<compile_context>
chip_gen: v6e
topology: v6e:2x2x1
jax: 0.10.0
libtpu: 0.0.40
codegen_flags: <defaults>
</compile_context>

<pallas_src>
import functools
import math

import jax
import jax.numpy as jnp
from jax import lax
from jax.experimental import pallas as pl
from jax.experimental.pallas import tpu as pltpu


_MASK_NEG = -1e30                       # finite masked-max / masked-softmax sentinel
_VMEM_LIMIT = 32 * 1024 * 1024          # <= 32 MiB (v7x-safe)


def _round_up(v, m):
    return (v + m - 1) // m * m


# ---------------------------------------------------------------------------
# Pallas kernel 1: whole MLP fused over row tiles (optionally + log_softmax epilogue).
#   x tile (tm, K0p) bf16 --[Linear+bias(+ReLU)] x L in VMEM--> (tm, NLp) f32
# ---------------------------------------------------------------------------
def _mlp_rows_kernel(x_ref, *refs, relus, softmax_cols):
    n_layers = len(relus)
    o_ref = refs[2 * n_layers]
    h = x_ref[...]                                    # bf16 (tm, K0p)
    for li in range(n_layers):
        w = refs[2 * li][...]                         # bf16 (Kp, Np), BN scale pre-folded
        b = refs[2 * li + 1][...]                     # f32  (1, Np),  BN shift pre-folded
        acc = jnp.dot(h, w, preferred_element_type=jnp.float32) + b
        if relus[li]:
            acc = jnp.maximum(acc, 0.0)
        h = acc.astype(jnp.bfloat16) if li + 1 < n_layers else acc
    if softmax_cols is not None:
        # Fused masked log_softmax over the valid lanes (padded lanes killed with -1e30).
        cols = lax.broadcasted_iota(jnp.int32, h.shape, 1)
        z = jnp.where(cols < softmax_cols, h, _MASK_NEG)
        m = jnp.max(z, axis=-1, keepdims=True)
        e = jnp.exp(z - m)
        s = jnp.sum(e, axis=-1, keepdims=True)
        h = z - m - jnp.log(s)
    o_ref[...] = h


def mlp_rows(x2d, layers, softmax_cols=None):
    """Apply a whole pre-padded MLP to a [R, K] row slab with ONE pallas_call."""
    R, K = x2d.shape
    K0p = layers[0]["Kp"]
    tm = min(512, _round_up(R, 8))                    # big tiles: mem-bound slabs want 512
    if _round_up(R, tm) // tm < 2 and R > 8:
        tm = _round_up((R + 1) // 2, 8)               # >=2 grid steps -> both v7x TCs busy
    Rp = _round_up(R, tm)
    xp = jnp.pad(x2d.astype(jnp.bfloat16), ((0, Rp - R), (0, K0p - K)))

    relus = tuple(l["relu"] for l in layers)
    NLp = layers[-1]["Np"]

    in_specs = [pl.BlockSpec((tm, K0p), lambda i: (i, 0))]
    operands = [xp]
    for l in layers:
        Kp, Np = l["W"].shape
        in_specs.append(pl.BlockSpec((Kp, Np), lambda i: (0, 0)))   # weight (grid-constant)
        in_specs.append(pl.BlockSpec((1, Np), lambda i: (0, 0)))    # bias   (grid-constant)
        operands += [l["W"], l["b"]]

    out = pl.pallas_call(
        functools.partial(_mlp_rows_kernel, relus=relus, softmax_cols=softmax_cols),
        out_shape=jax.ShapeDtypeStruct((Rp, NLp), jnp.float32),
        grid_spec=pltpu.PrefetchScalarGridSpec(
            num_scalar_prefetch=0,
            grid=(Rp // tm,),
            in_specs=in_specs,
            out_specs=pl.BlockSpec((tm, NLp), lambda i: (i, 0)),
        ),
        compiler_params=pltpu.CompilerParams(
            dimension_semantics=("parallel",),
            vmem_limit_bytes=_VMEM_LIMIT,
        ),
    )(*operands)
    return out[:R, : layers[-1]["cout"]]


# ---------------------------------------------------------------------------
# Pallas kernel 2: fused PointNetConv local_nn MLP + masked 'max' aggregation,
# batched over Gb groups per grid step.
#   Inputs per step: x (Np, Cxp) per graph, pos (Np, 8) per graph, centers (Gb, 8),
#   nbias (Gb, Np, 1).  rel = pos - center is built in-kernel; layer 1 uses split
#   weights: h1 = x@Wx (shared across the Gb groups) + rel@Wrel + b.  Remaining layers
#   run on the merged (Gb*Np, C) slab; a finite additive mask (-1e30) kills invalid /
#   padded neighbors; max over the neighbor axis yields one row per group.
# ---------------------------------------------------------------------------
def _sa_fused_kernel(x_ref, pos_ref, ctr_ref, nbias_ref, wx_ref, wrel_ref, b1_ref,
                     *refs, gb, npad, relus):
    o_ref = refs[-1]
    n_rest = (len(refs) - 1) // 2

    # Layer 1 with split weights: the x-part is shared by all Gb groups of this step.
    xw = jnp.dot(x_ref[...], wx_ref[...], preferred_element_type=jnp.float32)   # (Np, C1p)
    rel = pos_ref[...][None, :, :] - ctr_ref[...][:, None, :]                   # (Gb, Np, 8)
    rel2 = rel.reshape(gb * npad, 8).astype(jnp.bfloat16)
    relw = jnp.dot(rel2, wrel_ref[...], preferred_element_type=jnp.float32)     # (Gb*Np, C1p)
    h = relw.reshape(gb, npad, -1) + xw[None, :, :] + b1_ref[...][None, :, :]
    if relus[0]:
        h = jnp.maximum(h, 0.0)
    h = h.reshape(gb * npad, -1)                      # Np % 8 == 0 -> layout-free merge
    if n_rest:
        h = h.astype(jnp.bfloat16)

    for li in range(n_rest):
        w = refs[2 * li][...]
        b = refs[2 * li + 1][...]
        acc = jnp.dot(h, w, preferred_element_type=jnp.float32) + b
        if relus[1 + li]:
            acc = jnp.maximum(acc, 0.0)
        h = acc.astype(jnp.bfloat16) if li + 1 < n_rest else acc

    v = h.reshape(gb, npad, -1) + nbias_ref[...]      # (Gb, Np, 1): lane-only broadcast
    o_ref[...] = jnp.max(v, axis=1)                   # one lane-dense row per group


def _choose_group_tile(M, Np):
    """Pick (Gb, M_pad): Gb multiple of 8 (or == M when M < 8) with Gb*Np around 256-1024."""
    if M < 8:
        return M, M                                   # block extent == full array extent
    gb = _round_up(max(1, -(-256 // Np)), 8)          # aim for >=256 MXU rows per step
    gb = min(gb, _round_up(M, 8))
    while gb > 8 and gb * Np > 1024:                  # bound VMEM of the merged slab
        gb -= 8
    return gb, _round_up(M, gb)


def sa_fused(x, pos, centers, nbias, params):
    """x: [B, N, Cx], pos: [B, N, 3], centers: [B, M, 3],
    nbias: [B, M, N] (0 valid / -1e30 invalid)  ->  [B, M, Cout]."""
    B, N, Cx = x.shape
    M = centers.shape[1]
    first, rest = params["first"], params["rest"]
    Cxp, C1p = first["Cxp"], first["C1p"]
    Cout, Coutp = params["cout"], params["Coutp"]

    Np = _round_up(N, 8)
    Gb, Mp = _choose_group_tile(M, Np)

    xp = jnp.pad(x.astype(jnp.bfloat16), ((0, 0), (0, Np - N), (0, Cxp - Cx)))
    posp = jnp.pad(pos.astype(jnp.float32), ((0, 0), (0, Np - N), (0, 8 - 3)))
    ctrp = jnp.pad(centers.astype(jnp.float32), ((0, 0), (0, Mp - M), (0, 8 - 3)))
    nbp = jnp.pad(nbias, ((0, 0), (0, Mp - M), (0, Np - N)),
                  constant_values=_MASK_NEG)[..., None]

    relus = (first["relu"],) + tuple(l["relu"] for l in rest)

    in_specs = [
        pl.BlockSpec((None, Np, Cxp), lambda b, mb: (b, 0, 0)),      # x  (per graph)
        pl.BlockSpec((None, Np, 8), lambda b, mb: (b, 0, 0)),        # pos (per graph)
        pl.BlockSpec((None, Gb, 8), lambda b, mb: (b, mb, 0)),       # centers (per block)
        pl.BlockSpec((None, Gb, Np, 1), lambda b, mb: (b, mb, 0, 0)),  # neighbor mask
        pl.BlockSpec((Cxp, C1p), lambda b, mb: (0, 0)),              # Wx   (grid-constant)
        pl.BlockSpec((8, C1p), lambda b, mb: (0, 0)),                # Wrel (grid-constant)
        pl.BlockSpec((1, C1p), lambda b, mb: (0, 0)),                # b1   (grid-constant)
    ]
    operands = [xp, posp, ctrp, nbp, first["Wx"], first["Wrel"], first["b"]]
    for l in rest:
        in_specs.append(pl.BlockSpec((l["Kp"], l["Np"]), lambda b, mb: (0, 0)))
        in_specs.append(pl.BlockSpec((1, l["Np"]), lambda b, mb: (0, 0)))
        operands += [l["W"], l["b"]]

    out = pl.pallas_call(
        functools.partial(_sa_fused_kernel, gb=Gb, npad=Np, relus=relus),
        out_shape=jax.ShapeDtypeStruct((B, Mp, Coutp), jnp.float32),
        grid_spec=pltpu.PrefetchScalarGridSpec(
            num_scalar_prefetch=0,
            grid=(B, Mp // Gb),
            in_specs=in_specs,
            out_specs=pl.BlockSpec((None, Gb, Coutp), lambda b, mb: (b, mb, 0)),
        ),
        compiler_params=pltpu.CompilerParams(
            dimension_semantics=("parallel", "parallel"),
            vmem_limit_bytes=_VMEM_LIMIT,
        ),
    )(*operands)
    return out[:, :M, :Cout]


# ---------------------------------------------------------------------------
# Parameter construction (deterministic, synthetic). Pre-padded ONCE at init.
# ---------------------------------------------------------------------------
def _fold_bn_linear(key, cin, cout, last, use_norm):
    k1, k2, k3, k4 = jax.random.split(key, 4)
    W = jax.random.normal(k1, (cin, cout), jnp.float32) / jnp.sqrt(float(cin))
    b = 0.01 * jax.random.normal(k2, (cout,), jnp.float32)
    if use_norm and not last:                         # plain_last=True in PyG MLP
        gamma = 1.0 + 0.1 * jax.random.normal(k3, (cout,), jnp.float32)
        beta = 0.1 * jax.random.normal(k4, (cout,), jnp.float32)
        run_mean = jnp.zeros((cout,), jnp.float32)
        run_var = jnp.ones((cout,), jnp.float32)
        scale = gamma * lax.rsqrt(run_var + 1e-5)
        shift = beta - run_mean * scale
    else:
        scale = jnp.ones((cout,), jnp.float32)
        shift = jnp.zeros((cout,), jnp.float32)
    return W * scale[None, :], b * scale + shift       # fold eval BN into W / bias


def _pad_layer(W_eff, b_eff, relu):
    cin, cout = W_eff.shape
    Kp, Np = _round_up(cin, 128), _round_up(cout, 128)
    return {"W": jnp.pad(W_eff, ((0, Kp - cin), (0, Np - cout))).astype(jnp.bfloat16),
            "b": jnp.pad(b_eff, (0, Np - cout)).reshape(1, Np).astype(jnp.float32),
            "relu": relu, "Kp": Kp, "Np": Np, "cin": cin, "cout": cout}


def init_mlp(key, channels, use_norm=True):
    n = len(channels) - 1
    keys = jax.random.split(key, n)
    layers = []
    for li in range(n):
        last = li == n - 1
        W, b = _fold_bn_linear(keys[li], channels[li], channels[li + 1], last, use_norm)
        layers.append(_pad_layer(W, b, not last))
    return layers


def init_sa_mlp(key, cx, channels, use_norm=True):
    """SA local_nn MLP; channels[0] == cx + 3 (x features then relative position).
    The first layer is stored split: Wx (cx rows) and Wrel (3 rows, padded to 8)."""
    n = len(channels) - 1
    keys = jax.random.split(key, n)
    c1 = channels[1]
    W0, b0 = _fold_bn_linear(keys[0], channels[0], c1, n == 1, use_norm)
    Wx, Wrel = W0[:cx], W0[cx:cx + 3]
    Cxp, C1p = _round_up(cx, 128), _round_up(c1, 128)
    first = {
        "Wx": jnp.pad(Wx, ((0, Cxp - cx), (0, C1p - c1))).astype(jnp.bfloat16),
        "Wrel": jnp.pad(Wrel, ((0, 8 - 3), (0, C1p - c1))).astype(jnp.bfloat16),
        "b": jnp.pad(b0, (0, C1p - c1)).reshape(1, C1p).astype(jnp.float32),
        "relu": n > 1, "Cxp": Cxp, "C1p": C1p, "cx": cx,
    }
    rest = []
    for li in range(1, n):
        last = li == n - 1
        W, b = _fold_bn_linear(keys[li], channels[li], channels[li + 1], last, use_norm)
        rest.append(_pad_layer(W, b, not last))
    return {"first": first, "rest": rest,
            "cout": channels[-1], "Coutp": _round_up(channels[-1], 128)}


# ---------------------------------------------------------------------------
# Graph glue (data-dependent sampling / neighbor search) in plain JAX
# TODO(synk): at realistic point counts these O(N^2)/O(M*N) XLA materializations should
# become tiled Pallas kernels; at the toy sizes here they are negligible.
# ---------------------------------------------------------------------------
def fps_dense(pos, m):
    # Farthest point sampling over one graph; deterministic start at index 0.
    # TODO(synk): torch_cluster.fps uses a random start point by default.
    d2 = jnp.sum((pos[:, None, :] - pos[None, :, :]) ** 2, axis=-1)

    def body(i, state):
        idx, mind = state
        last = idx[i - 1]
        mind = jnp.minimum(mind, d2[last])
        nxt = jnp.argmax(mind).astype(jnp.int32)
        return idx.at[i].set(nxt), mind

    idx0 = jnp.zeros((m,), jnp.int32)
    idx, _ = lax.fori_loop(1, m, body, (idx0, d2[0]))
    return idx


def sa_module(x, pos, ratio, r, params):
    B, N, _ = x.shape
    M = int(math.ceil(ratio * N))
    idx = jax.vmap(lambda p: fps_dense(p, M))(pos)                    # [B, M]
    center_pos = jax.vmap(lambda p, i: p[i])(pos, idx)                # [B, M, 3]
    d2 = jnp.sum((pos[:, None, :, :] - center_pos[:, :, None, :]) ** 2, axis=-1)  # [B,M,N]
    # TODO(synk): torch_cluster `radius` caps neighbors at max_num_neighbors=64; at these
    # shapes the cap never binds, so it is not modeled.
    nbias = jnp.where(d2 <= r * r, 0.0, _MASK_NEG)                    # additive neighbor mask
    pooled = sa_fused(x, pos, center_pos, nbias, params)              # local_nn + 'max' aggr
    return pooled, center_pos


def global_sa(x, pos, params):
    B, M, _ = x.shape
    centers = jnp.zeros((B, 1, 3), jnp.float32)                       # rel = pos - 0 = pos
    nbias = jnp.zeros((B, 1, M), jnp.float32)                         # every point valid
    pooled = sa_fused(x, pos, centers, nbias, params)                 # [B, 1, 1024]
    return pooled[:, 0, :], jnp.zeros((B, 1, 3), jnp.float32)


def knn_interpolate_dense(x_c, pos_c, pos_f, k):
    d2 = jnp.sum((pos_f[:, :, None, :] - pos_c[:, None, :, :]) ** 2, axis=-1)  # [B,Mf,Mc]
    neg_d2, idx = lax.top_k(-d2, k)                                   # [B, Mf, k]
    w = 1.0 / jnp.maximum(-neg_d2, 1e-16)
    xg = jax.vmap(lambda xc, ii: xc[ii])(x_c, idx)                    # [B, Mf, k, C]
    num = jnp.sum(w[..., None] * xg, axis=2)
    den = jnp.sum(w, axis=2, keepdims=True)
    return num / den


def fp_module(x, pos, x_skip, pos_skip, k, layers):
    xi = knn_interpolate_dense(x, pos, pos_skip, k)
    if x_skip is not None:
        xi = jnp.concatenate([xi, x_skip], axis=-1)
    B, Mf, C = xi.shape
    out = mlp_rows(xi.reshape(B * Mf, C), layers)
    return out.reshape(B, Mf, -1)


# ---------------------------------------------------------------------------
# Full Net.forward
# ---------------------------------------------------------------------------
def net_forward(x0, pos0, params):
    x1, pos1 = sa_module(x0, pos0, 0.2, 0.2, params["sa1"])           # SAModule(0.2, 0.2)
    x2, pos2 = sa_module(x1, pos1, 0.25, 0.4, params["sa2"])          # SAModule(0.25, 0.4)
    x3, pos3 = global_sa(x2, pos2, params["sa3"])                     # GlobalSAModule
    f3 = fp_module(x3[:, None, :], pos3, x2, pos2, 1, params["fp3"])  # FPModule(k=1)
    f2 = fp_module(f3, pos2, x1, pos1, 3, params["fp2"])              # FPModule(k=3)
    f1 = fp_module(f2, pos1, x0, pos0, 3, params["fp1"])              # FPModule(k=3)
    B, N, _ = f1.shape
    # head MLP (no BN, dropout=identity in eval) with the log_softmax fused in-kernel
    return mlp_rows(f1.reshape(B * N, -1), params["head"],
                    softmax_cols=params["num_classes"])               # [B*N, num_classes]


if __name__ == "__main__":
    B, N, NUM_CLASSES = 2, 64, 6
    key = jax.random.PRNGKey(0)
    kx, kp, kparams = jax.random.split(key, 3)
    x = jax.random.normal(kx, (B, N, 3), jnp.float32)      # data.x  (e.g. point normals)
    pos = jax.random.uniform(kp, (B, N, 3), jnp.float32)   # data.pos (coordinates)

    ks = jax.random.split(kparams, 7)
    params = {
        "sa1": init_sa_mlp(ks[0], 3, [3 + 3, 64, 64, 128]),
        "sa2": init_sa_mlp(ks[1], 128, [128 + 3, 128, 128, 256]),
        "sa3": init_sa_mlp(ks[2], 256, [256 + 3, 256, 512, 1024]),
        "fp3": init_mlp(ks[3], [1024 + 256, 256, 256]),
        "fp2": init_mlp(ks[4], [256 + 128, 256, 128]),
        "fp1": init_mlp(ks[5], [128 + 3, 128, 128, 128]),
        "head": init_mlp(ks[6], [128, 128, 128, NUM_CLASSES], use_norm=False),
        "num_classes": NUM_CLASSES,
    }

    fwd = jax.jit(lambda xx, pp: net_forward(xx, pp, params))
    out = jax.block_until_ready(fwd(x, pos))
    assert out.shape == (B * N, NUM_CLASSES), out.shape
    assert bool(jnp.all(jnp.isfinite(out)))
    print("KERNEL_OK")
</pallas_src>

<mosaic_0001>
module attributes {stable_mosaic.version = 11 : i64} {
  func.func @_sa_fused_kernel(%arg0: i32, %arg1: i32, %arg2: memref<1x64x128xbf16, #tpu.memory_space<vmem>>, %arg3: memref<1x64x8xf32, #tpu.memory_space<vmem>>, %arg4: memref<1x8x8xf32, #tpu.memory_space<vmem>>, %arg5: memref<1x8x64x1xf32, #tpu.memory_space<vmem>>, %arg6: memref<128x128xbf16, #tpu.memory_space<vmem>>, %arg7: memref<8x128xbf16, #tpu.memory_space<vmem>>, %arg8: memref<1x128xf32, #tpu.memory_space<vmem>>, %arg9: memref<128x128xbf16, #tpu.memory_space<vmem>>, %arg10: memref<1x128xf32, #tpu.memory_space<vmem>>, %arg11: memref<128x128xbf16, #tpu.memory_space<vmem>>, %arg12: memref<1x128xf32, #tpu.memory_space<vmem>>, %arg13: memref<1x8x128xf32, #tpu.memory_space<vmem>>) attributes {dimension_semantics = [#tpu.dimension_semantics<parallel>, #tpu.dimension_semantics<parallel>], iteration_bounds = array<i64: 2, 2>, scalar_prefetch = 0 : i64, scratch_operands = 0 : i64, tpu.core_type = #tpu.core_type<tc>, window_params = [{transform_indices = @transform_0, window_bounds = array<i64: 1, 64, 128>}, {transform_indices = @transform_1, window_bounds = array<i64: 1, 64, 8>}, {transform_indices = @transform_2, window_bounds = array<i64: 1, 8, 8>}, {transform_indices = @transform_3, window_bounds = array<i64: 1, 8, 64, 1>}, {pipeline_mode = #tpu.pipeline_mode<synchronous>, transform_indices = @transform_4, window_bounds = array<i64: 128, 128>}, {pipeline_mode = #tpu.pipeline_mode<synchronous>, transform_indices = @transform_5, window_bounds = array<i64: 8, 128>}, {pipeline_mode = #tpu.pipeline_mode<synchronous>, transform_indices = @transform_6, window_bounds = array<i64: 1, 128>}, {pipeline_mode = #tpu.pipeline_mode<synchronous>, transform_indices = @transform_7, window_bounds = array<i64: 128, 128>}, {pipeline_mode = #tpu.pipeline_mode<synchronous>, transform_indices = @transform_8, window_bounds = array<i64: 1, 128>}, {pipeline_mode = #tpu.pipeline_mode<synchronous>, transform_indices = @transform_9, window_bounds = array<i64: 128, 128>}, {pipeline_mode = #tpu.pipeline_mode<synchronous>, transform_indices = @transform_10, window_bounds = array<i64: 1, 128>}, {transform_indices = @transform_11, window_bounds = array<i64: 1, 8, 128>}]} {
    %c0 = arith.constant 0 : index
    %c0_0 = arith.constant 0 : index
    %c0_1 = arith.constant 0 : index
    %0 = vector.load %arg2[%c0, %c0_0, %c0_1] : memref<1x64x128xbf16, #tpu.memory_space<vmem>>, vector<1x64x128xbf16>
    %1 = vector.shape_cast %0 : vector<1x64x128xbf16> to vector<64x128xbf16>
    %c0_2 = arith.constant 0 : index
    %c0_3 = arith.constant 0 : index
    %2 = vector.load %arg6[%c0_2, %c0_3] : memref<128x128xbf16, #tpu.memory_space<vmem>>, vector<128x128xbf16>
    %cst = arith.constant dense<0.000000e+00> : vector<64x128xf32>
    %3 = tpu.matmul %1, %2, %cst {dimension_numbers = #tpu.dot_dimension_numbers<[1], [0], [0], [1], [0, 0, 1, 1], [], []>} : vector<64x128xbf16>, vector<128x128xbf16>, vector<64x128xf32> -> vector<64x128xf32>
    %c0_4 = arith.constant 0 : index
    %c0_5 = arith.constant 0 : index
    %c0_6 = arith.constant 0 : index
    %4 = vector.load %arg3[%c0_4, %c0_5, %c0_6] : memref<1x64x8xf32, #tpu.memory_space<vmem>>, vector<1x64x8xf32>
    %5 = vector.shape_cast %4 : vector<1x64x8xf32> to vector<64x8xf32>
    %6 = vector.shape_cast %5 : vector<64x8xf32> to vector<1x64x8xf32>
    %c0_7 = arith.constant 0 : index
    %c0_8 = arith.constant 0 : index
    %c0_9 = arith.constant 0 : index
    %7 = vector.load %arg4[%c0_7, %c0_8, %c0_9] : memref<1x8x8xf32, #tpu.memory_space<vmem>>, vector<1x8x8xf32>
    %8 = vector.shape_cast %7 : vector<1x8x8xf32> to vector<8x8xf32>
    %9 = vector.shape_cast %8 : vector<8x8xf32> to vector<8x1x8xf32>
    %10 = vector.broadcast %6 : vector<1x64x8xf32> to vector<8x64x8xf32>
    %11 = vector.broadcast %9 : vector<8x1x8xf32> to vector<8x64x8xf32>
    %12 = arith.subf %10, %11 : vector<8x64x8xf32>
    %13 = vector.shape_cast %12 : vector<8x64x8xf32> to vector<512x8xf32>
    %14 = arith.truncf %13 : vector<512x8xf32> to vector<512x8xbf16>
    %c0_10 = arith.constant 0 : index
    %c0_11 = arith.constant 0 : index
    %15 = vector.load %arg7[%c0_10, %c0_11] : memref<8x128xbf16, #tpu.memory_space<vmem>>, vector<8x128xbf16>
    %cst_12 = arith.constant dense<0.000000e+00> : vector<512x128xf32>
    %16 = tpu.matmul %14, %15, %cst_12 {dimension_numbers = #tpu.dot_dimension_numbers<[1], [0], [0], [1], [0, 0, 1, 1], [], []>} : vector<512x8xbf16>, vector<8x128xbf16>, vector<512x128xf32> -> vector<512x128xf32>
    %17 = vector.shape_cast %16 : vector<512x128xf32> to vector<8x64x128xf32>
    %18 = vector.shape_cast %3 : vector<64x128xf32> to vector<1x64x128xf32>
    %19 = vector.broadcast %18 : vector<1x64x128xf32> to vector<8x64x128xf32>
    %20 = arith.addf %17, %19 : vector<8x64x128xf32>
    %c0_13 = arith.constant 0 : index
    %c0_14 = arith.constant 0 : index
    %21 = vector.load %arg8[%c0_13, %c0_14] : memref<1x128xf32, #tpu.memory_space<vmem>>, vector<1x128xf32>
    %22 = vector.shape_cast %21 : vector<1x128xf32> to vector<1x1x128xf32>
    %23 = vector.broadcast %22 : vector<1x1x128xf32> to vector<8x64x128xf32>
    %24 = arith.addf %20, %23 : vector<8x64x128xf32>
    %cst_15 = arith.constant 0.000000e+00 : f32
    %25 = vector.broadcast %cst_15 : f32 to vector<8x64x128xf32>
    %26 = arith.maximumf %24, %25 : vector<8x64x128xf32>
    %27 = vector.shape_cast %26 : vector<8x64x128xf32> to vector<512x128xf32>
    %28 = arith.truncf %27 : vector<512x128xf32> to vector<512x128xbf16>
    %c0_16 = arith.constant 0 : index
    %c0_17 = arith.constant 0 : index
    %29 = vector.load %arg9[%c0_16, %c0_17] : memref<128x128xbf16, #tpu.memory_space<vmem>>, vector<128x128xbf16>
    %c0_18 = arith.constant 0 : index
    %c0_19 = arith.constant 0 : index
    %30 = vector.load %arg10[%c0_18, %c0_19] : memref<1x128xf32, #tpu.memory_space<vmem>>, vector<1x128xf32>
    %cst_20 = arith.constant dense<0.000000e+00> : vector<512x128xf32>
    %31 = tpu.matmul %28, %29, %cst_20 {dimension_numbers = #tpu.dot_dimension_numbers<[1], [0], [0], [1], [0, 0, 1, 1], [], []>} : vector<512x128xbf16>, vector<128x128xbf16>, vector<512x128xf32> -> vector<512x128xf32>
    %32 = vector.broadcast %30 : vector<1x128xf32> to vector<512x128xf32>
    %33 = arith.addf %31, %32 : vector<512x128xf32>
    %cst_21 = arith.constant 0.000000e+00 : f32
    %34 = vector.broadcast %cst_21 : f32 to vector<512x128xf32>
    %35 = arith.maximumf %33, %34 : vector<512x128xf32>
    %36 = arith.truncf %35 : vector<512x128xf32> to vector<512x128xbf16>
    %c0_22 = arith.constant 0 : index
    %c0_23 = arith.constant 0 : index
    %37 = vector.load %arg11[%c0_22, %c0_23] : memref<128x128xbf16, #tpu.memory_space<vmem>>, vector<128x128xbf16>
    %c0_24 = arith.constant 0 : index
    %c0_25 = arith.constant 0 : index
    %38 = vector.load %arg12[%c0_24, %c0_25] : memref<1x128xf32, #tpu.memory_space<vmem>>, vector<1x128xf32>
    %cst_26 = arith.constant dense<0.000000e+00> : vector<512x128xf32>
    %39 = tpu.matmul %36, %37, %cst_26 {dimension_numbers = #tpu.dot_dimension_numbers<[1], [0], [0], [1], [0, 0, 1, 1], [], []>} : vector<512x128xbf16>, vector<128x128xbf16>, vector<512x128xf32> -> vector<512x128xf32>
    %40 = vector.broadcast %38 : vector<1x128xf32> to vector<512x128xf32>
    %41 = arith.addf %39, %40 : vector<512x128xf32>
    %42 = vector.shape_cast %41 : vector<512x128xf32> to vector<8x64x128xf32>
    %c0_27 = arith.constant 0 : index
    %c0_28 = arith.constant 0 : index
    %c0_29 = arith.constant 0 : index
    %c0_30 = arith.constant 0 : index
    %43 = vector.load %arg5[%c0_27, %c0_28, %c0_29, %c0_30] : memref<1x8x64x1xf32, #tpu.memory_space<vmem>>, vector<1x8x64x1xf32>
    %44 = vector.shape_cast %43 : vector<1x8x64x1xf32> to vector<8x64x1xf32>
    %45 = vector.broadcast %44 : vector<8x64x1xf32> to vector<8x64x128xf32>
    %46 = arith.addf %42, %45 : vector<8x64x128xf32>
    %cst_31 = arith.constant dense<0xFF800000> : vector<8x128xf32>
    %47 = vector.multi_reduction <maximumf>, %46, %cst_31 [1] : vector<8x64x128xf32> to vector<8x128xf32>
    %c0_32 = arith.constant 0 : index
    %c0_33 = arith.constant 0 : index
    %c0_34 = arith.constant 0 : index
    %48 = vector.load %arg13[%c0_32, %c0_33, %c0_34] : memref<1x8x128xf32, #tpu.memory_space<vmem>>, vector<1x8x128xf32>
    %49 = vector.shape_cast %48 : vector<1x8x128xf32> to vector<8x128xf32>
    %50 = vector.shape_cast %47 : vector<8x128xf32> to vector<1x8x128xf32>
    tpu.vector_store %arg13[%c0_32, %c0_33, %c0_34], %50 {strides = array<i32>} : memref<1x8x128xf32, #tpu.memory_space<vmem>>, vector<1x8x128xf32>,
    return
  }
  func.func @transform_0(%arg0: i32, %arg1: i32) -> (i32, i32, i32) {
    %c0_i32 = arith.constant 0 : i32
    %c0_i32_0 = arith.constant 0 : i32
    %c0_i32_1 = arith.constant 0 : i32
    return %arg0, %c0_i32, %c0_i32_0 : i32, i32, i32
  }
  func.func @transform_1(%arg0: i32, %arg1: i32) -> (i32, i32, i32) {
    %c0_i32 = arith.constant 0 : i32
    %c0_i32_0 = arith.constant 0 : i32
    %c0_i32_1 = arith.constant 0 : i32
    return %arg0, %c0_i32, %c0_i32_0 : i32, i32, i32
  }
  func.func @transform_2(%arg0: i32, %arg1: i32) -> (i32, i32, i32) {
    %c0_i32 = arith.constant 0 : i32
    %c0_i32_0 = arith.constant 0 : i32
    return %arg0, %arg1, %c0_i32 : i32, i32, i32
  }
  func.func @transform_3(%arg0: i32, %arg1: i32) -> (i32, i32, i32, i32) {
    %c0_i32 = arith.constant 0 : i32
    %c0_i32_0 = arith.constant 0 : i32
    %c0_i32_1 = arith.constant 0 : i32
    return %arg0, %arg1, %c0_i32, %c0_i32_0 : i32, i32, i32, i32
  }
  func.func @transform_4(%arg0: i32, %arg1: i32) -> (i32, i32) {
    %c0_i32 = arith.constant 0 : i32
    %c0_i32_0 = arith.constant 0 : i32
    %c0_i32_1 = arith.constant 0 : i32
    return %c0_i32, %c0_i32_0 : i32, i32
  }
  func.func @transform_5(%arg0: i32, %arg1: i32) -> (i32, i32) {
    %c0_i32 = arith.constant 0 : i32
    %c0_i32_0 = arith.constant 0 : i32
    %c0_i32_1 = arith.constant 0 : i32
    return %c0_i32, %c0_i32_0 : i32, i32
  }
  func.func @transform_6(%arg0: i32, %arg1: i32) -> (i32, i32) {
    %c0_i32 = arith.constant 0 : i32
    %c0_i32_0 = arith.constant 0 : i32
    %c0_i32_1 = arith.constant 0 : i32
    return %c0_i32, %c0_i32_0 : i32, i32
  }
  func.func @transform_7(%arg0: i32, %arg1: i32) -> (i32, i32) {
    %c0_i32 = arith.constant 0 : i32
    %c0_i32_0 = arith.constant 0 : i32
    %c0_i32_1 = arith.constant 0 : i32
    return %c0_i32, %c0_i32_0 : i32, i32
  }
  func.func @transform_8(%arg0: i32, %arg1: i32) -> (i32, i32) {
    %c0_i32 = arith.constant 0 : i32
    %c0_i32_0 = arith.constant 0 : i32
    %c0_i32_1 = arith.constant 0 : i32
    return %c0_i32, %c0_i32_0 : i32, i32
  }
  func.func @transform_9(%arg0: i32, %arg1: i32) -> (i32, i32) {
    %c0_i32 = arith.constant 0 : i32
    %c0_i32_0 = arith.constant 0 : i32
    %c0_i32_1 = arith.constant 0 : i32
    return %c0_i32, %c0_i32_0 : i32, i32
  }
  func.func @transform_10(%arg0: i32, %arg1: i32) -> (i32, i32) {
    %c0_i32 = arith.constant 0 : i32
    %c0_i32_0 = arith.constant 0 : i32
    %c0_i32_1 = arith.constant 0 : i32
    return %c0_i32, %c0_i32_0 : i32, i32
  }
  func.func @transform_11(%arg0: i32, %arg1: i32) -> (i32, i32, i32) {
    %c0_i32 = arith.constant 0 : i32
    %c0_i32_0 = arith.constant 0 : i32
    return %arg0, %arg1, %c0_i32 : i32, i32, i32
  }
}

module attributes {stable_mosaic.version = 11 : i64} {
  func.func @_sa_fused_kernel(%arg0: i32, %arg1: i32, %arg2: memref<1x16x128xbf16, #tpu.memory_space<vmem>>, %arg3: memref<1x16x8xf32, #tpu.memory_space<vmem>>, %arg4: memref<1x4x8xf32, #tpu.memory_space<vmem>>, %arg5: memref<1x4x16x1xf32, #tpu.memory_space<vmem>>, %arg6: memref<128x128xbf16, #tpu.memory_space<vmem>>, %arg7: memref<8x128xbf16, #tpu.memory_space<vmem>>, %arg8: memref<1x128xf32, #tpu.memory_space<vmem>>, %arg9: memref<128x128xbf16, #tpu.memory_space<vmem>>, %arg10: memref<1x128xf32, #tpu.memory_space<vmem>>, %arg11: memref<128x256xbf16, #tpu.memory_space<vmem>>, %arg12: memref<1x256xf32, #tpu.memory_space<vmem>>, %arg13: memref<1x4x256xf32, #tpu.memory_space<vmem>>) attributes {dimension_semantics = [#tpu.dimension_semantics<parallel>, #tpu.dimension_semantics<parallel>], iteration_bounds = array<i64: 2, 1>, scalar_prefetch = 0 : i64, scratch_operands = 0 : i64, tpu.core_type = #tpu.core_type<tc>, window_params = [{transform_indices = @transform_0, window_bounds = array<i64: 1, 16, 128>}, {transform_indices = @transform_1, window_bounds = array<i64: 1, 16, 8>}, {transform_indices = @transform_2, window_bounds = array<i64: 1, 4, 8>}, {transform_indices = @transform_3, window_bounds = array<i64: 1, 4, 16, 1>}, {pipeline_mode = #tpu.pipeline_mode<synchronous>, transform_indices = @transform_4, window_bounds = array<i64: 128, 128>}, {pipeline_mode = #tpu.pipeline_mode<synchronous>, transform_indices = @transform_5, window_bounds = array<i64: 8, 128>}, {pipeline_mode = #tpu.pipeline_mode<synchronous>, transform_indices = @transform_6, window_bounds = array<i64: 1, 128>}, {pipeline_mode = #tpu.pipeline_mode<synchronous>, transform_indices = @transform_7, window_bounds = array<i64: 128, 128>}, {pipeline_mode = #tpu.pipeline_mode<synchronous>, transform_indices = @transform_8, window_bounds = array<i64: 1, 128>}, {pipeline_mode = #tpu.pipeline_mode<synchronous>, transform_indices = @transform_9, window_bounds = array<i64: 128, 256>}, {pipeline_mode = #tpu.pipeline_mode<synchronous>, transform_indices = @transform_10, window_bounds = array<i64: 1, 256>}, {transform_indices = @transform_11, window_bounds = array<i64: 1, 4, 256>}]} {
    %c0 = arith.constant 0 : index
    %c0_0 = arith.constant 0 : index
    %c0_1 = arith.constant 0 : index
    %0 = vector.load %arg2[%c0, %c0_0, %c0_1] : memref<1x16x128xbf16, #tpu.memory_space<vmem>>, vector<1x16x128xbf16>
    %1 = vector.shape_cast %0 : vector<1x16x128xbf16> to vector<16x128xbf16>
    %c0_2 = arith.constant 0 : index
    %c0_3 = arith.constant 0 : index
    %2 = vector.load %arg6[%c0_2, %c0_3] : memref<128x128xbf16, #tpu.memory_space<vmem>>, vector<128x128xbf16>
    %cst = arith.constant dense<0.000000e+00> : vector<16x128xf32>
    %3 = tpu.matmul %1, %2, %cst {dimension_numbers = #tpu.dot_dimension_numbers<[1], [0], [0], [1], [0, 0, 1, 1], [], []>} : vector<16x128xbf16>, vector<128x128xbf16>, vector<16x128xf32> -> vector<16x128xf32>
    %c0_4 = arith.constant 0 : index
    %c0_5 = arith.constant 0 : index
    %c0_6 = arith.constant 0 : index
    %4 = vector.load %arg3[%c0_4, %c0_5, %c0_6] : memref<1x16x8xf32, #tpu.memory_space<vmem>>, vector<1x16x8xf32>
    %5 = vector.shape_cast %4 : vector<1x16x8xf32> to vector<16x8xf32>
    %6 = vector.shape_cast %5 : vector<16x8xf32> to vector<1x16x8xf32>
    %c0_7 = arith.constant 0 : index
    %c0_8 = arith.constant 0 : index
    %c0_9 = arith.constant 0 : index
    %7 = vector.load %arg4[%c0_7, %c0_8, %c0_9] : memref<1x4x8xf32, #tpu.memory_space<vmem>>, vector<1x4x8xf32>
    %8 = vector.shape_cast %7 : vector<1x4x8xf32> to vector<4x8xf32>
    %9 = vector.shape_cast %8 : vector<4x8xf32> to vector<4x1x8xf32>
    %10 = vector.broadcast %6 : vector<1x16x8xf32> to vector<4x16x8xf32>
    %11 = vector.broadcast %9 : vector<4x1x8xf32> to vector<4x16x8xf32>
    %12 = arith.subf %10, %11 : vector<4x16x8xf32>
    %13 = vector.shape_cast %12 : vector<4x16x8xf32> to vector<64x8xf32>
    %14 = arith.truncf %13 : vector<64x8xf32> to vector<64x8xbf16>
    %c0_10 = arith.constant 0 : index
    %c0_11 = arith.constant 0 : index
    %15 = vector.load %arg7[%c0_10, %c0_11] : memref<8x128xbf16, #tpu.memory_space<vmem>>, vector<8x128xbf16>
    %cst_12 = arith.constant dense<0.000000e+00> : vector<64x128xf32>
    %16 = tpu.matmul %14, %15, %cst_12 {dimension_numbers = #tpu.dot_dimension_numbers<[1], [0], [0], [1], [0, 0, 1, 1], [], []>} : vector<64x8xbf16>, vector<8x128xbf16>, vector<64x128xf32> -> vector<64x128xf32>
    %17 = vector.shape_cast %16 : vector<64x128xf32> to vector<4x16x128xf32>
    %18 = vector.shape_cast %3 : vector<16x128xf32> to vector<1x16x128xf32>
    %19 = vector.broadcast %18 : vector<1x16x128xf32> to vector<4x16x128xf32>
    %20 = arith.addf %17, %19 : vector<4x16x128xf32>
    %c0_13 = arith.constant 0 : index
    %c0_14 = arith.constant 0 : index
    %21 = vector.load %arg8[%c0_13, %c0_14] : memref<1x128xf32, #tpu.memory_space<vmem>>, vector<1x128xf32>
    %22 = vector.shape_cast %21 : vector<1x128xf32> to vector<1x1x128xf32>
    %23 = vector.broadcast %22 : vector<1x1x128xf32> to vector<4x16x128xf32>
    %24 = arith.addf %20, %23 : vector<4x16x128xf32>
    %cst_15 = arith.constant 0.000000e+00 : f32
    %25 = vector.broadcast %cst_15 : f32 to vector<4x16x128xf32>
    %26 = arith.maximumf %24, %25 : vector<4x16x128xf32>
    %27 = vector.shape_cast %26 : vector<4x16x128xf32> to vector<64x128xf32>
    %28 = arith.truncf %27 : vector<64x128xf32> to vector<64x128xbf16>
    %c0_16 = arith.constant 0 : index
    %c0_17 = arith.constant 0 : index
    %29 = vector.load %arg9[%c0_16, %c0_17] : memref<128x128xbf16, #tpu.memory_space<vmem>>, vector<128x128xbf16>
    %c0_18 = arith.constant 0 : index
    %c0_19 = arith.constant 0 : index
    %30 = vector.load %arg10[%c0_18, %c0_19] : memref<1x128xf32, #tpu.memory_space<vmem>>, vector<1x128xf32>
    %cst_20 = arith.constant dense<0.000000e+00> : vector<64x128xf32>
    %31 = tpu.matmul %28, %29, %cst_20 {dimension_numbers = #tpu.dot_dimension_numbers<[1], [0], [0], [1], [0, 0, 1, 1], [], []>} : vector<64x128xbf16>, vector<128x128xbf16>, vector<64x128xf32> -> vector<64x128xf32>
    %32 = vector.broadcast %30 : vector<1x128xf32> to vector<64x128xf32>
    %33 = arith.addf %31, %32 : vector<64x128xf32>
    %cst_21 = arith.constant 0.000000e+00 : f32
    %34 = vector.broadcast %cst_21 : f32 to vector<64x128xf32>
    %35 = arith.maximumf %33, %34 : vector<64x128xf32>
    %36 = arith.truncf %35 : vector<64x128xf32> to vector<64x128xbf16>
    %c0_22 = arith.constant 0 : index
    %c0_23 = arith.constant 0 : index
    %37 = vector.load %arg11[%c0_22, %c0_23] : memref<128x256xbf16, #tpu.memory_space<vmem>>, vector<128x256xbf16>
    %c0_24 = arith.constant 0 : index
    %c0_25 = arith.constant 0 : index
    %38 = vector.load %arg12[%c0_24, %c0_25] : memref<1x256xf32, #tpu.memory_space<vmem>>, vector<1x256xf32>
    %cst_26 = arith.constant dense<0.000000e+00> : vector<64x256xf32>
    %39 = tpu.matmul %36, %37, %cst_26 {dimension_numbers = #tpu.dot_dimension_numbers<[1], [0], [0], [1], [0, 0, 1, 1], [], []>} : vector<64x128xbf16>, vector<128x256xbf16>, vector<64x256xf32> -> vector<64x256xf32>
    %40 = vector.broadcast %38 : vector<1x256xf32> to vector<64x256xf32>
    %41 = arith.addf %39, %40 : vector<64x256xf32>
    %42 = vector.shape_cast %41 : vector<64x256xf32> to vector<4x16x256xf32>
    %c0_27 = arith.constant 0 : index
    %c0_28 = arith.constant 0 : index
    %c0_29 = arith.constant 0 : index
    %c0_30 = arith.constant 0 : index
    %43 = vector.load %arg5[%c0_27, %c0_28, %c0_29, %c0_30] : memref<1x4x16x1xf32, #tpu.memory_space<vmem>>, vector<1x4x16x1xf32>
    %44 = vector.shape_cast %43 : vector<1x4x16x1xf32> to vector<4x16x1xf32>
    %45 = vector.broadcast %44 : vector<4x16x1xf32> to vector<4x16x256xf32>
    %46 = arith.addf %42, %45 : vector<4x16x256xf32>
    %cst_31 = arith.constant dense<0xFF800000> : vector<4x256xf32>
    %47 = vector.multi_reduction <maximumf>, %46, %cst_31 [1] : vector<4x16x256xf32> to vector<4x256xf32>
    %c0_32 = arith.constant 0 : index
    %c0_33 = arith.constant 0 : index
    %c0_34 = arith.constant 0 : index
    %48 = vector.load %arg13[%c0_32, %c0_33, %c0_34] : memref<1x4x256xf32, #tpu.memory_space<vmem>>, vector<1x4x256xf32>
    %49 = vector.shape_cast %48 : vector<1x4x256xf32> to vector<4x256xf32>
    %50 = vector.shape_cast %47 : vector<4x256xf32> to vector<1x4x256xf32>
    tpu.vector_store %arg13[%c0_32, %c0_33, %c0_34], %50 {strides = array<i32>} : memref<1x4x256xf32, #tpu.memory_space<vmem>>, vector<1x4x256xf32>,
    return
  }
  func.func @transform_0(%arg0: i32, %arg1: i32) -> (i32, i32, i32) {
    %c0_i32 = arith.constant 0 : i32
    %c0_i32_0 = arith.constant 0 : i32
    %c0_i32_1 = arith.constant 0 : i32
    return %arg0, %c0_i32, %c0_i32_0 : i32, i32, i32
  }
  func.func @transform_1(%arg0: i32, %arg1: i32) -> (i32, i32, i32) {
    %c0_i32 = arith.constant 0 : i32
    %c0_i32_0 = arith.constant 0 : i32
    %c0_i32_1 = arith.constant 0 : i32
    return %arg0, %c0_i32, %c0_i32_0 : i32, i32, i32
  }
  func.func @transform_2(%arg0: i32, %arg1: i32) -> (i32, i32, i32) {
    %c0_i32 = arith.constant 0 : i32
    %c0_i32_0 = arith.constant 0 : i32
    return %arg0, %arg1, %c0_i32 : i32, i32, i32
  }
  func.func @transform_3(%arg0: i32, %arg1: i32) -> (i32, i32, i32, i32) {
    %c0_i32 = arith.constant 0 : i32
    %c0_i32_0 = arith.constant 0 : i32
    %c0_i32_1 = arith.constant 0 : i32
    return %arg0, %arg1, %c0_i32, %c0_i32_0 : i32, i32, i32, i32
  }
  func.func @transform_4(%arg0: i32, %arg1: i32) -> (i32, i32) {
    %c0_i32 = arith.constant 0 : i32
    %c0_i32_0 = arith.constant 0 : i32
    %c0_i32_1 = arith.constant 0 : i32
    return %c0_i32, %c0_i32_0 : i32, i32
  }
  func.func @transform_5(%arg0: i32, %arg1: i32) -> (i32, i32) {
    %c0_i32 = arith.constant 0 : i32
    %c0_i32_0 = arith.constant 0 : i32
    %c0_i32_1 = arith.constant 0 : i32
    return %c0_i32, %c0_i32_0 : i32, i32
  }
  func.func @transform_6(%arg0: i32, %arg1: i32) -> (i32, i32) {
    %c0_i32 = arith.constant 0 : i32
    %c0_i32_0 = arith.constant 0 : i32
    %c0_i32_1 = arith.constant 0 : i32
    return %c0_i32, %c0_i32_0 : i32, i32
  }
  func.func @transform_7(%arg0: i32, %arg1: i32) -> (i32, i32) {
    %c0_i32 = arith.constant 0 : i32
    %c0_i32_0 = arith.constant 0 : i32
    %c0_i32_1 = arith.constant 0 : i32
    return %c0_i32, %c0_i32_0 : i32, i32
  }
  func.func @transform_8(%arg0: i32, %arg1: i32) -> (i32, i32) {
    %c0_i32 = arith.constant 0 : i32
    %c0_i32_0 = arith.constant 0 : i32
    %c0_i32_1 = arith.constant 0 : i32
    return %c0_i32, %c0_i32_0 : i32, i32
  }
  func.func @transform_9(%arg0: i32, %arg1: i32) -> (i32, i32) {
    %c0_i32 = arith.constant 0 : i32
    %c0_i32_0 = arith.constant 0 : i32
    %c0_i32_1 = arith.constant 0 : i32
    return %c0_i32, %c0_i32_0 : i32, i32
  }
  func.func @transform_10(%arg0: i32, %arg1: i32) -> (i32, i32) {
    %c0_i32 = arith.constant 0 : i32
    %c0_i32_0 = arith.constant 0 : i32
    %c0_i32_1 = arith.constant 0 : i32
    return %c0_i32, %c0_i32_0 : i32, i32
  }
  func.func @transform_11(%arg0: i32, %arg1: i32) -> (i32, i32, i32) {
    %c0_i32 = arith.constant 0 : i32
    %c0_i32_0 = arith.constant 0 : i32
    return %arg0, %arg1, %c0_i32 : i32, i32, i32
  }
}

module attributes {stable_mosaic.version = 11 : i64} {
  func.func @_sa_fused_kernel(%arg0: i32, %arg1: i32, %arg2: memref<1x8x256xbf16, #tpu.memory_space<vmem>>, %arg3: memref<1x8x8xf32, #tpu.memory_space<vmem>>, %arg4: memref<1x1x8xf32, #tpu.memory_space<vmem>>, %arg5: memref<1x1x8x1xf32, #tpu.memory_space<vmem>>, %arg6: memref<256x256xbf16, #tpu.memory_space<vmem>>, %arg7: memref<8x256xbf16, #tpu.memory_space<vmem>>, %arg8: memref<1x256xf32, #tpu.memory_space<vmem>>, %arg9: memref<256x512xbf16, #tpu.memory_space<vmem>>, %arg10: memref<1x512xf32, #tpu.memory_space<vmem>>, %arg11: memref<512x1024xbf16, #tpu.memory_space<vmem>>, %arg12: memref<1x1024xf32, #tpu.memory_space<vmem>>, %arg13: memref<1x1x1024xf32, #tpu.memory_space<vmem>>) attributes {dimension_semantics = [#tpu.dimension_semantics<parallel>, #tpu.dimension_semantics<parallel>], iteration_bounds = array<i64: 2, 1>, scalar_prefetch = 0 : i64, scratch_operands = 0 : i64, tpu.core_type = #tpu.core_type<tc>, window_params = [{transform_indices = @transform_0, window_bounds = array<i64: 1, 8, 256>}, {transform_indices = @transform_1, window_bounds = array<i64: 1, 8, 8>}, {transform_indices = @transform_2, window_bounds = array<i64: 1, 1, 8>}, {transform_indices = @transform_3, window_bounds = array<i64: 1, 1, 8, 1>}, {pipeline_mode = #tpu.pipeline_mode<synchronous>, transform_indices = @transform_4, window_bounds = array<i64: 256, 256>}, {pipeline_mode = #tpu.pipeline_mode<synchronous>, transform_indices = @transform_5, window_bounds = array<i64: 8, 256>}, {pipeline_mode = #tpu.pipeline_mode<synchronous>, transform_indices = @transform_6, window_bounds = array<i64: 1, 256>}, {pipeline_mode = #tpu.pipeline_mode<synchronous>, transform_indices = @transform_7, window_bounds = array<i64: 256, 512>}, {pipeline_mode = #tpu.pipeline_mode<synchronous>, transform_indices = @transform_8, window_bounds = array<i64: 1, 512>}, {pipeline_mode = #tpu.pipeline_mode<synchronous>, transform_indices = @transform_9, window_bounds = array<i64: 512, 1024>}, {pipeline_mode = #tpu.pipeline_mode<synchronous>, transform_indices = @transform_10, window_bounds = array<i64: 1, 1024>}, {transform_indices = @transform_11, window_bounds = array<i64: 1, 1, 1024>}]} {
    %c0 = arith.constant 0 : index
    %c0_0 = arith.constant 0 : index
    %c0_1 = arith.constant 0 : index
    %0 = vector.load %arg2[%c0, %c0_0, %c0_1] : memref<1x8x256xbf16, #tpu.memory_space<vmem>>, vector<1x8x256xbf16>
    %1 = vector.shape_cast %0 : vector<1x8x256xbf16> to vector<8x256xbf16>
    %c0_2 = arith.constant 0 : index
    %c0_3 = arith.constant 0 : index
    %2 = vector.load %arg6[%c0_2, %c0_3] : memref<256x256xbf16, #tpu.memory_space<vmem>>, vector<256x256xbf16>
    %cst = arith.constant dense<0.000000e+00> : vector<8x256xf32>
    %3 = tpu.matmul %1, %2, %cst {dimension_numbers = #tpu.dot_dimension_numbers<[1], [0], [0], [1], [0, 0, 1, 1], [], []>} : vector<8x256xbf16>, vector<256x256xbf16>, vector<8x256xf32> -> vector<8x256xf32>
    %c0_4 = arith.constant 0 : index
    %c0_5 = arith.constant 0 : index
    %c0_6 = arith.constant 0 : index
    %4 = vector.load %arg3[%c0_4, %c0_5, %c0_6] : memref<1x8x8xf32, #tpu.memory_space<vmem>>, vector<1x8x8xf32>
    %5 = vector.shape_cast %4 : vector<1x8x8xf32> to vector<8x8xf32>
    %6 = vector.shape_cast %5 : vector<8x8xf32> to vector<1x8x8xf32>
    %c0_7 = arith.constant 0 : index
    %c0_8 = arith.constant 0 : index
    %c0_9 = arith.constant 0 : index
    %7 = vector.load %arg4[%c0_7, %c0_8, %c0_9] : memref<1x1x8xf32, #tpu.memory_space<vmem>>, vector<1x1x8xf32>
    %8 = vector.shape_cast %7 : vector<1x1x8xf32> to vector<1x8xf32>
    %9 = vector.shape_cast %8 : vector<1x8xf32> to vector<1x1x8xf32>
    %10 = vector.broadcast %9 : vector<1x1x8xf32> to vector<1x8x8xf32>
    %11 = arith.subf %6, %10 : vector<1x8x8xf32>
    %12 = vector.shape_cast %11 : vector<1x8x8xf32> to vector<8x8xf32>
    %13 = arith.truncf %12 : vector<8x8xf32> to vector<8x8xbf16>
    %c0_10 = arith.constant 0 : index
    %c0_11 = arith.constant 0 : index
    %14 = vector.load %arg7[%c0_10, %c0_11] : memref<8x256xbf16, #tpu.memory_space<vmem>>, vector<8x256xbf16>
    %cst_12 = arith.constant dense<0.000000e+00> : vector<8x256xf32>
    %15 = tpu.matmul %13, %14, %cst_12 {dimension_numbers = #tpu.dot_dimension_numbers<[1], [0], [0], [1], [0, 0, 1, 1], [], []>} : vector<8x8xbf16>, vector<8x256xbf16>, vector<8x256xf32> -> vector<8x256xf32>
    %16 = vector.shape_cast %15 : vector<8x256xf32> to vector<1x8x256xf32>
    %17 = vector.shape_cast %3 : vector<8x256xf32> to vector<1x8x256xf32>
    %18 = arith.addf %16, %17 : vector<1x8x256xf32>
    %c0_13 = arith.constant 0 : index
    %c0_14 = arith.constant 0 : index
    %19 = vector.load %arg8[%c0_13, %c0_14] : memref<1x256xf32, #tpu.memory_space<vmem>>, vector<1x256xf32>
    %20 = vector.shape_cast %19 : vector<1x256xf32> to vector<1x1x256xf32>
    %21 = vector.broadcast %20 : vector<1x1x256xf32> to vector<1x8x256xf32>
    %22 = arith.addf %18, %21 : vector<1x8x256xf32>
    %cst_15 = arith.constant 0.000000e+00 : f32
    %23 = vector.broadcast %cst_15 : f32 to vector<1x8x256xf32>
    %24 = arith.maximumf %22, %23 : vector<1x8x256xf32>
    %25 = vector.shape_cast %24 : vector<1x8x256xf32> to vector<8x256xf32>
    %26 = arith.truncf %25 : vector<8x256xf32> to vector<8x256xbf16>
    %c0_16 = arith.constant 0 : index
    %c0_17 = arith.constant 0 : index
    %27 = vector.load %arg9[%c0_16, %c0_17] : memref<256x512xbf16, #tpu.memory_space<vmem>>, vector<256x512xbf16>
    %c0_18 = arith.constant 0 : index
    %c0_19 = arith.constant 0 : index
    %28 = vector.load %arg10[%c0_18, %c0_19] : memref<1x512xf32, #tpu.memory_space<vmem>>, vector<1x512xf32>
    %cst_20 = arith.constant dense<0.000000e+00> : vector<8x512xf32>
    %29 = tpu.matmul %26, %27, %cst_20 {dimension_numbers = #tpu.dot_dimension_numbers<[1], [0], [0], [1], [0, 0, 1, 1], [], []>} : vector<8x256xbf16>, vector<256x512xbf16>, vector<8x512xf32> -> vector<8x512xf32>
    %30 = vector.broadcast %28 : vector<1x512xf32> to vector<8x512xf32>
    %31 = arith.addf %29, %30 : vector<8x512xf32>
    %cst_21 = arith.constant 0.000000e+00 : f32
    %32 = vector.broadcast %cst_21 : f32 to vector<8x512xf32>
    %33 = arith.maximumf %31, %32 : vector<8x512xf32>
    %34 = arith.truncf %33 : vector<8x512xf32> to vector<8x512xbf16>
    %c0_22 = arith.constant 0 : index
    %c0_23 = arith.constant 0 : index
    %35 = vector.load %arg11[%c0_22, %c0_23] : memref<512x1024xbf16, #tpu.memory_space<vmem>>, vector<512x1024xbf16>
    %c0_24 = arith.constant 0 : index
    %c0_25 = arith.constant 0 : index
    %36 = vector.load %arg12[%c0_24, %c0_25] : memref<1x1024xf32, #tpu.memory_space<vmem>>, vector<1x1024xf32>
    %cst_26 = arith.constant dense<0.000000e+00> : vector<8x1024xf32>
    %37 = tpu.matmul %34, %35, %cst_26 {dimension_numbers = #tpu.dot_dimension_numbers<[1], [0], [0], [1], [0, 0, 1, 1], [], []>} : vector<8x512xbf16>, vector<512x1024xbf16>, vector<8x1024xf32> -> vector<8x1024xf32>
    %38 = vector.broadcast %36 : vector<1x1024xf32> to vector<8x1024xf32>
    %39 = arith.addf %37, %38 : vector<8x1024xf32>
    %40 = vector.shape_cast %39 : vector<8x1024xf32> to vector<1x8x1024xf32>
    %c0_27 = arith.constant 0 : index
    %c0_28 = arith.constant 0 : index
    %c0_29 = arith.constant 0 : index
    %c0_30 = arith.constant 0 : index
    %41 = vector.load %arg5[%c0_27, %c0_28, %c0_29, %c0_30] : memref<1x1x8x1xf32, #tpu.memory_space<vmem>>, vector<1x1x8x1xf32>
    %42 = vector.shape_cast %41 : vector<1x1x8x1xf32> to vector<1x8x1xf32>
    %43 = vector.broadcast %42 : vector<1x8x1xf32> to vector<1x8x1024xf32>
    %44 = arith.addf %40, %43 : vector<1x8x1024xf32>
    %cst_31 = arith.constant dense<0xFF800000> : vector<1x1024xf32>
    %45 = vector.multi_reduction <maximumf>, %44, %cst_31 [1] : vector<1x8x1024xf32> to vector<1x1024xf32>
    %c0_32 = arith.constant 0 : index
    %c0_33 = arith.constant 0 : index
    %c0_34 = arith.constant 0 : index
    %46 = vector.load %arg13[%c0_32, %c0_33, %c0_34] : memref<1x1x1024xf32, #tpu.memory_space<vmem>>, vector<1x1x1024xf32>
    %47 = vector.shape_cast %46 : vector<1x1x1024xf32> to vector<1x1024xf32>
    %48 = vector.shape_cast %45 : vector<1x1024xf32> to vector<1x1x1024xf32>
    tpu.vector_store %arg13[%c0_32, %c0_33, %c0_34], %48 {strides = array<i32>} : memref<1x1x1024xf32, #tpu.memory_space<vmem>>, vector<1x1x1024xf32>,
    return
  }
  func.func @transform_0(%arg0: i32, %arg1: i32) -> (i32, i32, i32) {
    %c0_i32 = arith.constant 0 : i32
    %c0_i32_0 = arith.constant 0 : i32
    %c0_i32_1 = arith.constant 0 : i32
    return %arg0, %c0_i32, %c0_i32_0 : i32, i32, i32
  }
  func.func @transform_1(%arg0: i32, %arg1: i32) -> (i32, i32, i32) {
    %c0_i32 = arith.constant 0 : i32
    %c0_i32_0 = arith.constant 0 : i32
    %c0_i32_1 = arith.constant 0 : i32
    return %arg0, %c0_i32, %c0_i32_0 : i32, i32, i32
  }
  func.func @transform_2(%arg0: i32, %arg1: i32) -> (i32, i32, i32) {
    %c0_i32 = arith.constant 0 : i32
    %c0_i32_0 = arith.constant 0 : i32
    return %arg0, %arg1, %c0_i32 : i32, i32, i32
  }
  func.func @transform_3(%arg0: i32, %arg1: i32) -> (i32, i32, i32, i32) {
    %c0_i32 = arith.constant 0 : i32
    %c0_i32_0 = arith.constant 0 : i32
    %c0_i32_1 = arith.constant 0 : i32
    return %arg0, %arg1, %c0_i32, %c0_i32_0 : i32, i32, i32, i32
  }
  func.func @transform_4(%arg0: i32, %arg1: i32) -> (i32, i32) {
    %c0_i32 = arith.constant 0 : i32
    %c0_i32_0 = arith.constant 0 : i32
    %c0_i32_1 = arith.constant 0 : i32
    return %c0_i32, %c0_i32_0 : i32, i32
  }
  func.func @transform_5(%arg0: i32, %arg1: i32) -> (i32, i32) {
    %c0_i32 = arith.constant 0 : i32
    %c0_i32_0 = arith.constant 0 : i32
    %c0_i32_1 = arith.constant 0 : i32
    return %c0_i32, %c0_i32_0 : i32, i32
  }
  func.func @transform_6(%arg0: i32, %arg1: i32) -> (i32, i32) {
    %c0_i32 = arith.constant 0 : i32
    %c0_i32_0 = arith.constant 0 : i32
    %c0_i32_1 = arith.constant 0 : i32
    return %c0_i32, %c0_i32_0 : i32, i32
  }
  func.func @transform_7(%arg0: i32, %arg1: i32) -> (i32, i32) {
    %c0_i32 = arith.constant 0 : i32
    %c0_i32_0 = arith.constant 0 : i32
    %c0_i32_1 = arith.constant 0 : i32
    return %c0_i32, %c0_i32_0 : i32, i32
  }
  func.func @transform_8(%arg0: i32, %arg1: i32) -> (i32, i32) {
    %c0_i32 = arith.constant 0 : i32
    %c0_i32_0 = arith.constant 0 : i32
    %c0_i32_1 = arith.constant 0 : i32
    return %c0_i32, %c0_i32_0 : i32, i32
  }
  func.func @transform_9(%arg0: i32, %arg1: i32) -> (i32, i32) {
    %c0_i32 = arith.constant 0 : i32
    %c0_i32_0 = arith.constant 0 : i32
    %c0_i32_1 = arith.constant 0 : i32
    return %c0_i32, %c0_i32_0 : i32, i32
  }
  func.func @transform_10(%arg0: i32, %arg1: i32) -> (i32, i32) {
    %c0_i32 = arith.constant 0 : i32
    %c0_i32_0 = arith.constant 0 : i32
    %c0_i32_1 = arith.constant 0 : i32
    return %c0_i32, %c0_i32_0 : i32, i32
  }
  func.func @transform_11(%arg0: i32, %arg1: i32) -> (i32, i32, i32) {
    %c0_i32 = arith.constant 0 : i32
    %c0_i32_0 = arith.constant 0 : i32
    return %arg0, %arg1, %c0_i32 : i32, i32, i32
  }
}

module attributes {stable_mosaic.version = 11 : i64} {
  func.func @_mlp_rows_kernel(%arg0: i32, %arg1: memref<8x1280xbf16, #tpu.memory_space<vmem>>, %arg2: memref<1280x256xbf16, #tpu.memory_space<vmem>>, %arg3: memref<1x256xf32, #tpu.memory_space<vmem>>, %arg4: memref<256x256xbf16, #tpu.memory_space<vmem>>, %arg5: memref<1x256xf32, #tpu.memory_space<vmem>>, %arg6: memref<8x256xf32, #tpu.memory_space<vmem>>) attributes {dimension_semantics = [#tpu.dimension_semantics<parallel>], iteration_bounds = array<i64: 1>, scalar_prefetch = 0 : i64, scratch_operands = 0 : i64, tpu.core_type = #tpu.core_type<tc>, window_params = [{transform_indices = @transform_0, window_bounds = array<i64: 8, 1280>}, {pipeline_mode = #tpu.pipeline_mode<synchronous>, transform_indices = @transform_1, window_bounds = array<i64: 1280, 256>}, {pipeline_mode = #tpu.pipeline_mode<synchronous>, transform_indices = @transform_2, window_bounds = array<i64: 1, 256>}, {pipeline_mode = #tpu.pipeline_mode<synchronous>, transform_indices = @transform_3, window_bounds = array<i64: 256, 256>}, {pipeline_mode = #tpu.pipeline_mode<synchronous>, transform_indices = @transform_4, window_bounds = array<i64: 1, 256>}, {transform_indices = @transform_5, window_bounds = array<i64: 8, 256>}]} {
    %c0 = arith.constant 0 : index
    %c0_0 = arith.constant 0 : index
    %0 = vector.load %arg1[%c0, %c0_0] : memref<8x1280xbf16, #tpu.memory_space<vmem>>, vector<8x1280xbf16>
    %c0_1 = arith.constant 0 : index
    %c0_2 = arith.constant 0 : index
    %1 = vector.load %arg2[%c0_1, %c0_2] : memref<1280x256xbf16, #tpu.memory_space<vmem>>, vector<1280x256xbf16>
    %c0_3 = arith.constant 0 : index
    %c0_4 = arith.constant 0 : index
    %2 = vector.load %arg3[%c0_3, %c0_4] : memref<1x256xf32, #tpu.memory_space<vmem>>, vector<1x256xf32>
    %cst = arith.constant dense<0.000000e+00> : vector<8x256xf32>
    %3 = tpu.matmul %0, %1, %cst {dimension_numbers = #tpu.dot_dimension_numbers<[1], [0], [0], [1], [0, 0, 1, 1], [], []>} : vector<8x1280xbf16>, vector<1280x256xbf16>, vector<8x256xf32> -> vector<8x256xf32>
    %4 = vector.broadcast %2 : vector<1x256xf32> to vector<8x256xf32>
    %5 = arith.addf %3, %4 : vector<8x256xf32>
    %cst_5 = arith.constant 0.000000e+00 : f32
    %6 = vector.broadcast %cst_5 : f32 to vector<8x256xf32>
    %7 = arith.maximumf %5, %6 : vector<8x256xf32>
    %8 = arith.truncf %7 : vector<8x256xf32> to vector<8x256xbf16>
    %c0_6 = arith.constant 0 : index
    %c0_7 = arith.constant 0 : index
    %9 = vector.load %arg4[%c0_6, %c0_7] : memref<256x256xbf16, #tpu.memory_space<vmem>>, vector<256x256xbf16>
    %c0_8 = arith.constant 0 : index
    %c0_9 = arith.constant 0 : index
    %10 = vector.load %arg5[%c0_8, %c0_9] : memref<1x256xf32, #tpu.memory_space<vmem>>, vector<1x256xf32>
    %cst_10 = arith.constant dense<0.000000e+00> : vector<8x256xf32>
    %11 = tpu.matmul %8, %9, %cst_10 {dimension_numbers = #tpu.dot_dimension_numbers<[1], [0], [0], [1], [0, 0, 1, 1], [], []>} : vector<8x256xbf16>, vector<256x256xbf16>, vector<8x256xf32> -> vector<8x256xf32>
    %12 = vector.broadcast %10 : vector<1x256xf32> to vector<8x256xf32>
    %13 = arith.addf %11, %12 : vector<8x256xf32>
    %c0_11 = arith.constant 0 : index
    %c0_12 = arith.constant 0 : index
    %14 = vector.load %arg6[%c0_11, %c0_12] : memref<8x256xf32, #tpu.memory_space<vmem>>, vector<8x256xf32>
    tpu.vector_store %arg6[%c0_11, %c0_12], %13 {strides = array<i32>} : memref<8x256xf32, #tpu.memory_space<vmem>>, vector<8x256xf32>,
    return
  }
  func.func @transform_0(%arg0: i32) -> (i32, i32) {
    %c0_i32 = arith.constant 0 : i32
    %c0_i32_0 = arith.constant 0 : i32
    return %arg0, %c0_i32 : i32, i32
  }
  func.func @transform_1(%arg0: i32) -> (i32, i32) {
    %c0_i32 = arith.constant 0 : i32
    %c0_i32_0 = arith.constant 0 : i32
    %c0_i32_1 = arith.constant 0 : i32
    return %c0_i32, %c0_i32_0 : i32, i32
  }
  func.func @transform_2(%arg0: i32) -> (i32, i32) {
    %c0_i32 = arith.constant 0 : i32
    %c0_i32_0 = arith.constant 0 : i32
    %c0_i32_1 = arith.constant 0 : i32
    return %c0_i32, %c0_i32_0 : i32, i32
  }
  func.func @transform_3(%arg0: i32) -> (i32, i32) {
    %c0_i32 = arith.constant 0 : i32
    %c0_i32_0 = arith.constant 0 : i32
    %c0_i32_1 = arith.constant 0 : i32
    return %c0_i32, %c0_i32_0 : i32, i32
  }
  func.func @transform_4(%arg0: i32) -> (i32, i32) {
    %c0_i32 = arith.constant 0 : i32
    %c0_i32_0 = arith.constant 0 : i32
    %c0_i32_1 = arith.constant 0 : i32
    return %c0_i32, %c0_i32_0 : i32, i32
  }
  func.func @transform_5(%arg0: i32) -> (i32, i32) {
    %c0_i32 = arith.constant 0 : i32
    %c0_i32_0 = arith.constant 0 : i32
    return %arg0, %c0_i32 : i32, i32
  }
}

module attributes {stable_mosaic.version = 11 : i64} {
  func.func @_mlp_rows_kernel(%arg0: i32, %arg1: memref<16x384xbf16, #tpu.memory_space<vmem>>, %arg2: memref<384x256xbf16, #tpu.memory_space<vmem>>, %arg3: memref<1x256xf32, #tpu.memory_space<vmem>>, %arg4: memref<256x128xbf16, #tpu.memory_space<vmem>>, %arg5: memref<1x128xf32, #tpu.memory_space<vmem>>, %arg6: memref<16x128xf32, #tpu.memory_space<vmem>>) attributes {dimension_semantics = [#tpu.dimension_semantics<parallel>], iteration_bounds = array<i64: 2>, scalar_prefetch = 0 : i64, scratch_operands = 0 : i64, tpu.core_type = #tpu.core_type<tc>, window_params = [{transform_indices = @transform_0, window_bounds = array<i64: 16, 384>}, {pipeline_mode = #tpu.pipeline_mode<synchronous>, transform_indices = @transform_1, window_bounds = array<i64: 384, 256>}, {pipeline_mode = #tpu.pipeline_mode<synchronous>, transform_indices = @transform_2, window_bounds = array<i64: 1, 256>}, {pipeline_mode = #tpu.pipeline_mode<synchronous>, transform_indices = @transform_3, window_bounds = array<i64: 256, 128>}, {pipeline_mode = #tpu.pipeline_mode<synchronous>, transform_indices = @transform_4, window_bounds = array<i64: 1, 128>}, {transform_indices = @transform_5, window_bounds = array<i64: 16, 128>}]} {
    %c0 = arith.constant 0 : index
    %c0_0 = arith.constant 0 : index
    %0 = vector.load %arg1[%c0, %c0_0] : memref<16x384xbf16, #tpu.memory_space<vmem>>, vector<16x384xbf16>
    %c0_1 = arith.constant 0 : index
    %c0_2 = arith.constant 0 : index
    %1 = vector.load %arg2[%c0_1, %c0_2] : memref<384x256xbf16, #tpu.memory_space<vmem>>, vector<384x256xbf16>
    %c0_3 = arith.constant 0 : index
    %c0_4 = arith.constant 0 : index
    %2 = vector.load %arg3[%c0_3, %c0_4] : memref<1x256xf32, #tpu.memory_space<vmem>>, vector<1x256xf32>
    %cst = arith.constant dense<0.000000e+00> : vector<16x256xf32>
    %3 = tpu.matmul %0, %1, %cst {dimension_numbers = #tpu.dot_dimension_numbers<[1], [0], [0], [1], [0, 0, 1, 1], [], []>} : vector<16x384xbf16>, vector<384x256xbf16>, vector<16x256xf32> -> vector<16x256xf32>
    %4 = vector.broadcast %2 : vector<1x256xf32> to vector<16x256xf32>
    %5 = arith.addf %3, %4 : vector<16x256xf32>
    %cst_5 = arith.constant 0.000000e+00 : f32
    %6 = vector.broadcast %cst_5 : f32 to vector<16x256xf32>
    %7 = arith.maximumf %5, %6 : vector<16x256xf32>
    %8 = arith.truncf %7 : vector<16x256xf32> to vector<16x256xbf16>
    %c0_6 = arith.constant 0 : index
    %c0_7 = arith.constant 0 : index
    %9 = vector.load %arg4[%c0_6, %c0_7] : memref<256x128xbf16, #tpu.memory_space<vmem>>, vector<256x128xbf16>
    %c0_8 = arith.constant 0 : index
    %c0_9 = arith.constant 0 : index
    %10 = vector.load %arg5[%c0_8, %c0_9] : memref<1x128xf32, #tpu.memory_space<vmem>>, vector<1x128xf32>
    %cst_10 = arith.constant dense<0.000000e+00> : vector<16x128xf32>
    %11 = tpu.matmul %8, %9, %cst_10 {dimension_numbers = #tpu.dot_dimension_numbers<[1], [0], [0], [1], [0, 0, 1, 1], [], []>} : vector<16x256xbf16>, vector<256x128xbf16>, vector<16x128xf32> -> vector<16x128xf32>
    %12 = vector.broadcast %10 : vector<1x128xf32> to vector<16x128xf32>
    %13 = arith.addf %11, %12 : vector<16x128xf32>
    %c0_11 = arith.constant 0 : index
    %c0_12 = arith.constant 0 : index
    %14 = vector.load %arg6[%c0_11, %c0_12] : memref<16x128xf32, #tpu.memory_space<vmem>>, vector<16x128xf32>
    tpu.vector_store %arg6[%c0_11, %c0_12], %13 {strides = array<i32>} : memref<16x128xf32, #tpu.memory_space<vmem>>, vector<16x128xf32>,
    return
  }
  func.func @transform_0(%arg0: i32) -> (i32, i32) {
    %c0_i32 = arith.constant 0 : i32
    %c0_i32_0 = arith.constant 0 : i32
    return %arg0, %c0_i32 : i32, i32
  }
  func.func @transform_1(%arg0: i32) -> (i32, i32) {
    %c0_i32 = arith.constant 0 : i32
    %c0_i32_0 = arith.constant 0 : i32
    %c0_i32_1 = arith.constant 0 : i32
    return %c0_i32, %c0_i32_0 : i32, i32
  }
  func.func @transform_2(%arg0: i32) -> (i32, i32) {
    %c0_i32 = arith.constant 0 : i32
    %c0_i32_0 = arith.constant 0 : i32
    %c0_i32_1 = arith.constant 0 : i32
    return %c0_i32, %c0_i32_0 : i32, i32
  }
  func.func @transform_3(%arg0: i32) -> (i32, i32) {
    %c0_i32 = arith.constant 0 : i32
    %c0_i32_0 = arith.constant 0 : i32
    %c0_i32_1 = arith.constant 0 : i32
    return %c0_i32, %c0_i32_0 : i32, i32
  }
  func.func @transform_4(%arg0: i32) -> (i32, i32) {
    %c0_i32 = arith.constant 0 : i32
    %c0_i32_0 = arith.constant 0 : i32
    %c0_i32_1 = arith.constant 0 : i32
    return %c0_i32, %c0_i32_0 : i32, i32
  }
  func.func @transform_5(%arg0: i32) -> (i32, i32) {
    %c0_i32 = arith.constant 0 : i32
    %c0_i32_0 = arith.constant 0 : i32
    return %arg0, %c0_i32 : i32, i32
  }
}

module attributes {stable_mosaic.version = 11 : i64} {
  func.func @_mlp_rows_kernel(%arg0: i32, %arg1: memref<64x256xbf16, #tpu.memory_space<vmem>>, %arg2: memref<256x128xbf16, #tpu.memory_space<vmem>>, %arg3: memref<1x128xf32, #tpu.memory_space<vmem>>, %arg4: memref<128x128xbf16, #tpu.memory_space<vmem>>, %arg5: memref<1x128xf32, #tpu.memory_space<vmem>>, %arg6: memref<128x128xbf16, #tpu.memory_space<vmem>>, %arg7: memref<1x128xf32, #tpu.memory_space<vmem>>, %arg8: memref<64x128xf32, #tpu.memory_space<vmem>>) attributes {dimension_semantics = [#tpu.dimension_semantics<parallel>], iteration_bounds = array<i64: 2>, scalar_prefetch = 0 : i64, scratch_operands = 0 : i64, tpu.core_type = #tpu.core_type<tc>, window_params = [{transform_indices = @transform_0, window_bounds = array<i64: 64, 256>}, {pipeline_mode = #tpu.pipeline_mode<synchronous>, transform_indices = @transform_1, window_bounds = array<i64: 256, 128>}, {pipeline_mode = #tpu.pipeline_mode<synchronous>, transform_indices = @transform_2, window_bounds = array<i64: 1, 128>}, {pipeline_mode = #tpu.pipeline_mode<synchronous>, transform_indices = @transform_3, window_bounds = array<i64: 128, 128>}, {pipeline_mode = #tpu.pipeline_mode<synchronous>, transform_indices = @transform_4, window_bounds = array<i64: 1, 128>}, {pipeline_mode = #tpu.pipeline_mode<synchronous>, transform_indices = @transform_5, window_bounds = array<i64: 128, 128>}, {pipeline_mode = #tpu.pipeline_mode<synchronous>, transform_indices = @transform_6, window_bounds = array<i64: 1, 128>}, {transform_indices = @transform_7, window_bounds = array<i64: 64, 128>}]} {
    %c0 = arith.constant 0 : index
    %c0_0 = arith.constant 0 : index
    %0 = vector.load %arg1[%c0, %c0_0] : memref<64x256xbf16, #tpu.memory_space<vmem>>, vector<64x256xbf16>
    %c0_1 = arith.constant 0 : index
    %c0_2 = arith.constant 0 : index
    %1 = vector.load %arg2[%c0_1, %c0_2] : memref<256x128xbf16, #tpu.memory_space<vmem>>, vector<256x128xbf16>
    %c0_3 = arith.constant 0 : index
    %c0_4 = arith.constant 0 : index
    %2 = vector.load %arg3[%c0_3, %c0_4] : memref<1x128xf32, #tpu.memory_space<vmem>>, vector<1x128xf32>
    %cst = arith.constant dense<0.000000e+00> : vector<64x128xf32>
    %3 = tpu.matmul %0, %1, %cst {dimension_numbers = #tpu.dot_dimension_numbers<[1], [0], [0], [1], [0, 0, 1, 1], [], []>} : vector<64x256xbf16>, vector<256x128xbf16>, vector<64x128xf32> -> vector<64x128xf32>
    %4 = vector.broadcast %2 : vector<1x128xf32> to vector<64x128xf32>
    %5 = arith.addf %3, %4 : vector<64x128xf32>
    %cst_5 = arith.constant 0.000000e+00 : f32
    %6 = vector.broadcast %cst_5 : f32 to vector<64x128xf32>
    %7 = arith.maximumf %5, %6 : vector<64x128xf32>
    %8 = arith.truncf %7 : vector<64x128xf32> to vector<64x128xbf16>
    %c0_6 = arith.constant 0 : index
    %c0_7 = arith.constant 0 : index
    %9 = vector.load %arg4[%c0_6, %c0_7] : memref<128x128xbf16, #tpu.memory_space<vmem>>, vector<128x128xbf16>
    %c0_8 = arith.constant 0 : index
    %c0_9 = arith.constant 0 : index
    %10 = vector.load %arg5[%c0_8, %c0_9] : memref<1x128xf32, #tpu.memory_space<vmem>>, vector<1x128xf32>
    %cst_10 = arith.constant dense<0.000000e+00> : vector<64x128xf32>
    %11 = tpu.matmul %8, %9, %cst_10 {dimension_numbers = #tpu.dot_dimension_numbers<[1], [0], [0], [1], [0, 0, 1, 1], [], []>} : vector<64x128xbf16>, vector<128x128xbf16>, vector<64x128xf32> -> vector<64x128xf32>
    %12 = vector.broadcast %10 : vector<1x128xf32> to vector<64x128xf32>
    %13 = arith.addf %11, %12 : vector<64x128xf32>
    %cst_11 = arith.constant 0.000000e+00 : f32
    %14 = vector.broadcast %cst_11 : f32 to vector<64x128xf32>
    %15 = arith.maximumf %13, %14 : vector<64x128xf32>
    %16 = arith.truncf %15 : vector<64x128xf32> to vector<64x128xbf16>
    %c0_12 = arith.constant 0 : index
    %c0_13 = arith.constant 0 : index
    %17 = vector.load %arg6[%c0_12, %c0_13] : memref<128x128xbf16, #tpu.memory_space<vmem>>, vector<128x128xbf16>
    %c0_14 = arith.constant 0 : index
    %c0_15 = arith.constant 0 : index
    %18 = vector.load %arg7[%c0_14, %c0_15] : memref<1x128xf32, #tpu.memory_space<vmem>>, vector<1x128xf32>
    %cst_16 = arith.constant dense<0.000000e+00> : vector<64x128xf32>
    %19 = tpu.matmul %16, %17, %cst_16 {dimension_numbers = #tpu.dot_dimension_numbers<[1], [0], [0], [1], [0, 0, 1, 1], [], []>} : vector<64x128xbf16>, vector<128x128xbf16>, vector<64x128xf32> -> vector<64x128xf32>
    %20 = vector.broadcast %18 : vector<1x128xf32> to vector<64x128xf32>
    %21 = arith.addf %19, %20 : vector<64x128xf32>
    %c0_17 = arith.constant 0 : index
    %c0_18 = arith.constant 0 : index
    %22 = vector.load %arg8[%c0_17, %c0_18] : memref<64x128xf32, #tpu.memory_space<vmem>>, vector<64x128xf32>
    tpu.vector_store %arg8[%c0_17, %c0_18], %21 {strides = array<i32>} : memref<64x128xf32, #tpu.memory_space<vmem>>, vector<64x128xf32>,
    return
  }
  func.func @transform_0(%arg0: i32) -> (i32, i32) {
    %c0_i32 = arith.constant 0 : i32
    %c0_i32_0 = arith.constant 0 : i32
    return %arg0, %c0_i32 : i32, i32
  }
  func.func @transform_1(%arg0: i32) -> (i32, i32) {
    %c0_i32 = arith.constant 0 : i32
    %c0_i32_0 = arith.constant 0 : i32
    %c0_i32_1 = arith.constant 0 : i32
    return %c0_i32, %c0_i32_0 : i32, i32
  }
  func.func @transform_2(%arg0: i32) -> (i32, i32) {
    %c0_i32 = arith.constant 0 : i32
    %c0_i32_0 = arith.constant 0 : i32
    %c0_i32_1 = arith.constant 0 : i32
    return %c0_i32, %c0_i32_0 : i32, i32
  }
  func.func @transform_3(%arg0: i32) -> (i32, i32) {
    %c0_i32 = arith.constant 0 : i32
    %c0_i32_0 = arith.constant 0 : i32
    %c0_i32_1 = arith.constant 0 : i32
    return %c0_i32, %c0_i32_0 : i32, i32
  }
  func.func @transform_4(%arg0: i32) -> (i32, i32) {
    %c0_i32 = arith.constant 0 : i32
    %c0_i32_0 = arith.constant 0 : i32
    %c0_i32_1 = arith.constant 0 : i32
    return %c0_i32, %c0_i32_0 : i32, i32
  }
  func.func @transform_5(%arg0: i32) -> (i32, i32) {
    %c0_i32 = arith.constant 0 : i32
    %c0_i32_0 = arith.constant 0 : i32
    %c0_i32_1 = arith.constant 0 : i32
    return %c0_i32, %c0_i32_0 : i32, i32
  }
  func.func @transform_6(%arg0: i32) -> (i32, i32) {
    %c0_i32 = arith.constant 0 : i32
    %c0_i32_0 = arith.constant 0 : i32
    %c0_i32_1 = arith.constant 0 : i32
    return %c0_i32, %c0_i32_0 : i32, i32
  }
  func.func @transform_7(%arg0: i32) -> (i32, i32) {
    %c0_i32 = arith.constant 0 : i32
    %c0_i32_0 = arith.constant 0 : i32
    return %arg0, %c0_i32 : i32, i32
  }
}

module attributes {stable_mosaic.version = 11 : i64} {
  func.func @_mlp_rows_kernel(%arg0: i32, %arg1: memref<64x128xbf16, #tpu.memory_space<vmem>>, %arg2: memref<128x128xbf16, #tpu.memory_space<vmem>>, %arg3: memref<1x128xf32, #tpu.memory_space<vmem>>, %arg4: memref<128x128xbf16, #tpu.memory_space<vmem>>, %arg5: memref<1x128xf32, #tpu.memory_space<vmem>>, %arg6: memref<128x128xbf16, #tpu.memory_space<vmem>>, %arg7: memref<1x128xf32, #tpu.memory_space<vmem>>, %arg8: memref<64x128xf32, #tpu.memory_space<vmem>>) attributes {dimension_semantics = [#tpu.dimension_semantics<parallel>], iteration_bounds = array<i64: 2>, scalar_prefetch = 0 : i64, scratch_operands = 0 : i64, tpu.core_type = #tpu.core_type<tc>, window_params = [{transform_indices = @transform_0, window_bounds = array<i64: 64, 128>}, {pipeline_mode = #tpu.pipeline_mode<synchronous>, transform_indices = @transform_1, window_bounds = array<i64: 128, 128>}, {pipeline_mode = #tpu.pipeline_mode<synchronous>, transform_indices = @transform_2, window_bounds = array<i64: 1, 128>}, {pipeline_mode = #tpu.pipeline_mode<synchronous>, transform_indices = @transform_3, window_bounds = array<i64: 128, 128>}, {pipeline_mode = #tpu.pipeline_mode<synchronous>, transform_indices = @transform_4, window_bounds = array<i64: 1, 128>}, {pipeline_mode = #tpu.pipeline_mode<synchronous>, transform_indices = @transform_5, window_bounds = array<i64: 128, 128>}, {pipeline_mode = #tpu.pipeline_mode<synchronous>, transform_indices = @transform_6, window_bounds = array<i64: 1, 128>}, {transform_indices = @transform_7, window_bounds = array<i64: 64, 128>}]} {
    %c0 = arith.constant 0 : index
    %c0_0 = arith.constant 0 : index
    %0 = vector.load %arg1[%c0, %c0_0] : memref<64x128xbf16, #tpu.memory_space<vmem>>, vector<64x128xbf16>
    %c0_1 = arith.constant 0 : index
    %c0_2 = arith.constant 0 : index
    %1 = vector.load %arg2[%c0_1, %c0_2] : memref<128x128xbf16, #tpu.memory_space<vmem>>, vector<128x128xbf16>
    %c0_3 = arith.constant 0 : index
    %c0_4 = arith.constant 0 : index
    %2 = vector.load %arg3[%c0_3, %c0_4] : memref<1x128xf32, #tpu.memory_space<vmem>>, vector<1x128xf32>
    %cst = arith.constant dense<0.000000e+00> : vector<64x128xf32>
    %3 = tpu.matmul %0, %1, %cst {dimension_numbers = #tpu.dot_dimension_numbers<[1], [0], [0], [1], [0, 0, 1, 1], [], []>} : vector<64x128xbf16>, vector<128x128xbf16>, vector<64x128xf32> -> vector<64x128xf32>
    %4 = vector.broadcast %2 : vector<1x128xf32> to vector<64x128xf32>
    %5 = arith.addf %3, %4 : vector<64x128xf32>
    %cst_5 = arith.constant 0.000000e+00 : f32
    %6 = vector.broadcast %cst_5 : f32 to vector<64x128xf32>
    %7 = arith.maximumf %5, %6 : vector<64x128xf32>
    %8 = arith.truncf %7 : vector<64x128xf32> to vector<64x128xbf16>
    %c0_6 = arith.constant 0 : index
    %c0_7 = arith.constant 0 : index
    %9 = vector.load %arg4[%c0_6, %c0_7] : memref<128x128xbf16, #tpu.memory_space<vmem>>, vector<128x128xbf16>
    %c0_8 = arith.constant 0 : index
    %c0_9 = arith.constant 0 : index
    %10 = vector.load %arg5[%c0_8, %c0_9] : memref<1x128xf32, #tpu.memory_space<vmem>>, vector<1x128xf32>
    %cst_10 = arith.constant dense<0.000000e+00> : vector<64x128xf32>
    %11 = tpu.matmul %8, %9, %cst_10 {dimension_numbers = #tpu.dot_dimension_numbers<[1], [0], [0], [1], [0, 0, 1, 1], [], []>} : vector<64x128xbf16>, vector<128x128xbf16>, vector<64x128xf32> -> vector<64x128xf32>
    %12 = vector.broadcast %10 : vector<1x128xf32> to vector<64x128xf32>
    %13 = arith.addf %11, %12 : vector<64x128xf32>
    %cst_11 = arith.constant 0.000000e+00 : f32
    %14 = vector.broadcast %cst_11 : f32 to vector<64x128xf32>
    %15 = arith.maximumf %13, %14 : vector<64x128xf32>
    %16 = arith.truncf %15 : vector<64x128xf32> to vector<64x128xbf16>
    %c0_12 = arith.constant 0 : index
    %c0_13 = arith.constant 0 : index
    %17 = vector.load %arg6[%c0_12, %c0_13] : memref<128x128xbf16, #tpu.memory_space<vmem>>, vector<128x128xbf16>
    %c0_14 = arith.constant 0 : index
    %c0_15 = arith.constant 0 : index
    %18 = vector.load %arg7[%c0_14, %c0_15] : memref<1x128xf32, #tpu.memory_space<vmem>>, vector<1x128xf32>
    %cst_16 = arith.constant dense<0.000000e+00> : vector<64x128xf32>
    %19 = tpu.matmul %16, %17, %cst_16 {dimension_numbers = #tpu.dot_dimension_numbers<[1], [0], [0], [1], [0, 0, 1, 1], [], []>} : vector<64x128xbf16>, vector<128x128xbf16>, vector<64x128xf32> -> vector<64x128xf32>
    %20 = vector.broadcast %18 : vector<1x128xf32> to vector<64x128xf32>
    %21 = arith.addf %19, %20 : vector<64x128xf32>
    %22 = tpu.iota {dimensions = array<i32: 1>} : vector<64x128xi32>
    %c6_i32 = arith.constant 6 : i32
    %23 = vector.broadcast %c6_i32 : i32 to vector<64x128xi32>
    %24 = arith.cmpi slt, %22, %23 : vector<64x128xi32>
    %cst_17 = arith.constant -1.000000e+30 : f32
    %25 = vector.broadcast %cst_17 : f32 to vector<64x128xf32>
    %26 = arith.select %24, %21, %25 : vector<64x128xi1>, vector<64x128xf32>
    %cst_18 = arith.constant dense<0xFF800000> : vector<64xf32>
    %27 = vector.multi_reduction <maximumf>, %26, %cst_18 [1] : vector<64x128xf32> to vector<64xf32>
    %28 = vector.shape_cast %27 : vector<64xf32> to vector<64x1xf32>
    %29 = vector.broadcast %28 : vector<64x1xf32> to vector<64x128xf32>
    %30 = arith.subf %26, %29 : vector<64x128xf32>
    %31 = math.exp %30 : vector<64x128xf32>
    %cst_19 = arith.constant dense<0.000000e+00> : vector<64xf32>
    %32 = vector.multi_reduction <add>, %31, %cst_19 [1] : vector<64x128xf32> to vector<64xf32>
    %33 = vector.shape_cast %32 : vector<64xf32> to vector<64x1xf32>
    %34 = vector.broadcast %28 : vector<64x1xf32> to vector<64x128xf32>
    %35 = arith.subf %26, %34 : vector<64x128xf32>
    %36 = math.log %33 : vector<64x1xf32>
    %37 = vector.broadcast %36 : vector<64x1xf32> to vector<64x128xf32>
    %38 = arith.subf %35, %37 : vector<64x128xf32>
    %c0_20 = arith.constant 0 : index
    %c0_21 = arith.constant 0 : index
    %39 = vector.load %arg8[%c0_20, %c0_21] : memref<64x128xf32, #tpu.memory_space<vmem>>, vector<64x128xf32>
    tpu.vector_store %arg8[%c0_20, %c0_21], %38 {strides = array<i32>} : memref<64x128xf32, #tpu.memory_space<vmem>>, vector<64x128xf32>,
    return
  }
  func.func @transform_0(%arg0: i32) -> (i32, i32) {
    %c0_i32 = arith.constant 0 : i32
    %c0_i32_0 = arith.constant 0 : i32
    return %arg0, %c0_i32 : i32, i32
  }
  func.func @transform_1(%arg0: i32) -> (i32, i32) {
    %c0_i32 = arith.constant 0 : i32
    %c0_i32_0 = arith.constant 0 : i32
    %c0_i32_1 = arith.constant 0 : i32
    return %c0_i32, %c0_i32_0 : i32, i32
  }
  func.func @transform_2(%arg0: i32) -> (i32, i32) {
    %c0_i32 = arith.constant 0 : i32
    %c0_i32_0 = arith.constant 0 : i32
    %c0_i32_1 = arith.constant 0 : i32
    return %c0_i32, %c0_i32_0 : i32, i32
  }
  func.func @transform_3(%arg0: i32) -> (i32, i32) {
    %c0_i32 = arith.constant 0 : i32
    %c0_i32_0 = arith.constant 0 : i32
    %c0_i32_1 = arith.constant 0 : i32
    return %c0_i32, %c0_i32_0 : i32, i32
  }
  func.func @transform_4(%arg0: i32) -> (i32, i32) {
    %c0_i32 = arith.constant 0 : i32
    %c0_i32_0 = arith.constant 0 : i32
    %c0_i32_1 = arith.constant 0 : i32
    return %c0_i32, %c0_i32_0 : i32, i32
  }
  func.func @transform_5(%arg0: i32) -> (i32, i32) {
    %c0_i32 = arith.constant 0 : i32
    %c0_i32_0 = arith.constant 0 : i32
    %c0_i32_1 = arith.constant 0 : i32
    return %c0_i32, %c0_i32_0 : i32, i32
  }
  func.func @transform_6(%arg0: i32) -> (i32, i32) {
    %c0_i32 = arith.constant 0 : i32
    %c0_i32_0 = arith.constant 0 : i32
    %c0_i32_1 = arith.constant 0 : i32
    return %c0_i32, %c0_i32_0 : i32, i32
  }
  func.func @transform_7(%arg0: i32) -> (i32, i32) {
    %c0_i32 = arith.constant 0 : i32
    %c0_i32_0 = arith.constant 0 : i32
    return %arg0, %c0_i32 : i32, i32
  }
}

</mosaic_0001>

<llo_original>
// kernel: _lambda_.8
$region0: #{_lambda_.8}
  #allocation0 [shape = 'u32[]', space=smem, size = 0x4, offset = 0x4, fixed_abs, tag = 'smem constant byte address 0x4 - core index']
  #allocation1 [shape = 'u32[144,128]{1,0:T(1,128)}', space=vmem, size = 0x12000, scoped, tag = 'internal scratch']
  %s0 = inlined_call_operand.vmem [shape: bf16[2,16,128], index: 0, kind: input, shape index: {}]
  %s1 = inlined_call_operand.vmem [shape: f32[2,16,8], index: 1, kind: input, shape index: {}]
  %s2 = inlined_call_operand.vmem [shape: f32[2,4,8], index: 2, kind: input, shape index: {}]
  %s3 = inlined_call_operand.vmem [shape: f32[2,4,16,1], index: 3, kind: input, shape index: {}]
  %s4 = inlined_call_operand.vmem [shape: bf16[128,128], index: 4, kind: input, shape index: {}]
  %s5 = inlined_call_operand.vmem [shape: bf16[8,128], index: 5, kind: input, shape index: {}]
  %s6 = inlined_call_operand.vmem [shape: f32[1,128], index: 6, kind: input, shape index: {}]
  %s7 = inlined_call_operand.vmem [shape: bf16[128,128], index: 7, kind: input, shape index: {}]
  %s8 = inlined_call_operand.vmem [shape: f32[1,128], index: 8, kind: input, shape index: {}]
  %s9 = inlined_call_operand.vmem [shape: bf16[128,256], index: 9, kind: input, shape index: {}]
  %s10 = inlined_call_operand.vmem [shape: f32[1,256], index: 10, kind: input, shape index: {}]
  %s11 = inlined_call_operand.vmem [shape: f32[2,4,256], index: 11, kind: output, shape index: {}]
  %s12 = sld [smem:[#allocation0]]
  $region77: #{_lambda_.8} parent=0
    _
  %s14 = ssub.s32 1, %s12
  %s15 = scalar_select 0, %s14, %s12
  loop: start=0, step=1, limit=4
  $region2: #{_lambda_.8} parent=0 // loop_pre_header
    _
  $region3: #{_lambda_.8} parent=0 // loop_header
    %s17 = sphi 0, %s21
    %p18 = scmp.ge.s32.totalorder %s17, 4
    %s24 = sphi 0, %s36
    %s25 = sphi 0, %s32
    %s26 = sphi 0, %s24
    %s27 = sphi 0, %s25
    %s28 = sphi 0, %s26
    %s29 = sphi 0, %s27
    %s39 = sphi 0, %s41
    %s42 = sphi 0, %s39
    %s43 = sphi 0, %s42
    %s59 = sphi 0, %s43
    %s65 = sphi 0, %s67
    %s68 = sphi 0, %s65
    %s69 = sphi 0, %s68
    %s85 = sphi 0, %s69
    %s93 = sphi 0, %s95
    %s96 = sphi 0, %s93
    %s97 = sphi 0, %s96
    %s113 = sphi 0, %s97
    %s121 = sphi 0, %s123
    %s124 = sphi 0, %s121
    %s125 = sphi 0, %s124
    %s141 = sphi 0, %s125
    %s145 = sphi 0, %s145
    %s147 = sphi 0, %s145
    %s148 = sphi 0, %s147
    %s162 = sphi 0, %s148
    %s166 = sphi 0, %s166
    %s168 = sphi 0, %s166
    %s169 = sphi 0, %s168
    %s183 = sphi 0, %s169
    %s187 = sphi 0, %s187
    %s189 = sphi 0, %s187
    %s190 = sphi 0, %s189
    %s204 = sphi 0, %s190
    %s208 = sphi 0, %s208
    %s210 = sphi 0, %s208
    %s211 = sphi 0, %s210
    %s225 = sphi 0, %s211
    %s229 = sphi 0, %s229
    %s231 = sphi 0, %s229
    %s232 = sphi 0, %s231
    %s246 = sphi 0, %s232
    %s250 = sphi 0, %s250
    %s252 = sphi 0, %s250
    %s253 = sphi 0, %s252
    %s267 = sphi 0, %s253
    %s271 = sphi 0, %s271
    %s273 = sphi 0, %s271
    %s274 = sphi 0, %s273
    %s288 = sphi 0, %s274
    %s296 = sphi 0, %s298
    %s299 = sphi 0, %s296
    %s300 = sphi 0, %s299
    %s316 = sphi 0, %s300
  $region4: #{_lambda_.8} parent=0 // loop_header_branch
    %20 = sbr.rel (%p18) target = $region8
  $region5: #{_lambda_.8} parent=0 // loop_body
    %s22 = ssub.s32 %s17, 1
    %s23 = ssub.s32 %s17, 2
    %s30 = sadd.s32 1, %s25
    %p31 = scmp.ge.s32.totalorder %s30, 1
    %s32 = scalar_select %p31, 0, %s30
    %s33 = sadd.s32 1, %s24
    %s34 = scalar_select %p31, %s33, %s24
    %p35 = scmp.ge.s32.totalorder %s34, 2
    %s36 = scalar_select %p35, 0, %s34
    %s37 = ssub.s32 %s24, %s36
    %p38 = scmp.eq.s32.totalorder %s37, 0
    %s40 = sadd.s32 %s39, 1
    %s41 = scalar_select %p38, %s39, %s40
    %p44 = pneg %p38
    %p45 = scmp.eq.s32.totalorder %s17, 1
    %p46 = por %p44, %p45
    %p47 = scmp.ne.s32.totalorder %s39, %s42
    %p48 = scmp.eq.s32.totalorder %s17, 0
    %p49 = por %p47, %p48
    %p50 = scmp.ne.s32.totalorder %s39, %s42
    %p51 = scmp.eq.s32.totalorder %s22, 1
    %p52 = por %p50, %p51
    %p53 = scmp.ne.s32.totalorder %s42, %s43
    %p54 = scmp.eq.s32.totalorder %s22, 0
    %p55 = por %p53, %p54
    %p56 = scmp.ne.s32.totalorder %s42, %s43
    %p57 = scmp.eq.s32.totalorder %s23, 1
    %p58 = por %p56, %p57
    %p60 = scmp.ne.s32.totalorder %s43, %s59
    %p61 = scmp.eq.s32.totalorder %s23, 0
    %p62 = por %p60, %p61
    %s63 = ssub.s32 %s24, %s36
    %p64 = scmp.eq.s32.totalorder %s63, 0
    %s66 = sadd.s32 %s65, 1
    %s67 = scalar_select %p64, %s65, %s66
    %p70 = pneg %p64
    %p71 = scmp.eq.s32.totalorder %s17, 1
    %p72 = por %p70, %p71
    %p73 = scmp.ne.s32.totalorder %s65, %s68
    %p74 = scmp.eq.s32.totalorder %s17, 0
    %p75 = por %p73, %p74
    %p76 = scmp.ne.s32.totalorder %s65, %s68
    %p77 = scmp.eq.s32.totalorder %s22, 1
    %p78 = por %p76, %p77
    %p79 = scmp.ne.s32.totalorder %s68, %s69
    %p80 = scmp.eq.s32.totalorder %s22, 0
    %p81 = por %p79, %p80
    %p82 = scmp.ne.s32.totalorder %s68, %s69
    %p83 = scmp.eq.s32.totalorder %s23, 1
    %p84 = por %p82, %p83
    %p86 = scmp.ne.s32.totalorder %s69, %s85
    %p87 = scmp.eq.s32.totalorder %s23, 0
    %p88 = por %p86, %p87
    %s89 = ssub.s32 %s24, %s36
    %s90 = ssub.s32 %s25, %s32
    %s91 = sor.u32 %s89, %s90
    %p92 = scmp.eq.s32.totalorder %s91, 0
    %s94 = sadd.s32 %s93, 1
    %s95 = scalar_select %p92, %s93, %s94
    %p98 = pneg %p92
    %p99 = scmp.eq.s32.totalorder %s17, 1
    %p100 = por %p98, %p99
    %p101 = scmp.ne.s32.totalorder %s93, %s96
    %p102 = scmp.eq.s32.totalorder %s17, 0
    %p103 = por %p101, %p102
    %p104 = scmp.ne.s32.totalorder %s93, %s96
    %p105 = scmp.eq.s32.totalorder %s22, 1
    %p106 = por %p104, %p105
    %p107 = scmp.ne.s32.totalorder %s96, %s97
    %p108 = scmp.eq.s32.totalorder %s22, 0
    %p109 = por %p107, %p108
    %p110 = scmp.ne.s32.totalorder %s96, %s97
    %p111 = scmp.eq.s32.totalorder %s23, 1
    %p112 = por %p110, %p111
    %p114 = scmp.ne.s32.totalorder %s97, %s113
    %p115 = scmp.eq.s32.totalorder %s23, 0
    %p116 = por %p114, %p115
    %s117 = ssub.s32 %s24, %s36
    %s118 = ssub.s32 %s25, %s32
    %s119 = sor.u32 %s117, %s118
    %p120 = scmp.eq.s32.totalorder %s119, 0
    %s122 = sadd.s32 %s121, 1
    %s123 = scalar_select %p120, %s121, %s122
    %p126 = pneg %p120
    %p127 = scmp.eq.s32.totalorder %s17, 1
    %p128 = por %p126, %p127
    %p129 = scmp.ne.s32.totalorder %s121, %s124
    %p130 = scmp.eq.s32.totalorder %s17, 0
    %p131 = por %p129, %p130
    %p132 = scmp.ne.s32.totalorder %s121, %s124
    %p133 = scmp.eq.s32.totalorder %s22, 1
    %p134 = por %p132, %p133
    %p135 = scmp.ne.s32.totalorder %s124, %s125
    %p136 = scmp.eq.s32.totalorder %s22, 0
    %p137 = por %p135, %p136
    %p138 = scmp.ne.s32.totalorder %s124, %s125
    %p139 = scmp.eq.s32.totalorder %s23, 1
    %p140 = por %p138, %p139
    %p142 = scmp.ne.s32.totalorder %s125, %s141
    %p143 = scmp.eq.s32.totalorder %s23, 0
    %p144 = por %p142, %p143
    %s146 = sadd.s32 %s145, 1
    %p149 = scmp.eq.s32.totalorder %s17, 1
    %p150 = scmp.ne.s32.totalorder %s145, %s147
    %p151 = scmp.eq.s32.totalorder %s17, 0
    %p152 = por %p150, %p151
    %p153 = scmp.ne.s32.totalorder %s145, %s147
    %p154 = scmp.eq.s32.totalorder %s22, 1
    %p155 = por %p153, %p154
    %p156 = scmp.ne.s32.totalorder %s147, %s148
    %p157 = scmp.eq.s32.totalorder %s22, 0
    %p158 = por %p156, %p157
    %p159 = scmp.ne.s32.totalorder %s147, %s148
    %p160 = scmp.eq.s32.totalorder %s23, 1
    %p161 = por %p159, %p160
    %p163 = scmp.ne.s32.totalorder %s148, %s162
    %p164 = scmp.eq.s32.totalorder %s23, 0
    %p165 = por %p163, %p164
    %s167 = sadd.s32 %s166, 1
    %p170 = scmp.eq.s32.totalorder %s17, 1
    %p171 = scmp.ne.s32.totalorder %s166, %s168
    %p172 = scmp.eq.s32.totalorder %s17, 0
    %p173 = por %p171, %p172
    %p174 = scmp.ne.s32.totalorder %s166, %s168
    %p175 = scmp.eq.s32.totalorder %s22, 1
    %p176 = por %p174, %p175
    %p177 = scmp.ne.s32.totalorder %s168, %s169
    %p178 = scmp.eq.s32.totalorder %s22, 0
    %p179 = por %p177, %p178
    %p180 = scmp.ne.s32.totalorder %s168, %s169
    %p181 = scmp.eq.s32.totalorder %s23, 1
    %p182 = por %p180, %p181
    %p184 = scmp.ne.s32.totalorder %s169, %s183
    %p185 = scmp.eq.s32.totalorder %s23, 0
    %p186 = por %p184, %p185
    %s188 = sadd.s32 %s187, 1
    %p191 = scmp.eq.s32.totalorder %s17, 1
    %p192 = scmp.ne.s32.totalorder %s187, %s189
    %p193 = scmp.eq.s32.totalorder %s17, 0
    %p194 = por %p192, %p193
    %p195 = scmp.ne.s32.totalorder %s187, %s189
    %p196 = scmp.eq.s32.totalorder %s22, 1
    %p197 = por %p195, %p196
    %p198 = scmp.ne.s32.totalorder %s189, %s190
    %p199 = scmp.eq.s32.totalorder %s22, 0
    %p200 = por %p198, %p199
    %p201 = scmp.ne.s32.totalorder %s189, %s190
    %p202 = scmp.eq.s32.totalorder %s23, 1
    %p203 = por %p201, %p202
    %p205 = scmp.ne.s32.totalorder %s190, %s204
    %p206 = scmp.eq.s32.totalorder %s23, 0
    %p207 = por %p205, %p206
    %s209 = sadd.s32 %s208, 1
    %p212 = scmp.eq.s32.totalorder %s17, 1
    %p213 = scmp.ne.s32.totalorder %s208, %s210
    %p214 = scmp.eq.s32.totalorder %s17, 0
    %p215 = por %p213, %p214
    %p216 = scmp.ne.s32.totalorder %s208, %s210
    %p217 = scmp.eq.s32.totalorder %s22, 1
    %p218 = por %p216, %p217
    %p219 = scmp.ne.s32.totalorder %s210, %s211
    %p220 = scmp.eq.s32.totalorder %s22, 0
    %p221 = por %p219, %p220
    %p222 = scmp.ne.s32.totalorder %s210, %s211
    %p223 = scmp.eq.s32.totalorder %s23, 1
    %p224 = por %p222, %p223
    %p226 = scmp.ne.s32.totalorder %s211, %s225
    %p227 = scmp.eq.s32.totalorder %s23, 0
    %p228 = por %p226, %p227
    %s230 = sadd.s32 %s229, 1
    %p233 = scmp.eq.s32.totalorder %s17, 1
    %p234 = scmp.ne.s32.totalorder %s229, %s231
    %p235 = scmp.eq.s32.totalorder %s17, 0
    %p236 = por %p234, %p235
    %p237 = scmp.ne.s32.totalorder %s229, %s231
    %p238 = scmp.eq.s32.totalorder %s22, 1
    %p239 = por %p237, %p238
    %p240 = scmp.ne.s32.totalorder %s231, %s232
    %p241 = scmp.eq.s32.totalorder %s22, 0
    %p242 = por %p240, %p241
    %p243 = scmp.ne.s32.totalorder %s231, %s232
    %p244 = scmp.eq.s32.totalorder %s23, 1
    %p245 = por %p243, %p244
    %p247 = scmp.ne.s32.totalorder %s232, %s246
    %p248 = scmp.eq.s32.totalorder %s23, 0
    %p249 = por %p247, %p248
    %s251 = sadd.s32 %s250, 1
    %p254 = scmp.eq.s32.totalorder %s17, 1
    %p255 = scmp.ne.s32.totalorder %s250, %s252
    %p256 = scmp.eq.s32.totalorder %s17, 0
    %p257 = por %p255, %p256
    %p258 = scmp.ne.s32.totalorder %s250, %s252
    %p259 = scmp.eq.s32.totalorder %s22, 1
    %p260 = por %p258, %p259
    %p261 = scmp.ne.s32.totalorder %s252, %s253
    %p262 = scmp.eq.s32.totalorder %s22, 0
    %p263 = por %p261, %p262
    %p264 = scmp.ne.s32.totalorder %s252, %s253
    %p265 = scmp.eq.s32.totalorder %s23, 1
    %p266 = por %p264, %p265
    %p268 = scmp.ne.s32.totalorder %s253, %s267
    %p269 = scmp.eq.s32.totalorder %s23, 0
    %p270 = por %p268, %p269
    %s272 = sadd.s32 %s271, 1
    %p275 = scmp.eq.s32.totalorder %s17, 1
    %p276 = scmp.ne.s32.totalorder %s271, %s273
    %p277 = scmp.eq.s32.totalorder %s17, 0
    %p278 = por %p276, %p277
    %p279 = scmp.ne.s32.totalorder %s271, %s273
    %p280 = scmp.eq.s32.totalorder %s22, 1
    %p281 = por %p279, %p280
    %p282 = scmp.ne.s32.totalorder %s273, %s274
    %p283 = scmp.eq.s32.totalorder %s22, 0
    %p284 = por %p282, %p283
    %p285 = scmp.ne.s32.totalorder %s273, %s274
    %p286 = scmp.eq.s32.totalorder %s23, 1
    %p287 = por %p285, %p286
    %p289 = scmp.ne.s32.totalorder %s274, %s288
    %p290 = scmp.eq.s32.totalorder %s23, 0
    %p291 = por %p289, %p290
    %s292 = ssub.s32 %s24, %s36
    %s293 = ssub.s32 %s25, %s32
    %s294 = sor.u32 %s292, %s293
    %p295 = scmp.eq.s32.totalorder %s294, 0
    %s297 = sadd.s32 %s296, 1
    %s298 = scalar_select %p295, %s296, %s297
    %p301 = pneg %p295
    %p302 = scmp.eq.s32.totalorder %s17, 1
    %p303 = por %p301, %p302
    %p304 = scmp.ne.s32.totalorder %s296, %s299
    %p305 = scmp.eq.s32.totalorder %s17, 0
    %p306 = por %p304, %p305
    %p307 = scmp.ne.s32.totalorder %s296, %s299
    %p308 = scmp.eq.s32.totalorder %s22, 1
    %p309 = por %p307, %p308
    %p310 = scmp.ne.s32.totalorder %s299, %s300
    %p311 = scmp.eq.s32.totalorder %s22, 0
    %p312 = por %p310, %p311
    %p313 = scmp.ne.s32.totalorder %s299, %s300
    %p314 = scmp.eq.s32.totalorder %s23, 1
    %p315 = por %p313, %p314
    %p317 = scmp.ne.s32.totalorder %s300, %s316
    %p318 = scmp.eq.s32.totalorder %s23, 0
    %p319 = por %p317, %p318
    %p320 = scmp.le.s32.totalorder 1, %s17
    %p321 = scmp.lt.s32.totalorder %s17, 3
    %p322 = pnand %p320, %p321
    %p323 = pneg %p322
    // Predicated region
    $region9: #{_lambda_.8} parent=5 // pred_check
      _
    $region10: #{_lambda_.8} parent=5 // pred_check_branch
      %325 = sbr.rel (%p322) target = $region12
    $region11: #{_lambda_.8} parent=5 // pred_region
      %s326 = ssub.s32 %s17, 1
      // Predicated region
      $region13: #{_lambda_.8} parent=11 // pred_check
        %p327 = pneg %p158
      $region14: #{_lambda_.8} parent=11 // pred_check_branch
        %329 = sbr.rel (%p327) target = $region16
      $region15: #{_lambda_.8} parent=11 // pred_region
        _
      $region16: #{_lambda_.8} parent=11 // pred_fallthru
        _
      // Predicated region
      $region17: #{_lambda_.8} parent=11 // pred_check
        %p330 = pneg %p179
      $region18: #{_lambda_.8} parent=11 // pred_check_branch
        %332 = sbr.rel (%p330) target = $region20
      $region19: #{_lambda_.8} parent=11 // pred_region
        _
      $region20: #{_lambda_.8} parent=11 // pred_fallthru
        _
      // Predicated region
      $region21: #{_lambda_.8} parent=11 // pred_check
        %p333 = pneg %p200
      $region22: #{_lambda_.8} parent=11 // pred_check_branch
        %335 = sbr.rel (%p333) target = $region24
      $region23: #{_lambda_.8} parent=11 // pred_region
        _
      $region24: #{_lambda_.8} parent=11 // pred_fallthru
        _
      // Predicated region
      $region25: #{_lambda_.8} parent=11 // pred_check
        %p336 = pneg %p221
      $region26: #{_lambda_.8} parent=11 // pred_check_branch
        %338 = sbr.rel (%p336) target = $region28
      $region27: #{_lambda_.8} parent=11 // pred_region
        _
      $region28: #{_lambda_.8} parent=11 // pred_fallthru
        _
      // Predicated region
      $region29: #{_lambda_.8} parent=11 // pred_check
        %p339 = pneg %p242
      $region30: #{_lambda_.8} parent=11 // pred_check_branch
        %341 = sbr.rel (%p339) target = $region32
      $region31: #{_lambda_.8} parent=11 // pred_region
        _
      $region32: #{_lambda_.8} parent=11 // pred_fallthru
        _
      // Predicated region
      $region33: #{_lambda_.8} parent=11 // pred_check
        %p342 = pneg %p263
      $region34: #{_lambda_.8} parent=11 // pred_check_branch
        %344 = sbr.rel (%p342) target = $region36
      $region35: #{_lambda_.8} parent=11 // pred_region
        _
      $region36: #{_lambda_.8} parent=11 // pred_fallthru
        _
      // Predicated region
      $region37: #{_lambda_.8} parent=11 // pred_check
        %p345 = pneg %p284
      $region38: #{_lambda_.8} parent=11 // pred_check_branch
        %347 = sbr.rel (%p345) target = $region40
      $region39: #{_lambda_.8} parent=11 // pred_region
        _
      $region40: #{_lambda_.8} parent=11 // pred_fallthru
        _
    $region12: #{_lambda_.8} parent=5 // pred_fallthru
      _
    %p348 = scmp.lt.s32.totalorder %s17, 2
    // Predicated region
    $region41: #{_lambda_.8} parent=5 // pred_check
      %p349 = pneg %p348
    $region42: #{_lambda_.8} parent=5 // pred_check_branch
      %351 = sbr.rel (%p349) target = $region44
    $region43: #{_lambda_.8} parent=5 // pred_region
      // Predicated region
      $region45: #{_lambda_.8} parent=43 // pred_check
        %p352 = pneg %p49
      $region46: #{_lambda_.8} parent=43 // pred_check_branch
        %354 = sbr.rel (%p352) target = $region48
      $region47: #{_lambda_.8} parent=43 // pred_region
        %p355 = scmp.lt.s32.totalorder %s24, 1
        %s356 = scalar_select %p355, %s24, 1
        %s357 = smul.addr %s356, 2
        %s358 = smul.addr %s357, 4
        %s359 = scalar_lea.vmem %s0, %s358
      $region48: #{_lambda_.8} parent=43 // pred_fallthru
        _
      // Predicated region
      $region49: #{_lambda_.8} parent=43 // pred_check
        %p360 = pneg %p75
      $region50: #{_lambda_.8} parent=43 // pred_check_branch
        %362 = sbr.rel (%p360) target = $region52
      $region51: #{_lambda_.8} parent=43 // pred_region
        %p363 = scmp.lt.s32.totalorder %s24, 1
        %s364 = scalar_select %p363, %s24, 1
        %s365 = smul.addr %s364, 2
        %s366 = smul.addr %s365, 8
        %s367 = scalar_lea.vmem %s1, %s366
      $region52: #{_lambda_.8} parent=43 // pred_fallthru
        _
      // Predicated region
      $region53: #{_lambda_.8} parent=43 // pred_check
        %p368 = pneg %p103
      $region54: #{_lambda_.8} parent=43 // pred_check_branch
        %370 = sbr.rel (%p368) target = $region56
      $region55: #{_lambda_.8} parent=43 // pred_region
        %p371 = scmp.lt.s32.totalorder %s24, 1
        %s372 = scalar_select %p371, %s24, 1
        %p373 = scmp.lt.s32.totalorder %s25, 0
        %s374 = scalar_select %p373, %s25, 0
        %s375 = sadd.s32 %s374, %s372
        %s376 = smul.addr %s375, 4
        %s377 = scalar_lea.vmem %s2, %s376
      $region56: #{_lambda_.8} parent=43 // pred_fallthru
        _
      // Predicated region
      $region57: #{_lambda_.8} parent=43 // pred_check
        %p378 = pneg %p131
      $region58: #{_lambda_.8} parent=43 // pred_check_branch
        %380 = sbr.rel (%p378) target = $region60
      $region59: #{_lambda_.8} parent=43 // pred_region
        %s381 = smul.u32 4, %s25
        %p382 = scmp.lt.s32.totalorder %s24, 1
        %s383 = scalar_select %p382, %s24, 1
        %p384 = scmp.lt.s32.totalorder %s381, 3
        %s385 = scalar_select %p384, %s381, 3
        %s386 = smul.addr %s385, 2
        %s387 = smul.addr %s383, 8
        %s388 = sadd.s32 %s386, %s387
        %s389 = smul.addr %s388, 8
        %s390 = scalar_lea.vmem %s3, %s389
        %s391 = smul.u32 4, %s25
      $region60: #{_lambda_.8} parent=43 // pred_fallthru
        _
    $region44: #{_lambda_.8} parent=5 // pred_fallthru
      _
    %p392 = scmp.le.s32.totalorder 1, %s17
    %p393 = scmp.lt.s32.totalorder %s17, 3
    %p394 = pnand %p392, %p393
    %p395 = pneg %p394
    // Predicated region
    $region61: #{_lambda_.8} parent=5 // pred_check
      _
    $region62: #{_lambda_.8} parent=5 // pred_check_branch
      %397 = sbr.rel (%p394) target = $region64
    $region63: #{_lambda_.8} parent=5 // pred_region
      %s398 = ssub.s32 %s17, 1
      %p399 = scmp.lt.s32.totalorder %s26, 1
      %s400 = scalar_select %p399, %s26, 1
      %s401 = smul.addr %s400, 2
      %s402 = smul.addr %s401, 4
      %s403 = scalar_lea.vmem %s0, %s402
      %p404 = pneg %p55
      %p405 = pneg %p52
      %p406 = scmp.lt.s32.totalorder %s26, 1
      %s407 = scalar_select %p406, %s26, 1
      %s408 = smul.addr %s407, 2
      %s409 = smul.addr %s408, 8
      %s410 = scalar_lea.vmem %s1, %s409
      %p411 = pneg %p81
      %p412 = pneg %p78
      %p413 = scmp.lt.s32.totalorder %s26, 1
      %s414 = scalar_select %p413, %s26, 1
      %p415 = scmp.lt.s32.totalorder %s27, 0
      %s416 = scalar_select %p415, %s27, 0
      %s417 = sadd.s32 %s416, %s414
      %s418 = smul.addr %s417, 4
      %s419 = scalar_lea.vmem %s2, %s418
      %p420 = pneg %p109
      %p421 = pneg %p106
      %s422 = smul.u32 4, %s27
      %p423 = scmp.lt.s32.totalorder %s26, 1
      %s424 = scalar_select %p423, %s26, 1
      %p425 = scmp.lt.s32.totalorder %s422, 3
      %s426 = scalar_select %p425, %s422, 3
      %s427 = smul.addr %s426, 2
      %s428 = smul.addr %s424, 8
      %s429 = sadd.s32 %s427, %s428
      %s430 = smul.addr %s429, 8
      %s431 = scalar_lea.vmem %s3, %s430
      %p432 = pneg %p137
      %p433 = pneg %p134
      %p434 = pneg %p158
      %p435 = pneg %p155
      %p436 = pneg %p179
      %p437 = pneg %p176
      %p438 = pneg %p200
      %p439 = pneg %p197
      %p440 = pneg %p221
      %p441 = pneg %p218
      %p442 = pneg %p242
      %p443 = pneg %p239
      %p444 = pneg %p263
      %p445 = pneg %p260
      %p446 = pneg %p284
      %p447 = pneg %p281
      %p448 = pneg %p312
      %p449 = pneg %p309
      %p450 = scmp.lt.s32.totalorder %s26, 1
      %s451 = scalar_select %p450, %s26, 1
      %p452 = scmp.lt.s32.totalorder %s27, 0
      %s453 = scalar_select %p452, %s27, 0
      %s454 = smul.addr %s453, 2
      %s455 = smul.addr %s451, 2
      %s456 = sadd.s32 %s454, %s455
      %s457 = smul.addr %s456, 4
      %s458 = scalar_lea.vmem %s11, %s457
      %p459 = scmp.lt.s32.totalorder %s26, 1
      %s460 = scalar_select %p459, %s26, 1
      %s461 = smul.addr %s460, 2
      %s462 = smul.addr %s461, 4
      %s463 = scalar_lea.vmem %s0, %s462
      %p464 = scmp.lt.s32.totalorder %s26, 1
      %s465 = scalar_select %p464, %s26, 1
      %s466 = smul.addr %s465, 2
      %s467 = smul.addr %s466, 8
      %s468 = scalar_lea.vmem %s1, %s467
      %p469 = scmp.lt.s32.totalorder %s26, 1
      %s470 = scalar_select %p469, %s26, 1
      %p471 = scmp.lt.s32.totalorder %s27, 0
      %s472 = scalar_select %p471, %s27, 0
      %s473 = sadd.s32 %s472, %s470
      %s474 = smul.addr %s473, 4
      %s475 = scalar_lea.vmem %s2, %s474
      %s476 = smul.u32 4, %s27
      %p477 = scmp.lt.s32.totalorder %s26, 1
      %s478 = scalar_select %p477, %s26, 1
      %p479 = scmp.lt.s32.totalorder %s476, 3
      %s480 = scalar_select %p479, %s476, 3
      %s481 = smul.addr %s480, 2
      %s482 = smul.addr %s478, 8
      %s483 = sadd.s32 %s481, %s482
      %s484 = smul.addr %s483, 8
      %s485 = scalar_lea.vmem %s3, %s484
      %s486 = smul.u32 4, %s27
      %p487 = scmp.lt.s32.totalorder %s26, 1
      %s488 = scalar_select %p487, %s26, 1
      %p489 = scmp.lt.s32.totalorder %s27, 0
      %s490 = scalar_select %p489, %s27, 0
      %s491 = smul.addr %s490, 2
      %s492 = smul.addr %s488, 2
      %s493 = sadd.s32 %s491, %s492
      %s494 = smul.addr %s493, 4
      %s495 = scalar_lea.vmem %s11, %s494
      %v497 = vld [vmem:[%s463] sm:$0xf]
      %v498 = vld [vmem:[%s463 + $0x4] sm:$0xf]
      %v499 = vld [vmem:[%s4] sm:$0xf]
      %v500 = vld [vmem:[%s4 + $0x4] sm:$0xf]
      %v501 = vld [vmem:[%s4 + $0x8] sm:$0xf]
      %v502 = vld [vmem:[%s4 + $0xc] sm:$0xf]
      %v503 = vld [vmem:[%s4 + $0x10] sm:$0xf]
      %v504 = vld [vmem:[%s4 + $0x14] sm:$0xf]
      %v505 = vld [vmem:[%s4 + $0x18] sm:$0xf]
      %v506 = vld [vmem:[%s4 + $0x1c] sm:$0xf]
      %v507 = vld [vmem:[%s4 + $0x20] sm:$0xf]
      %v508 = vld [vmem:[%s4 + $0x24] sm:$0xf]
      %v509 = vld [vmem:[%s4 + $0x28] sm:$0xf]
      %v510 = vld [vmem:[%s4 + $0x2c] sm:$0xf]
      %v511 = vld [vmem:[%s4 + $0x30] sm:$0xf]
      %v512 = vld [vmem:[%s4 + $0x34] sm:$0xf]
      %v513 = vld [vmem:[%s4 + $0x38] sm:$0xf]
      %v514 = vld [vmem:[%s4 + $0x3c] sm:$0xf]
      %v517 = vunpack.c.l.b16 %v497
      %v518 = vunpack.c.l.b16 %v498
      %v519 = vpack.c.b16 %v518, %v517
      %v537 = vunpack.c.l.b16 %v499
      %v538 = vunpack.c.l.b16 %v500
      %v539 = vunpack.c.l.b16 %v501
      %v540 = vunpack.c.l.b16 %v502
      %v541 = vunpack.c.l.b16 %v503
      %v542 = vunpack.c.l.b16 %v504
      %v543 = vunpack.c.l.b16 %v505
      %v544 = vunpack.c.l.b16 %v506
      %v545 = vunpack.c.l.b16 %v507
      %v546 = vunpack.c.l.b16 %v508
      %v547 = vunpack.c.l.b16 %v509
      %v548 = vunpack.c.l.b16 %v510
      %v549 = vunpack.c.l.b16 %v511
      %v550 = vunpack.c.l.b16 %v512
      %v551 = vunpack.c.l.b16 %v513
      %v552 = vunpack.c.l.b16 %v514
      %v553 = vpack.c.b16 %v538, %v537
      %v554 = vpack.c.b16 %v540, %v539
      %v555 = vpack.c.b16 %v542, %v541
      %v556 = vpack.c.b16 %v544, %v543
      %v557 = vpack.c.b16 %v546, %v545
      %v558 = vpack.c.b16 %v548, %v547
      %v559 = vpack.c.b16 %v550, %v549
      %v560 = vpack.c.b16 %v552, %v551
      %569 = vmatprep.subr.bf16.mxu0 0
      %570 = vmatpush1.bf16.msra.mxu0 %v560
      %571 = vmatprep.subr.bf16.mxu0 0
      %572 = vmatpush1.bf16.msra.mxu0 %v559
      %573 = vmatprep.subr.bf16.mxu0 0
      %574 = vmatpush1.bf16.msra.mxu0 %v558
      %575 = vmatprep.subr.bf16.mxu0 0
      %576 = vmatpush1.bf16.msra.mxu0 %v557
      %577 = vmatprep.subr.bf16.mxu0 0
      %578 = vmatpush1.bf16.msra.mxu0 %v556
      %579 = vmatprep.subr.bf16.mxu0 0
      %580 = vmatpush1.bf16.msra.mxu0 %v555
      %581 = vmatprep.subr.bf16.mxu0 0
      %582 = vmatpush1.bf16.msra.mxu0 %v554
      %583 = vmatprep.subr.bf16.mxu0 0
      %584 = vmatpush1.bf16.msra.mxu0 %v553
      %585 = vmatprep.subr.bf16.mxu0 0
      %586 = vmatpush2.bf16.msra.mxu0 0
      %587 = vmatprep.subr.bf16.mxu0 0
      %588 = vmatpush2.bf16.msra.mxu0 0
      %589 = vmatprep.subr.bf16.mxu0 0
      %590 = vmatpush2.bf16.msra.mxu0 0
      %591 = vmatprep.subr.bf16.mxu0 0
      %592 = vmatpush2.bf16.msra.mxu0 0
      %593 = vmatprep.subr.bf16.mxu0 0
      %594 = vmatpush2.bf16.msra.mxu0 0
      %595 = vmatprep.subr.bf16.mxu0 0
      %596 = vmatpush2.bf16.msra.mxu0 0
      %597 = vmatprep.subr.bf16.mxu0 0
      %598 = vmatpush2.bf16.msra.mxu0 0
      %599 = vmatprep.subr.bf16.mxu0 0
      %600 = vmatpush2.bf16.msra.mxu0 0
      %601 = vmatprep.mubr.bf16.mxu0 0
      %602 = vmatmul.mubr.bf16.gmra.mxu0 %v519
      %v603 = vpop.f32.mrf.mxu0
      %v604 = vadd.f32 0.0, %v603
      %v605 = vpop.f32.mrf.mxu0
      %v606 = vpop.f32.mrf.mxu0
      %v607 = vadd.f32 0.0, %v606
      %v608 = vpop.f32.mrf.mxu0
      %609 = vdwg.mxu0
      %v610 = vld [vmem:[%s468] sm:$0xff]
      %v611 = vld [vmem:[%s468 + $0x8] sm:$0xff]
      %v612 = vld [vmem:[%s475] sm:$0xf]
      %v615 = vunpack.c.l.s4 1966171168
      %v616 = vunpack.c.0.s8 %v615
      %v617 = vlaneseq
      %v618 = vshrl.u32 %v617, 7
      %v619 = vsub.s32 %v616, %v618
      %v620 = vrot.slane %v612, %v619
      %v621 = vcombine.high %v620, %v620
      %v623 = vunpack.c.l.s4 1966171168
      %v624 = vunpack.c.0.s8 %v623
      %v625 = vlaneseq
      %v626 = vshrl.u32 %v625, 7
      %v627 = vsub.s32 %v624, %v626
      %v628 = vrot.slane %v620, %v627
      %v630 = vunpack.c.l.s4 1966171168
      %v631 = vunpack.c.0.s8 %v630
      %v632 = vlaneseq
      %v633 = vshrl.u32 %v632, 7
      %v634 = vsub.s32 %v631, %v633
      %v635 = vrot.slane %v621, %v634
      %v636 = vcombine.high %v628, %v628
      %v637 = vcombine.high %v635, %v635
      %v638 = vlaneseq
      %v639 = vshrl.u32 %v638, 7
      %v640 = vsub.s32 0, %v639
      %v641 = vrot.slane %v628, %v640
      %v642 = vlaneseq
      %v643 = vshrl.u32 %v642, 7
      %v644 = vsub.s32 0, %v643
      %v645 = vrot.slane %v635, %v644
      %v646 = vlaneseq
      %v647 = vshrl.u32 %v646, 7
      %v648 = vsub.s32 0, %v647
      %v649 = vrot.slane %v636, %v648
      %v650 = vlaneseq
      %v651 = vshrl.u32 %v650, 7
      %v652 = vsub.s32 0, %v651
      %v653 = vrot.slane %v637, %v652
      %v658 = vsub.f32 %v610, %v641
      %v659 = vsub.f32 %v611, %v641
      %v660 = vsub.f32 %v610, %v645
      %v661 = vsub.f32 %v611, %v645
      %v662 = vsub.f32 %v610, %v649
      %v663 = vsub.f32 %v611, %v649
      %v664 = vsub.f32 %v610, %v653
      %v665 = vsub.f32 %v611, %v653
      %v666 = vpack.c.bf16 %v659, %v658
      %v667 = vpack.c.bf16 %v661, %v660
      %v668 = vpack.c.bf16 %v663, %v662
      %v669 = vpack.c.bf16 %v665, %v664
      %v670 = vld [vmem:[%s5] sm:$0xf]
      %vm671 = vcmask 64512
      %v673 = vsel %vm671, %v666, 0
      %v676 = vsel %vm671, %v667, 0
      %v679 = vsel %vm671, %v668, 0
      %v682 = vsel %vm671, %v669, 0
      %vm684 = vcmask 1043456
      %v686 = vsel %vm684, %v670, 0
      %688 = vmatprep.subr.bf16.mxu0 0
      %689 = vmatpush1.bf16.msra.mxu0 0
      %690 = vmatprep.subr.bf16.mxu0 0
      %691 = vmatpush1.bf16.msra.mxu0 0
      %692 = vmatprep.subr.bf16.mxu0 0
      %693 = vmatpush1.bf16.msra.mxu0 0
      %694 = vmatprep.subr.bf16.mxu0 0
      %695 = vmatpush1.bf16.msra.mxu0 0
      %696 = vmatprep.subr.bf16.mxu0 0
      %697 = vmatpush1.bf16.msra.mxu0 0
      %698 = vmatprep.subr.bf16.mxu0 0
      %699 = vmatpush1.bf16.msra.mxu0 0
      %700 = vmatprep.subr.bf16.mxu0 0
      %701 = vmatpush1.bf16.msra.mxu0 0
      %702 = vmatprep.subr.bf16.mxu0 0
      %703 = vmatpush1.bf16.msra.mxu0 %v686
      %704 = vmatprep.subr.bf16.mxu0 0
      %705 = vmatpush2.bf16.msra.mxu0 0
      %706 = vmatprep.subr.bf16.mxu0 0
      %707 = vmatpush2.bf16.msra.mxu0 0
      %708 = vmatprep.subr.bf16.mxu0 0
      %709 = vmatpush2.bf16.msra.mxu0 0
      %710 = vmatprep.subr.bf16.mxu0 0
      %711 = vmatpush2.bf16.msra.mxu0 0
      %712 = vmatprep.subr.bf16.mxu0 0
      %713 = vmatpush2.bf16.msra.mxu0 0
      %714 = vmatprep.subr.bf16.mxu0 0
      %715 = vmatpush2.bf16.msra.mxu0 0
      %716 = vmatprep.subr.bf16.mxu0 0
      %717 = vmatpush2.bf16.msra.mxu0 0
      %718 = vmatprep.subr.bf16.mxu0 0
      %719 = vmatpush2.bf16.msra.mxu0 0
      %720 = vmatprep.mubr.bf16.mxu0 0
      %721 = vmatmul.mubr.bf16.gmra.mxu0 %v673
      %v722 = vpop.f32.mrf.mxu0
      %v723 = vadd.f32 0.0, %v722
      %v724 = vpop.f32.mrf.mxu0
      %v725 = vpop.f32.mrf.mxu0
      %v726 = vadd.f32 0.0, %v725
      %v727 = vpop.f32.mrf.mxu0
      %728 = vmatprep.mubr.bf16.mxu0 0
      %729 = vmatmul.mubr.bf16.gmra.mxu0 %v676
      %v730 = vpop.f32.mrf.mxu0
      %v731 = vadd.f32 0.0, %v730
      %v732 = vpop.f32.mrf.mxu0
      %v733 = vpop.f32.mrf.mxu0
      %v734 = vadd.f32 0.0, %v733
      %v735 = vpop.f32.mrf.mxu0
      %736 = vmatprep.mubr.bf16.mxu0 0
      %737 = vmatmul.mubr.bf16.gmra.mxu0 %v679
      %v738 = vpop.f32.mrf.mxu0
      %v739 = vadd.f32 0.0, %v738
      %v740 = vpop.f32.mrf.mxu0
      %v741 = vpop.f32.mrf.mxu0
      %v742 = vadd.f32 0.0, %v741
      %v743 = vpop.f32.mrf.mxu0
      %744 = vmatprep.mubr.bf16.mxu0 0
      %745 = vmatmul.mubr.bf16.gmra.mxu0 %v682
      %v746 = vpop.f32.mrf.mxu0
      %v747 = vadd.f32 0.0, %v746
      %v748 = vpop.f32.mrf.mxu0
      %v749 = vpop.f32.mrf.mxu0
      %v750 = vadd.f32 0.0, %v749
      %v751 = vpop.f32.mrf.mxu0
      %752 = vdwg.mxu0
      %v753 = vadd.f32 %v723, %v604
      %v754 = vadd.f32 %v726, %v607
      %v755 = vadd.f32 %v731, %v604
      %v756 = vadd.f32 %v734, %v607
      %v757 = vadd.f32 %v739, %v604
      %v758 = vadd.f32 %v742, %v607
      %v759 = vadd.f32 %v747, %v604
      %v760 = vadd.f32 %v750, %v607
      %v761 = vld [vmem:[%s6] sm:$0x1]
      %v763 = vlaneseq
      %v764 = vshrl.u32 %v763, 7
      %v765 = vsub.s32 0, %v764
      %v766 = vrot.slane %v761, %v765
      %v768 = vadd.f32 %v753, %v766
      %v769 = vadd.f32 %v754, %v766
      %v770 = vadd.f32 %v755, %v766
      %v771 = vadd.f32 %v756, %v766
      %v772 = vadd.f32 %v757, %v766
      %v773 = vadd.f32 %v758, %v766
      %v774 = vadd.f32 %v759, %v766
      %v775 = vadd.f32 %v760, %v766
      %v776 = vmax.f32 %v768, 0.0
      %v777 = vmax.f32 %v769, 0.0
      %v778 = vmax.f32 %v770, 0.0
      %v779 = vmax.f32 %v771, 0.0
      %v780 = vmax.f32 %v772, 0.0
      %v781 = vmax.f32 %v773, 0.0
      %v782 = vmax.f32 %v774, 0.0
      %v783 = vmax.f32 %v775, 0.0
      %v784 = vpack.c.bf16 %v777, %v776
      %v785 = vpack.c.bf16 %v779, %v778
      %v786 = vpack.c.bf16 %v781, %v780
      %v787 = vpack.c.bf16 %v783, %v782
      %v788 = vld [vmem:[%s7] sm:$0xf]
      %v789 = vld [vmem:[%s7 + $0x4] sm:$0xf]
      %v790 = vld [vmem:[%s7 + $0x8] sm:$0xf]
      %v791 = vld [vmem:[%s7 + $0xc] sm:$0xf]
      %v792 = vld [vmem:[%s7 + $0x10] sm:$0xf]
      %v793 = vld [vmem:[%s7 + $0x14] sm:$0xf]
      %v794 = vld [vmem:[%s7 + $0x18] sm:$0xf]
      %v795 = vld [vmem:[%s7 + $0x1c] sm:$0xf]
      %v796 = vld [vmem:[%s7 + $0x20] sm:$0xf]
      %v797 = vld [vmem:[%s7 + $0x24] sm:$0xf]
      %v798 = vld [vmem:[%s7 + $0x28] sm:$0xf]
      %v799 = vld [vmem:[%s7 + $0x2c] sm:$0xf]
      %v800 = vld [vmem:[%s7 + $0x30] sm:$0xf]
      %v801 = vld [vmem:[%s7 + $0x34] sm:$0xf]
      %v802 = vld [vmem:[%s7 + $0x38] sm:$0xf]
      %v803 = vld [vmem:[%s7 + $0x3c] sm:$0xf]
      %v804 = vld [vmem:[%s8] sm:$0x1]
      %v806 = vlaneseq
      %v807 = vshrl.u32 %v806, 7
      %v808 = vsub.s32 0, %v807
      %v809 = vrot.slane %v804, %v808
      %v827 = vunpack.c.l.b16 %v788
      %v828 = vunpack.c.l.b16 %v789
      %v829 = vunpack.c.l.b16 %v790
      %v830 = vunpack.c.l.b16 %v791
      %v831 = vunpack.c.l.b16 %v792
      %v832 = vunpack.c.l.b16 %v793
      %v833 = vunpack.c.l.b16 %v794
      %v834 = vunpack.c.l.b16 %v795
      %v835 = vunpack.c.l.b16 %v796
      %v836 = vunpack.c.l.b16 %v797
      %v837 = vunpack.c.l.b16 %v798
      %v838 = vunpack.c.l.b16 %v799
      %v839 = vunpack.c.l.b16 %v800
      %v840 = vunpack.c.l.b16 %v801
      %v841 = vunpack.c.l.b16 %v802
      %v842 = vunpack.c.l.b16 %v803
      %v843 = vpack.c.b16 %v828, %v827
      %v844 = vpack.c.b16 %v830, %v829
      %v845 = vpack.c.b16 %v832, %v831
      %v846 = vpack.c.b16 %v834, %v833
      %v847 = vpack.c.b16 %v836, %v835
      %v848 = vpack.c.b16 %v838, %v837
      %v849 = vpack.c.b16 %v840, %v839
      %v850 = vpack.c.b16 %v842, %v841
      %859 = vmatprep.subr.bf16.mxu0 0
      %860 = vmatpush1.bf16.msra.mxu0 %v850
      %861 = vmatprep.subr.bf16.mxu0 0
      %862 = vmatpush1.bf16.msra.mxu0 %v849
      %863 = vmatprep.subr.bf16.mxu0 0
      %864 = vmatpush1.bf16.msra.mxu0 %v848
      %865 = vmatprep.subr.bf16.mxu0 0
      %866 = vmatpush1.bf16.msra.mxu0 %v847
      %867 = vmatprep.subr.bf16.mxu0 0
      %868 = vmatpush1.bf16.msra.mxu0 %v846
      %869 = vmatprep.subr.bf16.mxu0 0
      %870 = vmatpush1.bf16.msra.mxu0 %v845
      %871 = vmatprep.subr.bf16.mxu0 0
      %872 = vmatpush1.bf16.msra.mxu0 %v844
      %873 = vmatprep.subr.bf16.mxu0 0
      %874 = vmatpush1.bf16.msra.mxu0 %v843
      %875 = vmatprep.subr.bf16.mxu0 0
      %876 = vmatpush2.bf16.msra.mxu0 0
      %877 = vmatprep.subr.bf16.mxu0 0
      %878 = vmatpush2.bf16.msra.mxu0 0
      %879 = vmatprep.subr.bf16.mxu0 0
      %880 = vmatpush2.bf16.msra.mxu0 0
      %881 = vmatprep.subr.bf16.mxu0 0
      %882 = vmatpush2.bf16.msra.mxu0 0
      %883 = vmatprep.subr.bf16.mxu0 0
      %884 = vmatpush2.bf16.msra.mxu0 0
      %885 = vmatprep.subr.bf16.mxu0 0
      %886 = vmatpush2.bf16.msra.mxu0 0
      %887 = vmatprep.subr.bf16.mxu0 0
      %888 = vmatpush2.bf16.msra.mxu0 0
      %889 = vmatprep.subr.bf16.mxu0 0
      %890 = vmatpush2.bf16.msra.mxu0 0
      %891 = vmatprep.mubr.bf16.mxu0 0
      %892 = vmatmul.mubr.bf16.gmra.mxu0 %v784
      %v893 = vpop.f32.mrf.mxu0
      %v894 = vadd.f32 %v809, %v893
      %v895 = vpop.f32.mrf.mxu0
      %v896 = vpop.f32.mrf.mxu0
      %v897 = vadd.f32 %v809, %v896
      %v898 = vpop.f32.mrf.mxu0
      %899 = vmatprep.mubr.bf16.mxu0 0
      %900 = vmatmul.mubr.bf16.gmra.mxu0 %v785
      %v901 = vpop.f32.mrf.mxu0
      %v902 = vadd.f32 %v809, %v901
      %v903 = vpop.f32.mrf.mxu0
      %v904 = vpop.f32.mrf.mxu0
      %v905 = vadd.f32 %v809, %v904
      %v906 = vpop.f32.mrf.mxu0
      %907 = vmatprep.mubr.bf16.mxu0 0
      %908 = vmatmul.mubr.bf16.gmra.mxu0 %v786
      %v909 = vpop.f32.mrf.mxu0
      %v910 = vadd.f32 %v809, %v909
      %v911 = vpop.f32.mrf.mxu0
      %v912 = vpop.f32.mrf.mxu0
      %v913 = vadd.f32 %v809, %v912
      %v914 = vpop.f32.mrf.mxu0
      %915 = vmatprep.mubr.bf16.mxu0 0
      %916 = vmatmul.mubr.bf16.gmra.mxu0 %v787
      %v917 = vpop.f32.mrf.mxu0
      %v918 = vadd.f32 %v809, %v917
      %v919 = vpop.f32.mrf.mxu0
      %v920 = vpop.f32.mrf.mxu0
      %v921 = vadd.f32 %v809, %v920
      %v922 = vpop.f32.mrf.mxu0
      %923 = vdwg.mxu0
      %v924 = vmax.f32 %v894, 0.0
      %v925 = vmax.f32 %v897, 0.0
      %v926 = vmax.f32 %v902, 0.0
      %v927 = vmax.f32 %v905, 0.0
      %v928 = vmax.f32 %v910, 0.0
      %v929 = vmax.f32 %v913, 0.0
      %v930 = vmax.f32 %v918, 0.0
      %v931 = vmax.f32 %v921, 0.0
      %v932 = vpack.c.bf16 %v925, %v924
      %v933 = vpack.c.bf16 %v927, %v926
      %v934 = vpack.c.bf16 %v929, %v928
      %v935 = vpack.c.bf16 %v931, %v930
      %v936 = vld [vmem:[%s9] sm:$0xff]
      %v937 = vld [vmem:[%s9 + $0x8] sm:$0xff]
      %v938 = vld [vmem:[%s9 + $0x10] sm:$0xff]
      %v939 = vld [vmem:[%s9 + $0x18] sm:$0xff]
      %v940 = vld [vmem:[%s9 + $0x20] sm:$0xff]
      %v941 = vld [vmem:[%s9 + $0x28] sm:$0xff]
      %v942 = vld [vmem:[%s9 + $0x30] sm:$0xff]
      %v943 = vld [vmem:[%s9 + $0x38] sm:$0xff]
      %v944 = vld [vmem:[%s9 + $0x40] sm:$0xff]
      %v945 = vld [vmem:[%s9 + $0x48] sm:$0xff]
      %v946 = vld [vmem:[%s9 + $0x50] sm:$0xff]
      %v947 = vld [vmem:[%s9 + $0x58] sm:$0xff]
      %v948 = vld [vmem:[%s9 + $0x60] sm:$0xff]
      %v949 = vld [vmem:[%s9 + $0x68] sm:$0xff]
      %v950 = vld [vmem:[%s9 + $0x70] sm:$0xff]
      %v951 = vld [vmem:[%s9 + $0x78] sm:$0xff]
      %v952 = vld [vmem:[%s10] sm:$0x3]
      %v954 = vlaneseq
      %v955 = vshrl.u32 %v954, 7
      %v956 = vsub.s32 0, %v955
      %v957 = vrot.slane %v952, %v956
      %v958 = vlaneseq
      %v959 = vshrl.u32 %v958, 7
      %v960 = vsub.s32 1, %v959
      %v961 = vrot.slane %v952, %v960
      %v980 = vunpack.c.l.b16 %v936
      %v981 = vunpack.c.h.b16 %v936
      %v982 = vunpack.c.l.b16 %v937
      %v983 = vunpack.c.h.b16 %v937
      %v984 = vunpack.c.l.b16 %v938
      %v985 = vunpack.c.h.b16 %v938
      %v986 = vunpack.c.l.b16 %v939
      %v987 = vunpack.c.h.b16 %v939
      %v988 = vunpack.c.l.b16 %v940
      %v989 = vunpack.c.h.b16 %v940
      %v990 = vunpack.c.l.b16 %v941
      %v991 = vunpack.c.h.b16 %v941
      %v992 = vunpack.c.l.b16 %v942
      %v993 = vunpack.c.h.b16 %v942
      %v994 = vunpack.c.l.b16 %v943
      %v995 = vunpack.c.h.b16 %v943
      %v996 = vunpack.c.l.b16 %v944
      %v997 = vunpack.c.h.b16 %v944
      %v998 = vunpack.c.l.b16 %v945
      %v999 = vunpack.c.h.b16 %v945
      %v1000 = vunpack.c.l.b16 %v946
      %v1001 = vunpack.c.h.b16 %v946
      %v1002 = vunpack.c.l.b16 %v947
      %v1003 = vunpack.c.h.b16 %v947
      %v1004 = vunpack.c.l.b16 %v948
      %v1005 = vunpack.c.h.b16 %v948
      %v1006 = vunpack.c.l.b16 %v949
      %v1007 = vunpack.c.h.b16 %v949
      %v1008 = vunpack.c.l.b16 %v950
      %v1009 = vunpack.c.h.b16 %v950
      %v1010 = vunpack.c.l.b16 %v951
      %v1011 = vunpack.c.h.b16 %v951
      %v1012 = vpack.c.b16 %v982, %v980
      %v1013 = vpack.c.b16 %v983, %v981
      %v1014 = vpack.c.b16 %v986, %v984
      %v1015 = vpack.c.b16 %v987, %v985
      %v1016 = vpack.c.b16 %v990, %v988
      %v1017 = vpack.c.b16 %v991, %v989
      %v1018 = vpack.c.b16 %v994, %v992
      %v1019 = vpack.c.b16 %v995, %v993
      %v1020 = vpack.c.b16 %v998, %v996
      %v1021 = vpack.c.b16 %v999, %v997
      %v1022 = vpack.c.b16 %v1002, %v1000
      %v1023 = vpack.c.b16 %v1003, %v1001
      %v1024 = vpack.c.b16 %v1006, %v1004
      %v1025 = vpack.c.b16 %v1007, %v1005
      %v1026 = vpack.c.b16 %v1010, %v1008
      %v1027 = vpack.c.b16 %v1011, %v1009
      %1044 = vmatprep.subr.bf16.mxu0 %v1027
      %1045 = vmatpush1.bf16.msra.mxu0 %v1026
      %1046 = vmatprep.subr.bf16.mxu0 %v1025
      %1047 = vmatpush1.bf16.msra.mxu0 %v1024
      %1048 = vmatprep.subr.bf16.mxu0 %v1023
      %1049 = vmatpush1.bf16.msra.mxu0 %v1022
      %1050 = vmatprep.subr.bf16.mxu0 %v1021
      %1051 = vmatpush1.bf16.msra.mxu0 %v1020
      %1052 = vmatprep.subr.bf16.mxu0 %v1019
      %1053 = vmatpush1.bf16.msra.mxu0 %v1018
      %1054 = vmatprep.subr.bf16.mxu0 %v1017
      %1055 = vmatpush1.bf16.msra.mxu0 %v1016
      %1056 = vmatprep.subr.bf16.mxu0 %v1015
      %1057 = vmatpush1.bf16.msra.mxu0 %v1014
      %1058 = vmatprep.subr.bf16.mxu0 %v1013
      %1059 = vmatpush1.bf16.msra.mxu0 %v1012
      %1060 = vmatprep.subr.bf16.mxu0 0
      %1061 = vmatpush2.bf16.msra.mxu0 0
      %1062 = vmatprep.subr.bf16.mxu0 0
      %1063 = vmatpush2.bf16.msra.mxu0 0
      %1064 = vmatprep.subr.bf16.mxu0 0
      %1065 = vmatpush2.bf16.msra.mxu0 0
      %1066 = vmatprep.subr.bf16.mxu0 0
      %1067 = vmatpush2.bf16.msra.mxu0 0
      %1068 = vmatprep.subr.bf16.mxu0 0
      %1069 = vmatpush2.bf16.msra.mxu0 0
      %1070 = vmatprep.subr.bf16.mxu0 0
      %1071 = vmatpush2.bf16.msra.mxu0 0
      %1072 = vmatprep.subr.bf16.mxu0 0
      %1073 = vmatpush2.bf16.msra.mxu0 0
      %1074 = vmatprep.subr.bf16.mxu0 0
      %1075 = vmatpush2.bf16.msra.mxu0 0
      %1076 = vmatprep.mubr.bf16.mxu0 0
      %1077 = vmatmul.mubr.bf16.gmra.mxu0 %v932
      %v1078 = vpop.f32.mrf.mxu0
      %v1079 = vadd.f32 %v957, %v1078
      %v1080 = vpop.f32.mrf.mxu0
      %v1081 = vadd.f32 %v961, %v1080
      %v1082 = vpop.f32.mrf.mxu0
      %v1083 = vadd.f32 %v957, %v1082
      %v1084 = vpop.f32.mrf.mxu0
      %v1085 = vadd.f32 %v961, %v1084
      %1086 = vmatprep.mubr.bf16.mxu0 0
      %1087 = vmatmul.mubr.bf16.gmra.mxu0 %v933
      %v1088 = vpop.f32.mrf.mxu0
      %v1089 = vadd.f32 %v957, %v1088
      %v1090 = vpop.f32.mrf.mxu0
      %v1091 = vadd.f32 %v961, %v1090
      %v1092 = vpop.f32.mrf.mxu0
      %v1093 = vadd.f32 %v957, %v1092
      %v1094 = vpop.f32.mrf.mxu0
      %v1095 = vadd.f32 %v961, %v1094
      %1096 = vmatprep.mubr.bf16.mxu0 0
      %1097 = vmatmul.mubr.bf16.gmra.mxu0 %v934
      %v1098 = vpop.f32.mrf.mxu0
      %v1099 = vadd.f32 %v957, %v1098
      %v1100 = vpop.f32.mrf.mxu0
      %v1101 = vadd.f32 %v961, %v1100
      %v1102 = vpop.f32.mrf.mxu0
      %v1103 = vadd.f32 %v957, %v1102
      %v1104 = vpop.f32.mrf.mxu0
      %v1105 = vadd.f32 %v961, %v1104
      %1106 = vmatprep.mubr.bf16.mxu0 0
      %1107 = vmatmul.mubr.bf16.gmra.mxu0 %v935
      %v1108 = vpop.f32.mrf.mxu0
      %v1109 = vadd.f32 %v957, %v1108
      %v1110 = vpop.f32.mrf.mxu0
      %v1111 = vadd.f32 %v961, %v1110
      %v1112 = vpop.f32.mrf.mxu0
      %v1113 = vadd.f32 %v957, %v1112
      %v1114 = vpop.f32.mrf.mxu0
      %v1115 = vadd.f32 %v961, %v1114
      %1116 = vdwg.mxu0
      %v1117 = vld [vmem:[%s485] sm:$0xff]
      %v1118 = vld [vmem:[%s485 + $0x8] sm:$0xff]
      %v1119 = vld [vmem:[%s485 + $0x10] sm:$0xff]
      %v1120 = vld [vmem:[%s485 + $0x18] sm:$0xff]
      %v1121 = vld [vmem:[%s485 + $0x20] sm:$0xff]
      %v1122 = vld [vmem:[%s485 + $0x28] sm:$0xff]
      %v1123 = vld [vmem:[%s485 + $0x30] sm:$0xff]
      %v1124 = vld [vmem:[%s485 + $0x38] sm:$0xff]
      %1126 = vset.pattern.permute.xlu0 0
      %1127 = vperm.xlu0 %1126, %v1117
      %v1128 = vpop.permute.xlu0 %1127
      %1131 = vset.pattern.permute.xlu0 0
      %1132 = vperm.xlu0 %1131, %v1118
      %v1133 = vpop.permute.xlu0 %1132
      %1136 = vset.pattern.permute.xlu0 0
      %1137 = vperm.xlu0 %1136, %v1119
      %v1138 = vpop.permute.xlu0 %1137
      %1141 = vset.pattern.permute.xlu0 0
      %1142 = vperm.xlu0 %1141, %v1120
      %v1143 = vpop.permute.xlu0 %1142
      %1146 = vset.pattern.permute.xlu0 0
      %1147 = vperm.xlu0 %1146, %v1121
      %v1148 = vpop.permute.xlu0 %1147
      %1151 = vset.pattern.permute.xlu0 0
      %1152 = vperm.xlu0 %1151, %v1122
      %v1153 = vpop.permute.xlu0 %1152
      %1156 = vset.pattern.permute.xlu0 0
      %1157 = vperm.xlu0 %1156, %v1123
      %v1158 = vpop.permute.xlu0 %1157
      %1161 = vset.pattern.permute.xlu0 0
      %1162 = vperm.xlu0 %1161, %v1124
      %v1163 = vpop.permute.xlu0 %1162
      %v1165 = vadd.f32 %v1079, %v1128
      %v1166 = vadd.f32 %v1081, %v1128
      %v1167 = vadd.f32 %v1083, %v1133
      %v1168 = vadd.f32 %v1085, %v1133
      %v1169 = vadd.f32 %v1089, %v1138
      %v1170 = vadd.f32 %v1091, %v1138
      %v1171 = vadd.f32 %v1093, %v1143
      %v1172 = vadd.f32 %v1095, %v1143
      %v1173 = vadd.f32 %v1099, %v1148
      %v1174 = vadd.f32 %v1101, %v1148
      %v1175 = vadd.f32 %v1103, %v1153
      %v1176 = vadd.f32 %v1105, %v1153
      %v1177 = vadd.f32 %v1109, %v1158
      %v1178 = vadd.f32 %v1111, %v1158
      %v1179 = vadd.f32 %v1113, %v1163
      %v1180 = vadd.f32 %v1115, %v1163
      %v1181 = vmax.f32 %v1165, %v1167
      %v1182 = vrot.slane %v1181, 4
      %v1183 = vmax.f32 %v1181, %v1182
      %v1184 = vrot.slane %v1183, 2
      %v1185 = vmax.f32 %v1183, %v1184
      %v1186 = vrot.slane %v1185, 1
      %v1187 = vmax.f32 %v1185, %v1186
      %v1188 = vmax.f32 %v1166, %v1168
      %v1189 = vrot.slane %v1188, 4
      %v1190 = vmax.f32 %v1188, %v1189
      %v1191 = vrot.slane %v1190, 2
      %v1192 = vmax.f32 %v1190, %v1191
      %v1193 = vrot.slane %v1192, 1
      %v1194 = vmax.f32 %v1192, %v1193
      %v1195 = vmax.f32 %v1169, %v1171
      %v1196 = vrot.slane %v1195, 4
      %v1197 = vmax.f32 %v1195, %v1196
      %v1198 = vrot.slane %v1197, 2
      %v1199 = vmax.f32 %v1197, %v1198
      %v1200 = vrot.slane %v1199, 1
      %v1201 = vmax.f32 %v1199, %v1200
      %v1202 = vmax.f32 %v1170, %v1172
      %v1203 = vrot.slane %v1202, 4
      %v1204 = vmax.f32 %v1202, %v1203
      %v1205 = vrot.slane %v1204, 2
      %v1206 = vmax.f32 %v1204, %v1205
      %v1207 = vrot.slane %v1206, 1
      %v1208 = vmax.f32 %v1206, %v1207
      %v1209 = vmax.f32 %v1173, %v1175
      %v1210 = vrot.slane %v1209, 4
      %v1211 = vmax.f32 %v1209, %v1210
      %v1212 = vrot.slane %v1211, 2
      %v1213 = vmax.f32 %v1211, %v1212
      %v1214 = vrot.slane %v1213, 1
      %v1215 = vmax.f32 %v1213, %v1214
      %v1216 = vmax.f32 %v1174, %v1176
      %v1217 = vrot.slane %v1216, 4
      %v1218 = vmax.f32 %v1216, %v1217
      %v1219 = vrot.slane %v1218, 2
      %v1220 = vmax.f32 %v1218, %v1219
      %v1221 = vrot.slane %v1220, 1
      %v1222 = vmax.f32 %v1220, %v1221
      %v1223 = vmax.f32 %v1177, %v1179
      %v1224 = vrot.slane %v1223, 4
      %v1225 = vmax.f32 %v1223, %v1224
      %v1226 = vrot.slane %v1225, 2
      %v1227 = vmax.f32 %v1225, %v1226
      %v1228 = vrot.slane %v1227, 1
      %v1229 = vmax.f32 %v1227, %v1228
      %v1230 = vmax.f32 %v1178, %v1180
      %v1231 = vrot.slane %v1230, 4
      %v1232 = vmax.f32 %v1230, %v1231
      %v1233 = vrot.slane %v1232, 2
      %v1234 = vmax.f32 %v1232, %v1233
      %v1235 = vrot.slane %v1234, 1
      %v1236 = vmax.f32 %v1234, %v1235
      %v1245 = vcombine.low %v1187, %v1194
      %v1246 = vcombine.low %v1201, %v1208
      %v1247 = vcombine.low %v1215, %v1222
      %v1248 = vcombine.low %v1229, %v1236
      %v1249 = vrot.slane %v1246, 7
      %vm1250 = vcmask 1041409
      %v1251 = vsel %vm1250, %v1249, %v1245
      %vm1252 = vcmask 1045509
      %v1253 = vsel %vm1252, %v1249, %v1251
      %v1254 = vrot.slane %v1247, 6
      %vm1255 = vcmask 1042434
      %v1256 = vsel %vm1255, %v1254, %v1253
      %vm1257 = vcmask 1046534
      %v1258 = vsel %vm1257, %v1254, %v1256
      %v1259 = vrot.slane %v1248, 5
      %vm1260 = vcmask 1043459
      %v1261 = vsel %vm1260, %v1259, %v1258
      %vm1262 = vcmask 1047559
      %v1263 = vsel %vm1262, %v1259, %v1261
      %1265 = vst [vmem:[%s495] sm:$0xff] %v1263
      %p1266 = scmp.lt.s32.totalorder %s26, 1
      %s1267 = scalar_select %p1266, %s26, 1
      %p1268 = scmp.lt.s32.totalorder %s27, 0
      %s1269 = scalar_select %p1268, %s27, 0
      %s1270 = smul.addr %s1269, 2
      %s1271 = smul.addr %s1267, 2
      %s1272 = sadd.s32 %s1270, %s1271
      %s1273 = smul.addr %s1272, 4
      %s1274 = scalar_lea.vmem %s11, %s1273
      // Predicated region
      $region65: #{_lambda_.8} parent=63 // pred_check
        %p1275 = pneg %p309
      $region66: #{_lambda_.8} parent=63 // pred_check_branch
        %1277 = sbr.rel (%p1275) target = $region68
      $region67: #{_lambda_.8} parent=63 // pred_region
        _
      $region68: #{_lambda_.8} parent=63 // pred_fallthru
        _
    $region64: #{_lambda_.8} parent=5 // pred_fallthru
      _
    %p1278 = scmp.le.s32.totalorder 2, %s17
    // Predicated region
    $region69: #{_lambda_.8} parent=5 // pred_check
      %p1279 = pneg %p1278
    $region70: #{_lambda_.8} parent=5 // pred_check_branch
      %1281 = sbr.rel (%p1279) target = $region72
    $region71: #{_lambda_.8} parent=5 // pred_region
      %s1282 = ssub.s32 %s17, 2
      // Predicated region
      $region73: #{_lambda_.8} parent=71 // pred_check
        %p1283 = pneg %p315
      $region74: #{_lambda_.8} parent=71 // pred_check_branch
        %1285 = sbr.rel (%p1283) target = $region76
      $region75: #{_lambda_.8} parent=71 // pred_region
        %p1286 = scmp.lt.s32.totalorder %s28, 1
        %s1287 = scalar_select %p1286, %s28, 1
        %p1288 = scmp.lt.s32.totalorder %s29, 0
        %s1289 = scalar_select %p1288, %s29, 0
        %s1290 = smul.addr %s1289, 2
        %s1291 = smul.addr %s1287, 2
        %s1292 = sadd.s32 %s1290, %s1291
        %s1293 = smul.addr %s1292, 4
        %s1294 = scalar_lea.vmem %s11, %s1293
      $region76: #{_lambda_.8} parent=71 // pred_fallthru
        _
    $region72: #{_lambda_.8} parent=5 // pred_fallthru
      _
  $region6: #{_lambda_.8} parent=0 // loop_footer
    %s21 = sadd.s32 1, %s17
  $region7: #{_lambda_.8} parent=0 // loop_footer_branch
    %16 = sbr.rel target = $region3
  $region8: #{_lambda_.8} parent=0 // loop_exit
    _

// kernel: _lambda_.7
$region0: #{_lambda_.7}
  #allocation0 [shape = 'u32[]', space=smem, size = 0x4, offset = 0x4, fixed_abs, tag = 'smem constant byte address 0x4 - core index']
  #allocation1 [shape = 'u32[144,128]{1,0:T(1,128)}', space=vmem, size = 0x12000, scoped, tag = 'internal scratch']
  %s0 = inlined_call_operand.vmem [shape: bf16[2,64,128], index: 0, kind: input, shape index: {}]
  %s1 = inlined_call_operand.vmem [shape: f32[2,64,8], index: 1, kind: input, shape index: {}]
  %s2 = inlined_call_operand.vmem [shape: f32[2,16,8], index: 2, kind: input, shape index: {}]
  %s3 = inlined_call_operand.vmem [shape: f32[2,16,64,1], index: 3, kind: input, shape index: {}]
  %s4 = inlined_call_operand.vmem [shape: bf16[128,128], index: 4, kind: input, shape index: {}]
  %s5 = inlined_call_operand.vmem [shape: bf16[8,128], index: 5, kind: input, shape index: {}]
  %s6 = inlined_call_operand.vmem [shape: f32[1,128], index: 6, kind: input, shape index: {}]
  %s7 = inlined_call_operand.vmem [shape: bf16[128,128], index: 7, kind: input, shape index: {}]
  %s8 = inlined_call_operand.vmem [shape: f32[1,128], index: 8, kind: input, shape index: {}]
  %s9 = inlined_call_operand.vmem [shape: bf16[128,128], index: 9, kind: input, shape index: {}]
  %s10 = inlined_call_operand.vmem [shape: f32[1,128], index: 10, kind: input, shape index: {}]
  %s11 = inlined_call_operand.vmem [shape: f32[2,16,128], index: 11, kind: output, shape index: {}]
  %s12 = sld [smem:[#allocation0]]
  $region77: #{_lambda_.7} parent=0
    _
  %s14 = ssub.s32 1, %s12
  %s15 = scalar_select 0, %s14, %s12
  loop: start=0, step=1, limit=6
  $region2: #{_lambda_.7} parent=0 // loop_pre_header
    _
  $region3: #{_lambda_.7} parent=0 // loop_header
    %s17 = sphi 0, %s21
    %p18 = scmp.ge.s32.totalorder %s17, 6
    %s24 = sphi 0, %s36
    %s25 = sphi 0, %s32
    %s26 = sphi 0, %s24
    %s27 = sphi 0, %s25
    %s28 = sphi 0, %s26
    %s29 = sphi 0, %s27
    %s39 = sphi 0, %s41
    %s42 = sphi 0, %s39
    %s43 = sphi 0, %s42
    %s59 = sphi 0, %s43
    %s65 = sphi 0, %s67
    %s68 = sphi 0, %s65
    %s69 = sphi 0, %s68
    %s85 = sphi 0, %s69
    %s93 = sphi 0, %s95
    %s96 = sphi 0, %s93
    %s97 = sphi 0, %s96
    %s113 = sphi 0, %s97
    %s121 = sphi 0, %s123
    %s124 = sphi 0, %s121
    %s125 = sphi 0, %s124
    %s141 = sphi 0, %s125
    %s145 = sphi 0, %s145
    %s147 = sphi 0, %s145
    %s148 = sphi 0, %s147
    %s162 = sphi 0, %s148
    %s166 = sphi 0, %s166
    %s168 = sphi 0, %s166
    %s169 = sphi 0, %s168
    %s183 = sphi 0, %s169
    %s187 = sphi 0, %s187
    %s189 = sphi 0, %s187
    %s190 = sphi 0, %s189
    %s204 = sphi 0, %s190
    %s208 = sphi 0, %s208
    %s210 = sphi 0, %s208
    %s211 = sphi 0, %s210
    %s225 = sphi 0, %s211
    %s229 = sphi 0, %s229
    %s231 = sphi 0, %s229
    %s232 = sphi 0, %s231
    %s246 = sphi 0, %s232
    %s250 = sphi 0, %s250
    %s252 = sphi 0, %s250
    %s253 = sphi 0, %s252
    %s267 = sphi 0, %s253
    %s271 = sphi 0, %s271
    %s273 = sphi 0, %s271
    %s274 = sphi 0, %s273
    %s288 = sphi 0, %s274
    %s296 = sphi 0, %s298
    %s299 = sphi 0, %s296
    %s300 = sphi 0, %s299
    %s316 = sphi 0, %s300
  $region4: #{_lambda_.7} parent=0 // loop_header_branch
    %20 = sbr.rel (%p18) target = $region8
  $region5: #{_lambda_.7} parent=0 // loop_body
    %s22 = ssub.s32 %s17, 1
    %s23 = ssub.s32 %s17, 2
    %s30 = sadd.s32 1, %s25
    %p31 = scmp.ge.s32.totalorder %s30, 2
    %s32 = scalar_select %p31, 0, %s30
    %s33 = sadd.s32 1, %s24
    %s34 = scalar_select %p31, %s33, %s24
    %p35 = scmp.ge.s32.totalorder %s34, 2
    %s36 = scalar_select %p35, 0, %s34
    %s37 = ssub.s32 %s24, %s36
    %p38 = scmp.eq.s32.totalorder %s37, 0
    %s40 = sadd.s32 %s39, 1
    %s41 = scalar_select %p38, %s39, %s40
    %p44 = pneg %p38
    %p45 = scmp.eq.s32.totalorder %s17, 3
    %p46 = por %p44, %p45
    %p47 = scmp.ne.s32.totalorder %s39, %s42
    %p48 = scmp.eq.s32.totalorder %s17, 0
    %p49 = por %p47, %p48
    %p50 = scmp.ne.s32.totalorder %s39, %s42
    %p51 = scmp.eq.s32.totalorder %s22, 3
    %p52 = por %p50, %p51
    %p53 = scmp.ne.s32.totalorder %s42, %s43
    %p54 = scmp.eq.s32.totalorder %s22, 0
    %p55 = por %p53, %p54
    %p56 = scmp.ne.s32.totalorder %s42, %s43
    %p57 = scmp.eq.s32.totalorder %s23, 3
    %p58 = por %p56, %p57
    %p60 = scmp.ne.s32.totalorder %s43, %s59
    %p61 = scmp.eq.s32.totalorder %s23, 0
    %p62 = por %p60, %p61
    %s63 = ssub.s32 %s24, %s36
    %p64 = scmp.eq.s32.totalorder %s63, 0
    %s66 = sadd.s32 %s65, 1
    %s67 = scalar_select %p64, %s65, %s66
    %p70 = pneg %p64
    %p71 = scmp.eq.s32.totalorder %s17, 3
    %p72 = por %p70, %p71
    %p73 = scmp.ne.s32.totalorder %s65, %s68
    %p74 = scmp.eq.s32.totalorder %s17, 0
    %p75 = por %p73, %p74
    %p76 = scmp.ne.s32.totalorder %s65, %s68
    %p77 = scmp.eq.s32.totalorder %s22, 3
    %p78 = por %p76, %p77
    %p79 = scmp.ne.s32.totalorder %s68, %s69
    %p80 = scmp.eq.s32.totalorder %s22, 0
    %p81 = por %p79, %p80
    %p82 = scmp.ne.s32.totalorder %s68, %s69
    %p83 = scmp.eq.s32.totalorder %s23, 3
    %p84 = por %p82, %p83
    %p86 = scmp.ne.s32.totalorder %s69, %s85
    %p87 = scmp.eq.s32.totalorder %s23, 0
    %p88 = por %p86, %p87
    %s89 = ssub.s32 %s24, %s36
    %s90 = ssub.s32 %s25, %s32
    %s91 = sor.u32 %s89, %s90
    %p92 = scmp.eq.s32.totalorder %s91, 0
    %s94 = sadd.s32 %s93, 1
    %s95 = scalar_select %p92, %s93, %s94
    %p98 = pneg %p92
    %p99 = scmp.eq.s32.totalorder %s17, 3
    %p100 = por %p98, %p99
    %p101 = scmp.ne.s32.totalorder %s93, %s96
    %p102 = scmp.eq.s32.totalorder %s17, 0
    %p103 = por %p101, %p102
    %p104 = scmp.ne.s32.totalorder %s93, %s96
    %p105 = scmp.eq.s32.totalorder %s22, 3
    %p106 = por %p104, %p105
    %p107 = scmp.ne.s32.totalorder %s96, %s97
    %p108 = scmp.eq.s32.totalorder %s22, 0
    %p109 = por %p107, %p108
    %p110 = scmp.ne.s32.totalorder %s96, %s97
    %p111 = scmp.eq.s32.totalorder %s23, 3
    %p112 = por %p110, %p111
    %p114 = scmp.ne.s32.totalorder %s97, %s113
    %p115 = scmp.eq.s32.totalorder %s23, 0
    %p116 = por %p114, %p115
    %s117 = ssub.s32 %s24, %s36
    %s118 = ssub.s32 %s25, %s32
    %s119 = sor.u32 %s117, %s118
    %p120 = scmp.eq.s32.totalorder %s119, 0
    %s122 = sadd.s32 %s121, 1
    %s123 = scalar_select %p120, %s121, %s122
    %p126 = pneg %p120
    %p127 = scmp.eq.s32.totalorder %s17, 3
    %p128 = por %p126, %p127
    %p129 = scmp.ne.s32.totalorder %s121, %s124
    %p130 = scmp.eq.s32.totalorder %s17, 0
    %p131 = por %p129, %p130
    %p132 = scmp.ne.s32.totalorder %s121, %s124
    %p133 = scmp.eq.s32.totalorder %s22, 3
    %p134 = por %p132, %p133
    %p135 = scmp.ne.s32.totalorder %s124, %s125
    %p136 = scmp.eq.s32.totalorder %s22, 0
    %p137 = por %p135, %p136
    %p138 = scmp.ne.s32.totalorder %s124, %s125
    %p139 = scmp.eq.s32.totalorder %s23, 3
    %p140 = por %p138, %p139
    %p142 = scmp.ne.s32.totalorder %s125, %s141
    %p143 = scmp.eq.s32.totalorder %s23, 0
    %p144 = por %p142, %p143
    %s146 = sadd.s32 %s145, 1
    %p149 = scmp.eq.s32.totalorder %s17, 3
    %p150 = scmp.ne.s32.totalorder %s145, %s147
    %p151 = scmp.eq.s32.totalorder %s17, 0
    %p152 = por %p150, %p151
    %p153 = scmp.ne.s32.totalorder %s145, %s147
    %p154 = scmp.eq.s32.totalorder %s22, 3
    %p155 = por %p153, %p154
    %p156 = scmp.ne.s32.totalorder %s147, %s148
    %p157 = scmp.eq.s32.totalorder %s22, 0
    %p158 = por %p156, %p157
    %p159 = scmp.ne.s32.totalorder %s147, %s148
    %p160 = scmp.eq.s32.totalorder %s23, 3
    %p161 = por %p159, %p160
    %p163 = scmp.ne.s32.totalorder %s148, %s162
    %p164 = scmp.eq.s32.totalorder %s23, 0
    %p165 = por %p163, %p164
    %s167 = sadd.s32 %s166, 1
    %p170 = scmp.eq.s32.totalorder %s17, 3
    %p171 = scmp.ne.s32.totalorder %s166, %s168
    %p172 = scmp.eq.s32.totalorder %s17, 0
    %p173 = por %p171, %p172
    %p174 = scmp.ne.s32.totalorder %s166, %s168
    %p175 = scmp.eq.s32.totalorder %s22, 3
    %p176 = por %p174, %p175
    %p177 = scmp.ne.s32.totalorder %s168, %s169
    %p178 = scmp.eq.s32.totalorder %s22, 0
    %p179 = por %p177, %p178
    %p180 = scmp.ne.s32.totalorder %s168, %s169
    %p181 = scmp.eq.s32.totalorder %s23, 3
    %p182 = por %p180, %p181
    %p184 = scmp.ne.s32.totalorder %s169, %s183
    %p185 = scmp.eq.s32.totalorder %s23, 0
    %p186 = por %p184, %p185
    %s188 = sadd.s32 %s187, 1
    %p191 = scmp.eq.s32.totalorder %s17, 3
    %p192 = scmp.ne.s32.totalorder %s187, %s189
    %p193 = scmp.eq.s32.totalorder %s17, 0
    %p194 = por %p192, %p193
    %p195 = scmp.ne.s32.totalorder %s187, %s189
    %p196 = scmp.eq.s32.totalorder %s22, 3
    %p197 = por %p195, %p196
    %p198 = scmp.ne.s32.totalorder %s189, %s190
    %p199 = scmp.eq.s32.totalorder %s22, 0
    %p200 = por %p198, %p199
    %p201 = scmp.ne.s32.totalorder %s189, %s190
    %p202 = scmp.eq.s32.totalorder %s23, 3
    %p203 = por %p201, %p202
    %p205 = scmp.ne.s32.totalorder %s190, %s204
    %p206 = scmp.eq.s32.totalorder %s23, 0
    %p207 = por %p205, %p206
    %s209 = sadd.s32 %s208, 1
    %p212 = scmp.eq.s32.totalorder %s17, 3
    %p213 = scmp.ne.s32.totalorder %s208, %s210
    %p214 = scmp.eq.s32.totalorder %s17, 0
    %p215 = por %p213, %p214
    %p216 = scmp.ne.s32.totalorder %s208, %s210
    %p217 = scmp.eq.s32.totalorder %s22, 3
    %p218 = por %p216, %p217
    %p219 = scmp.ne.s32.totalorder %s210, %s211
    %p220 = scmp.eq.s32.totalorder %s22, 0
    %p221 = por %p219, %p220
    %p222 = scmp.ne.s32.totalorder %s210, %s211
    %p223 = scmp.eq.s32.totalorder %s23, 3
    %p224 = por %p222, %p223
    %p226 = scmp.ne.s32.totalorder %s211, %s225
    %p227 = scmp.eq.s32.totalorder %s23, 0
    %p228 = por %p226, %p227
    %s230 = sadd.s32 %s229, 1
    %p233 = scmp.eq.s32.totalorder %s17, 3
    %p234 = scmp.ne.s32.totalorder %s229, %s231
    %p235 = scmp.eq.s32.totalorder %s17, 0
    %p236 = por %p234, %p235
    %p237 = scmp.ne.s32.totalorder %s229, %s231
    %p238 = scmp.eq.s32.totalorder %s22, 3
    %p239 = por %p237, %p238
    %p240 = scmp.ne.s32.totalorder %s231, %s232
    %p241 = scmp.eq.s32.totalorder %s22, 0
    %p242 = por %p240, %p241
    %p243 = scmp.ne.s32.totalorder %s231, %s232
    %p244 = scmp.eq.s32.totalorder %s23, 3
    %p245 = por %p243, %p244
    %p247 = scmp.ne.s32.totalorder %s232, %s246
    %p248 = scmp.eq.s32.totalorder %s23, 0
    %p249 = por %p247, %p248
    %s251 = sadd.s32 %s250, 1
    %p254 = scmp.eq.s32.totalorder %s17, 3
    %p255 = scmp.ne.s32.totalorder %s250, %s252
    %p256 = scmp.eq.s32.totalorder %s17, 0
    %p257 = por %p255, %p256
    %p258 = scmp.ne.s32.totalorder %s250, %s252
    %p259 = scmp.eq.s32.totalorder %s22, 3
    %p260 = por %p258, %p259
    %p261 = scmp.ne.s32.totalorder %s252, %s253
    %p262 = scmp.eq.s32.totalorder %s22, 0
    %p263 = por %p261, %p262
    %p264 = scmp.ne.s32.totalorder %s252, %s253
    %p265 = scmp.eq.s32.totalorder %s23, 3
    %p266 = por %p264, %p265
    %p268 = scmp.ne.s32.totalorder %s253, %s267
    %p269 = scmp.eq.s32.totalorder %s23, 0
    %p270 = por %p268, %p269
    %s272 = sadd.s32 %s271, 1
    %p275 = scmp.eq.s32.totalorder %s17, 3
    %p276 = scmp.ne.s32.totalorder %s271, %s273
    %p277 = scmp.eq.s32.totalorder %s17, 0
    %p278 = por %p276, %p277
    %p279 = scmp.ne.s32.totalorder %s271, %s273
    %p280 = scmp.eq.s32.totalorder %s22, 3
    %p281 = por %p279, %p280
    %p282 = scmp.ne.s32.totalorder %s273, %s274
    %p283 = scmp.eq.s32.totalorder %s22, 0
    %p284 = por %p282, %p283
    %p285 = scmp.ne.s32.totalorder %s273, %s274
    %p286 = scmp.eq.s32.totalorder %s23, 3
    %p287 = por %p285, %p286
    %p289 = scmp.ne.s32.totalorder %s274, %s288
    %p290 = scmp.eq.s32.totalorder %s23, 0
    %p291 = por %p289, %p290
    %s292 = ssub.s32 %s24, %s36
    %s293 = ssub.s32 %s25, %s32
    %s294 = sor.u32 %s292, %s293
    %p295 = scmp.eq.s32.totalorder %s294, 0
    %s297 = sadd.s32 %s296, 1
    %s298 = scalar_select %p295, %s296, %s297
    %p301 = pneg %p295
    %p302 = scmp.eq.s32.totalorder %s17, 3
    %p303 = por %p301, %p302
    %p304 = scmp.ne.s32.totalorder %s296, %s299
    %p305 = scmp.eq.s32.totalorder %s17, 0
    %p306 = por %p304, %p305
    %p307 = scmp.ne.s32.totalorder %s296, %s299
    %p308 = scmp.eq.s32.totalorder %s22, 3
    %p309 = por %p307, %p308
    %p310 = scmp.ne.s32.totalorder %s299, %s300
    %p311 = scmp.eq.s32.totalorder %s22, 0
    %p312 = por %p310, %p311
    %p313 = scmp.ne.s32.totalorder %s299, %s300
    %p314 = scmp.eq.s32.totalorder %s23, 3
    %p315 = por %p313, %p314
    %p317 = scmp.ne.s32.totalorder %s300, %s316
    %p318 = scmp.eq.s32.totalorder %s23, 0
    %p319 = por %p317, %p318
    %p320 = scmp.le.s32.totalorder 1, %s17
    %p321 = scmp.lt.s32.totalorder %s17, 5
    %p322 = pnand %p320, %p321
    %p323 = pneg %p322
    // Predicated region
    $region9: #{_lambda_.7} parent=5 // pred_check
      _
    $region10: #{_lambda_.7} parent=5 // pred_check_branch
      %325 = sbr.rel (%p322) target = $region12
    $region11: #{_lambda_.7} parent=5 // pred_region
      %s326 = ssub.s32 %s17, 1
      // Predicated region
      $region13: #{_lambda_.7} parent=11 // pred_check
        %p327 = pneg %p158
      $region14: #{_lambda_.7} parent=11 // pred_check_branch
        %329 = sbr.rel (%p327) target = $region16
      $region15: #{_lambda_.7} parent=11 // pred_region
        _
      $region16: #{_lambda_.7} parent=11 // pred_fallthru
        _
      // Predicated region
      $region17: #{_lambda_.7} parent=11 // pred_check
        %p330 = pneg %p179
      $region18: #{_lambda_.7} parent=11 // pred_check_branch
        %332 = sbr.rel (%p330) target = $region20
      $region19: #{_lambda_.7} parent=11 // pred_region
        _
      $region20: #{_lambda_.7} parent=11 // pred_fallthru
        _
      // Predicated region
      $region21: #{_lambda_.7} parent=11 // pred_check
        %p333 = pneg %p200
      $region22: #{_lambda_.7} parent=11 // pred_check_branch
        %335 = sbr.rel (%p333) target = $region24
      $region23: #{_lambda_.7} parent=11 // pred_region
        _
      $region24: #{_lambda_.7} parent=11 // pred_fallthru
        _
      // Predicated region
      $region25: #{_lambda_.7} parent=11 // pred_check
        %p336 = pneg %p221
      $region26: #{_lambda_.7} parent=11 // pred_check_branch
        %338 = sbr.rel (%p336) target = $region28
      $region27: #{_lambda_.7} parent=11 // pred_region
        _
      $region28: #{_lambda_.7} parent=11 // pred_fallthru
        _
      // Predicated region
      $region29: #{_lambda_.7} parent=11 // pred_check
        %p339 = pneg %p242
      $region30: #{_lambda_.7} parent=11 // pred_check_branch
        %341 = sbr.rel (%p339) target = $region32
      $region31: #{_lambda_.7} parent=11 // pred_region
        _
      $region32: #{_lambda_.7} parent=11 // pred_fallthru
        _
      // Predicated region
      $region33: #{_lambda_.7} parent=11 // pred_check
        %p342 = pneg %p263
      $region34: #{_lambda_.7} parent=11 // pred_check_branch
        %344 = sbr.rel (%p342) target = $region36
      $region35: #{_lambda_.7} parent=11 // pred_region
        _
      $region36: #{_lambda_.7} parent=11 // pred_fallthru
        _
      // Predicated region
      $region37: #{_lambda_.7} parent=11 // pred_check
        %p345 = pneg %p284
      $region38: #{_lambda_.7} parent=11 // pred_check_branch
        %347 = sbr.rel (%p345) target = $region40
      $region39: #{_lambda_.7} parent=11 // pred_region
        _
      $region40: #{_lambda_.7} parent=11 // pred_fallthru
        _
    $region12: #{_lambda_.7} parent=5 // pred_fallthru
      _
    %p348 = scmp.lt.s32.totalorder %s17, 4
    // Predicated region
    $region41: #{_lambda_.7} parent=5 // pred_check
      %p349 = pneg %p348
    $region42: #{_lambda_.7} parent=5 // pred_check_branch
      %351 = sbr.rel (%p349) target = $region44
    $region43: #{_lambda_.7} parent=5 // pred_region
      // Predicated region
      $region45: #{_lambda_.7} parent=43 // pred_check
        %p352 = pneg %p49
      $region46: #{_lambda_.7} parent=43 // pred_check_branch
        %354 = sbr.rel (%p352) target = $region48
      $region47: #{_lambda_.7} parent=43 // pred_region
        %p355 = scmp.lt.s32.totalorder %s24, 1
        %s356 = scalar_select %p355, %s24, 1
        %s357 = smul.addr %s356, 8
        %s358 = smul.addr %s357, 4
        %s359 = scalar_lea.vmem %s0, %s358
      $region48: #{_lambda_.7} parent=43 // pred_fallthru
        _
      // Predicated region
      $region49: #{_lambda_.7} parent=43 // pred_check
        %p360 = pneg %p75
      $region50: #{_lambda_.7} parent=43 // pred_check_branch
        %362 = sbr.rel (%p360) target = $region52
      $region51: #{_lambda_.7} parent=43 // pred_region
        %p363 = scmp.lt.s32.totalorder %s24, 1
        %s364 = scalar_select %p363, %s24, 1
        %s365 = smul.addr %s364, 8
        %s366 = smul.addr %s365, 8
        %s367 = scalar_lea.vmem %s1, %s366
      $region52: #{_lambda_.7} parent=43 // pred_fallthru
        _
      // Predicated region
      $region53: #{_lambda_.7} parent=43 // pred_check
        %p368 = pneg %p103
      $region54: #{_lambda_.7} parent=43 // pred_check_branch
        %370 = sbr.rel (%p368) target = $region56
      $region55: #{_lambda_.7} parent=43 // pred_region
        %p371 = scmp.lt.s32.totalorder %s24, 1
        %s372 = scalar_select %p371, %s24, 1
        %p373 = scmp.lt.s32.totalorder %s25, 1
        %s374 = scalar_select %p373, %s25, 1
        %s375 = smul.addr %s372, 2
        %s376 = sadd.s32 %s374, %s375
        %s377 = smul.addr %s376, 8
        %s378 = scalar_lea.vmem %s2, %s377
      $region56: #{_lambda_.7} parent=43 // pred_fallthru
        _
      // Predicated region
      $region57: #{_lambda_.7} parent=43 // pred_check
        %p379 = pneg %p131
      $region58: #{_lambda_.7} parent=43 // pred_check_branch
        %381 = sbr.rel (%p379) target = $region60
      $region59: #{_lambda_.7} parent=43 // pred_region
        %s382 = smul.u32 8, %s25
        %p383 = scmp.lt.s32.totalorder %s24, 1
        %s384 = scalar_select %p383, %s24, 1
        %p385 = scmp.lt.s32.totalorder %s382, 15
        %s386 = scalar_select %p385, %s382, 15
        %s387 = smul.addr %s386, 8
        %s388 = smul.addr %s384, 128
        %s389 = sadd.s32 %s387, %s388
        %s390 = smul.addr %s389, 8
        %s391 = scalar_lea.vmem %s3, %s390
        %s392 = smul.u32 8, %s25
      $region60: #{_lambda_.7} parent=43 // pred_fallthru
        _
    $region44: #{_lambda_.7} parent=5 // pred_fallthru
      _
    %p393 = scmp.le.s32.totalorder 1, %s17
    %p394 = scmp.lt.s32.totalorder %s17, 5
    %p395 = pnand %p393, %p394
    %p396 = pneg %p395
    // Predicated region
    $region61: #{_lambda_.7} parent=5 // pred_check
      _
    $region62: #{_lambda_.7} parent=5 // pred_check_branch
      %398 = sbr.rel (%p395) target = $region64
    $region63: #{_lambda_.7} parent=5 // pred_region
      %s399 = ssub.s32 %s17, 1
      %p400 = scmp.lt.s32.totalorder %s26, 1
      %s401 = scalar_select %p400, %s26, 1
      %s402 = smul.addr %s401, 8
      %s403 = smul.addr %s402, 4
      %s404 = scalar_lea.vmem %s0, %s403
      %p405 = pneg %p55
      %p406 = pneg %p52
      %p407 = scmp.lt.s32.totalorder %s26, 1
      %s408 = scalar_select %p407, %s26, 1
      %s409 = smul.addr %s408, 8
      %s410 = smul.addr %s409, 8
      %s411 = scalar_lea.vmem %s1, %s410
      %p412 = pneg %p81
      %p413 = pneg %p78
      %p414 = scmp.lt.s32.totalorder %s26, 1
      %s415 = scalar_select %p414, %s26, 1
      %p416 = scmp.lt.s32.totalorder %s27, 1
      %s417 = scalar_select %p416, %s27, 1
      %s418 = smul.addr %s415, 2
      %s419 = sadd.s32 %s417, %s418
      %s420 = smul.addr %s419, 8
      %s421 = scalar_lea.vmem %s2, %s420
      %p422 = pneg %p109
      %p423 = pneg %p106
      %s424 = smul.u32 8, %s27
      %p425 = scmp.lt.s32.totalorder %s26, 1
      %s426 = scalar_select %p425, %s26, 1
      %p427 = scmp.lt.s32.totalorder %s424, 15
      %s428 = scalar_select %p427, %s424, 15
      %s429 = smul.addr %s428, 8
      %s430 = smul.addr %s426, 128
      %s431 = sadd.s32 %s429, %s430
      %s432 = smul.addr %s431, 8
      %s433 = scalar_lea.vmem %s3, %s432
      %p434 = pneg %p137
      %p435 = pneg %p134
      %p436 = pneg %p158
      %p437 = pneg %p155
      %p438 = pneg %p179
      %p439 = pneg %p176
      %p440 = pneg %p200
      %p441 = pneg %p197
      %p442 = pneg %p221
      %p443 = pneg %p218
      %p444 = pneg %p242
      %p445 = pneg %p239
      %p446 = pneg %p263
      %p447 = pneg %p260
      %p448 = pneg %p284
      %p449 = pneg %p281
      %p450 = pneg %p312
      %p451 = pneg %p309
      %p452 = scmp.lt.s32.totalorder %s26, 1
      %s453 = scalar_select %p452, %s26, 1
      %p454 = scmp.lt.s32.totalorder %s27, 1
      %s455 = scalar_select %p454, %s27, 1
      %s456 = smul.addr %s453, 2
      %s457 = sadd.s32 %s455, %s456
      %s458 = smul.addr %s457, 8
      %s459 = scalar_lea.vmem %s11, %s458
      %p460 = scmp.lt.s32.totalorder %s26, 1
      %s461 = scalar_select %p460, %s26, 1
      %s462 = smul.addr %s461, 8
      %s463 = smul.addr %s462, 4
      %s464 = scalar_lea.vmem %s0, %s463
      %p465 = scmp.lt.s32.totalorder %s26, 1
      %s466 = scalar_select %p465, %s26, 1
      %s467 = smul.addr %s466, 8
      %s468 = smul.addr %s467, 8
      %s469 = scalar_lea.vmem %s1, %s468
      %p470 = scmp.lt.s32.totalorder %s26, 1
      %s471 = scalar_select %p470, %s26, 1
      %p472 = scmp.lt.s32.totalorder %s27, 1
      %s473 = scalar_select %p472, %s27, 1
      %s474 = smul.addr %s471, 2
      %s475 = sadd.s32 %s473, %s474
      %s476 = smul.addr %s475, 8
      %s477 = scalar_lea.vmem %s2, %s476
      %s478 = smul.u32 8, %s27
      %p479 = scmp.lt.s32.totalorder %s26, 1
      %s480 = scalar_select %p479, %s26, 1
      %p481 = scmp.lt.s32.totalorder %s478, 15
      %s482 = scalar_select %p481, %s478, 15
      %s483 = smul.addr %s482, 8
      %s484 = smul.addr %s480, 128
      %s485 = sadd.s32 %s483, %s484
      %s486 = smul.addr %s485, 8
      %s487 = scalar_lea.vmem %s3, %s486
      %s488 = smul.u32 8, %s27
      %p489 = scmp.lt.s32.totalorder %s26, 1
      %s490 = scalar_select %p489, %s26, 1
      %p491 = scmp.lt.s32.totalorder %s27, 1
      %s492 = scalar_select %p491, %s27, 1
      %s493 = smul.addr %s490, 2
      %s494 = sadd.s32 %s492, %s493
      %s495 = smul.addr %s494, 8
      %s496 = scalar_lea.vmem %s11, %s495
      %v498 = vld [vmem:[%s464] sm:$0xf]
      %v499 = vld [vmem:[%s464 + $0x4] sm:$0xf]
      %v500 = vld [vmem:[%s464 + $0x8] sm:$0xf]
      %v501 = vld [vmem:[%s464 + $0xc] sm:$0xf]
      %v502 = vld [vmem:[%s464 + $0x10] sm:$0xf]
      %v503 = vld [vmem:[%s464 + $0x14] sm:$0xf]
      %v504 = vld [vmem:[%s464 + $0x18] sm:$0xf]
      %v505 = vld [vmem:[%s464 + $0x1c] sm:$0xf]
      %v506 = vld [vmem:[%s4] sm:$0xf]
      %v507 = vld [vmem:[%s4 + $0x4] sm:$0xf]
      %v508 = vld [vmem:[%s4 + $0x8] sm:$0xf]
      %v509 = vld [vmem:[%s4 + $0xc] sm:$0xf]
      %v510 = vld [vmem:[%s4 + $0x10] sm:$0xf]
      %v511 = vld [vmem:[%s4 + $0x14] sm:$0xf]
      %v512 = vld [vmem:[%s4 + $0x18] sm:$0xf]
      %v513 = vld [vmem:[%s4 + $0x1c] sm:$0xf]
      %v514 = vld [vmem:[%s4 + $0x20] sm:$0xf]
      %v515 = vld [vmem:[%s4 + $0x24] sm:$0xf]
      %v516 = vld [vmem:[%s4 + $0x28] sm:$0xf]
      %v517 = vld [vmem:[%s4 + $0x2c] sm:$0xf]
      %v518 = vld [vmem:[%s4 + $0x30] sm:$0xf]
      %v519 = vld [vmem:[%s4 + $0x34] sm:$0xf]
      %v520 = vld [vmem:[%s4 + $0x38] sm:$0xf]
      %v521 = vld [vmem:[%s4 + $0x3c] sm:$0xf]
      %v530 = vunpack.c.l.b16 %v498
      %v531 = vunpack.c.l.b16 %v499
      %v532 = vunpack.c.l.b16 %v500
      %v533 = vunpack.c.l.b16 %v501
      %v534 = vunpack.c.l.b16 %v502
      %v535 = vunpack.c.l.b16 %v503
      %v536 = vunpack.c.l.b16 %v504
      %v537 = vunpack.c.l.b16 %v505
      %v538 = vpack.c.b16 %v531, %v530
      %v539 = vpack.c.b16 %v533, %v532
      %v540 = vpack.c.b16 %v535, %v534
      %v541 = vpack.c.b16 %v537, %v536
      %v562 = vunpack.c.l.b16 %v506
      %v563 = vunpack.c.l.b16 %v507
      %v564 = vunpack.c.l.b16 %v508
      %v565 = vunpack.c.l.b16 %v509
      %v566 = vunpack.c.l.b16 %v510
      %v567 = vunpack.c.l.b16 %v511
      %v568 = vunpack.c.l.b16 %v512
      %v569 = vunpack.c.l.b16 %v513
      %v570 = vunpack.c.l.b16 %v514
      %v571 = vunpack.c.l.b16 %v515
      %v572 = vunpack.c.l.b16 %v516
      %v573 = vunpack.c.l.b16 %v517
      %v574 = vunpack.c.l.b16 %v518
      %v575 = vunpack.c.l.b16 %v519
      %v576 = vunpack.c.l.b16 %v520
      %v577 = vunpack.c.l.b16 %v521
      %v578 = vpack.c.b16 %v563, %v562
      %v579 = vpack.c.b16 %v565, %v564
      %v580 = vpack.c.b16 %v567, %v566
      %v581 = vpack.c.b16 %v569, %v568
      %v582 = vpack.c.b16 %v571, %v570
      %v583 = vpack.c.b16 %v573, %v572
      %v584 = vpack.c.b16 %v575, %v574
      %v585 = vpack.c.b16 %v577, %v576
      %594 = vmatprep.subr.bf16.mxu0 0
      %595 = vmatpush1.bf16.msra.mxu0 %v585
      %596 = vmatprep.subr.bf16.mxu0 0
      %597 = vmatpush1.bf16.msra.mxu0 %v584
      %598 = vmatprep.subr.bf16.mxu0 0
      %599 = vmatpush1.bf16.msra.mxu0 %v583
      %600 = vmatprep.subr.bf16.mxu0 0
      %601 = vmatpush1.bf16.msra.mxu0 %v582
      %602 = vmatprep.subr.bf16.mxu0 0
      %603 = vmatpush1.bf16.msra.mxu0 %v581
      %604 = vmatprep.subr.bf16.mxu0 0
      %605 = vmatpush1.bf16.msra.mxu0 %v580
      %606 = vmatprep.subr.bf16.mxu0 0
      %607 = vmatpush1.bf16.msra.mxu0 %v579
      %608 = vmatprep.subr.bf16.mxu0 0
      %609 = vmatpush1.bf16.msra.mxu0 %v578
      %610 = vmatprep.subr.bf16.mxu0 0
      %611 = vmatpush2.bf16.msra.mxu0 0
      %612 = vmatprep.subr.bf16.mxu0 0
      %613 = vmatpush2.bf16.msra.mxu0 0
      %614 = vmatprep.subr.bf16.mxu0 0
      %615 = vmatpush2.bf16.msra.mxu0 0
      %616 = vmatprep.subr.bf16.mxu0 0
      %617 = vmatpush2.bf16.msra.mxu0 0
      %618 = vmatprep.subr.bf16.mxu0 0
      %619 = vmatpush2.bf16.msra.mxu0 0
      %620 = vmatprep.subr.bf16.mxu0 0
      %621 = vmatpush2.bf16.msra.mxu0 0
      %622 = vmatprep.subr.bf16.mxu0 0
      %623 = vmatpush2.bf16.msra.mxu0 0
      %624 = vmatprep.subr.bf16.mxu0 0
      %625 = vmatpush2.bf16.msra.mxu0 0
      %626 = vmatprep.mubr.bf16.mxu0 0
      %627 = vmatmul.mubr.bf16.gmra.mxu0 %v538
      %v628 = vpop.f32.mrf.mxu0
      %v629 = vadd.f32 0.0, %v628
      %v630 = vpop.f32.mrf.mxu0
      %v631 = vpop.f32.mrf.mxu0
      %v632 = vadd.f32 0.0, %v631
      %v633 = vpop.f32.mrf.mxu0
      %634 = vmatprep.mubr.bf16.mxu0 0
      %635 = vmatmul.mubr.bf16.gmra.mxu0 %v539
      %v636 = vpop.f32.mrf.mxu0
      %v637 = vadd.f32 0.0, %v636
      %v638 = vpop.f32.mrf.mxu0
      %v639 = vpop.f32.mrf.mxu0
      %v640 = vadd.f32 0.0, %v639
      %v641 = vpop.f32.mrf.mxu0
      %642 = vmatprep.mubr.bf16.mxu0 0
      %643 = vmatmul.mubr.bf16.gmra.mxu0 %v540
      %v644 = vpop.f32.mrf.mxu0
      %v645 = vadd.f32 0.0, %v644
      %v646 = vpop.f32.mrf.mxu0
      %v647 = vpop.f32.mrf.mxu0
      %v648 = vadd.f32 0.0, %v647
      %v649 = vpop.f32.mrf.mxu0
      %650 = vmatprep.mubr.bf16.mxu0 0
      %651 = vmatmul.mubr.bf16.gmra.mxu0 %v541
      %v652 = vpop.f32.mrf.mxu0
      %v653 = vadd.f32 0.0, %v652
      %v654 = vpop.f32.mrf.mxu0
      %v655 = vpop.f32.mrf.mxu0
      %v656 = vadd.f32 0.0, %v655
      %v657 = vpop.f32.mrf.mxu0
      %658 = vdwg.mxu0
      %v659 = vld [vmem:[%s469] sm:$0xff]
      %v660 = vld [vmem:[%s469 + $0x8] sm:$0xff]
      %v661 = vld [vmem:[%s469 + $0x10] sm:$0xff]
      %v662 = vld [vmem:[%s469 + $0x18] sm:$0xff]
      %v663 = vld [vmem:[%s469 + $0x20] sm:$0xff]
      %v664 = vld [vmem:[%s469 + $0x28] sm:$0xff]
      %v665 = vld [vmem:[%s469 + $0x30] sm:$0xff]
      %v666 = vld [vmem:[%s469 + $0x38] sm:$0xff]
      %v667 = vld [vmem:[%s477] sm:$0xff]
      %v669 = vcombine.high %v667, %v667
      %v671 = vunpack.c.l.s4 1966171168
      %v672 = vunpack.c.0.s8 %v671
      %v673 = vlaneseq
      %v674 = vshrl.u32 %v673, 7
      %v675 = vsub.s32 %v672, %v674
      %v676 = vrot.slane %v667, %v675
      %v678 = vunpack.c.l.s4 1966171168
      %v679 = vunpack.c.0.s8 %v678
      %v680 = vlaneseq
      %v681 = vshrl.u32 %v680, 7
      %v682 = vsub.s32 %v679, %v681
      %v683 = vrot.slane %v669, %v682
      %v684 = vcombine.high %v676, %v676
      %v685 = vcombine.high %v683, %v683
      %v687 = vunpack.c.l.s4 1966171168
      %v688 = vunpack.c.0.s8 %v687
      %v689 = vlaneseq
      %v690 = vshrl.u32 %v689, 7
      %v691 = vsub.s32 %v688, %v690
      %v692 = vrot.slane %v676, %v691
      %v694 = vunpack.c.l.s4 1966171168
      %v695 = vunpack.c.0.s8 %v694
      %v696 = vlaneseq
      %v697 = vshrl.u32 %v696, 7
      %v698 = vsub.s32 %v695, %v697
      %v699 = vrot.slane %v683, %v698
      %v701 = vunpack.c.l.s4 1966171168
      %v702 = vunpack.c.0.s8 %v701
      %v703 = vlaneseq
      %v704 = vshrl.u32 %v703, 7
      %v705 = vsub.s32 %v702, %v704
      %v706 = vrot.slane %v684, %v705
      %v708 = vunpack.c.l.s4 1966171168
      %v709 = vunpack.c.0.s8 %v708
      %v710 = vlaneseq
      %v711 = vshrl.u32 %v710, 7
      %v712 = vsub.s32 %v709, %v711
      %v713 = vrot.slane %v685, %v712
      %v714 = vcombine.high %v692, %v692
      %v715 = vcombine.high %v699, %v699
      %v716 = vcombine.high %v706, %v706
      %v717 = vcombine.high %v713, %v713
      %v718 = vlaneseq
      %v719 = vshrl.u32 %v718, 7
      %v720 = vsub.s32 0, %v719
      %v721 = vrot.slane %v692, %v720
      %v722 = vlaneseq
      %v723 = vshrl.u32 %v722, 7
      %v724 = vsub.s32 0, %v723
      %v725 = vrot.slane %v706, %v724
      %v726 = vlaneseq
      %v727 = vshrl.u32 %v726, 7
      %v728 = vsub.s32 0, %v727
      %v729 = vrot.slane %v714, %v728
      %v730 = vlaneseq
      %v731 = vshrl.u32 %v730, 7
      %v732 = vsub.s32 0, %v731
      %v733 = vrot.slane %v716, %v732
      %v734 = vlaneseq
      %v735 = vshrl.u32 %v734, 7
      %v736 = vsub.s32 0, %v735
      %v737 = vrot.slane %v699, %v736
      %v738 = vlaneseq
      %v739 = vshrl.u32 %v738, 7
      %v740 = vsub.s32 0, %v739
      %v741 = vrot.slane %v713, %v740
      %v742 = vlaneseq
      %v743 = vshrl.u32 %v742, 7
      %v744 = vsub.s32 0, %v743
      %v745 = vrot.slane %v715, %v744
      %v746 = vlaneseq
      %v747 = vshrl.u32 %v746, 7
      %v748 = vsub.s32 0, %v747
      %v749 = vrot.slane %v717, %v748
      %v758 = vsub.f32 %v659, %v721
      %v759 = vsub.f32 %v660, %v721
      %v760 = vsub.f32 %v661, %v721
      %v761 = vsub.f32 %v662, %v721
      %v762 = vsub.f32 %v663, %v721
      %v763 = vsub.f32 %v664, %v721
      %v764 = vsub.f32 %v665, %v721
      %v765 = vsub.f32 %v666, %v721
      %v766 = vsub.f32 %v659, %v725
      %v767 = vsub.f32 %v660, %v725
      %v768 = vsub.f32 %v661, %v725
      %v769 = vsub.f32 %v662, %v725
      %v770 = vsub.f32 %v663, %v725
      %v771 = vsub.f32 %v664, %v725
      %v772 = vsub.f32 %v665, %v725
      %v773 = vsub.f32 %v666, %v725
      %v774 = vsub.f32 %v659, %v729
      %v775 = vsub.f32 %v660, %v729
      %v776 = vsub.f32 %v661, %v729
      %v777 = vsub.f32 %v662, %v729
      %v778 = vsub.f32 %v663, %v729
      %v779 = vsub.f32 %v664, %v729
      %v780 = vsub.f32 %v665, %v729
      %v781 = vsub.f32 %v666, %v729
      %v782 = vsub.f32 %v659, %v733
      %v783 = vsub.f32 %v660, %v733
      %v784 = vsub.f32 %v661, %v733
      %v785 = vsub.f32 %v662, %v733
      %v786 = vsub.f32 %v663, %v733
      %v787 = vsub.f32 %v664, %v733
      %v788 = vsub.f32 %v665, %v733
      %v789 = vsub.f32 %v666, %v733
      %v790 = vsub.f32 %v659, %v737
      %v791 = vsub.f32 %v660, %v737
      %v792 = vsub.f32 %v661, %v737
      %v793 = vsub.f32 %v662, %v737
      %v794 = vsub.f32 %v663, %v737
      %v795 = vsub.f32 %v664, %v737
      %v796 = vsub.f32 %v665, %v737
      %v797 = vsub.f32 %v666, %v737
      %v798 = vsub.f32 %v659, %v741
      %v799 = vsub.f32 %v660, %v741
      %v800 = vsub.f32 %v661, %v741
      %v801 = vsub.f32 %v662, %v741
      %v802 = vsub.f32 %v663, %v741
      %v803 = vsub.f32 %v664, %v741
      %v804 = vsub.f32 %v665, %v741
      %v805 = vsub.f32 %v666, %v741
      %v806 = vsub.f32 %v659, %v745
      %v807 = vsub.f32 %v660, %v745
      %v808 = vsub.f32 %v661, %v745
      %v809 = vsub.f32 %v662, %v745
      %v810 = vsub.f32 %v663, %v745
      %v811 = vsub.f32 %v664, %v745
      %v812 = vsub.f32 %v665, %v745
      %v813 = vsub.f32 %v666, %v745
      %v814 = vsub.f32 %v659, %v749
      %v815 = vsub.f32 %v660, %v749
      %v816 = vsub.f32 %v661, %v749
      %v817 = vsub.f32 %v662, %v749
      %v818 = vsub.f32 %v663, %v749
      %v819 = vsub.f32 %v664, %v749
      %v820 = vsub.f32 %v665, %v749
      %v821 = vsub.f32 %v666, %v749
      %v822 = vpack.c.bf16 %v759, %v758
      %v823 = vpack.c.bf16 %v761, %v760
      %v824 = vpack.c.bf16 %v763, %v762
      %v825 = vpack.c.bf16 %v765, %v764
      %v826 = vpack.c.bf16 %v767, %v766
      %v827 = vpack.c.bf16 %v769, %v768
      %v828 = vpack.c.bf16 %v771, %v770
      %v829 = vpack.c.bf16 %v773, %v772
      %v830 = vpack.c.bf16 %v775, %v774
      %v831 = vpack.c.bf16 %v777, %v776
      %v832 = vpack.c.bf16 %v779, %v778
      %v833 = vpack.c.bf16 %v781, %v780
      %v834 = vpack.c.bf16 %v783, %v782
      %v835 = vpack.c.bf16 %v785, %v784
      %v836 = vpack.c.bf16 %v787, %v786
      %v837 = vpack.c.bf16 %v789, %v788
      %v838 = vpack.c.bf16 %v791, %v790
      %v839 = vpack.c.bf16 %v793, %v792
      %v840 = vpack.c.bf16 %v795, %v794
      %v841 = vpack.c.bf16 %v797, %v796
      %v842 = vpack.c.bf16 %v799, %v798
      %v843 = vpack.c.bf16 %v801, %v800
      %v844 = vpack.c.bf16 %v803, %v802
      %v845 = vpack.c.bf16 %v805, %v804
      %v846 = vpack.c.bf16 %v807, %v806
      %v847 = vpack.c.bf16 %v809, %v808
      %v848 = vpack.c.bf16 %v811, %v810
      %v849 = vpack.c.bf16 %v813, %v812
      %v850 = vpack.c.bf16 %v815, %v814
      %v851 = vpack.c.bf16 %v817, %v816
      %v852 = vpack.c.bf16 %v819, %v818
      %v853 = vpack.c.bf16 %v821, %v820
      %v854 = vld [vmem:[%s5] sm:$0xf]
      %vm855 = vcmask 64512
      %v857 = vsel %vm855, %v822, 0
      %v860 = vsel %vm855, %v823, 0
      %v863 = vsel %vm855, %v824, 0
      %v866 = vsel %vm855, %v825, 0
      %v869 = vsel %vm855, %v826, 0
      %v872 = vsel %vm855, %v827, 0
      %v875 = vsel %vm855, %v828, 0
      %v878 = vsel %vm855, %v829, 0
      %v881 = vsel %vm855, %v830, 0
      %v884 = vsel %vm855, %v831, 0
      %v887 = vsel %vm855, %v832, 0
      %v890 = vsel %vm855, %v833, 0
      %v893 = vsel %vm855, %v834, 0
      %v896 = vsel %vm855, %v835, 0
      %v899 = vsel %vm855, %v836, 0
      %v902 = vsel %vm855, %v837, 0
      %v905 = vsel %vm855, %v838, 0
      %v908 = vsel %vm855, %v839, 0
      %v911 = vsel %vm855, %v840, 0
      %v914 = vsel %vm855, %v841, 0
      %v917 = vsel %vm855, %v842, 0
      %v920 = vsel %vm855, %v843, 0
      %v923 = vsel %vm855, %v844, 0
      %v926 = vsel %vm855, %v845, 0
      %v929 = vsel %vm855, %v846, 0
      %v932 = vsel %vm855, %v847, 0
      %v935 = vsel %vm855, %v848, 0
      %v938 = vsel %vm855, %v849, 0
      %v941 = vsel %vm855, %v850, 0
      %v944 = vsel %vm855, %v851, 0
      %v947 = vsel %vm855, %v852, 0
      %v950 = vsel %vm855, %v853, 0
      %vm952 = vcmask 1043456
      %v954 = vsel %vm952, %v854, 0
      %956 = vmatprep.subr.bf16.mxu0 0
      %957 = vmatpush1.bf16.msra.mxu0 0
      %958 = vmatprep.subr.bf16.mxu0 0
      %959 = vmatpush1.bf16.msra.mxu0 0
      %960 = vmatprep.subr.bf16.mxu0 0
      %961 = vmatpush1.bf16.msra.mxu0 0
      %962 = vmatprep.subr.bf16.mxu0 0
      %963 = vmatpush1.bf16.msra.mxu0 0
      %964 = vmatprep.subr.bf16.mxu0 0
      %965 = vmatpush1.bf16.msra.mxu0 0
      %966 = vmatprep.subr.bf16.mxu0 0
      %967 = vmatpush1.bf16.msra.mxu0 0
      %968 = vmatprep.subr.bf16.mxu0 0
      %969 = vmatpush1.bf16.msra.mxu0 0
      %970 = vmatprep.subr.bf16.mxu0 0
      %971 = vmatpush1.bf16.msra.mxu0 %v954
      %972 = vmatprep.subr.bf16.mxu0 0
      %973 = vmatpush2.bf16.msra.mxu0 0
      %974 = vmatprep.subr.bf16.mxu0 0
      %975 = vmatpush2.bf16.msra.mxu0 0
      %976 = vmatprep.subr.bf16.mxu0 0
      %977 = vmatpush2.bf16.msra.mxu0 0
      %978 = vmatprep.subr.bf16.mxu0 0
      %979 = vmatpush2.bf16.msra.mxu0 0
      %980 = vmatprep.subr.bf16.mxu0 0
      %981 = vmatpush2.bf16.msra.mxu0 0
      %982 = vmatprep.subr.bf16.mxu0 0
      %983 = vmatpush2.bf16.msra.mxu0 0
      %984 = vmatprep.subr.bf16.mxu0 0
      %985 = vmatpush2.bf16.msra.mxu0 0
      %986 = vmatprep.subr.bf16.mxu0 0
      %987 = vmatpush2.bf16.msra.mxu0 0
      %988 = vmatprep.mubr.bf16.mxu0 0
      %989 = vmatmul.mubr.bf16.gmra.mxu0 %v857
      %v990 = vpop.f32.mrf.mxu0
      %v991 = vadd.f32 0.0, %v990
      %v992 = vpop.f32.mrf.mxu0
      %v993 = vpop.f32.mrf.mxu0
      %v994 = vadd.f32 0.0, %v993
      %v995 = vpop.f32.mrf.mxu0
      %996 = vmatprep.mubr.bf16.mxu0 0
      %997 = vmatmul.mubr.bf16.gmra.mxu0 %v860
      %v998 = vpop.f32.mrf.mxu0
      %v999 = vadd.f32 0.0, %v998
      %v1000 = vpop.f32.mrf.mxu0
      %v1001 = vpop.f32.mrf.mxu0
      %v1002 = vadd.f32 0.0, %v1001
      %v1003 = vpop.f32.mrf.mxu0
      %1004 = vmatprep.mubr.bf16.mxu0 0
      %1005 = vmatmul.mubr.bf16.gmra.mxu0 %v863
      %v1006 = vpop.f32.mrf.mxu0
      %v1007 = vadd.f32 0.0, %v1006
      %v1008 = vpop.f32.mrf.mxu0
      %v1009 = vpop.f32.mrf.mxu0
      %v1010 = vadd.f32 0.0, %v1009
      %v1011 = vpop.f32.mrf.mxu0
      %1012 = vmatprep.mubr.bf16.mxu0 0
      %1013 = vmatmul.mubr.bf16.gmra.mxu0 %v866
      %v1014 = vpop.f32.mrf.mxu0
      %v1015 = vadd.f32 0.0, %v1014
      %v1016 = vpop.f32.mrf.mxu0
      %v1017 = vpop.f32.mrf.mxu0
      %v1018 = vadd.f32 0.0, %v1017
      %v1019 = vpop.f32.mrf.mxu0
      %1020 = vmatprep.mubr.bf16.mxu0 0
      %1021 = vmatmul.mubr.bf16.gmra.mxu0 %v869
      %v1022 = vpop.f32.mrf.mxu0
      %v1023 = vadd.f32 0.0, %v1022
      %v1024 = vpop.f32.mrf.mxu0
      %v1025 = vpop.f32.mrf.mxu0
      %v1026 = vadd.f32 0.0, %v1025
      %v1027 = vpop.f32.mrf.mxu0
      %1028 = vmatprep.mubr.bf16.mxu0 0
      %1029 = vmatmul.mubr.bf16.gmra.mxu0 %v872
      %v1030 = vpop.f32.mrf.mxu0
      %v1031 = vadd.f32 0.0, %v1030
      %v1032 = vpop.f32.mrf.mxu0
      %v1033 = vpop.f32.mrf.mxu0
      %v1034 = vadd.f32 0.0, %v1033
      %v1035 = vpop.f32.mrf.mxu0
      %1036 = vmatprep.mubr.bf16.mxu0 0
      %1037 = vmatmul.mubr.bf16.gmra.mxu0 %v875
      %v1038 = vpop.f32.mrf.mxu0
      %v1039 = vadd.f32 0.0, %v1038
      %v1040 = vpop.f32.mrf.mxu0
      %v1041 = vpop.f32.mrf.mxu0
      %v1042 = vadd.f32 0.0, %v1041
      %v1043 = vpop.f32.mrf.mxu0
      %1044 = vmatprep.mubr.bf16.mxu0 0
      %1045 = vmatmul.mubr.bf16.gmra.mxu0 %v878
      %v1046 = vpop.f32.mrf.mxu0
      %v1047 = vadd.f32 0.0, %v1046
      %v1048 = vpop.f32.mrf.mxu0
      %v1049 = vpop.f32.mrf.mxu0
      %v1050 = vadd.f32 0.0, %v1049
      %v1051 = vpop.f32.mrf.mxu0
      %1052 = vmatprep.mubr.bf16.mxu0 0
      %1053 = vmatmul.mubr.bf16.gmra.mxu0 %v881
      %v1054 = vpop.f32.mrf.mxu0
      %v1055 = vadd.f32 0.0, %v1054
      %v1056 = vpop.f32.mrf.mxu0
      %v1057 = vpop.f32.mrf.mxu0
      %v1058 = vadd.f32 0.0, %v1057
      %v1059 = vpop.f32.mrf.mxu0
      %1060 = vmatprep.mubr.bf16.mxu0 0
      %1061 = vmatmul.mubr.bf16.gmra.mxu0 %v884
      %v1062 = vpop.f32.mrf.mxu0
      %v1063 = vadd.f32 0.0, %v1062
      %v1064 = vpop.f32.mrf.mxu0
      %v1065 = vpop.f32.mrf.mxu0
      %v1066 = vadd.f32 0.0, %v1065
      %v1067 = vpop.f32.mrf.mxu0
      %1068 = vmatprep.mubr.bf16.mxu0 0
      %1069 = vmatmul.mubr.bf16.gmra.mxu0 %v887
      %v1070 = vpop.f32.mrf.mxu0
      %v1071 = vadd.f32 0.0, %v1070
      %v1072 = vpop.f32.mrf.mxu0
      %v1073 = vpop.f32.mrf.mxu0
      %v1074 = vadd.f32 0.0, %v1073
      %v1075 = vpop.f32.mrf.mxu0
      %1076 = vmatprep.mubr.bf16.mxu0 0
      %1077 = vmatmul.mubr.bf16.gmra.mxu0 %v890
      %v1078 = vpop.f32.mrf.mxu0
      %v1079 = vadd.f32 0.0, %v1078
      %v1080 = vpop.f32.mrf.mxu0
      %v1081 = vpop.f32.mrf.mxu0
      %v1082 = vadd.f32 0.0, %v1081
      %v1083 = vpop.f32.mrf.mxu0
      %1084 = vmatprep.mubr.bf16.mxu0 0
      %1085 = vmatmul.mubr.bf16.gmra.mxu0 %v893
      %v1086 = vpop.f32.mrf.mxu0
      %v1087 = vadd.f32 0.0, %v1086
      %v1088 = vpop.f32.mrf.mxu0
      %v1089 = vpop.f32.mrf.mxu0
      %v1090 = vadd.f32 0.0, %v1089
      %v1091 = vpop.f32.mrf.mxu0
      %1092 = vmatprep.mubr.bf16.mxu0 0
      %1093 = vmatmul.mubr.bf16.gmra.mxu0 %v896
      %v1094 = vpop.f32.mrf.mxu0
      %v1095 = vadd.f32 0.0, %v1094
      %v1096 = vpop.f32.mrf.mxu0
      %v1097 = vpop.f32.mrf.mxu0
      %v1098 = vadd.f32 0.0, %v1097
      %v1099 = vpop.f32.mrf.mxu0
      %1100 = vmatprep.mubr.bf16.mxu0 0
      %1101 = vmatmul.mubr.bf16.gmra.mxu0 %v899
      %v1102 = vpop.f32.mrf.mxu0
      %v1103 = vadd.f32 0.0, %v1102
      %v1104 = vpop.f32.mrf.mxu0
      %v1105 = vpop.f32.mrf.mxu0
      %v1106 = vadd.f32 0.0, %v1105
      %v1107 = vpop.f32.mrf.mxu0
      %1108 = vmatprep.mubr.bf16.mxu0 0
      %1109 = vmatmul.mubr.bf16.gmra.mxu0 %v902
      %v1110 = vpop.f32.mrf.mxu0
      %v1111 = vadd.f32 0.0, %v1110
      %v1112 = vpop.f32.mrf.mxu0
      %v1113 = vpop.f32.mrf.mxu0
      %v1114 = vadd.f32 0.0, %v1113
      %v1115 = vpop.f32.mrf.mxu0
      %1116 = vmatprep.mubr.bf16.mxu0 0
      %1117 = vmatmul.mubr.bf16.gmra.mxu0 %v905
      %v1118 = vpop.f32.mrf.mxu0
      %v1119 = vadd.f32 0.0, %v1118
      %v1120 = vpop.f32.mrf.mxu0
      %v1121 = vpop.f32.mrf.mxu0
      %v1122 = vadd.f32 0.0, %v1121
      %v1123 = vpop.f32.mrf.mxu0
      %1124 = vmatprep.mubr.bf16.mxu0 0
      %1125 = vmatmul.mubr.bf16.gmra.mxu0 %v908
      %v1126 = vpop.f32.mrf.mxu0
      %v1127 = vadd.f32 0.0, %v1126
      %v1128 = vpop.f32.mrf.mxu0
      %v1129 = vpop.f32.mrf.mxu0
      %v1130 = vadd.f32 0.0, %v1129
      %v1131 = vpop.f32.mrf.mxu0
      %1132 = vmatprep.mubr.bf16.mxu0 0
      %1133 = vmatmul.mubr.bf16.gmra.mxu0 %v911
      %v1134 = vpop.f32.mrf.mxu0
      %v1135 = vadd.f32 0.0, %v1134
      %v1136 = vpop.f32.mrf.mxu0
      %v1137 = vpop.f32.mrf.mxu0
      %v1138 = vadd.f32 0.0, %v1137
      %v1139 = vpop.f32.mrf.mxu0
      %1140 = vmatprep.mubr.bf16.mxu0 0
      %1141 = vmatmul.mubr.bf16.gmra.mxu0 %v914
      %v1142 = vpop.f32.mrf.mxu0
      %v1143 = vadd.f32 0.0, %v1142
      %v1144 = vpop.f32.mrf.mxu0
      %v1145 = vpop.f32.mrf.mxu0
      %v1146 = vadd.f32 0.0, %v1145
      %v1147 = vpop.f32.mrf.mxu0
      %1148 = vmatprep.mubr.bf16.mxu0 0
      %1149 = vmatmul.mubr.bf16.gmra.mxu0 %v917
      %v1150 = vpop.f32.mrf.mxu0
      %v1151 = vadd.f32 0.0, %v1150
      %v1152 = vpop.f32.mrf.mxu0
      %v1153 = vpop.f32.mrf.mxu0
      %v1154 = vadd.f32 0.0, %v1153
      %v1155 = vpop.f32.mrf.mxu0
      %1156 = vmatprep.mubr.bf16.mxu0 0
      %1157 = vmatmul.mubr.bf16.gmra.mxu0 %v920
      %v1158 = vpop.f32.mrf.mxu0
      %v1159 = vadd.f32 0.0, %v1158
      %v1160 = vpop.f32.mrf.mxu0
      %v1161 = vpop.f32.mrf.mxu0
      %v1162 = vadd.f32 0.0, %v1161
      %v1163 = vpop.f32.mrf.mxu0
      %1164 = vmatprep.mubr.bf16.mxu0 0
      %1165 = vmatmul.mubr.bf16.gmra.mxu0 %v923
      %v1166 = vpop.f32.mrf.mxu0
      %v1167 = vadd.f32 0.0, %v1166
      %v1168 = vpop.f32.mrf.mxu0
      %v1169 = vpop.f32.mrf.mxu0
      %v1170 = vadd.f32 0.0, %v1169
      %v1171 = vpop.f32.mrf.mxu0
      %1172 = vmatprep.mubr.bf16.mxu0 0
      %1173 = vmatmul.mubr.bf16.gmra.mxu0 %v926
      %v1174 = vpop.f32.mrf.mxu0
      %v1175 = vadd.f32 0.0, %v1174
      %v1176 = vpop.f32.mrf.mxu0
      %v1177 = vpop.f32.mrf.mxu0
      %v1178 = vadd.f32 0.0, %v1177
      %v1179 = vpop.f32.mrf.mxu0
      %1180 = vmatprep.mubr.bf16.mxu0 0
      %1181 = vmatmul.mubr.bf16.gmra.mxu0 %v929
      %v1182 = vpop.f32.mrf.mxu0
      %v1183 = vadd.f32 0.0, %v1182
      %v1184 = vpop.f32.mrf.mxu0
      %v1185 = vpop.f32.mrf.mxu0
      %v1186 = vadd.f32 0.0, %v1185
      %v1187 = vpop.f32.mrf.mxu0
      %1188 = vmatprep.mubr.bf16.mxu0 0
      %1189 = vmatmul.mubr.bf16.gmra.mxu0 %v932
      %v1190 = vpop.f32.mrf.mxu0
      %v1191 = vadd.f32 0.0, %v1190
      %v1192 = vpop.f32.mrf.mxu0
      %v1193 = vpop.f32.mrf.mxu0
      %v1194 = vadd.f32 0.0, %v1193
      %v1195 = vpop.f32.mrf.mxu0
      %1196 = vmatprep.mubr.bf16.mxu0 0
      %1197 = vmatmul.mubr.bf16.gmra.mxu0 %v935
      %v1198 = vpop.f32.mrf.mxu0
      %v1199 = vadd.f32 0.0, %v1198
      %v1200 = vpop.f32.mrf.mxu0
      %v1201 = vpop.f32.mrf.mxu0
      %v1202 = vadd.f32 0.0, %v1201
      %v1203 = vpop.f32.mrf.mxu0
      %1204 = vmatprep.mubr.bf16.mxu0 0
      %1205 = vmatmul.mubr.bf16.gmra.mxu0 %v938
      %v1206 = vpop.f32.mrf.mxu0
      %v1207 = vadd.f32 0.0, %v1206
      %v1208 = vpop.f32.mrf.mxu0
      %v1209 = vpop.f32.mrf.mxu0
      %v1210 = vadd.f32 0.0, %v1209
      %v1211 = vpop.f32.mrf.mxu0
      %1212 = vmatprep.mubr.bf16.mxu0 0
      %1213 = vmatmul.mubr.bf16.gmra.mxu0 %v941
      %v1214 = vpop.f32.mrf.mxu0
      %v1215 = vadd.f32 0.0, %v1214
      %v1216 = vpop.f32.mrf.mxu0
      %v1217 = vpop.f32.mrf.mxu0
      %v1218 = vadd.f32 0.0, %v1217
      %v1219 = vpop.f32.mrf.mxu0
      %1220 = vmatprep.mubr.bf16.mxu0 0
      %1221 = vmatmul.mubr.bf16.gmra.mxu0 %v944
      %v1222 = vpop.f32.mrf.mxu0
      %v1223 = vadd.f32 0.0, %v1222
      %v1224 = vpop.f32.mrf.mxu0
      %v1225 = vpop.f32.mrf.mxu0
      %v1226 = vadd.f32 0.0, %v1225
      %v1227 = vpop.f32.mrf.mxu0
      %1228 = vmatprep.mubr.bf16.mxu0 0
      %1229 = vmatmul.mubr.bf16.gmra.mxu0 %v947
      %v1230 = vpop.f32.mrf.mxu0
      %v1231 = vadd.f32 0.0, %v1230
      %v1232 = vpop.f32.mrf.mxu0
      %v1233 = vpop.f32.mrf.mxu0
      %v1234 = vadd.f32 0.0, %v1233
      %v1235 = vpop.f32.mrf.mxu0
      %1236 = vmatprep.mubr.bf16.mxu0 0
      %1237 = vmatmul.mubr.bf16.gmra.mxu0 %v950
      %v1238 = vpop.f32.mrf.mxu0
      %v1239 = vadd.f32 0.0, %v1238
      %v1240 = vpop.f32.mrf.mxu0
      %v1241 = vpop.f32.mrf.mxu0
      %v1242 = vadd.f32 0.0, %v1241
      %v1243 = vpop.f32.mrf.mxu0
      %1244 = vdwg.mxu0
      %v1245 = vadd.f32 %v991, %v629
      %v1246 = vadd.f32 %v994, %v632
      %v1247 = vadd.f32 %v999, %v637
      %v1248 = vadd.f32 %v1002, %v640
      %v1249 = vadd.f32 %v1007, %v645
      %v1250 = vadd.f32 %v1010, %v648
      %v1251 = vadd.f32 %v1015, %v653
      %v1252 = vadd.f32 %v1018, %v656
      %v1253 = vadd.f32 %v1023, %v629
      %v1254 = vadd.f32 %v1026, %v632
      %v1255 = vadd.f32 %v1031, %v637
      %v1256 = vadd.f32 %v1034, %v640
      %v1257 = vadd.f32 %v1039, %v645
      %v1258 = vadd.f32 %v1042, %v648
      %v1259 = vadd.f32 %v1047, %v653
      %v1260 = vadd.f32 %v1050, %v656
      %v1261 = vadd.f32 %v1055, %v629
      %v1262 = vadd.f32 %v1058, %v632
      %v1263 = vadd.f32 %v1063, %v637
      %v1264 = vadd.f32 %v1066, %v640
      %v1265 = vadd.f32 %v1071, %v645
      %v1266 = vadd.f32 %v1074, %v648
      %v1267 = vadd.f32 %v1079, %v653
      %v1268 = vadd.f32 %v1082, %v656
      %v1269 = vadd.f32 %v1087, %v629
      %v1270 = vadd.f32 %v1090, %v632
      %v1271 = vadd.f32 %v1095, %v637
      %v1272 = vadd.f32 %v1098, %v640
      %v1273 = vadd.f32 %v1103, %v645
      %v1274 = vadd.f32 %v1106, %v648
      %v1275 = vadd.f32 %v1111, %v653
      %v1276 = vadd.f32 %v1114, %v656
      %v1277 = vadd.f32 %v1119, %v629
      %v1278 = vadd.f32 %v1122, %v632
      %v1279 = vadd.f32 %v1127, %v637
      %v1280 = vadd.f32 %v1130, %v640
      %v1281 = vadd.f32 %v1135, %v645
      %v1282 = vadd.f32 %v1138, %v648
      %v1283 = vadd.f32 %v1143, %v653
      %v1284 = vadd.f32 %v1146, %v656
      %v1285 = vadd.f32 %v1151, %v629
      %v1286 = vadd.f32 %v1154, %v632
      %v1287 = vadd.f32 %v1159, %v637
      %v1288 = vadd.f32 %v1162, %v640
      %v1289 = vadd.f32 %v1167, %v645
      %v1290 = vadd.f32 %v1170, %v648
      %v1291 = vadd.f32 %v1175, %v653
      %v1292 = vadd.f32 %v1178, %v656
      %v1293 = vadd.f32 %v1183, %v629
      %v1294 = vadd.f32 %v1186, %v632
      %v1295 = vadd.f32 %v1191, %v637
      %v1296 = vadd.f32 %v1194, %v640
      %v1297 = vadd.f32 %v1199, %v645
      %v1298 = vadd.f32 %v1202, %v648
      %v1299 = vadd.f32 %v1207, %v653
      %v1300 = vadd.f32 %v1210, %v656
      %v1301 = vadd.f32 %v1215, %v629
      %v1302 = vadd.f32 %v1218, %v632
      %v1303 = vadd.f32 %v1223, %v637
      %v1304 = vadd.f32 %v1226, %v640
      %v1305 = vadd.f32 %v1231, %v645
      %v1306 = vadd.f32 %v1234, %v648
      %v1307 = vadd.f32 %v1239, %v653
      %v1308 = vadd.f32 %v1242, %v656
      %v1309 = vld [vmem:[%s6] sm:$0x1]
      %v1311 = vlaneseq
      %v1312 = vshrl.u32 %v1311, 7
      %v1313 = vsub.s32 0, %v1312
      %v1314 = vrot.slane %v1309, %v1313
      %v1316 = vadd.f32 %v1245, %v1314
      %v1317 = vadd.f32 %v1246, %v1314
      %v1318 = vadd.f32 %v1247, %v1314
      %v1319 = vadd.f32 %v1248, %v1314
      %v1320 = vadd.f32 %v1249, %v1314
      %v1321 = vadd.f32 %v1250, %v1314
      %v1322 = vadd.f32 %v1251, %v1314
      %v1323 = vadd.f32 %v1252, %v1314
      %v1324 = vadd.f32 %v1253, %v1314
      %v1325 = vadd.f32 %v1254, %v1314
      %v1326 = vadd.f32 %v1255, %v1314
      %v1327 = vadd.f32 %v1256, %v1314
      %v1328 = vadd.f32 %v1257, %v1314
      %v1329 = vadd.f32 %v1258, %v1314
      %v1330 = vadd.f32 %v1259, %v1314
      %v1331 = vadd.f32 %v1260, %v1314
      %v1332 = vadd.f32 %v1261, %v1314
      %v1333 = vadd.f32 %v1262, %v1314
      %v1334 = vadd.f32 %v1263, %v1314
      %v1335 = vadd.f32 %v1264, %v1314
      %v1336 = vadd.f32 %v1265, %v1314
      %v1337 = vadd.f32 %v1266, %v1314
      %v1338 = vadd.f32 %v1267, %v1314
      %v1339 = vadd.f32 %v1268, %v1314
      %v1340 = vadd.f32 %v1269, %v1314
      %v1341 = vadd.f32 %v1270, %v1314
      %v1342 = vadd.f32 %v1271, %v1314
      %v1343 = vadd.f32 %v1272, %v1314
      %v1344 = vadd.f32 %v1273, %v1314
      %v1345 = vadd.f32 %v1274, %v1314
      %v1346 = vadd.f32 %v1275, %v1314
      %v1347 = vadd.f32 %v1276, %v1314
      %v1348 = vadd.f32 %v1277, %v1314
      %v1349 = vadd.f32 %v1278, %v1314
      %v1350 = vadd.f32 %v1279, %v1314
      %v1351 = vadd.f32 %v1280, %v1314
      %v1352 = vadd.f32 %v1281, %v1314
      %v1353 = vadd.f32 %v1282, %v1314
      %v1354 = vadd.f32 %v1283, %v1314
      %v1355 = vadd.f32 %v1284, %v1314
      %v1356 = vadd.f32 %v1285, %v1314
      %v1357 = vadd.f32 %v1286, %v1314
      %v1358 = vadd.f32 %v1287, %v1314
      %v1359 = vadd.f32 %v1288, %v1314
      %v1360 = vadd.f32 %v1289, %v1314
      %v1361 = vadd.f32 %v1290, %v1314
      %v1362 = vadd.f32 %v1291, %v1314
      %v1363 = vadd.f32 %v1292, %v1314
      %v1364 = vadd.f32 %v1293, %v1314
      %v1365 = vadd.f32 %v1294, %v1314
      %v1366 = vadd.f32 %v1295, %v1314
      %v1367 = vadd.f32 %v1296, %v1314
      %v1368 = vadd.f32 %v1297, %v1314
      %v1369 = vadd.f32 %v1298, %v1314
      %v1370 = vadd.f32 %v1299, %v1314
      %v1371 = vadd.f32 %v1300, %v1314
      %v1372 = vadd.f32 %v1301, %v1314
      %v1373 = vadd.f32 %v1302, %v1314
      %v1374 = vadd.f32 %v1303, %v1314
      %v1375 = vadd.f32 %v1304, %v1314
      %v1376 = vadd.f32 %v1305, %v1314
      %v1377 = vadd.f32 %v1306, %v1314
      %v1378 = vadd.f32 %v1307, %v1314
      %v1379 = vadd.f32 %v1308, %v1314
      %v1380 = vmax.f32 %v1316, 0.0
      %v1381 = vmax.f32 %v1317, 0.0
      %v1382 = vmax.f32 %v1318, 0.0
      %v1383 = vmax.f32 %v1319, 0.0
      %v1384 = vmax.f32 %v1320, 0.0
      %v1385 = vmax.f32 %v1321, 0.0
      %v1386 = vmax.f32 %v1322, 0.0
      %v1387 = vmax.f32 %v1323, 0.0
      %v1388 = vmax.f32 %v1324, 0.0
      %v1389 = vmax.f32 %v1325, 0.0
      %v1390 = vmax.f32 %v1326, 0.0
      %v1391 = vmax.f32 %v1327, 0.0
      %v1392 = vmax.f32 %v1328, 0.0
      %v1393 = vmax.f32 %v1329, 0.0
      %v1394 = vmax.f32 %v1330, 0.0
      %v1395 = vmax.f32 %v1331, 0.0
      %v1396 = vmax.f32 %v1332, 0.0
      %v1397 = vmax.f32 %v1333, 0.0
      %v1398 = vmax.f32 %v1334, 0.0
      %v1399 = vmax.f32 %v1335, 0.0
      %v1400 = vmax.f32 %v1336, 0.0
      %v1401 = vmax.f32 %v1337, 0.0
      %v1402 = vmax.f32 %v1338, 0.0
      %v1403 = vmax.f32 %v1339, 0.0
      %v1404 = vmax.f32 %v1340, 0.0
      %v1405 = vmax.f32 %v1341, 0.0
      %v1406 = vmax.f32 %v1342, 0.0
      %v1407 = vmax.f32 %v1343, 0.0
      %v1408 = vmax.f32 %v1344, 0.0
      %v1409 = vmax.f32 %v1345, 0.0
      %v1410 = vmax.f32 %v1346, 0.0
      %v1411 = vmax.f32 %v1347, 0.0
      %v1412 = vmax.f32 %v1348, 0.0
      %v1413 = vmax.f32 %v1349, 0.0
      %v1414 = vmax.f32 %v1350, 0.0
      %v1415 = vmax.f32 %v1351, 0.0
      %v1416 = vmax.f32 %v1352, 0.0
      %v1417 = vmax.f32 %v1353, 0.0
      %v1418 = vmax.f32 %v1354, 0.0
      %v1419 = vmax.f32 %v1355, 0.0
      %v1420 = vmax.f32 %v1356, 0.0
      %v1421 = vmax.f32 %v1357, 0.0
      %v1422 = vmax.f32 %v1358, 0.0
      %v1423 = vmax.f32 %v1359, 0.0
      %v1424 = vmax.f32 %v1360, 0.0
      %v1425 = vmax.f32 %v1361, 0.0
      %v1426 = vmax.f32 %v1362, 0.0
      %v1427 = vmax.f32 %v1363, 0.0
      %v1428 = vmax.f32 %v1364, 0.0
      %v1429 = vmax.f32 %v1365, 0.0
      %v1430 = vmax.f32 %v1366, 0.0
      %v1431 = vmax.f32 %v1367, 0.0
      %v1432 = vmax.f32 %v1368, 0.0
      %v1433 = vmax.f32 %v1369, 0.0
      %v1434 = vmax.f32 %v1370, 0.0
      %v1435 = vmax.f32 %v1371, 0.0
      %v1436 = vmax.f32 %v1372, 0.0
      %v1437 = vmax.f32 %v1373, 0.0
      %v1438 = vmax.f32 %v1374, 0.0
      %v1439 = vmax.f32 %v1375, 0.0
      %v1440 = vmax.f32 %v1376, 0.0
      %v1441 = vmax.f32 %v1377, 0.0
      %v1442 = vmax.f32 %v1378, 0.0
      %v1443 = vmax.f32 %v1379, 0.0
      %v1444 = vpack.c.bf16 %v1381, %v1380
      %v1445 = vpack.c.bf16 %v1383, %v1382
      %v1446 = vpack.c.bf16 %v1385, %v1384
      %v1447 = vpack.c.bf16 %v1387, %v1386
      %v1448 = vpack.c.bf16 %v1389, %v1388
      %v1449 = vpack.c.bf16 %v1391, %v1390
      %v1450 = vpack.c.bf16 %v1393, %v1392
      %v1451 = vpack.c.bf16 %v1395, %v1394
      %v1452 = vpack.c.bf16 %v1397, %v1396
      %v1453 = vpack.c.bf16 %v1399, %v1398
      %v1454 = vpack.c.bf16 %v1401, %v1400
      %v1455 = vpack.c.bf16 %v1403, %v1402
      %v1456 = vpack.c.bf16 %v1405, %v1404
      %v1457 = vpack.c.bf16 %v1407, %v1406
      %v1458 = vpack.c.bf16 %v1409, %v1408
      %v1459 = vpack.c.bf16 %v1411, %v1410
      %v1460 = vpack.c.bf16 %v1413, %v1412
      %v1461 = vpack.c.bf16 %v1415, %v1414
      %v1462 = vpack.c.bf16 %v1417, %v1416
      %v1463 = vpack.c.bf16 %v1419, %v1418
      %v1464 = vpack.c.bf16 %v1421, %v1420
      %v1465 = vpack.c.bf16 %v1423, %v1422
      %v1466 = vpack.c.bf16 %v1425, %v1424
      %v1467 = vpack.c.bf16 %v1427, %v1426
      %v1468 = vpack.c.bf16 %v1429, %v1428
      %v1469 = vpack.c.bf16 %v1431, %v1430
      %v1470 = vpack.c.bf16 %v1433, %v1432
      %v1471 = vpack.c.bf16 %v1435, %v1434
      %v1472 = vpack.c.bf16 %v1437, %v1436
      %v1473 = vpack.c.bf16 %v1439, %v1438
      %v1474 = vpack.c.bf16 %v1441, %v1440
      %v1475 = vpack.c.bf16 %v1443, %v1442
      %v1476 = vld [vmem:[%s7] sm:$0xf]
      %v1477 = vld [vmem:[%s7 + $0x4] sm:$0xf]
      %v1478 = vld [vmem:[%s7 + $0x8] sm:$0xf]
      %v1479 = vld [vmem:[%s7 + $0xc] sm:$0xf]
      %v1480 = vld [vmem:[%s7 + $0x10] sm:$0xf]
      %v1481 = vld [vmem:[%s7 + $0x14] sm:$0xf]
      %v1482 = vld [vmem:[%s7 + $0x18] sm:$0xf]
      %v1483 = vld [vmem:[%s7 + $0x1c] sm:$0xf]
      %v1484 = vld [vmem:[%s7 + $0x20] sm:$0xf]
      %v1485 = vld [vmem:[%s7 + $0x24] sm:$0xf]
      %v1486 = vld [vmem:[%s7 + $0x28] sm:$0xf]
      %v1487 = vld [vmem:[%s7 + $0x2c] sm:$0xf]
      %v1488 = vld [vmem:[%s7 + $0x30] sm:$0xf]
      %v1489 = vld [vmem:[%s7 + $0x34] sm:$0xf]
      %v1490 = vld [vmem:[%s7 + $0x38] sm:$0xf]
      %v1491 = vld [vmem:[%s7 + $0x3c] sm:$0xf]
      %v1492 = vld [vmem:[%s8] sm:$0x1]
      %v1494 = vlaneseq
      %v1495 = vshrl.u32 %v1494, 7
      %v1496 = vsub.s32 0, %v1495
      %v1497 = vrot.slane %v1492, %v1496
      %v1515 = vunpack.c.l.b16 %v1476
      %v1516 = vunpack.c.l.b16 %v1477
      %v1517 = vunpack.c.l.b16 %v1478
      %v1518 = vunpack.c.l.b16 %v1479
      %v1519 = vunpack.c.l.b16 %v1480
      %v1520 = vunpack.c.l.b16 %v1481
      %v1521 = vunpack.c.l.b16 %v1482
      %v1522 = vunpack.c.l.b16 %v1483
      %v1523 = vunpack.c.l.b16 %v1484
      %v1524 = vunpack.c.l.b16 %v1485
      %v1525 = vunpack.c.l.b16 %v1486
      %v1526 = vunpack.c.l.b16 %v1487
      %v1527 = vunpack.c.l.b16 %v1488
      %v1528 = vunpack.c.l.b16 %v1489
      %v1529 = vunpack.c.l.b16 %v1490
      %v1530 = vunpack.c.l.b16 %v1491
      %v1531 = vpack.c.b16 %v1516, %v1515
      %v1532 = vpack.c.b16 %v1518, %v1517
      %v1533 = vpack.c.b16 %v1520, %v1519
      %v1534 = vpack.c.b16 %v1522, %v1521
      %v1535 = vpack.c.b16 %v1524, %v1523
      %v1536 = vpack.c.b16 %v1526, %v1525
      %v1537 = vpack.c.b16 %v1528, %v1527
      %v1538 = vpack.c.b16 %v1530, %v1529
      %1547 = vmatprep.subr.bf16.mxu0 0
      %1548 = vmatpush1.bf16.msra.mxu0 %v1538
      %1549 = vmatprep.subr.bf16.mxu0 0
      %1550 = vmatpush1.bf16.msra.mxu0 %v1537
      %1551 = vmatprep.subr.bf16.mxu0 0
      %1552 = vmatpush1.bf16.msra.mxu0 %v1536
      %1553 = vmatprep.subr.bf16.mxu0 0
      %1554 = vmatpush1.bf16.msra.mxu0 %v1535
      %1555 = vmatprep.subr.bf16.mxu0 0
      %1556 = vmatpush1.bf16.msra.mxu0 %v1534
      %1557 = vmatprep.subr.bf16.mxu0 0
      %1558 = vmatpush1.bf16.msra.mxu0 %v1533
      %1559 = vmatprep.subr.bf16.mxu0 0
      %1560 = vmatpush1.bf16.msra.mxu0 %v1532
      %1561 = vmatprep.subr.bf16.mxu0 0
      %1562 = vmatpush1.bf16.msra.mxu0 %v1531
      %1563 = vmatprep.subr.bf16.mxu0 0
      %1564 = vmatpush2.bf16.msra.mxu0 0
      %1565 = vmatprep.subr.bf16.mxu0 0
      %1566 = vmatpush2.bf16.msra.mxu0 0
      %1567 = vmatprep.subr.bf16.mxu0 0
      %1568 = vmatpush2.bf16.msra.mxu0 0
      %1569 = vmatprep.subr.bf16.mxu0 0
      %1570 = vmatpush2.bf16.msra.mxu0 0
      %1571 = vmatprep.subr.bf16.mxu0 0
      %1572 = vmatpush2.bf16.msra.mxu0 0
      %1573 = vmatprep.subr.bf16.mxu0 0
      %1574 = vmatpush2.bf16.msra.mxu0 0
      %1575 = vmatprep.subr.bf16.mxu0 0
      %1576 = vmatpush2.bf16.msra.mxu0 0
      %1577 = vmatprep.subr.bf16.mxu0 0
      %1578 = vmatpush2.bf16.msra.mxu0 0
      %1579 = vmatprep.mubr.bf16.mxu0 0
      %1580 = vmatmul.mubr.bf16.gmra.mxu0 %v1444
      %v1581 = vpop.f32.mrf.mxu0
      %v1582 = vadd.f32 %v1497, %v1581
      %v1583 = vpop.f32.mrf.mxu0
      %v1584 = vpop.f32.mrf.mxu0
      %v1585 = vadd.f32 %v1497, %v1584
      %v1586 = vpop.f32.mrf.mxu0
      %1587 = vmatprep.mubr.bf16.mxu0 0
      %1588 = vmatmul.mubr.bf16.gmra.mxu0 %v1445
      %v1589 = vpop.f32.mrf.mxu0
      %v1590 = vadd.f32 %v1497, %v1589
      %v1591 = vpop.f32.mrf.mxu0
      %v1592 = vpop.f32.mrf.mxu0
      %v1593 = vadd.f32 %v1497, %v1592
      %v1594 = vpop.f32.mrf.mxu0
      %1595 = vmatprep.mubr.bf16.mxu0 0
      %1596 = vmatmul.mubr.bf16.gmra.mxu0 %v1446
      %v1597 = vpop.f32.mrf.mxu0
      %v1598 = vadd.f32 %v1497, %v1597
      %v1599 = vpop.f32.mrf.mxu0
      %v1600 = vpop.f32.mrf.mxu0
      %v1601 = vadd.f32 %v1497, %v1600
      %v1602 = vpop.f32.mrf.mxu0
      %1603 = vmatprep.mubr.bf16.mxu0 0
      %1604 = vmatmul.mubr.bf16.gmra.mxu0 %v1447
      %v1605 = vpop.f32.mrf.mxu0
      %v1606 = vadd.f32 %v1497, %v1605
      %v1607 = vpop.f32.mrf.mxu0
      %v1608 = vpop.f32.mrf.mxu0
      %v1609 = vadd.f32 %v1497, %v1608
      %v1610 = vpop.f32.mrf.mxu0
      %1611 = vmatprep.mubr.bf16.mxu0 0
      %1612 = vmatmul.mubr.bf16.gmra.mxu0 %v1448
      %v1613 = vpop.f32.mrf.mxu0
      %v1614 = vadd.f32 %v1497, %v1613
      %v1615 = vpop.f32.mrf.mxu0
      %v1616 = vpop.f32.mrf.mxu0
      %v1617 = vadd.f32 %v1497, %v1616
      %v1618 = vpop.f32.mrf.mxu0
      %1619 = vmatprep.mubr.bf16.mxu0 0
      %1620 = vmatmul.mubr.bf16.gmra.mxu0 %v1449
      %v1621 = vpop.f32.mrf.mxu0
      %v1622 = vadd.f32 %v1497, %v1621
      %v1623 = vpop.f32.mrf.mxu0
      %v1624 = vpop.f32.mrf.mxu0
      %v1625 = vadd.f32 %v1497, %v1624
      %v1626 = vpop.f32.mrf.mxu0
      %1627 = vmatprep.mubr.bf16.mxu0 0
      %1628 = vmatmul.mubr.bf16.gmra.mxu0 %v1450
      %v1629 = vpop.f32.mrf.mxu0
      %v1630 = vadd.f32 %v1497, %v1629
      %v1631 = vpop.f32.mrf.mxu0
      %v1632 = vpop.f32.mrf.mxu0
      %v1633 = vadd.f32 %v1497, %v1632
      %v1634 = vpop.f32.mrf.mxu0
      %1635 = vmatprep.mubr.bf16.mxu0 0
      %1636 = vmatmul.mubr.bf16.gmra.mxu0 %v1451
      %v1637 = vpop.f32.mrf.mxu0
      %v1638 = vadd.f32 %v1497, %v1637
      %v1639 = vpop.f32.mrf.mxu0
      %v1640 = vpop.f32.mrf.mxu0
      %v1641 = vadd.f32 %v1497, %v1640
      %v1642 = vpop.f32.mrf.mxu0
      %1643 = vmatprep.mubr.bf16.mxu0 0
      %1644 = vmatmul.mubr.bf16.gmra.mxu0 %v1452
      %v1645 = vpop.f32.mrf.mxu0
      %v1646 = vadd.f32 %v1497, %v1645
      %v1647 = vpop.f32.mrf.mxu0
      %v1648 = vpop.f32.mrf.mxu0
      %v1649 = vadd.f32 %v1497, %v1648
      %v1650 = vpop.f32.mrf.mxu0
      %1651 = vmatprep.mubr.bf16.mxu0 0
      %1652 = vmatmul.mubr.bf16.gmra.mxu0 %v1453
      %v1653 = vpop.f32.mrf.mxu0
      %v1654 = vadd.f32 %v1497, %v1653
      %v1655 = vpop.f32.mrf.mxu0
      %v1656 = vpop.f32.mrf.mxu0
      %v1657 = vadd.f32 %v1497, %v1656
      %v1658 = vpop.f32.mrf.mxu0
      %1659 = vmatprep.mubr.bf16.mxu0 0
      %1660 = vmatmul.mubr.bf16.gmra.mxu0 %v1454
      %v1661 = vpop.f32.mrf.mxu0
      %v1662 = vadd.f32 %v1497, %v1661
      %v1663 = vpop.f32.mrf.mxu0
      %v1664 = vpop.f32.mrf.mxu0
      %v1665 = vadd.f32 %v1497, %v1664
      %v1666 = vpop.f32.mrf.mxu0
      %1667 = vmatprep.mubr.bf16.mxu0 0
      %1668 = vmatmul.mubr.bf16.gmra.mxu0 %v1455
      %v1669 = vpop.f32.mrf.mxu0
      %v1670 = vadd.f32 %v1497, %v1669
      %v1671 = vpop.f32.mrf.mxu0
      %v1672 = vpop.f32.mrf.mxu0
      %v1673 = vadd.f32 %v1497, %v1672
      %v1674 = vpop.f32.mrf.mxu0
      %1675 = vmatprep.mubr.bf16.mxu0 0
      %1676 = vmatmul.mubr.bf16.gmra.mxu0 %v1456
      %v1677 = vpop.f32.mrf.mxu0
      %v1678 = vadd.f32 %v1497, %v1677
      %v1679 = vpop.f32.mrf.mxu0
      %v1680 = vpop.f32.mrf.mxu0
      %v1681 = vadd.f32 %v1497, %v1680
      %v1682 = vpop.f32.mrf.mxu0
      %1683 = vmatprep.mubr.bf16.mxu0 0
      %1684 = vmatmul.mubr.bf16.gmra.mxu0 %v1457
      %v1685 = vpop.f32.mrf.mxu0
      %v1686 = vadd.f32 %v1497, %v1685
      %v1687 = vpop.f32.mrf.mxu0
      %v1688 = vpop.f32.mrf.mxu0
      %v1689 = vadd.f32 %v1497, %v1688
      %v1690 = vpop.f32.mrf.mxu0
      %1691 = vmatprep.mubr.bf16.mxu0 0
      %1692 = vmatmul.mubr.bf16.gmra.mxu0 %v1458
      %v1693 = vpop.f32.mrf.mxu0
      %v1694 = vadd.f32 %v1497, %v1693
      %v1695 = vpop.f32.mrf.mxu0
      %v1696 = vpop.f32.mrf.mxu0
      %v1697 = vadd.f32 %v1497, %v1696
      %v1698 = vpop.f32.mrf.mxu0
      %1699 = vmatprep.mubr.bf16.mxu0 0
      %1700 = vmatmul.mubr.bf16.gmra.mxu0 %v1459
      %v1701 = vpop.f32.mrf.mxu0
      %v1702 = vadd.f32 %v1497, %v1701
      %v1703 = vpop.f32.mrf.mxu0
      %v1704 = vpop.f32.mrf.mxu0
      %v1705 = vadd.f32 %v1497, %v1704
      %v1706 = vpop.f32.mrf.mxu0
      %1707 = vmatprep.mubr.bf16.mxu0 0
      %1708 = vmatmul.mubr.bf16.gmra.mxu0 %v1460
      %v1709 = vpop.f32.mrf.mxu0
      %v1710 = vadd.f32 %v1497, %v1709
      %v1711 = vpop.f32.mrf.mxu0
      %v1712 = vpop.f32.mrf.mxu0
      %v1713 = vadd.f32 %v1497, %v1712
      %v1714 = vpop.f32.mrf.mxu0
      %1715 = vmatprep.mubr.bf16.mxu0 0
      %1716 = vmatmul.mubr.bf16.gmra.mxu0 %v1461
      %v1717 = vpop.f32.mrf.mxu0
      %v1718 = vadd.f32 %v1497, %v1717
      %v1719 = vpop.f32.mrf.mxu0
      %v1720 = vpop.f32.mrf.mxu0
      %v1721 = vadd.f32 %v1497, %v1720
      %v1722 = vpop.f32.mrf.mxu0
      %1723 = vmatprep.mubr.bf16.mxu0 0
      %1724 = vmatmul.mubr.bf16.gmra.mxu0 %v1462
      %v1725 = vpop.f32.mrf.mxu0
      %v1726 = vadd.f32 %v1497, %v1725
      %v1727 = vpop.f32.mrf.mxu0
      %v1728 = vpop.f32.mrf.mxu0
      %v1729 = vadd.f32 %v1497, %v1728
      %v1730 = vpop.f32.mrf.mxu0
      %1731 = vmatprep.mubr.bf16.mxu0 0
      %1732 = vmatmul.mubr.bf16.gmra.mxu0 %v1463
      %v1733 = vpop.f32.mrf.mxu0
      %v1734 = vadd.f32 %v1497, %v1733
      %v1735 = vpop.f32.mrf.mxu0
      %v1736 = vpop.f32.mrf.mxu0
      %v1737 = vadd.f32 %v1497, %v1736
      %v1738 = vpop.f32.mrf.mxu0
      %1739 = vmatprep.mubr.bf16.mxu0 0
      %1740 = vmatmul.mubr.bf16.gmra.mxu0 %v1464
      %v1741 = vpop.f32.mrf.mxu0
      %v1742 = vadd.f32 %v1497, %v1741
      %v1743 = vpop.f32.mrf.mxu0
      %v1744 = vpop.f32.mrf.mxu0
      %v1745 = vadd.f32 %v1497, %v1744
      %v1746 = vpop.f32.mrf.mxu0
      %1747 = vmatprep.mubr.bf16.mxu0 0
      %1748 = vmatmul.mubr.bf16.gmra.mxu0 %v1465
      %v1749 = vpop.f32.mrf.mxu0
      %v1750 = vadd.f32 %v1497, %v1749
      %v1751 = vpop.f32.mrf.mxu0
      %v1752 = vpop.f32.mrf.mxu0
      %v1753 = vadd.f32 %v1497, %v1752
      %v1754 = vpop.f32.mrf.mxu0
      %1755 = vmatprep.mubr.bf16.mxu0 0
      %1756 = vmatmul.mubr.bf16.gmra.mxu0 %v1466
      %v1757 = vpop.f32.mrf.mxu0
      %v1758 = vadd.f32 %v1497, %v1757
      %v1759 = vpop.f32.mrf.mxu0
      %v1760 = vpop.f32.mrf.mxu0
      %v1761 = vadd.f32 %v1497, %v1760
      %v1762 = vpop.f32.mrf.mxu0
      %1763 = vmatprep.mubr.bf16.mxu0 0
      %1764 = vmatmul.mubr.bf16.gmra.mxu0 %v1467
      %v1765 = vpop.f32.mrf.mxu0
      %v1766 = vadd.f32 %v1497, %v1765
      %v1767 = vpop.f32.mrf.mxu0
      %v1768 = vpop.f32.mrf.mxu0
      %v1769 = vadd.f32 %v1497, %v1768
      %v1770 = vpop.f32.mrf.mxu0
      %1771 = vmatprep.mubr.bf16.mxu0 0
      %1772 = vmatmul.mubr.bf16.gmra.mxu0 %v1468
      %v1773 = vpop.f32.mrf.mxu0
      %v1774 = vadd.f32 %v1497, %v1773
      %v1775 = vpop.f32.mrf.mxu0
      %v1776 = vpop.f32.mrf.mxu0
      %v1777 = vadd.f32 %v1497, %v1776
      %v1778 = vpop.f32.mrf.mxu0
      %1779 = vmatprep.mubr.bf16.mxu0 0
      %1780 = vmatmul.mubr.bf16.gmra.mxu0 %v1469
      %v1781 = vpop.f32.mrf.mxu0
      %v1782 = vadd.f32 %v1497, %v1781
      %v1783 = vpop.f32.mrf.mxu0
      %v1784 = vpop.f32.mrf.mxu0
      %v1785 = vadd.f32 %v1497, %v1784
      %v1786 = vpop.f32.mrf.mxu0
      %1787 = vmatprep.mubr.bf16.mxu0 0
      %1788 = vmatmul.mubr.bf16.gmra.mxu0 %v1470
      %v1789 = vpop.f32.mrf.mxu0
      %v1790 = vadd.f32 %v1497, %v1789
      %v1791 = vpop.f32.mrf.mxu0
      %v1792 = vpop.f32.mrf.mxu0
      %v1793 = vadd.f32 %v1497, %v1792
      %v1794 = vpop.f32.mrf.mxu0
      %1795 = vmatprep.mubr.bf16.mxu0 0
      %1796 = vmatmul.mubr.bf16.gmra.mxu0 %v1471
      %v1797 = vpop.f32.mrf.mxu0
      %v1798 = vadd.f32 %v1497, %v1797
      %v1799 = vpop.f32.mrf.mxu0
      %v1800 = vpop.f32.mrf.mxu0
      %v1801 = vadd.f32 %v1497, %v1800
      %v1802 = vpop.f32.mrf.mxu0
      %1803 = vmatprep.mubr.bf16.mxu0 0
      %1804 = vmatmul.mubr.bf16.gmra.mxu0 %v1472
      %v1805 = vpop.f32.mrf.mxu0
      %v1806 = vadd.f32 %v1497, %v1805
      %v1807 = vpop.f32.mrf.mxu0
      %v1808 = vpop.f32.mrf.mxu0
      %v1809 = vadd.f32 %v1497, %v1808
      %v1810 = vpop.f32.mrf.mxu0
      %1811 = vmatprep.mubr.bf16.mxu0 0
      %1812 = vmatmul.mubr.bf16.gmra.mxu0 %v1473
      %v1813 = vpop.f32.mrf.mxu0
      %v1814 = vadd.f32 %v1497, %v1813
      %v1815 = vpop.f32.mrf.mxu0
      %v1816 = vpop.f32.mrf.mxu0
      %v1817 = vadd.f32 %v1497, %v1816
      %v1818 = vpop.f32.mrf.mxu0
      %1819 = vmatprep.mubr.bf16.mxu0 0
      %1820 = vmatmul.mubr.bf16.gmra.mxu0 %v1474
      %v1821 = vpop.f32.mrf.mxu0
      %v1822 = vadd.f32 %v1497, %v1821
      %v1823 = vpop.f32.mrf.mxu0
      %v1824 = vpop.f32.mrf.mxu0
      %v1825 = vadd.f32 %v1497, %v1824
      %v1826 = vpop.f32.mrf.mxu0
      %1827 = vmatprep.mubr.bf16.mxu0 0
      %1828 = vmatmul.mubr.bf16.gmra.mxu0 %v1475
      %v1829 = vpop.f32.mrf.mxu0
      %v1830 = vadd.f32 %v1497, %v1829
      %v1831 = vpop.f32.mrf.mxu0
      %v1832 = vpop.f32.mrf.mxu0
      %v1833 = vadd.f32 %v1497, %v1832
      %v1834 = vpop.f32.mrf.mxu0
      %1835 = vdwg.mxu0
      %v1836 = vmax.f32 %v1582, 0.0
      %v1837 = vmax.f32 %v1585, 0.0
      %v1838 = vmax.f32 %v1590, 0.0
      %v1839 = vmax.f32 %v1593, 0.0
      %v1840 = vmax.f32 %v1598, 0.0
      %v1841 = vmax.f32 %v1601, 0.0
      %v1842 = vmax.f32 %v1606, 0.0
      %v1843 = vmax.f32 %v1609, 0.0
      %v1844 = vmax.f32 %v1614, 0.0
      %v1845 = vmax.f32 %v1617, 0.0
      %v1846 = vmax.f32 %v1622, 0.0
      %v1847 = vmax.f32 %v1625, 0.0
      %v1848 = vmax.f32 %v1630, 0.0
      %v1849 = vmax.f32 %v1633, 0.0
      %v1850 = vmax.f32 %v1638, 0.0
      %v1851 = vmax.f32 %v1641, 0.0
      %v1852 = vmax.f32 %v1646, 0.0
      %v1853 = vmax.f32 %v1649, 0.0
      %v1854 = vmax.f32 %v1654, 0.0
      %v1855 = vmax.f32 %v1657, 0.0
      %v1856 = vmax.f32 %v1662, 0.0
      %v1857 = vmax.f32 %v1665, 0.0
      %v1858 = vmax.f32 %v1670, 0.0
      %v1859 = vmax.f32 %v1673, 0.0
      %v1860 = vmax.f32 %v1678, 0.0
      %v1861 = vmax.f32 %v1681, 0.0
      %v1862 = vmax.f32 %v1686, 0.0
      %v1863 = vmax.f32 %v1689, 0.0
      %v1864 = vmax.f32 %v1694, 0.0
      %v1865 = vmax.f32 %v1697, 0.0
      %v1866 = vmax.f32 %v1702, 0.0
      %v1867 = vmax.f32 %v1705, 0.0
      %v1868 = vmax.f32 %v1710, 0.0
      %v1869 = vmax.f32 %v1713, 0.0
      %v1870 = vmax.f32 %v1718, 0.0
      %v1871 = vmax.f32 %v1721, 0.0
      %v1872 = vmax.f32 %v1726, 0.0
      %v1873 = vmax.f32 %v1729, 0.0
      %v1874 = vmax.f32 %v1734, 0.0
      %v1875 = vmax.f32 %v1737, 0.0
      %v1876 = vmax.f32 %v1742, 0.0
      %v1877 = vmax.f32 %v1745, 0.0
      %v1878 = vmax.f32 %v1750, 0.0
      %v1879 = vmax.f32 %v1753, 0.0
      %v1880 = vmax.f32 %v1758, 0.0
      %v1881 = vmax.f32 %v1761, 0.0
      %v1882 = vmax.f32 %v1766, 0.0
      %v1883 = vmax.f32 %v1769, 0.0
      %v1884 = vmax.f32 %v1774, 0.0
      %v1885 = vmax.f32 %v1777, 0.0
      %v1886 = vmax.f32 %v1782, 0.0
      %v1887 = vmax.f32 %v1785, 0.0
      %v1888 = vmax.f32 %v1790, 0.0
      %v1889 = vmax.f32 %v1793, 0.0
      %v1890 = vmax.f32 %v1798, 0.0
      %v1891 = vmax.f32 %v1801, 0.0
      %v1892 = vmax.f32 %v1806, 0.0
      %v1893 = vmax.f32 %v1809, 0.0
      %v1894 = vmax.f32 %v1814, 0.0
      %v1895 = vmax.f32 %v1817, 0.0
      %v1896 = vmax.f32 %v1822, 0.0
      %v1897 = vmax.f32 %v1825, 0.0
      %v1898 = vmax.f32 %v1830, 0.0
      %v1899 = vmax.f32 %v1833, 0.0
      %v1900 = vpack.c.bf16 %v1837, %v1836
      %v1901 = vpack.c.bf16 %v1839, %v1838
      %v1902 = vpack.c.bf16 %v1841, %v1840
      %v1903 = vpack.c.bf16 %v1843, %v1842
      %v1904 = vpack.c.bf16 %v1845, %v1844
      %v1905 = vpack.c.bf16 %v1847, %v1846
      %v1906 = vpack.c.bf16 %v1849, %v1848
      %v1907 = vpack.c.bf16 %v1851, %v1850
      %v1908 = vpack.c.bf16 %v1853, %v1852
      %v1909 = vpack.c.bf16 %v1855, %v1854
      %v1910 = vpack.c.bf16 %v1857, %v1856
      %v1911 = vpack.c.bf16 %v1859, %v1858
      %v1912 = vpack.c.bf16 %v1861, %v1860
      %v1913 = vpack.c.bf16 %v1863, %v1862
      %v1914 = vpack.c.bf16 %v1865, %v1864
      %v1915 = vpack.c.bf16 %v1867, %v1866
      %v1916 = vpack.c.bf16 %v1869, %v1868
      %v1917 = vpack.c.bf16 %v1871, %v1870
      %v1918 = vpack.c.bf16 %v1873, %v1872
      %v1919 = vpack.c.bf16 %v1875, %v1874
      %v1920 = vpack.c.bf16 %v1877, %v1876
      %v1921 = vpack.c.bf16 %v1879, %v1878
      %v1922 = vpack.c.bf16 %v1881, %v1880
      %v1923 = vpack.c.bf16 %v1883, %v1882
      %v1924 = vpack.c.bf16 %v1885, %v1884
      %v1925 = vpack.c.bf16 %v1887, %v1886
      %v1926 = vpack.c.bf16 %v1889, %v1888
      %v1927 = vpack.c.bf16 %v1891, %v1890
      %v1928 = vpack.c.bf16 %v1893, %v1892
      %v1929 = vpack.c.bf16 %v1895, %v1894
      %v1930 = vpack.c.bf16 %v1897, %v1896
      %v1931 = vpack.c.bf16 %v1899, %v1898
      %v1932 = vld [vmem:[%s9] sm:$0xf]
      %v1933 = vld [vmem:[%s9 + $0x4] sm:$0xf]
      %v1934 = vld [vmem:[%s9 + $0x8] sm:$0xf]
      %v1935 = vld [vmem:[%s9 + $0xc] sm:$0xf]
      %v1936 = vld [vmem:[%s9 + $0x10] sm:$0xf]
      %v1937 = vld [vmem:[%s9 + $0x14] sm:$0xf]
      %v1938 = vld [vmem:[%s9 + $0x18] sm:$0xf]
      %v1939 = vld [vmem:[%s9 + $0x1c] sm:$0xf]
      %v1940 = vld [vmem:[%s9 + $0x20] sm:$0xf]
      %v1941 = vld [vmem:[%s9 + $0x24] sm:$0xf]
      %v1942 = vld [vmem:[%s9 + $0x28] sm:$0xf]
      %v1943 = vld [vmem:[%s9 + $0x2c] sm:$0xf]
      %v1944 = vld [vmem:[%s9 + $0x30] sm:$0xf]
      %v1945 = vld [vmem:[%s9 + $0x34] sm:$0xf]
      %v1946 = vld [vmem:[%s9 + $0x38] sm:$0xf]
      %v1947 = vld [vmem:[%s9 + $0x3c] sm:$0xf]
      %v1948 = vld [vmem:[%s10] sm:$0x1]
      %v1950 = vlaneseq
      %v1951 = vshrl.u32 %v1950, 7
      %v1952 = vsub.s32 0, %v1951
      %v1953 = vrot.slane %v1948, %v1952
      %v1971 = vunpack.c.l.b16 %v1932
      %v1972 = vunpack.c.l.b16 %v1933
      %v1973 = vunpack.c.l.b16 %v1934
      %v1974 = vunpack.c.l.b16 %v1935
      %v1975 = vunpack.c.l.b16 %v1936
      %v1976 = vunpack.c.l.b16 %v1937
      %v1977 = vunpack.c.l.b16 %v1938
      %v1978 = vunpack.c.l.b16 %v1939
      %v1979 = vunpack.c.l.b16 %v1940
      %v1980 = vunpack.c.l.b16 %v1941
      %v1981 = vunpack.c.l.b16 %v1942
      %v1982 = vunpack.c.l.b16 %v1943
      %v1983 = vunpack.c.l.b16 %v1944
      %v1984 = vunpack.c.l.b16 %v1945
      %v1985 = vunpack.c.l.b16 %v1946
      %v1986 = vunpack.c.l.b16 %v1947
      %v1987 = vpack.c.b16 %v1972, %v1971
      %v1988 = vpack.c.b16 %v1974, %v1973
      %v1989 = vpack.c.b16 %v1976, %v1975
      %v1990 = vpack.c.b16 %v1978, %v1977
      %v1991 = vpack.c.b16 %v1980, %v1979
      %v1992 = vpack.c.b16 %v1982, %v1981
      %v1993 = vpack.c.b16 %v1984, %v1983
      %v1994 = vpack.c.b16 %v1986, %v1985
      %2003 = vmatprep.subr.bf16.mxu0 0
      %2004 = vmatpush1.bf16.msra.mxu0 %v1994
      %2005 = vmatprep.subr.bf16.mxu0 0
      %2006 = vmatpush1.bf16.msra.mxu0 %v1993
      %2007 = vmatprep.subr.bf16.mxu0 0
      %2008 = vmatpush1.bf16.msra.mxu0 %v1992
      %2009 = vmatprep.subr.bf16.mxu0 0
      %2010 = vmatpush1.bf16.msra.mxu0 %v1991
      %2011 = vmatprep.subr.bf16.mxu0 0
      %2012 = vmatpush1.bf16.msra.mxu0 %v1990
      %2013 = vmatprep.subr.bf16.mxu0 0
      %2014 = vmatpush1.bf16.msra.mxu0 %v1989
      %2015 = vmatprep.subr.bf16.mxu0 0
      %2016 = vmatpush1.bf16.msra.mxu0 %v1988
      %2017 = vmatprep.subr.bf16.mxu0 0
      %2018 = vmatpush1.bf16.msra.mxu0 %v1987
      %2019 = vmatprep.subr.bf16.mxu0 0
      %2020 = vmatpush2.bf16.msra.mxu0 0
      %2021 = vmatprep.subr.bf16.mxu0 0
      %2022 = vmatpush2.bf16.msra.mxu0 0
      %2023 = vmatprep.subr.bf16.mxu0 0
      %2024 = vmatpush2.bf16.msra.mxu0 0
      %2025 = vmatprep.subr.bf16.mxu0 0
      %2026 = vmatpush2.bf16.msra.mxu0 0
      %2027 = vmatprep.subr.bf16.mxu0 0
      %2028 = vmatpush2.bf16.msra.mxu0 0
      %2029 = vmatprep.subr.bf16.mxu0 0
      %2030 = vmatpush2.bf16.msra.mxu0 0
      %2031 = vmatprep.subr.bf16.mxu0 0
      %2032 = vmatpush2.bf16.msra.mxu0 0
      %2033 = vmatprep.subr.bf16.mxu0 0
      %2034 = vmatpush2.bf16.msra.mxu0 0
      %2035 = vmatprep.mubr.bf16.mxu0 0
      %2036 = vmatmul.mubr.bf16.gmra.mxu0 %v1900
      %v2037 = vpop.f32.mrf.mxu0
      %v2038 = vadd.f32 %v1953, %v2037
      %v2039 = vpop.f32.mrf.mxu0
      %v2040 = vpop.f32.mrf.mxu0
      %v2041 = vadd.f32 %v1953, %v2040
      %v2042 = vpop.f32.mrf.mxu0
      %2043 = vmatprep.mubr.bf16.mxu0 0
      %2044 = vmatmul.mubr.bf16.gmra.mxu0 %v1901
      %v2045 = vpop.f32.mrf.mxu0
      %v2046 = vadd.f32 %v1953, %v2045
      %v2047 = vpop.f32.mrf.mxu0
      %v2048 = vpop.f32.mrf.mxu0
      %v2049 = vadd.f32 %v1953, %v2048
      %v2050 = vpop.f32.mrf.mxu0
      %2051 = vmatprep.mubr.bf16.mxu0 0
      %2052 = vmatmul.mubr.bf16.gmra.mxu0 %v1902
      %v2053 = vpop.f32.mrf.mxu0
      %v2054 = vadd.f32 %v1953, %v2053
      %v2055 = vpop.f32.mrf.mxu0
      %v2056 = vpop.f32.mrf.mxu0
      %v2057 = vadd.f32 %v1953, %v2056
      %v2058 = vpop.f32.mrf.mxu0
      %2059 = vmatprep.mubr.bf16.mxu0 0
      %2060 = vmatmul.mubr.bf16.gmra.mxu0 %v1903
      %v2061 = vpop.f32.mrf.mxu0
      %v2062 = vadd.f32 %v1953, %v2061
      %v2063 = vpop.f32.mrf.mxu0
      %v2064 = vpop.f32.mrf.mxu0
      %v2065 = vadd.f32 %v1953, %v2064
      %v2066 = vpop.f32.mrf.mxu0
      %2067 = vmatprep.mubr.bf16.mxu0 0
      %2068 = vmatmul.mubr.bf16.gmra.mxu0 %v1904
      %v2069 = vpop.f32.mrf.mxu0
      %v2070 = vadd.f32 %v1953, %v2069
      %v2071 = vpop.f32.mrf.mxu0
      %v2072 = vpop.f32.mrf.mxu0
      %v2073 = vadd.f32 %v1953, %v2072
      %v2074 = vpop.f32.mrf.mxu0
      %2075 = vmatprep.mubr.bf16.mxu0 0
      %2076 = vmatmul.mubr.bf16.gmra.mxu0 %v1905
      %v2077 = vpop.f32.mrf.mxu0
      %v2078 = vadd.f32 %v1953, %v2077
      %v2079 = vpop.f32.mrf.mxu0
      %v2080 = vpop.f32.mrf.mxu0
      %v2081 = vadd.f32 %v1953, %v2080
      %v2082 = vpop.f32.mrf.mxu0
      %2083 = vmatprep.mubr.bf16.mxu0 0
      %2084 = vmatmul.mubr.bf16.gmra.mxu0 %v1906
      %v2085 = vpop.f32.mrf.mxu0
      %v2086 = vadd.f32 %v1953, %v2085
      %v2087 = vpop.f32.mrf.mxu0
      %v2088 = vpop.f32.mrf.mxu0
      %v2089 = vadd.f32 %v1953, %v2088
      %v2090 = vpop.f32.mrf.mxu0
      %2091 = vmatprep.mubr.bf16.mxu0 0
      %2092 = vmatmul.mubr.bf16.gmra.mxu0 %v1907
      %v2093 = vpop.f32.mrf.mxu0
      %v2094 = vadd.f32 %v1953, %v2093
      %v2095 = vpop.f32.mrf.mxu0
      %v2096 = vpop.f32.mrf.mxu0
      %v2097 = vadd.f32 %v1953, %v2096
      %v2098 = vpop.f32.mrf.mxu0
      %2099 = vmatprep.mubr.bf16.mxu0 0
      %2100 = vmatmul.mubr.bf16.gmra.mxu0 %v1908
      %v2101 = vpop.f32.mrf.mxu0
      %v2102 = vadd.f32 %v1953, %v2101
      %v2103 = vpop.f32.mrf.mxu0
      %v2104 = vpop.f32.mrf.mxu0
      %v2105 = vadd.f32 %v1953, %v2104
      %v2106 = vpop.f32.mrf.mxu0
      %2107 = vmatprep.mubr.bf16.mxu0 0
      %2108 = vmatmul.mubr.bf16.gmra.mxu0 %v1909
      %v2109 = vpop.f32.mrf.mxu0
      %v2110 = vadd.f32 %v1953, %v2109
      %v2111 = vpop.f32.mrf.mxu0
      %v2112 = vpop.f32.mrf.mxu0
      %v2113 = vadd.f32 %v1953, %v2112
      %v2114 = vpop.f32.mrf.mxu0
      %2115 = vmatprep.mubr.bf16.mxu0 0
      %2116 = vmatmul.mubr.bf16.gmra.mxu0 %v1910
      %v2117 = vpop.f32.mrf.mxu0
      %v2118 = vadd.f32 %v1953, %v2117
      %v2119 = vpop.f32.mrf.mxu0
      %v2120 = vpop.f32.mrf.mxu0
      %v2121 = vadd.f32 %v1953, %v2120
      %v2122 = vpop.f32.mrf.mxu0
      %2123 = vmatprep.mubr.bf16.mxu0 0
      %2124 = vmatmul.mubr.bf16.gmra.mxu0 %v1911
      %v2125 = vpop.f32.mrf.mxu0
      %v2126 = vadd.f32 %v1953, %v2125
      %v2127 = vpop.f32.mrf.mxu0
      %v2128 = vpop.f32.mrf.mxu0
      %v2129 = vadd.f32 %v1953, %v2128
      %v2130 = vpop.f32.mrf.mxu0
      %2131 = vmatprep.mubr.bf16.mxu0 0
      %2132 = vmatmul.mubr.bf16.gmra.mxu0 %v1912
      %v2133 = vpop.f32.mrf.mxu0
      %v2134 = vadd.f32 %v1953, %v2133
      %v2135 = vpop.f32.mrf.mxu0
      %v2136 = vpop.f32.mrf.mxu0
      %v2137 = vadd.f32 %v1953, %v2136
      %v2138 = vpop.f32.mrf.mxu0
      %2139 = vmatprep.mubr.bf16.mxu0 0
      %2140 = vmatmul.mubr.bf16.gmra.mxu0 %v1913
      %v2141 = vpop.f32.mrf.mxu0
      %v2142 = vadd.f32 %v1953, %v2141
      %v2143 = vpop.f32.mrf.mxu0
      %v2144 = vpop.f32.mrf.mxu0
      %v2145 = vadd.f32 %v1953, %v2144
      %v2146 = vpop.f32.mrf.mxu0
      %2147 = vmatprep.mubr.bf16.mxu0 0
      %2148 = vmatmul.mubr.bf16.gmra.mxu0 %v1914
      %v2149 = vpop.f32.mrf.mxu0
      %v2150 = vadd.f32 %v1953, %v2149
      %v2151 = vpop.f32.mrf.mxu0
      %v2152 = vpop.f32.mrf.mxu0
      %v2153 = vadd.f32 %v1953, %v2152
      %v2154 = vpop.f32.mrf.mxu0
      %2155 = vmatprep.mubr.bf16.mxu0 0
      %2156 = vmatmul.mubr.bf16.gmra.mxu0 %v1915
      %v2157 = vpop.f32.mrf.mxu0
      %v2158 = vadd.f32 %v1953, %v2157
      %v2159 = vpop.f32.mrf.mxu0
      %v2160 = vpop.f32.mrf.mxu0
      %v2161 = vadd.f32 %v1953, %v2160
      %v2162 = vpop.f32.mrf.mxu0
      %2163 = vmatprep.mubr.bf16.mxu0 0
      %2164 = vmatmul.mubr.bf16.gmra.mxu0 %v1916
      %v2165 = vpop.f32.mrf.mxu0
      %v2166 = vadd.f32 %v1953, %v2165
      %v2167 = vpop.f32.mrf.mxu0
      %v2168 = vpop.f32.mrf.mxu0
      %v2169 = vadd.f32 %v1953, %v2168
      %v2170 = vpop.f32.mrf.mxu0
      %2171 = vmatprep.mubr.bf16.mxu0 0
      %2172 = vmatmul.mubr.bf16.gmra.mxu0 %v1917
      %v2173 = vpop.f32.mrf.mxu0
      %v2174 = vadd.f32 %v1953, %v2173
      %v2175 = vpop.f32.mrf.mxu0
      %v2176 = vpop.f32.mrf.mxu0
      %v2177 = vadd.f32 %v1953, %v2176
      %v2178 = vpop.f32.mrf.mxu0
      %2179 = vmatprep.mubr.bf16.mxu0 0
      %2180 = vmatmul.mubr.bf16.gmra.mxu0 %v1918
      %v2181 = vpop.f32.mrf.mxu0
      %v2182 = vadd.f32 %v1953, %v2181
      %v2183 = vpop.f32.mrf.mxu0
      %v2184 = vpop.f32.mrf.mxu0
      %v2185 = vadd.f32 %v1953, %v2184
      %v2186 = vpop.f32.mrf.mxu0
      %2187 = vmatprep.mubr.bf16.mxu0 0
      %2188 = vmatmul.mubr.bf16.gmra.mxu0 %v1919
      %v2189 = vpop.f32.mrf.mxu0
      %v2190 = vadd.f32 %v1953, %v2189
      %v2191 = vpop.f32.mrf.mxu0
      %v2192 = vpop.f32.mrf.mxu0
      %v2193 = vadd.f32 %v1953, %v2192
      %v2194 = vpop.f32.mrf.mxu0
      %2195 = vmatprep.mubr.bf16.mxu0 0
      %2196 = vmatmul.mubr.bf16.gmra.mxu0 %v1920
      %v2197 = vpop.f32.mrf.mxu0
      %v2198 = vadd.f32 %v1953, %v2197
      %v2199 = vpop.f32.mrf.mxu0
      %v2200 = vpop.f32.mrf.mxu0
      %v2201 = vadd.f32 %v1953, %v2200
      %v2202 = vpop.f32.mrf.mxu0
      %2203 = vmatprep.mubr.bf16.mxu0 0
      %2204 = vmatmul.mubr.bf16.gmra.mxu0 %v1921
      %v2205 = vpop.f32.mrf.mxu0
      %v2206 = vadd.f32 %v1953, %v2205
      %v2207 = vpop.f32.mrf.mxu0
      %v2208 = vpop.f32.mrf.mxu0
      %v2209 = vadd.f32 %v1953, %v2208
      %v2210 = vpop.f32.mrf.mxu0
      %2211 = vmatprep.mubr.bf16.mxu0 0
      %2212 = vmatmul.mubr.bf16.gmra.mxu0 %v1922
      %v2213 = vpop.f32.mrf.mxu0
      %v2214 = vadd.f32 %v1953, %v2213
      %v2215 = vpop.f32.mrf.mxu0
      %v2216 = vpop.f32.mrf.mxu0
      %v2217 = vadd.f32 %v1953, %v2216
      %v2218 = vpop.f32.mrf.mxu0
      %2219 = vmatprep.mubr.bf16.mxu0 0
      %2220 = vmatmul.mubr.bf16.gmra.mxu0 %v1923
      %v2221 = vpop.f32.mrf.mxu0
      %v2222 = vadd.f32 %v1953, %v2221
      %v2223 = vpop.f32.mrf.mxu0
      %v2224 = vpop.f32.mrf.mxu0
      %v2225 = vadd.f32 %v1953, %v2224
      %v2226 = vpop.f32.mrf.mxu0
      %2227 = vmatprep.mubr.bf16.mxu0 0
      %2228 = vmatmul.mubr.bf16.gmra.mxu0 %v1924
      %v2229 = vpop.f32.mrf.mxu0
      %v2230 = vadd.f32 %v1953, %v2229
      %v2231 = vpop.f32.mrf.mxu0
      %v2232 = vpop.f32.mrf.mxu0
      %v2233 = vadd.f32 %v1953, %v2232
      %v2234 = vpop.f32.mrf.mxu0
      %2235 = vmatprep.mubr.bf16.mxu0 0
      %2236 = vmatmul.mubr.bf16.gmra.mxu0 %v1925
      %v2237 = vpop.f32.mrf.mxu0
      %v2238 = vadd.f32 %v1953, %v2237
      %v2239 = vpop.f32.mrf.mxu0
      %v2240 = vpop.f32.mrf.mxu0
      %v2241 = vadd.f32 %v1953, %v2240
      %v2242 = vpop.f32.mrf.mxu0
      %2243 = vmatprep.mubr.bf16.mxu0 0
      %2244 = vmatmul.mubr.bf16.gmra.mxu0 %v1926
      %v2245 = vpop.f32.mrf.mxu0
      %v2246 = vadd.f32 %v1953, %v2245
      %v2247 = vpop.f32.mrf.mxu0
      %v2248 = vpop.f32.mrf.mxu0
      %v2249 = vadd.f32 %v1953, %v2248
      %v2250 = vpop.f32.mrf.mxu0
      %2251 = vmatprep.mubr.bf16.mxu0 0
      %2252 = vmatmul.mubr.bf16.gmra.mxu0 %v1927
      %v2253 = vpop.f32.mrf.mxu0
      %v2254 = vadd.f32 %v1953, %v2253
      %v2255 = vpop.f32.mrf.mxu0
      %v2256 = vpop.f32.mrf.mxu0
      %v2257 = vadd.f32 %v1953, %v2256
      %v2258 = vpop.f32.mrf.mxu0
      %2259 = vmatprep.mubr.bf16.mxu0 0
      %2260 = vmatmul.mubr.bf16.gmra.mxu0 %v1928
      %v2261 = vpop.f32.mrf.mxu0
      %v2262 = vadd.f32 %v1953, %v2261
      %v2263 = vpop.f32.mrf.mxu0
      %v2264 = vpop.f32.mrf.mxu0
      %v2265 = vadd.f32 %v1953, %v2264
      %v2266 = vpop.f32.mrf.mxu0
      %2267 = vmatprep.mubr.bf16.mxu0 0
      %2268 = vmatmul.mubr.bf16.gmra.mxu0 %v1929
      %v2269 = vpop.f32.mrf.mxu0
      %v2270 = vadd.f32 %v1953, %v2269
      %v2271 = vpop.f32.mrf.mxu0
      %v2272 = vpop.f32.mrf.mxu0
      %v2273 = vadd.f32 %v1953, %v2272
      %v2274 = vpop.f32.mrf.mxu0
      %2275 = vmatprep.mubr.bf16.mxu0 0
      %2276 = vmatmul.mubr.bf16.gmra.mxu0 %v1930
      %v2277 = vpop.f32.mrf.mxu0
      %v2278 = vadd.f32 %v1953, %v2277
      %v2279 = vpop.f32.mrf.mxu0
      %v2280 = vpop.f32.mrf.mxu0
      %v2281 = vadd.f32 %v1953, %v2280
      %v2282 = vpop.f32.mrf.mxu0
      %2283 = vmatprep.mubr.bf16.mxu0 0
      %2284 = vmatmul.mubr.bf16.gmra.mxu0 %v1931
      %v2285 = vpop.f32.mrf.mxu0
      %v2286 = vadd.f32 %v1953, %v2285
      %v2287 = vpop.f32.mrf.mxu0
      %v2288 = vpop.f32.mrf.mxu0
      %v2289 = vadd.f32 %v1953, %v2288
      %v2290 = vpop.f32.mrf.mxu0
      %2291 = vdwg.mxu0
      %v2292 = vld [vmem:[%s487] sm:$0xff]
      %v2293 = vld [vmem:[%s487 + $0x8] sm:$0xff]
      %v2294 = vld [vmem:[%s487 + $0x10] sm:$0xff]
      %v2295 = vld [vmem:[%s487 + $0x18] sm:$0xff]
      %v2296 = vld [vmem:[%s487 + $0x20] sm:$0xff]
      %v2297 = vld [vmem:[%s487 + $0x28] sm:$0xff]
      %v2298 = vld [vmem:[%s487 + $0x30] sm:$0xff]
      %v2299 = vld [vmem:[%s487 + $0x38] sm:$0xff]
      %v2300 = vld [vmem:[%s487 + $0x40] sm:$0xff]
      %v2301 = vld [vmem:[%s487 + $0x48] sm:$0xff]
      %v2302 = vld [vmem:[%s487 + $0x50] sm:$0xff]
      %v2303 = vld [vmem:[%s487 + $0x58] sm:$0xff]
      %v2304 = vld [vmem:[%s487 + $0x60] sm:$0xff]
      %v2305 = vld [vmem:[%s487 + $0x68] sm:$0xff]
      %v2306 = vld [vmem:[%s487 + $0x70] sm:$0xff]
      %v2307 = vld [vmem:[%s487 + $0x78] sm:$0xff]
      %v2308 = vld [vmem:[%s487 + $0x80] sm:$0xff]
      %v2309 = vld [vmem:[%s487 + $0x88] sm:$0xff]
      %v2310 = vld [vmem:[%s487 + $0x90] sm:$0xff]
      %v2311 = vld [vmem:[%s487 + $0x98] sm:$0xff]
      %v2312 = vld [vmem:[%s487 + $0xa0] sm:$0xff]
      %v2313 = vld [vmem:[%s487 + $0xa8] sm:$0xff]
      %v2314 = vld [vmem:[%s487 + $0xb0] sm:$0xff]
      %v2315 = vld [vmem:[%s487 + $0xb8] sm:$0xff]
      %v2316 = vld [vmem:[%s487 + $0xc0] sm:$0xff]
      %v2317 = vld [vmem:[%s487 + $0xc8] sm:$0xff]
      %v2318 = vld [vmem:[%s487 + $0xd0] sm:$0xff]
      %v2319 = vld [vmem:[%s487 + $0xd8] sm:$0xff]
      %v2320 = vld [vmem:[%s487 + $0xe0] sm:$0xff]
      %v2321 = vld [vmem:[%s487 + $0xe8] sm:$0xff]
      %v2322 = vld [vmem:[%s487 + $0xf0] sm:$0xff]
      %v2323 = vld [vmem:[%s487 + $0xf8] sm:$0xff]
      %v2324 = vld [vmem:[%s487 + $0x100] sm:$0xff]
      %v2325 = vld [vmem:[%s487 + $0x108] sm:$0xff]
      %v2326 = vld [vmem:[%s487 + $0x110] sm:$0xff]
      %v2327 = vld [vmem:[%s487 + $0x118] sm:$0xff]
      %v2328 = vld [vmem:[%s487 + $0x120] sm:$0xff]
      %v2329 = vld [vmem:[%s487 + $0x128] sm:$0xff]
      %v2330 = vld [vmem:[%s487 + $0x130] sm:$0xff]
      %v2331 = vld [vmem:[%s487 + $0x138] sm:$0xff]
      %v2332 = vld [vmem:[%s487 + $0x140] sm:$0xff]
      %v2333 = vld [vmem:[%s487 + $0x148] sm:$0xff]
      %v2334 = vld [vmem:[%s487 + $0x150] sm:$0xff]
      %v2335 = vld [vmem:[%s487 + $0x158] sm:$0xff]
      %v2336 = vld [vmem:[%s487 + $0x160] sm:$0xff]
      %v2337 = vld [vmem:[%s487 + $0x168] sm:$0xff]
      %v2338 = vld [vmem:[%s487 + $0x170] sm:$0xff]
      %v2339 = vld [vmem:[%s487 + $0x178] sm:$0xff]
      %v2340 = vld [vmem:[%s487 + $0x180] sm:$0xff]
      %v2341 = vld [vmem:[%s487 + $0x188] sm:$0xff]
      %v2342 = vld [vmem:[%s487 + $0x190] sm:$0xff]
      %v2343 = vld [vmem:[%s487 + $0x198] sm:$0xff]
      %v2344 = vld [vmem:[%s487 + $0x1a0] sm:$0xff]
      %v2345 = vld [vmem:[%s487 + $0x1a8] sm:$0xff]
      %v2346 = vld [vmem:[%s487 + $0x1b0] sm:$0xff]
      %v2347 = vld [vmem:[%s487 + $0x1b8] sm:$0xff]
      %v2348 = vld [vmem:[%s487 + $0x1c0] sm:$0xff]
      %v2349 = vld [vmem:[%s487 + $0x1c8] sm:$0xff]
      %v2350 = vld [vmem:[%s487 + $0x1d0] sm:$0xff]
      %v2351 = vld [vmem:[%s487 + $0x1d8] sm:$0xff]
      %v2352 = vld [vmem:[%s487 + $0x1e0] sm:$0xff]
      %v2353 = vld [vmem:[%s487 + $0x1e8] sm:$0xff]
      %v2354 = vld [vmem:[%s487 + $0x1f0] sm:$0xff]
      %v2355 = vld [vmem:[%s487 + $0x1f8] sm:$0xff]
      %2357 = vset.pattern.permute.xlu0 0
      %2358 = vperm.xlu0 %2357, %v2292
      %v2359 = vpop.permute.xlu0 %2358
      %2362 = vset.pattern.permute.xlu0 0
      %2363 = vperm.xlu0 %2362, %v2293
      %v2364 = vpop.permute.xlu0 %2363
      %2367 = vset.pattern.permute.xlu0 0
      %2368 = vperm.xlu0 %2367, %v2294
      %v2369 = vpop.permute.xlu0 %2368
      %2372 = vset.pattern.permute.xlu0 0
      %2373 = vperm.xlu0 %2372, %v2295
      %v2374 = vpop.permute.xlu0 %2373
      %2377 = vset.pattern.permute.xlu0 0
      %2378 = vperm.xlu0 %2377, %v2296
      %v2379 = vpop.permute.xlu0 %2378
      %2382 = vset.pattern.permute.xlu0 0
      %2383 = vperm.xlu0 %2382, %v2297
      %v2384 = vpop.permute.xlu0 %2383
      %2387 = vset.pattern.permute.xlu0 0
      %2388 = vperm.xlu0 %2387, %v2298
      %v2389 = vpop.permute.xlu0 %2388
      %2392 = vset.pattern.permute.xlu0 0
      %2393 = vperm.xlu0 %2392, %v2299
      %v2394 = vpop.permute.xlu0 %2393
      %2397 = vset.pattern.permute.xlu0 0
      %2398 = vperm.xlu0 %2397, %v2300
      %v2399 = vpop.permute.xlu0 %2398
      %2402 = vset.pattern.permute.xlu0 0
      %2403 = vperm.xlu0 %2402, %v2301
      %v2404 = vpop.permute.xlu0 %2403
      %2407 = vset.pattern.permute.xlu0 0
      %2408 = vperm.xlu0 %2407, %v2302
      %v2409 = vpop.permute.xlu0 %2408
      %2412 = vset.pattern.permute.xlu0 0
      %2413 = vperm.xlu0 %2412, %v2303
      %v2414 = vpop.permute.xlu0 %2413
      %2417 = vset.pattern.permute.xlu0 0
      %2418 = vperm.xlu0 %2417, %v2304
      %v2419 = vpop.permute.xlu0 %2418
      %2422 = vset.pattern.permute.xlu0 0
      %2423 = vperm.xlu0 %2422, %v2305
      %v2424 = vpop.permute.xlu0 %2423
      %2427 = vset.pattern.permute.xlu0 0
      %2428 = vperm.xlu0 %2427, %v2306
      %v2429 = vpop.permute.xlu0 %2428
      %2432 = vset.pattern.permute.xlu0 0
      %2433 = vperm.xlu0 %2432, %v2307
      %v2434 = vpop.permute.xlu0 %2433
      %2437 = vset.pattern.permute.xlu0 0
      %2438 = vperm.xlu0 %2437, %v2308
      %v2439 = vpop.permute.xlu0 %2438
      %2442 = vset.pattern.permute.xlu0 0
      %2443 = vperm.xlu0 %2442, %v2309
      %v2444 = vpop.permute.xlu0 %2443
      %2447 = vset.pattern.permute.xlu0 0
      %2448 = vperm.xlu0 %2447, %v2310
      %v2449 = vpop.permute.xlu0 %2448
      %2452 = vset.pattern.permute.xlu0 0
      %2453 = vperm.xlu0 %2452, %v2311
      %v2454 = vpop.permute.xlu0 %2453
      %2457 = vset.pattern.permute.xlu0 0
      %2458 = vperm.xlu0 %2457, %v2312
      %v2459 = vpop.permute.xlu0 %2458
      %2462 = vset.pattern.permute.xlu0 0
      %2463 = vperm.xlu0 %2462, %v2313
      %v2464 = vpop.permute.xlu0 %2463
      %2467 = vset.pattern.permute.xlu0 0
      %2468 = vperm.xlu0 %2467, %v2314
      %v2469 = vpop.permute.xlu0 %2468
      %2472 = vset.pattern.permute.xlu0 0
      %2473 = vperm.xlu0 %2472, %v2315
      %v2474 = vpop.permute.xlu0 %2473
      %2477 = vset.pattern.permute.xlu0 0
      %2478 = vperm.xlu0 %2477, %v2316
      %v2479 = vpop.permute.xlu0 %2478
      %2482 = vset.pattern.permute.xlu0 0
      %2483 = vperm.xlu0 %2482, %v2317
      %v2484 = vpop.permute.xlu0 %2483
      %2487 = vset.pattern.permute.xlu0 0
      %2488 = vperm.xlu0 %2487, %v2318
      %v2489 = vpop.permute.xlu0 %2488
      %2492 = vset.pattern.permute.xlu0 0
      %2493 = vperm.xlu0 %2492, %v2319
      %v2494 = vpop.permute.xlu0 %2493
      %2497 = vset.pattern.permute.xlu0 0
      %2498 = vperm.xlu0 %2497, %v2320
      %v2499 = vpop.permute.xlu0 %2498
      %2502 = vset.pattern.permute.xlu0 0
      %2503 = vperm.xlu0 %2502, %v2321
      %v2504 = vpop.permute.xlu0 %2503
      %2507 = vset.pattern.permute.xlu0 0
      %2508 = vperm.xlu0 %2507, %v2322
      %v2509 = vpop.permute.xlu0 %2508
      %2512 = vset.pattern.permute.xlu0 0
      %2513 = vperm.xlu0 %2512, %v2323
      %v2514 = vpop.permute.xlu0 %2513
      %2517 = vset.pattern.permute.xlu0 0
      %2518 = vperm.xlu0 %2517, %v2324
      %v2519 = vpop.permute.xlu0 %2518
      %2522 = vset.pattern.permute.xlu0 0
      %2523 = vperm.xlu0 %2522, %v2325
      %v2524 = vpop.permute.xlu0 %2523
      %2527 = vset.pattern.permute.xlu0 0
      %2528 = vperm.xlu0 %2527, %v2326
      %v2529 = vpop.permute.xlu0 %2528
      %2532 = vset.pattern.permute.xlu0 0
      %2533 = vperm.xlu0 %2532, %v2327
      %v2534 = vpop.permute.xlu0 %2533
      %2537 = vset.pattern.permute.xlu0 0
      %2538 = vperm.xlu0 %2537, %v2328
      %v2539 = vpop.permute.xlu0 %2538
      %2542 = vset.pattern.permute.xlu0 0
      %2543 = vperm.xlu0 %2542, %v2329
      %v2544 = vpop.permute.xlu0 %2543
      %2547 = vset.pattern.permute.xlu0 0
      %2548 = vperm.xlu0 %2547, %v2330
      %v2549 = vpop.permute.xlu0 %2548
      %2552 = vset.pattern.permute.xlu0 0
      %2553 = vperm.xlu0 %2552, %v2331
      %v2554 = vpop.permute.xlu0 %2553
      %2557 = vset.pattern.permute.xlu0 0
      %2558 = vperm.xlu0 %2557, %v2332
      %v2559 = vpop.permute.xlu0 %2558
      %2562 = vset.pattern.permute.xlu0 0
      %2563 = vperm.xlu0 %2562, %v2333
      %v2564 = vpop.permute.xlu0 %2563
      %2567 = vset.pattern.permute.xlu0 0
      %2568 = vperm.xlu0 %2567, %v2334
      %v2569 = vpop.permute.xlu0 %2568
      %2572 = vset.pattern.permute.xlu0 0
      %2573 = vperm.xlu0 %2572, %v2335
      %v2574 = vpop.permute.xlu0 %2573
      %2577 = vset.pattern.permute.xlu0 0
      %2578 = vperm.xlu0 %2577, %v2336
      %v2579 = vpop.permute.xlu0 %2578
      %2582 = vset.pattern.permute.xlu0 0
      %2583 = vperm.xlu0 %2582, %v2337
      %v2584 = vpop.permute.xlu0 %2583
      %2587 = vset.pattern.permute.xlu0 0
      %2588 = vperm.xlu0 %2587, %v2338
      %v2589 = vpop.permute.xlu0 %2588
      %2592 = vset.pattern.permute.xlu0 0
      %2593 = vperm.xlu0 %2592, %v2339
      %v2594 = vpop.permute.xlu0 %2593
      %2597 = vset.pattern.permute.xlu0 0
      %2598 = vperm.xlu0 %2597, %v2340
      %v2599 = vpop.permute.xlu0 %2598
      %2602 = vset.pattern.permute.xlu0 0
      %2603 = vperm.xlu0 %2602, %v2341
      %v2604 = vpop.permute.xlu0 %2603
      %2607 = vset.pattern.permute.xlu0 0
      %2608 = vperm.xlu0 %2607, %v2342
      %v2609 = vpop.permute.xlu0 %2608
      %2612 = vset.pattern.permute.xlu0 0
      %2613 = vperm.xlu0 %2612, %v2343
      %v2614 = vpop.permute.xlu0 %2613
      %2617 = vset.pattern.permute.xlu0 0
      %2618 = vperm.xlu0 %2617, %v2344
      %v2619 = vpop.permute.xlu0 %2618
      %2622 = vset.pattern.permute.xlu0 0
      %2623 = vperm.xlu0 %2622, %v2345
      %v2624 = vpop.permute.xlu0 %2623
      %2627 = vset.pattern.permute.xlu0 0
      %2628 = vperm.xlu0 %2627, %v2346
      %v2629 = vpop.permute.xlu0 %2628
      %2632 = vset.pattern.permute.xlu0 0
      %2633 = vperm.xlu0 %2632, %v2347
      %v2634 = vpop.permute.xlu0 %2633
      %2637 = vset.pattern.permute.xlu0 0
      %2638 = vperm.xlu0 %2637, %v2348
      %v2639 = vpop.permute.xlu0 %2638
      %2642 = vset.pattern.permute.xlu0 0
      %2643 = vperm.xlu0 %2642, %v2349
      %v2644 = vpop.permute.xlu0 %2643
      %2647 = vset.pattern.permute.xlu0 0
      %2648 = vperm.xlu0 %2647, %v2350
      %v2649 = vpop.permute.xlu0 %2648
      %2652 = vset.pattern.permute.xlu0 0
      %2653 = vperm.xlu0 %2652, %v2351
      %v2654 = vpop.permute.xlu0 %2653
      %2657 = vset.pattern.permute.xlu0 0
      %2658 = vperm.xlu0 %2657, %v2352
      %v2659 = vpop.permute.xlu0 %2658
      %2662 = vset.pattern.permute.xlu0 0
      %2663 = vperm.xlu0 %2662, %v2353
      %v2664 = vpop.permute.xlu0 %2663
      %2667 = vset.pattern.permute.xlu0 0
      %2668 = vperm.xlu0 %2667, %v2354
      %v2669 = vpop.permute.xlu0 %2668
      %2672 = vset.pattern.permute.xlu0 0
      %2673 = vperm.xlu0 %2672, %v2355
      %v2674 = vpop.permute.xlu0 %2673
      %v2676 = vadd.f32 %v2038, %v2359
      %v2677 = vadd.f32 %v2041, %v2364
      %v2678 = vadd.f32 %v2046, %v2369
      %v2679 = vadd.f32 %v2049, %v2374
      %v2680 = vadd.f32 %v2054, %v2379
      %v2681 = vadd.f32 %v2057, %v2384
      %v2682 = vadd.f32 %v2062, %v2389
      %v2683 = vadd.f32 %v2065, %v2394
      %v2684 = vadd.f32 %v2070, %v2399
      %v2685 = vadd.f32 %v2073, %v2404
      %v2686 = vadd.f32 %v2078, %v2409
      %v2687 = vadd.f32 %v2081, %v2414
      %v2688 = vadd.f32 %v2086, %v2419
      %v2689 = vadd.f32 %v2089, %v2424
      %v2690 = vadd.f32 %v2094, %v2429
      %v2691 = vadd.f32 %v2097, %v2434
      %v2692 = vadd.f32 %v2102, %v2439
      %v2693 = vadd.f32 %v2105, %v2444
      %v2694 = vadd.f32 %v2110, %v2449
      %v2695 = vadd.f32 %v2113, %v2454
      %v2696 = vadd.f32 %v2118, %v2459
      %v2697 = vadd.f32 %v2121, %v2464
      %v2698 = vadd.f32 %v2126, %v2469
      %v2699 = vadd.f32 %v2129, %v2474
      %v2700 = vadd.f32 %v2134, %v2479
      %v2701 = vadd.f32 %v2137, %v2484
      %v2702 = vadd.f32 %v2142, %v2489
      %v2703 = vadd.f32 %v2145, %v2494
      %v2704 = vadd.f32 %v2150, %v2499
      %v2705 = vadd.f32 %v2153, %v2504
      %v2706 = vadd.f32 %v2158, %v2509
      %v2707 = vadd.f32 %v2161, %v2514
      %v2708 = vadd.f32 %v2166, %v2519
      %v2709 = vadd.f32 %v2169, %v2524
      %v2710 = vadd.f32 %v2174, %v2529
      %v2711 = vadd.f32 %v2177, %v2534
      %v2712 = vadd.f32 %v2182, %v2539
      %v2713 = vadd.f32 %v2185, %v2544
      %v2714 = vadd.f32 %v2190, %v2549
      %v2715 = vadd.f32 %v2193, %v2554
      %v2716 = vadd.f32 %v2198, %v2559
      %v2717 = vadd.f32 %v2201, %v2564
      %v2718 = vadd.f32 %v2206, %v2569
      %v2719 = vadd.f32 %v2209, %v2574
      %v2720 = vadd.f32 %v2214, %v2579
      %v2721 = vadd.f32 %v2217, %v2584
      %v2722 = vadd.f32 %v2222, %v2589
      %v2723 = vadd.f32 %v2225, %v2594
      %v2724 = vadd.f32 %v2230, %v2599
      %v2725 = vadd.f32 %v2233, %v2604
      %v2726 = vadd.f32 %v2238, %v2609
      %v2727 = vadd.f32 %v2241, %v2614
      %v2728 = vadd.f32 %v2246, %v2619
      %v2729 = vadd.f32 %v2249, %v2624
      %v2730 = vadd.f32 %v2254, %v2629
      %v2731 = vadd.f32 %v2257, %v2634
      %v2732 = vadd.f32 %v2262, %v2639
      %v2733 = vadd.f32 %v2265, %v2644
      %v2734 = vadd.f32 %v2270, %v2649
      %v2735 = vadd.f32 %v2273, %v2654
      %v2736 = vadd.f32 %v2278, %v2659
      %v2737 = vadd.f32 %v2281, %v2664
      %v2738 = vadd.f32 %v2286, %v2669
      %v2739 = vadd.f32 %v2289, %v2674
      %v2740 = vmax.f32 %v2676, %v2677
      %v2741 = vmax.f32 %v2740, %v2678
      %v2742 = vmax.f32 %v2741, %v2679
      %v2743 = vmax.f32 %v2742, %v2680
      %v2744 = vmax.f32 %v2743, %v2681
      %v2745 = vmax.f32 %v2744, %v2682
      %v2746 = vmax.f32 %v2745, %v2683
      %v2747 = vrot.slane %v2746, 4
      %v2748 = vmax.f32 %v2746, %v2747
      %v2749 = vrot.slane %v2748, 2
      %v2750 = vmax.f32 %v2748, %v2749
      %v2751 = vrot.slane %v2750, 1
      %v2752 = vmax.f32 %v2750, %v2751
      %v2753 = vmax.f32 %v2684, %v2685
      %v2754 = vmax.f32 %v2753, %v2686
      %v2755 = vmax.f32 %v2754, %v2687
      %v2756 = vmax.f32 %v2755, %v2688
      %v2757 = vmax.f32 %v2756, %v2689
      %v2758 = vmax.f32 %v2757, %v2690
      %v2759 = vmax.f32 %v2758, %v2691
      %v2760 = vrot.slane %v2759, 4
      %v2761 = vmax.f32 %v2759, %v2760
      %v2762 = vrot.slane %v2761, 2
      %v2763 = vmax.f32 %v2761, %v2762
      %v2764 = vrot.slane %v2763, 1
      %v2765 = vmax.f32 %v2763, %v2764
      %v2766 = vmax.f32 %v2692, %v2693
      %v2767 = vmax.f32 %v2766, %v2694
      %v2768 = vmax.f32 %v2767, %v2695
      %v2769 = vmax.f32 %v2768, %v2696
      %v2770 = vmax.f32 %v2769, %v2697
      %v2771 = vmax.f32 %v2770, %v2698
      %v2772 = vmax.f32 %v2771, %v2699
      %v2773 = vrot.slane %v2772, 4
      %v2774 = vmax.f32 %v2772, %v2773
      %v2775 = vrot.slane %v2774, 2
      %v2776 = vmax.f32 %v2774, %v2775
      %v2777 = vrot.slane %v2776, 1
      %v2778 = vmax.f32 %v2776, %v2777
      %v2779 = vmax.f32 %v2700, %v2701
      %v2780 = vmax.f32 %v2779, %v2702
      %v2781 = vmax.f32 %v2780, %v2703
      %v2782 = vmax.f32 %v2781, %v2704
      %v2783 = vmax.f32 %v2782, %v2705
      %v2784 = vmax.f32 %v2783, %v2706
      %v2785 = vmax.f32 %v2784, %v2707
      %v2786 = vrot.slane %v2785, 4
      %v2787 = vmax.f32 %v2785, %v2786
      %v2788 = vrot.slane %v2787, 2
      %v2789 = vmax.f32 %v2787, %v2788
      %v2790 = vrot.slane %v2789, 1
      %v2791 = vmax.f32 %v2789, %v2790
      %v2792 = vmax.f32 %v2708, %v2709
      %v2793 = vmax.f32 %v2792, %v2710
      %v2794 = vmax.f32 %v2793, %v2711
      %v2795 = vmax.f32 %v2794, %v2712
      %v2796 = vmax.f32 %v2795, %v2713
      %v2797 = vmax.f32 %v2796, %v2714
      %v2798 = vmax.f32 %v2797, %v2715
      %v2799 = vrot.slane %v2798, 4
      %v2800 = vmax.f32 %v2798, %v2799
      %v2801 = vrot.slane %v2800, 2
      %v2802 = vmax.f32 %v2800, %v2801
      %v2803 = vrot.slane %v2802, 1
      %v2804 = vmax.f32 %v2802, %v2803
      %v2805 = vmax.f32 %v2716, %v2717
      %v2806 = vmax.f32 %v2805, %v2718
      %v2807 = vmax.f32 %v2806, %v2719
      %v2808 = vmax.f32 %v2807, %v2720
      %v2809 = vmax.f32 %v2808, %v2721
      %v2810 = vmax.f32 %v2809, %v2722
      %v2811 = vmax.f32 %v2810, %v2723
      %v2812 = vrot.slane %v2811, 4
      %v2813 = vmax.f32 %v2811, %v2812
      %v2814 = vrot.slane %v2813, 2
      %v2815 = vmax.f32 %v2813, %v2814
      %v2816 = vrot.slane %v2815, 1
      %v2817 = vmax.f32 %v2815, %v2816
      %v2818 = vmax.f32 %v2724, %v2725
      %v2819 = vmax.f32 %v2818, %v2726
      %v2820 = vmax.f32 %v2819, %v2727
      %v2821 = vmax.f32 %v2820, %v2728
      %v2822 = vmax.f32 %v2821, %v2729
      %v2823 = vmax.f32 %v2822, %v2730
      %v2824 = vmax.f32 %v2823, %v2731
      %v2825 = vrot.slane %v2824, 4
      %v2826 = vmax.f32 %v2824, %v2825
      %v2827 = vrot.slane %v2826, 2
      %v2828 = vmax.f32 %v2826, %v2827
      %v2829 = vrot.slane %v2828, 1
      %v2830 = vmax.f32 %v2828, %v2829
      %v2831 = vmax.f32 %v2732, %v2733
      %v2832 = vmax.f32 %v2831, %v2734
      %v2833 = vmax.f32 %v2832, %v2735
      %v2834 = vmax.f32 %v2833, %v2736
      %v2835 = vmax.f32 %v2834, %v2737
      %v2836 = vmax.f32 %v2835, %v2738
      %v2837 = vmax.f32 %v2836, %v2739
      %v2838 = vrot.slane %v2837, 4
      %v2839 = vmax.f32 %v2837, %v2838
      %v2840 = vrot.slane %v2839, 2
      %v2841 = vmax.f32 %v2839, %v2840
      %v2842 = vrot.slane %v2841, 1
      %v2843 = vmax.f32 %v2841, %v2842
      %vm2852 = vcmask 1041409
      %v2853 = vsel %vm2852, %v2765, %v2752
      %vm2854 = vcmask 1042434
      %v2855 = vsel %vm2854, %v2778, %v2853
      %vm2856 = vcmask 1043459
      %v2857 = vsel %vm2856, %v2791, %v2855
      %vm2858 = vcmask 1044484
      %v2859 = vsel %vm2858, %v2804, %v2857
      %vm2860 = vcmask 1045509
      %v2861 = vsel %vm2860, %v2817, %v2859
      %vm2862 = vcmask 1046534
      %v2863 = vsel %vm2862, %v2830, %v2861
      %vm2864 = vcmask 1047559
      %v2865 = vsel %vm2864, %v2843, %v2863
      %2867 = vst [vmem:[%s496] sm:$0xff] %v2865
      %p2868 = scmp.lt.s32.totalorder %s26, 1
      %s2869 = scalar_select %p2868, %s26, 1
      %p2870 = scmp.lt.s32.totalorder %s27, 1
      %s2871 = scalar_select %p2870, %s27, 1
      %s2872 = smul.addr %s2869, 2
      %s2873 = sadd.s32 %s2871, %s2872
      %s2874 = smul.addr %s2873, 8
      %s2875 = scalar_lea.vmem %s11, %s2874
      // Predicated region
      $region65: #{_lambda_.7} parent=63 // pred_check
        %p2876 = pneg %p309
      $region66: #{_lambda_.7} parent=63 // pred_check_branch
        %2878 = sbr.rel (%p2876) target = $region68
      $region67: #{_lambda_.7} parent=63 // pred_region
        _
      $region68: #{_lambda_.7} parent=63 // pred_fallthru
        _
    $region64: #{_lambda_.7} parent=5 // pred_fallthru
      _
    %p2879 = scmp.le.s32.totalorder 2, %s17
    // Predicated region
    $region69: #{_lambda_.7} parent=5 // pred_check
      %p2880 = pneg %p2879
    $region70: #{_lambda_.7} parent=5 // pred_check_branch
      %2882 = sbr.rel (%p2880) target = $region72
    $region71: #{_lambda_.7} parent=5 // pred_region
      %s2883 = ssub.s32 %s17, 2
      // Predicated region
      $region73: #{_lambda_.7} parent=71 // pred_check
        %p2884 = pneg %p315
      $region74: #{_lambda_.7} parent=71 // pred_check_branch
        %2886 = sbr.rel (%p2884) target = $region76
      $region75: #{_lambda_.7} parent=71 // pred_region
        %p2887 = scmp.lt.s32.totalorder %s28, 1
        %s2888 = scalar_select %p2887, %s28, 1
        %p2889 = scmp.lt.s32.totalorder %s29, 1
        %s2890 = scalar_select %p2889, %s29, 1
        %s2891 = smul.addr %s2888, 2
        %s2892 = sadd.s32 %s2890, %s2891
        %s2893 = smul.addr %s2892, 8
        %s2894 = scalar_lea.vmem %s11, %s2893
      $region76: #{_lambda_.7} parent=71 // pred_fallthru
        _
    $region72: #{_lambda_.7} parent=5 // pred_fallthru
      _
  $region6: #{_lambda_.7} parent=0 // loop_footer
    %s21 = sadd.s32 1, %s17
  $region7: #{_lambda_.7} parent=0 // loop_footer_branch
    %16 = sbr.rel target = $region3
  $region8: #{_lambda_.7} parent=0 // loop_exit
    _

// kernel: neg.8
$region0: #{neg.8}
  #allocation0 [shape = 's32[1]{0}', space=sflag, size = 0x4, scoped, tag = 'scoped memory for neg.8']
  %s0 = inlined_call_operand.vmem [shape: f32[2,13,4], index: 0, kind: input, shape index: {}]
  %s1 = inlined_call_operand.vmem [shape: f32[2,13,4], index: 1, kind: output, shape index: {}]
  %v2 = vld [vmem:[%s0] sm:$0xf]
  %3 = xla_tuple %v2
  %4 = xla_tuple %3
  %v5 = vxor.u32 %v2, 2147483648
  %6 = xla_tuple %v5
  %7 = vst [vmem:[%s1] sm:$0xf] %v5
  %s8 = scalar_lea.vmem %s0, 4
  %v9 = vld [vmem:[%s8] sm:$0xf]
  %10 = xla_tuple %v9
  %11 = xla_tuple %10
  %v12 = vxor.u32 %v9, 2147483648
  %13 = xla_tuple %v12
  %s14 = scalar_lea.vmem %s1, 4
  %15 = vst [vmem:[%s14] sm:$0xf] %v12

// kernel: _lambda_.10
$region0: #{_lambda_.10}
  #allocation0 [shape = 'u32[]', space=smem, size = 0x4, offset = 0x4, fixed_abs, tag = 'smem constant byte address 0x4 - core index']
  #allocation1 [shape = 'u32[144,128]{1,0:T(1,128)}', space=vmem, size = 0x12000, scoped, tag = 'internal scratch']
  %s0 = inlined_call_operand.vmem [shape: bf16[8,1280], index: 0, kind: input, shape index: {}]
  %s1 = inlined_call_operand.vmem [shape: bf16[1280,256], index: 1, kind: input, shape index: {}]
  %s2 = inlined_call_operand.vmem [shape: f32[1,256], index: 2, kind: input, shape index: {}]
  %s3 = inlined_call_operand.vmem [shape: bf16[256,256], index: 3, kind: input, shape index: {}]
  %s4 = inlined_call_operand.vmem [shape: f32[1,256], index: 4, kind: input, shape index: {}]
  %s5 = inlined_call_operand.vmem [shape: f32[8,256], index: 5, kind: output, shape index: {}]
  %s6 = sld [smem:[#allocation0]]
  $region30: #{_lambda_.10} parent=0
    _
  %s8 = ssub.s32 1, %s6
  %s9 = scalar_select 0, %s8, %s6
  // Predicated region
  $region2: #{_lambda_.10} parent=0 // pred_check
    _
  $region3: #{_lambda_.10} parent=0 // pred_check_branch
    %11 = sbr.rel (0) target = $region5
  $region4: #{_lambda_.10} parent=0 // pred_region
    _
  $region5: #{_lambda_.10} parent=0 // pred_fallthru
    _
  // Predicated region
  $region6: #{_lambda_.10} parent=0 // pred_check
    _
  $region7: #{_lambda_.10} parent=0 // pred_check_branch
    %13 = sbr.rel (0) target = $region9
  $region8: #{_lambda_.10} parent=0 // pred_region
    _
  $region9: #{_lambda_.10} parent=0 // pred_fallthru
    _
  // Predicated region
  $region10: #{_lambda_.10} parent=0 // pred_check
    _
  $region11: #{_lambda_.10} parent=0 // pred_check_branch
    %15 = sbr.rel (0) target = $region13
  $region12: #{_lambda_.10} parent=0 // pred_region
    _
  $region13: #{_lambda_.10} parent=0 // pred_fallthru
    _
  // Predicated region
  $region14: #{_lambda_.10} parent=0 // pred_check
    _
  $region15: #{_lambda_.10} parent=0 // pred_check_branch
    %17 = sbr.rel (0) target = $region17
  $region16: #{_lambda_.10} parent=0 // pred_region
    _
  $region17: #{_lambda_.10} parent=0 // pred_fallthru
    _
  // Predicated region
  $region18: #{_lambda_.10} parent=0 // pred_check
    _
  $region19: #{_lambda_.10} parent=0 // pred_check_branch
    %19 = sbr.rel (0) target = $region21
  $region20: #{_lambda_.10} parent=0 // pred_region
    _
  $region21: #{_lambda_.10} parent=0 // pred_fallthru
    _
  %v20 = vld [vmem:[%s0] sm:$0xff]
  %v21 = vld [vmem:[%s0 + $0x8] sm:$0xff]
  %v22 = vld [vmem:[%s0 + $0x10] sm:$0xff]
  %v23 = vld [vmem:[%s0 + $0x18] sm:$0xff]
  %v24 = vld [vmem:[%s0 + $0x20] sm:$0xff]
  %v25 = vld [vmem:[%s1] sm:$0xff]
  %v26 = vld [vmem:[%s1 + $0x8] sm:$0xff]
  %v27 = vld [vmem:[%s1 + $0x10] sm:$0xff]
  %v28 = vld [vmem:[%s1 + $0x18] sm:$0xff]
  %v29 = vld [vmem:[%s1 + $0x20] sm:$0xff]
  %v30 = vld [vmem:[%s1 + $0x28] sm:$0xff]
  %v31 = vld [vmem:[%s1 + $0x30] sm:$0xff]
  %v32 = vld [vmem:[%s1 + $0x38] sm:$0xff]
  %v33 = vld [vmem:[%s1 + $0x40] sm:$0xff]
  %v34 = vld [vmem:[%s1 + $0x48] sm:$0xff]
  %v35 = vld [vmem:[%s1 + $0x50] sm:$0xff]
  %v36 = vld [vmem:[%s1 + $0x58] sm:$0xff]
  %v37 = vld [vmem:[%s1 + $0x60] sm:$0xff]
  %v38 = vld [vmem:[%s1 + $0x68] sm:$0xff]
  %v39 = vld [vmem:[%s1 + $0x70] sm:$0xff]
  %v40 = vld [vmem:[%s1 + $0x78] sm:$0xff]
  %v41 = vld [vmem:[%s1 + $0x80] sm:$0xff]
  %v42 = vld [vmem:[%s1 + $0x88] sm:$0xff]
  %v43 = vld [vmem:[%s1 + $0x90] sm:$0xff]
  %v44 = vld [vmem:[%s1 + $0x98] sm:$0xff]
  %v45 = vld [vmem:[%s1 + $0xa0] sm:$0xff]
  %v46 = vld [vmem:[%s1 + $0xa8] sm:$0xff]
  %v47 = vld [vmem:[%s1 + $0xb0] sm:$0xff]
  %v48 = vld [vmem:[%s1 + $0xb8] sm:$0xff]
  %v49 = vld [vmem:[%s1 + $0xc0] sm:$0xff]
  %v50 = vld [vmem:[%s1 + $0xc8] sm:$0xff]
  %v51 = vld [vmem:[%s1 + $0xd0] sm:$0xff]
  %v52 = vld [vmem:[%s1 + $0xd8] sm:$0xff]
  %v53 = vld [vmem:[%s1 + $0xe0] sm:$0xff]
  %v54 = vld [vmem:[%s1 + $0xe8] sm:$0xff]
  %v55 = vld [vmem:[%s1 + $0xf0] sm:$0xff]
  %v56 = vld [vmem:[%s1 + $0xf8] sm:$0xff]
  %v57 = vld [vmem:[%s1 + $0x100] sm:$0xff]
  %v58 = vld [vmem:[%s1 + $0x108] sm:$0xff]
  %v59 = vld [vmem:[%s1 + $0x110] sm:$0xff]
  %v60 = vld [vmem:[%s1 + $0x118] sm:$0xff]
  %v61 = vld [vmem:[%s1 + $0x120] sm:$0xff]
  %v62 = vld [vmem:[%s1 + $0x128] sm:$0xff]
  %v63 = vld [vmem:[%s1 + $0x130] sm:$0xff]
  %v64 = vld [vmem:[%s1 + $0x138] sm:$0xff]
  %v65 = vld [vmem:[%s1 + $0x140] sm:$0xff]
  %v66 = vld [vmem:[%s1 + $0x148] sm:$0xff]
  %v67 = vld [vmem:[%s1 + $0x150] sm:$0xff]
  %v68 = vld [vmem:[%s1 + $0x158] sm:$0xff]
  %v69 = vld [vmem:[%s1 + $0x160] sm:$0xff]
  %v70 = vld [vmem:[%s1 + $0x168] sm:$0xff]
  %v71 = vld [vmem:[%s1 + $0x170] sm:$0xff]
  %v72 = vld [vmem:[%s1 + $0x178] sm:$0xff]
  %v73 = vld [vmem:[%s1 + $0x180] sm:$0xff]
  %v74 = vld [vmem:[%s1 + $0x188] sm:$0xff]
  %v75 = vld [vmem:[%s1 + $0x190] sm:$0xff]
  %v76 = vld [vmem:[%s1 + $0x198] sm:$0xff]
  %v77 = vld [vmem:[%s1 + $0x1a0] sm:$0xff]
  %v78 = vld [vmem:[%s1 + $0x1a8] sm:$0xff]
  %v79 = vld [vmem:[%s1 + $0x1b0] sm:$0xff]
  %v80 = vld [vmem:[%s1 + $0x1b8] sm:$0xff]
  %v81 = vld [vmem:[%s1 + $0x1c0] sm:$0xff]
  %v82 = vld [vmem:[%s1 + $0x1c8] sm:$0xff]
  %v83 = vld [vmem:[%s1 + $0x1d0] sm:$0xff]
  %v84 = vld [vmem:[%s1 + $0x1d8] sm:$0xff]
  %v85 = vld [vmem:[%s1 + $0x1e0] sm:$0xff]
  %v86 = vld [vmem:[%s1 + $0x1e8] sm:$0xff]
  %v87 = vld [vmem:[%s1 + $0x1f0] sm:$0xff]
  %v88 = vld [vmem:[%s1 + $0x1f8] sm:$0xff]
  %v89 = vld [vmem:[%s1 + $0x200] sm:$0xff]
  %v90 = vld [vmem:[%s1 + $0x208] sm:$0xff]
  %v91 = vld [vmem:[%s1 + $0x210] sm:$0xff]
  %v92 = vld [vmem:[%s1 + $0x218] sm:$0xff]
  %v93 = vld [vmem:[%s1 + $0x220] sm:$0xff]
  %v94 = vld [vmem:[%s1 + $0x228] sm:$0xff]
  %v95 = vld [vmem:[%s1 + $0x230] sm:$0xff]
  %v96 = vld [vmem:[%s1 + $0x238] sm:$0xff]
  %v97 = vld [vmem:[%s1 + $0x240] sm:$0xff]
  %v98 = vld [vmem:[%s1 + $0x248] sm:$0xff]
  %v99 = vld [vmem:[%s1 + $0x250] sm:$0xff]
  %v100 = vld [vmem:[%s1 + $0x258] sm:$0xff]
  %v101 = vld [vmem:[%s1 + $0x260] sm:$0xff]
  %v102 = vld [vmem:[%s1 + $0x268] sm:$0xff]
  %v103 = vld [vmem:[%s1 + $0x270] sm:$0xff]
  %v104 = vld [vmem:[%s1 + $0x278] sm:$0xff]
  %v105 = vld [vmem:[%s1 + $0x280] sm:$0xff]
  %v106 = vld [vmem:[%s1 + $0x288] sm:$0xff]
  %v107 = vld [vmem:[%s1 + $0x290] sm:$0xff]
  %v108 = vld [vmem:[%s1 + $0x298] sm:$0xff]
  %v109 = vld [vmem:[%s1 + $0x2a0] sm:$0xff]
  %v110 = vld [vmem:[%s1 + $0x2a8] sm:$0xff]
  %v111 = vld [vmem:[%s1 + $0x2b0] sm:$0xff]
  %v112 = vld [vmem:[%s1 + $0x2b8] sm:$0xff]
  %v113 = vld [vmem:[%s1 + $0x2c0] sm:$0xff]
  %v114 = vld [vmem:[%s1 + $0x2c8] sm:$0xff]
  %v115 = vld [vmem:[%s1 + $0x2d0] sm:$0xff]
  %v116 = vld [vmem:[%s1 + $0x2d8] sm:$0xff]
  %v117 = vld [vmem:[%s1 + $0x2e0] sm:$0xff]
  %v118 = vld [vmem:[%s1 + $0x2e8] sm:$0xff]
  %v119 = vld [vmem:[%s1 + $0x2f0] sm:$0xff]
  %v120 = vld [vmem:[%s1 + $0x2f8] sm:$0xff]
  %v121 = vld [vmem:[%s1 + $0x300] sm:$0xff]
  %v122 = vld [vmem:[%s1 + $0x308] sm:$0xff]
  %v123 = vld [vmem:[%s1 + $0x310] sm:$0xff]
  %v124 = vld [vmem:[%s1 + $0x318] sm:$0xff]
  %v125 = vld [vmem:[%s1 + $0x320] sm:$0xff]
  %v126 = vld [vmem:[%s1 + $0x328] sm:$0xff]
  %v127 = vld [vmem:[%s1 + $0x330] sm:$0xff]
  %v128 = vld [vmem:[%s1 + $0x338] sm:$0xff]
  %v129 = vld [vmem:[%s1 + $0x340] sm:$0xff]
  %v130 = vld [vmem:[%s1 + $0x348] sm:$0xff]
  %v131 = vld [vmem:[%s1 + $0x350] sm:$0xff]
  %v132 = vld [vmem:[%s1 + $0x358] sm:$0xff]
  %v133 = vld [vmem:[%s1 + $0x360] sm:$0xff]
  %v134 = vld [vmem:[%s1 + $0x368] sm:$0xff]
  %v135 = vld [vmem:[%s1 + $0x370] sm:$0xff]
  %v136 = vld [vmem:[%s1 + $0x378] sm:$0xff]
  %v137 = vld [vmem:[%s1 + $0x380] sm:$0xff]
  %v138 = vld [vmem:[%s1 + $0x388] sm:$0xff]
  %v139 = vld [vmem:[%s1 + $0x390] sm:$0xff]
  %v140 = vld [vmem:[%s1 + $0x398] sm:$0xff]
  %v141 = vld [vmem:[%s1 + $0x3a0] sm:$0xff]
  %v142 = vld [vmem:[%s1 + $0x3a8] sm:$0xff]
  %v143 = vld [vmem:[%s1 + $0x3b0] sm:$0xff]
  %v144 = vld [vmem:[%s1 + $0x3b8] sm:$0xff]
  %v145 = vld [vmem:[%s1 + $0x3c0] sm:$0xff]
  %v146 = vld [vmem:[%s1 + $0x3c8] sm:$0xff]
  %v147 = vld [vmem:[%s1 + $0x3d0] sm:$0xff]
  %v148 = vld [vmem:[%s1 + $0x3d8] sm:$0xff]
  %v149 = vld [vmem:[%s1 + $0x3e0] sm:$0xff]
  %v150 = vld [vmem:[%s1 + $0x3e8] sm:$0xff]
  %v151 = vld [vmem:[%s1 + $0x3f0] sm:$0xff]
  %v152 = vld [vmem:[%s1 + $0x3f8] sm:$0xff]
  %v153 = vld [vmem:[%s1 + $0x400] sm:$0xff]
  %v154 = vld [vmem:[%s1 + $0x408] sm:$0xff]
  %v155 = vld [vmem:[%s1 + $0x410] sm:$0xff]
  %v156 = vld [vmem:[%s1 + $0x418] sm:$0xff]
  %v157 = vld [vmem:[%s1 + $0x420] sm:$0xff]
  %v158 = vld [vmem:[%s1 + $0x428] sm:$0xff]
  %v159 = vld [vmem:[%s1 + $0x430] sm:$0xff]
  %v160 = vld [vmem:[%s1 + $0x438] sm:$0xff]
  %v161 = vld [vmem:[%s1 + $0x440] sm:$0xff]
  %v162 = vld [vmem:[%s1 + $0x448] sm:$0xff]
  %v163 = vld [vmem:[%s1 + $0x450] sm:$0xff]
  %v164 = vld [vmem:[%s1 + $0x458] sm:$0xff]
  %v165 = vld [vmem:[%s1 + $0x460] sm:$0xff]
  %v166 = vld [vmem:[%s1 + $0x468] sm:$0xff]
  %v167 = vld [vmem:[%s1 + $0x470] sm:$0xff]
  %v168 = vld [vmem:[%s1 + $0x478] sm:$0xff]
  %v169 = vld [vmem:[%s1 + $0x480] sm:$0xff]
  %v170 = vld [vmem:[%s1 + $0x488] sm:$0xff]
  %v171 = vld [vmem:[%s1 + $0x490] sm:$0xff]
  %v172 = vld [vmem:[%s1 + $0x498] sm:$0xff]
  %v173 = vld [vmem:[%s1 + $0x4a0] sm:$0xff]
  %v174 = vld [vmem:[%s1 + $0x4a8] sm:$0xff]
  %v175 = vld [vmem:[%s1 + $0x4b0] sm:$0xff]
  %v176 = vld [vmem:[%s1 + $0x4b8] sm:$0xff]
  %v177 = vld [vmem:[%s1 + $0x4c0] sm:$0xff]
  %v178 = vld [vmem:[%s1 + $0x4c8] sm:$0xff]
  %v179 = vld [vmem:[%s1 + $0x4d0] sm:$0xff]
  %v180 = vld [vmem:[%s1 + $0x4d8] sm:$0xff]
  %v181 = vld [vmem:[%s1 + $0x4e0] sm:$0xff]
  %v182 = vld [vmem:[%s1 + $0x4e8] sm:$0xff]
  %v183 = vld [vmem:[%s1 + $0x4f0] sm:$0xff]
  %v184 = vld [vmem:[%s1 + $0x4f8] sm:$0xff]
  %v185 = vld [vmem:[%s2] sm:$0x3]
  %v187 = vlaneseq
  %v188 = vshrl.u32 %v187, 7
  %v189 = vsub.s32 0, %v188
  %v190 = vrot.slane %v185, %v189
  %v191 = vlaneseq
  %v192 = vshrl.u32 %v191, 7
  %v193 = vsub.s32 1, %v192
  %v194 = vrot.slane %v185, %v193
  %v202 = vunpack.c.l.b16 %v20
  %v203 = vunpack.c.h.b16 %v20
  %v204 = vunpack.c.l.b16 %v21
  %v205 = vunpack.c.h.b16 %v21
  %v206 = vunpack.c.l.b16 %v22
  %v207 = vunpack.c.h.b16 %v22
  %v208 = vunpack.c.l.b16 %v23
  %v209 = vunpack.c.h.b16 %v23
  %v210 = vunpack.c.l.b16 %v24
  %v211 = vunpack.c.h.b16 %v24
  %v212 = vpack.c.b16 %v202, %v202
  %v213 = vpack.c.b16 %v203, %v203
  %v214 = vpack.c.b16 %v204, %v204
  %v215 = vpack.c.b16 %v205, %v205
  %v216 = vpack.c.b16 %v206, %v206
  %v217 = vpack.c.b16 %v207, %v207
  %v218 = vpack.c.b16 %v208, %v208
  %v219 = vpack.c.b16 %v209, %v209
  %v220 = vpack.c.b16 %v210, %v210
  %v221 = vpack.c.b16 %v211, %v211
  %v392 = vunpack.c.l.b16 %v25
  %v393 = vunpack.c.h.b16 %v25
  %v394 = vunpack.c.l.b16 %v26
  %v395 = vunpack.c.h.b16 %v26
  %v396 = vunpack.c.l.b16 %v27
  %v397 = vunpack.c.h.b16 %v27
  %v398 = vunpack.c.l.b16 %v28
  %v399 = vunpack.c.h.b16 %v28
  %v400 = vunpack.c.l.b16 %v29
  %v401 = vunpack.c.h.b16 %v29
  %v402 = vunpack.c.l.b16 %v30
  %v403 = vunpack.c.h.b16 %v30
  %v404 = vunpack.c.l.b16 %v31
  %v405 = vunpack.c.h.b16 %v31
  %v406 = vunpack.c.l.b16 %v32
  %v407 = vunpack.c.h.b16 %v32
  %v408 = vunpack.c.l.b16 %v33
  %v409 = vunpack.c.h.b16 %v33
  %v410 = vunpack.c.l.b16 %v34
  %v411 = vunpack.c.h.b16 %v34
  %v412 = vunpack.c.l.b16 %v35
  %v413 = vunpack.c.h.b16 %v35
  %v414 = vunpack.c.l.b16 %v36
  %v415 = vunpack.c.h.b16 %v36
  %v416 = vunpack.c.l.b16 %v37
  %v417 = vunpack.c.h.b16 %v37
  %v418 = vunpack.c.l.b16 %v38
  %v419 = vunpack.c.h.b16 %v38
  %v420 = vunpack.c.l.b16 %v39
  %v421 = vunpack.c.h.b16 %v39
  %v422 = vunpack.c.l.b16 %v40
  %v423 = vunpack.c.h.b16 %v40
  %v424 = vunpack.c.l.b16 %v41
  %v425 = vunpack.c.h.b16 %v41
  %v426 = vunpack.c.l.b16 %v42
  %v427 = vunpack.c.h.b16 %v42
  %v428 = vunpack.c.l.b16 %v43
  %v429 = vunpack.c.h.b16 %v43
  %v430 = vunpack.c.l.b16 %v44
  %v431 = vunpack.c.h.b16 %v44
  %v432 = vunpack.c.l.b16 %v45
  %v433 = vunpack.c.h.b16 %v45
  %v434 = vunpack.c.l.b16 %v46
  %v435 = vunpack.c.h.b16 %v46
  %v436 = vunpack.c.l.b16 %v47
  %v437 = vunpack.c.h.b16 %v47
  %v438 = vunpack.c.l.b16 %v48
  %v439 = vunpack.c.h.b16 %v48
  %v440 = vunpack.c.l.b16 %v49
  %v441 = vunpack.c.h.b16 %v49
  %v442 = vunpack.c.l.b16 %v50
  %v443 = vunpack.c.h.b16 %v50
  %v444 = vunpack.c.l.b16 %v51
  %v445 = vunpack.c.h.b16 %v51
  %v446 = vunpack.c.l.b16 %v52
  %v447 = vunpack.c.h.b16 %v52
  %v448 = vunpack.c.l.b16 %v53
  %v449 = vunpack.c.h.b16 %v53
  %v450 = vunpack.c.l.b16 %v54
  %v451 = vunpack.c.h.b16 %v54
  %v452 = vunpack.c.l.b16 %v55
  %v453 = vunpack.c.h.b16 %v55
  %v454 = vunpack.c.l.b16 %v56
  %v455 = vunpack.c.h.b16 %v56
  %v456 = vunpack.c.l.b16 %v57
  %v457 = vunpack.c.h.b16 %v57
  %v458 = vunpack.c.l.b16 %v58
  %v459 = vunpack.c.h.b16 %v58
  %v460 = vunpack.c.l.b16 %v59
  %v461 = vunpack.c.h.b16 %v59
  %v462 = vunpack.c.l.b16 %v60
  %v463 = vunpack.c.h.b16 %v60
  %v464 = vunpack.c.l.b16 %v61
  %v465 = vunpack.c.h.b16 %v61
  %v466 = vunpack.c.l.b16 %v62
  %v467 = vunpack.c.h.b16 %v62
  %v468 = vunpack.c.l.b16 %v63
  %v469 = vunpack.c.h.b16 %v63
  %v470 = vunpack.c.l.b16 %v64
  %v471 = vunpack.c.h.b16 %v64
  %v472 = vunpack.c.l.b16 %v65
  %v473 = vunpack.c.h.b16 %v65
  %v474 = vunpack.c.l.b16 %v66
  %v475 = vunpack.c.h.b16 %v66
  %v476 = vunpack.c.l.b16 %v67
  %v477 = vunpack.c.h.b16 %v67
  %v478 = vunpack.c.l.b16 %v68
  %v479 = vunpack.c.h.b16 %v68
  %v480 = vunpack.c.l.b16 %v69
  %v481 = vunpack.c.h.b16 %v69
  %v482 = vunpack.c.l.b16 %v70
  %v483 = vunpack.c.h.b16 %v70
  %v484 = vunpack.c.l.b16 %v71
  %v485 = vunpack.c.h.b16 %v71
  %v486 = vunpack.c.l.b16 %v72
  %v487 = vunpack.c.h.b16 %v72
  %v488 = vunpack.c.l.b16 %v73
  %v489 = vunpack.c.h.b16 %v73
  %v490 = vunpack.c.l.b16 %v74
  %v491 = vunpack.c.h.b16 %v74
  %v492 = vunpack.c.l.b16 %v75
  %v493 = vunpack.c.h.b16 %v75
  %v494 = vunpack.c.l.b16 %v76
  %v495 = vunpack.c.h.b16 %v76
  %v496 = vunpack.c.l.b16 %v77
  %v497 = vunpack.c.h.b16 %v77
  %v498 = vunpack.c.l.b16 %v78
  %v499 = vunpack.c.h.b16 %v78
  %v500 = vunpack.c.l.b16 %v79
  %v501 = vunpack.c.h.b16 %v79
  %v502 = vunpack.c.l.b16 %v80
  %v503 = vunpack.c.h.b16 %v80
  %v504 = vunpack.c.l.b16 %v81
  %v505 = vunpack.c.h.b16 %v81
  %v506 = vunpack.c.l.b16 %v82
  %v507 = vunpack.c.h.b16 %v82
  %v508 = vunpack.c.l.b16 %v83
  %v509 = vunpack.c.h.b16 %v83
  %v510 = vunpack.c.l.b16 %v84
  %v511 = vunpack.c.h.b16 %v84
  %v512 = vunpack.c.l.b16 %v85
  %v513 = vunpack.c.h.b16 %v85
  %v514 = vunpack.c.l.b16 %v86
  %v515 = vunpack.c.h.b16 %v86
  %v516 = vunpack.c.l.b16 %v87
  %v517 = vunpack.c.h.b16 %v87
  %v518 = vunpack.c.l.b16 %v88
  %v519 = vunpack.c.h.b16 %v88
  %v520 = vunpack.c.l.b16 %v89
  %v521 = vunpack.c.h.b16 %v89
  %v522 = vunpack.c.l.b16 %v90
  %v523 = vunpack.c.h.b16 %v90
  %v524 = vunpack.c.l.b16 %v91
  %v525 = vunpack.c.h.b16 %v91
  %v526 = vunpack.c.l.b16 %v92
  %v527 = vunpack.c.h.b16 %v92
  %v528 = vunpack.c.l.b16 %v93
  %v529 = vunpack.c.h.b16 %v93
  %v530 = vunpack.c.l.b16 %v94
  %v531 = vunpack.c.h.b16 %v94
  %v532 = vunpack.c.l.b16 %v95
  %v533 = vunpack.c.h.b16 %v95
  %v534 = vunpack.c.l.b16 %v96
  %v535 = vunpack.c.h.b16 %v96
  %v536 = vunpack.c.l.b16 %v97
  %v537 = vunpack.c.h.b16 %v97
  %v538 = vunpack.c.l.b16 %v98
  %v539 = vunpack.c.h.b16 %v98
  %v540 = vunpack.c.l.b16 %v99
  %v541 = vunpack.c.h.b16 %v99
  %v542 = vunpack.c.l.b16 %v100
  %v543 = vunpack.c.h.b16 %v100
  %v544 = vunpack.c.l.b16 %v101
  %v545 = vunpack.c.h.b16 %v101
  %v546 = vunpack.c.l.b16 %v102
  %v547 = vunpack.c.h.b16 %v102
  %v548 = vunpack.c.l.b16 %v103
  %v549 = vunpack.c.h.b16 %v103
  %v550 = vunpack.c.l.b16 %v104
  %v551 = vunpack.c.h.b16 %v104
  %v552 = vunpack.c.l.b16 %v105
  %v553 = vunpack.c.h.b16 %v105
  %v554 = vunpack.c.l.b16 %v106
  %v555 = vunpack.c.h.b16 %v106
  %v556 = vunpack.c.l.b16 %v107
  %v557 = vunpack.c.h.b16 %v107
  %v558 = vunpack.c.l.b16 %v108
  %v559 = vunpack.c.h.b16 %v108
  %v560 = vunpack.c.l.b16 %v109
  %v561 = vunpack.c.h.b16 %v109
  %v562 = vunpack.c.l.b16 %v110
  %v563 = vunpack.c.h.b16 %v110
  %v564 = vunpack.c.l.b16 %v111
  %v565 = vunpack.c.h.b16 %v111
  %v566 = vunpack.c.l.b16 %v112
  %v567 = vunpack.c.h.b16 %v112
  %v568 = vunpack.c.l.b16 %v113
  %v569 = vunpack.c.h.b16 %v113
  %v570 = vunpack.c.l.b16 %v114
  %v571 = vunpack.c.h.b16 %v114
  %v572 = vunpack.c.l.b16 %v115
  %v573 = vunpack.c.h.b16 %v115
  %v574 = vunpack.c.l.b16 %v116
  %v575 = vunpack.c.h.b16 %v116
  %v576 = vunpack.c.l.b16 %v117
  %v577 = vunpack.c.h.b16 %v117
  %v578 = vunpack.c.l.b16 %v118
  %v579 = vunpack.c.h.b16 %v118
  %v580 = vunpack.c.l.b16 %v119
  %v581 = vunpack.c.h.b16 %v119
  %v582 = vunpack.c.l.b16 %v120
  %v583 = vunpack.c.h.b16 %v120
  %v584 = vunpack.c.l.b16 %v121
  %v585 = vunpack.c.h.b16 %v121
  %v586 = vunpack.c.l.b16 %v122
  %v587 = vunpack.c.h.b16 %v122
  %v588 = vunpack.c.l.b16 %v123
  %v589 = vunpack.c.h.b16 %v123
  %v590 = vunpack.c.l.b16 %v124
  %v591 = vunpack.c.h.b16 %v124
  %v592 = vunpack.c.l.b16 %v125
  %v593 = vunpack.c.h.b16 %v125
  %v594 = vunpack.c.l.b16 %v126
  %v595 = vunpack.c.h.b16 %v126
  %v596 = vunpack.c.l.b16 %v127
  %v597 = vunpack.c.h.b16 %v127
  %v598 = vunpack.c.l.b16 %v128
  %v599 = vunpack.c.h.b16 %v128
  %v600 = vunpack.c.l.b16 %v129
  %v601 = vunpack.c.h.b16 %v129
  %v602 = vunpack.c.l.b16 %v130
  %v603 = vunpack.c.h.b16 %v130
  %v604 = vunpack.c.l.b16 %v131
  %v605 = vunpack.c.h.b16 %v131
  %v606 = vunpack.c.l.b16 %v132
  %v607 = vunpack.c.h.b16 %v132
  %v608 = vunpack.c.l.b16 %v133
  %v609 = vunpack.c.h.b16 %v133
  %v610 = vunpack.c.l.b16 %v134
  %v611 = vunpack.c.h.b16 %v134
  %v612 = vunpack.c.l.b16 %v135
  %v613 = vunpack.c.h.b16 %v135
  %v614 = vunpack.c.l.b16 %v136
  %v615 = vunpack.c.h.b16 %v136
  %v616 = vunpack.c.l.b16 %v137
  %v617 = vunpack.c.h.b16 %v137
  %v618 = vunpack.c.l.b16 %v138
  %v619 = vunpack.c.h.b16 %v138
  %v620 = vunpack.c.l.b16 %v139
  %v621 = vunpack.c.h.b16 %v139
  %v622 = vunpack.c.l.b16 %v140
  %v623 = vunpack.c.h.b16 %v140
  %v624 = vunpack.c.l.b16 %v141
  %v625 = vunpack.c.h.b16 %v141
  %v626 = vunpack.c.l.b16 %v142
  %v627 = vunpack.c.h.b16 %v142
  %v628 = vunpack.c.l.b16 %v143
  %v629 = vunpack.c.h.b16 %v143
  %v630 = vunpack.c.l.b16 %v144
  %v631 = vunpack.c.h.b16 %v144
  %v632 = vunpack.c.l.b16 %v145
  %v633 = vunpack.c.h.b16 %v145
  %v634 = vunpack.c.l.b16 %v146
  %v635 = vunpack.c.h.b16 %v146
  %v636 = vunpack.c.l.b16 %v147
  %v637 = vunpack.c.h.b16 %v147
  %v638 = vunpack.c.l.b16 %v148
  %v639 = vunpack.c.h.b16 %v148
  %v640 = vunpack.c.l.b16 %v149
  %v641 = vunpack.c.h.b16 %v149
  %v642 = vunpack.c.l.b16 %v150
  %v643 = vunpack.c.h.b16 %v150
  %v644 = vunpack.c.l.b16 %v151
  %v645 = vunpack.c.h.b16 %v151
  %v646 = vunpack.c.l.b16 %v152
  %v647 = vunpack.c.h.b16 %v152
  %v648 = vunpack.c.l.b16 %v153
  %v649 = vunpack.c.h.b16 %v153
  %v650 = vunpack.c.l.b16 %v154
  %v651 = vunpack.c.h.b16 %v154
  %v652 = vunpack.c.l.b16 %v155
  %v653 = vunpack.c.h.b16 %v155
  %v654 = vunpack.c.l.b16 %v156
  %v655 = vunpack.c.h.b16 %v156
  %v656 = vunpack.c.l.b16 %v157
  %v657 = vunpack.c.h.b16 %v157
  %v658 = vunpack.c.l.b16 %v158
  %v659 = vunpack.c.h.b16 %v158
  %v660 = vunpack.c.l.b16 %v159
  %v661 = vunpack.c.h.b16 %v159
  %v662 = vunpack.c.l.b16 %v160
  %v663 = vunpack.c.h.b16 %v160
  %v664 = vunpack.c.l.b16 %v161
  %v665 = vunpack.c.h.b16 %v161
  %v666 = vunpack.c.l.b16 %v162
  %v667 = vunpack.c.h.b16 %v162
  %v668 = vunpack.c.l.b16 %v163
  %v669 = vunpack.c.h.b16 %v163
  %v670 = vunpack.c.l.b16 %v164
  %v671 = vunpack.c.h.b16 %v164
  %v672 = vunpack.c.l.b16 %v165
  %v673 = vunpack.c.h.b16 %v165
  %v674 = vunpack.c.l.b16 %v166
  %v675 = vunpack.c.h.b16 %v166
  %v676 = vunpack.c.l.b16 %v167
  %v677 = vunpack.c.h.b16 %v167
  %v678 = vunpack.c.l.b16 %v168
  %v679 = vunpack.c.h.b16 %v168
  %v680 = vunpack.c.l.b16 %v169
  %v681 = vunpack.c.h.b16 %v169
  %v682 = vunpack.c.l.b16 %v170
  %v683 = vunpack.c.h.b16 %v170
  %v684 = vunpack.c.l.b16 %v171
  %v685 = vunpack.c.h.b16 %v171
  %v686 = vunpack.c.l.b16 %v172
  %v687 = vunpack.c.h.b16 %v172
  %v688 = vunpack.c.l.b16 %v173
  %v689 = vunpack.c.h.b16 %v173
  %v690 = vunpack.c.l.b16 %v174
  %v691 = vunpack.c.h.b16 %v174
  %v692 = vunpack.c.l.b16 %v175
  %v693 = vunpack.c.h.b16 %v175
  %v694 = vunpack.c.l.b16 %v176
  %v695 = vunpack.c.h.b16 %v176
  %v696 = vunpack.c.l.b16 %v177
  %v697 = vunpack.c.h.b16 %v177
  %v698 = vunpack.c.l.b16 %v178
  %v699 = vunpack.c.h.b16 %v178
  %v700 = vunpack.c.l.b16 %v179
  %v701 = vunpack.c.h.b16 %v179
  %v702 = vunpack.c.l.b16 %v180
  %v703 = vunpack.c.h.b16 %v180
  %v704 = vunpack.c.l.b16 %v181
  %v705 = vunpack.c.h.b16 %v181
  %v706 = vunpack.c.l.b16 %v182
  %v707 = vunpack.c.h.b16 %v182
  %v708 = vunpack.c.l.b16 %v183
  %v709 = vunpack.c.h.b16 %v183
  %v710 = vunpack.c.l.b16 %v184
  %v711 = vunpack.c.h.b16 %v184
  %v712 = vpack.c.b16 %v394, %v392
  %v713 = vpack.c.b16 %v395, %v393
  %v714 = vpack.c.b16 %v398, %v396
  %v715 = vpack.c.b16 %v399, %v397
  %v716 = vpack.c.b16 %v402, %v400
  %v717 = vpack.c.b16 %v403, %v401
  %v718 = vpack.c.b16 %v406, %v404
  %v719 = vpack.c.b16 %v407, %v405
  %v720 = vpack.c.b16 %v410, %v408
  %v721 = vpack.c.b16 %v411, %v409
  %v722 = vpack.c.b16 %v414, %v412
  %v723 = vpack.c.b16 %v415, %v413
  %v724 = vpack.c.b16 %v418, %v416
  %v725 = vpack.c.b16 %v419, %v417
  %v726 = vpack.c.b16 %v422, %v420
  %v727 = vpack.c.b16 %v423, %v421
  %v728 = vpack.c.b16 %v426, %v424
  %v729 = vpack.c.b16 %v427, %v425
  %v730 = vpack.c.b16 %v430, %v428
  %v731 = vpack.c.b16 %v431, %v429
  %v732 = vpack.c.b16 %v434, %v432
  %v733 = vpack.c.b16 %v435, %v433
  %v734 = vpack.c.b16 %v438, %v436
  %v735 = vpack.c.b16 %v439, %v437
  %v736 = vpack.c.b16 %v442, %v440
  %v737 = vpack.c.b16 %v443, %v441
  %v738 = vpack.c.b16 %v446, %v444
  %v739 = vpack.c.b16 %v447, %v445
  %v740 = vpack.c.b16 %v450, %v448
  %v741 = vpack.c.b16 %v451, %v449
  %v742 = vpack.c.b16 %v454, %v452
  %v743 = vpack.c.b16 %v455, %v453
  %v744 = vpack.c.b16 %v458, %v456
  %v745 = vpack.c.b16 %v459, %v457
  %v746 = vpack.c.b16 %v462, %v460
  %v747 = vpack.c.b16 %v463, %v461
  %v748 = vpack.c.b16 %v466, %v464
  %v749 = vpack.c.b16 %v467, %v465
  %v750 = vpack.c.b16 %v470, %v468
  %v751 = vpack.c.b16 %v471, %v469
  %v752 = vpack.c.b16 %v474, %v472
  %v753 = vpack.c.b16 %v475, %v473
  %v754 = vpack.c.b16 %v478, %v476
  %v755 = vpack.c.b16 %v479, %v477
  %v756 = vpack.c.b16 %v482, %v480
  %v757 = vpack.c.b16 %v483, %v481
  %v758 = vpack.c.b16 %v486, %v484
  %v759 = vpack.c.b16 %v487, %v485
  %v760 = vpack.c.b16 %v490, %v488
  %v761 = vpack.c.b16 %v491, %v489
  %v762 = vpack.c.b16 %v494, %v492
  %v763 = vpack.c.b16 %v495, %v493
  %v764 = vpack.c.b16 %v498, %v496
  %v765 = vpack.c.b16 %v499, %v497
  %v766 = vpack.c.b16 %v502, %v500
  %v767 = vpack.c.b16 %v503, %v501
  %v768 = vpack.c.b16 %v506, %v504
  %v769 = vpack.c.b16 %v507, %v505
  %v770 = vpack.c.b16 %v510, %v508
  %v771 = vpack.c.b16 %v511, %v509
  %v772 = vpack.c.b16 %v514, %v512
  %v773 = vpack.c.b16 %v515, %v513
  %v774 = vpack.c.b16 %v518, %v516
  %v775 = vpack.c.b16 %v519, %v517
  %v776 = vpack.c.b16 %v522, %v520
  %v777 = vpack.c.b16 %v523, %v521
  %v778 = vpack.c.b16 %v526, %v524
  %v779 = vpack.c.b16 %v527, %v525
  %v780 = vpack.c.b16 %v530, %v528
  %v781 = vpack.c.b16 %v531, %v529
  %v782 = vpack.c.b16 %v534, %v532
  %v783 = vpack.c.b16 %v535, %v533
  %v784 = vpack.c.b16 %v538, %v536
  %v785 = vpack.c.b16 %v539, %v537
  %v786 = vpack.c.b16 %v542, %v540
  %v787 = vpack.c.b16 %v543, %v541
  %v788 = vpack.c.b16 %v546, %v544
  %v789 = vpack.c.b16 %v547, %v545
  %v790 = vpack.c.b16 %v550, %v548
  %v791 = vpack.c.b16 %v551, %v549
  %v792 = vpack.c.b16 %v554, %v552
  %v793 = vpack.c.b16 %v555, %v553
  %v794 = vpack.c.b16 %v558, %v556
  %v795 = vpack.c.b16 %v559, %v557
  %v796 = vpack.c.b16 %v562, %v560
  %v797 = vpack.c.b16 %v563, %v561
  %v798 = vpack.c.b16 %v566, %v564
  %v799 = vpack.c.b16 %v567, %v565
  %v800 = vpack.c.b16 %v570, %v568
  %v801 = vpack.c.b16 %v571, %v569
  %v802 = vpack.c.b16 %v574, %v572
  %v803 = vpack.c.b16 %v575, %v573
  %v804 = vpack.c.b16 %v578, %v576
  %v805 = vpack.c.b16 %v579, %v577
  %v806 = vpack.c.b16 %v582, %v580
  %v807 = vpack.c.b16 %v583, %v581
  %v808 = vpack.c.b16 %v586, %v584
  %v809 = vpack.c.b16 %v587, %v585
  %v810 = vpack.c.b16 %v590, %v588
  %v811 = vpack.c.b16 %v591, %v589
  %v812 = vpack.c.b16 %v594, %v592
  %v813 = vpack.c.b16 %v595, %v593
  %v814 = vpack.c.b16 %v598, %v596
  %v815 = vpack.c.b16 %v599, %v597
  %v816 = vpack.c.b16 %v602, %v600
  %v817 = vpack.c.b16 %v603, %v601
  %v818 = vpack.c.b16 %v606, %v604
  %v819 = vpack.c.b16 %v607, %v605
  %v820 = vpack.c.b16 %v610, %v608
  %v821 = vpack.c.b16 %v611, %v609
  %v822 = vpack.c.b16 %v614, %v612
  %v823 = vpack.c.b16 %v615, %v613
  %v824 = vpack.c.b16 %v618, %v616
  %v825 = vpack.c.b16 %v619, %v617
  %v826 = vpack.c.b16 %v622, %v620
  %v827 = vpack.c.b16 %v623, %v621
  %v828 = vpack.c.b16 %v626, %v624
  %v829 = vpack.c.b16 %v627, %v625
  %v830 = vpack.c.b16 %v630, %v628
  %v831 = vpack.c.b16 %v631, %v629
  %v832 = vpack.c.b16 %v634, %v632
  %v833 = vpack.c.b16 %v635, %v633
  %v834 = vpack.c.b16 %v638, %v636
  %v835 = vpack.c.b16 %v639, %v637
  %v836 = vpack.c.b16 %v642, %v640
  %v837 = vpack.c.b16 %v643, %v641
  %v838 = vpack.c.b16 %v646, %v644
  %v839 = vpack.c.b16 %v647, %v645
  %v840 = vpack.c.b16 %v650, %v648
  %v841 = vpack.c.b16 %v651, %v649
  %v842 = vpack.c.b16 %v654, %v652
  %v843 = vpack.c.b16 %v655, %v653
  %v844 = vpack.c.b16 %v658, %v656
  %v845 = vpack.c.b16 %v659, %v657
  %v846 = vpack.c.b16 %v662, %v660
  %v847 = vpack.c.b16 %v663, %v661
  %v848 = vpack.c.b16 %v666, %v664
  %v849 = vpack.c.b16 %v667, %v665
  %v850 = vpack.c.b16 %v670, %v668
  %v851 = vpack.c.b16 %v671, %v669
  %v852 = vpack.c.b16 %v674, %v672
  %v853 = vpack.c.b16 %v675, %v673
  %v854 = vpack.c.b16 %v678, %v676
  %v855 = vpack.c.b16 %v679, %v677
  %v856 = vpack.c.b16 %v682, %v680
  %v857 = vpack.c.b16 %v683, %v681
  %v858 = vpack.c.b16 %v686, %v684
  %v859 = vpack.c.b16 %v687, %v685
  %v860 = vpack.c.b16 %v690, %v688
  %v861 = vpack.c.b16 %v691, %v689
  %v862 = vpack.c.b16 %v694, %v692
  %v863 = vpack.c.b16 %v695, %v693
  %v864 = vpack.c.b16 %v698, %v696
  %v865 = vpack.c.b16 %v699, %v697
  %v866 = vpack.c.b16 %v702, %v700
  %v867 = vpack.c.b16 %v703, %v701
  %v868 = vpack.c.b16 %v706, %v704
  %v869 = vpack.c.b16 %v707, %v705
  %v870 = vpack.c.b16 %v710, %v708
  %v871 = vpack.c.b16 %v711, %v709
  %1032 = vmatprep.subr.bf16.mxu0 %v727
  %1033 = vmatpush1.bf16.msra.mxu0 %v726
  %1034 = vmatprep.subr.bf16.mxu0 %v725
  %1035 = vmatpush1.bf16.msra.mxu0 %v724
  %1036 = vmatprep.subr.bf16.mxu0 %v723
  %1037 = vmatpush1.bf16.msra.mxu0 %v722
  %1038 = vmatprep.subr.bf16.mxu0 %v721
  %1039 = vmatpush1.bf16.msra.mxu0 %v720
  %1040 = vmatprep.subr.bf16.mxu0 %v719
  %1041 = vmatpush1.bf16.msra.mxu0 %v718
  %1042 = vmatprep.subr.bf16.mxu0 %v717
  %1043 = vmatpush1.bf16.msra.mxu0 %v716
  %1044 = vmatprep.subr.bf16.mxu0 %v715
  %1045 = vmatpush1.bf16.msra.mxu0 %v714
  %1046 = vmatprep.subr.bf16.mxu0 %v713
  %1047 = vmatpush1.bf16.msra.mxu0 %v712
  %1048 = vmatprep.subr.bf16.mxu0 %v743
  %1049 = vmatpush2.bf16.msra.mxu0 %v742
  %1050 = vmatprep.subr.bf16.mxu0 %v741
  %1051 = vmatpush2.bf16.msra.mxu0 %v740
  %1052 = vmatprep.subr.bf16.mxu0 %v739
  %1053 = vmatpush2.bf16.msra.mxu0 %v738
  %1054 = vmatprep.subr.bf16.mxu0 %v737
  %1055 = vmatpush2.bf16.msra.mxu0 %v736
  %1056 = vmatprep.subr.bf16.mxu0 %v735
  %1057 = vmatpush2.bf16.msra.mxu0 %v734
  %1058 = vmatprep.subr.bf16.mxu0 %v733
  %1059 = vmatpush2.bf16.msra.mxu0 %v732
  %1060 = vmatprep.subr.bf16.mxu0 %v731
  %1061 = vmatpush2.bf16.msra.mxu0 %v730
  %1062 = vmatprep.subr.bf16.mxu0 %v729
  %1063 = vmatpush2.bf16.msra.mxu0 %v728
  %1064 = vmatprep.mubr.bf16.mxu0 %v213
  %1065 = vmatmul.mubr.bf16.gmra.mxu0 %v212
  %v1066 = vpop.f32.mrf.mxu0
  %v1067 = vadd.f32 %v190, %v1066
  %v1068 = vpop.f32.mrf.mxu0
  %v1069 = vadd.f32 %v194, %v1068
  %v1070 = vpop.f32.mrf.mxu0
  %v1071 = vpop.f32.mrf.mxu0
  %1072 = vdwg.mxu0
  %1073 = vmatprep.subr.bf16.mxu0 %v759
  %1074 = vmatpush1.bf16.msra.mxu0 %v758
  %1075 = vmatprep.subr.bf16.mxu0 %v757
  %1076 = vmatpush1.bf16.msra.mxu0 %v756
  %1077 = vmatprep.subr.bf16.mxu0 %v755
  %1078 = vmatpush1.bf16.msra.mxu0 %v754
  %1079 = vmatprep.subr.bf16.mxu0 %v753
  %1080 = vmatpush1.bf16.msra.mxu0 %v752
  %1081 = vmatprep.subr.bf16.mxu0 %v751
  %1082 = vmatpush1.bf16.msra.mxu0 %v750
  %1083 = vmatprep.subr.bf16.mxu0 %v749
  %1084 = vmatpush1.bf16.msra.mxu0 %v748
  %1085 = vmatprep.subr.bf16.mxu0 %v747
  %1086 = vmatpush1.bf16.msra.mxu0 %v746
  %1087 = vmatprep.subr.bf16.mxu0 %v745
  %1088 = vmatpush1.bf16.msra.mxu0 %v744
  %1089 = vmatprep.subr.bf16.mxu0 %v775
  %1090 = vmatpush2.bf16.msra.mxu0 %v774
  %1091 = vmatprep.subr.bf16.mxu0 %v773
  %1092 = vmatpush2.bf16.msra.mxu0 %v772
  %1093 = vmatprep.subr.bf16.mxu0 %v771
  %1094 = vmatpush2.bf16.msra.mxu0 %v770
  %1095 = vmatprep.subr.bf16.mxu0 %v769
  %1096 = vmatpush2.bf16.msra.mxu0 %v768
  %1097 = vmatprep.subr.bf16.mxu0 %v767
  %1098 = vmatpush2.bf16.msra.mxu0 %v766
  %1099 = vmatprep.subr.bf16.mxu0 %v765
  %1100 = vmatpush2.bf16.msra.mxu0 %v764
  %1101 = vmatprep.subr.bf16.mxu0 %v763
  %1102 = vmatpush2.bf16.msra.mxu0 %v762
  %1103 = vmatprep.subr.bf16.mxu0 %v761
  %1104 = vmatpush2.bf16.msra.mxu0 %v760
  %1105 = vmatprep.mubr.bf16.mxu0 %v215
  %1106 = vmatmul.mubr.bf16.gmra.mxu0 %v214
  %v1107 = vpop.f32.mrf.mxu0
  %v1108 = vadd.f32 %v1067, %v1107
  %v1109 = vpop.f32.mrf.mxu0
  %v1110 = vadd.f32 %v1069, %v1109
  %v1111 = vpop.f32.mrf.mxu0
  %v1112 = vpop.f32.mrf.mxu0
  %1113 = vdwg.mxu0
  %1114 = vmatprep.subr.bf16.mxu0 %v791
  %1115 = vmatpush1.bf16.msra.mxu0 %v790
  %1116 = vmatprep.subr.bf16.mxu0 %v789
  %1117 = vmatpush1.bf16.msra.mxu0 %v788
  %1118 = vmatprep.subr.bf16.mxu0 %v787
  %1119 = vmatpush1.bf16.msra.mxu0 %v786
  %1120 = vmatprep.subr.bf16.mxu0 %v785
  %1121 = vmatpush1.bf16.msra.mxu0 %v784
  %1122 = vmatprep.subr.bf16.mxu0 %v783
  %1123 = vmatpush1.bf16.msra.mxu0 %v782
  %1124 = vmatprep.subr.bf16.mxu0 %v781
  %1125 = vmatpush1.bf16.msra.mxu0 %v780
  %1126 = vmatprep.subr.bf16.mxu0 %v779
  %1127 = vmatpush1.bf16.msra.mxu0 %v778
  %1128 = vmatprep.subr.bf16.mxu0 %v777
  %1129 = vmatpush1.bf16.msra.mxu0 %v776
  %1130 = vmatprep.subr.bf16.mxu0 %v807
  %1131 = vmatpush2.bf16.msra.mxu0 %v806
  %1132 = vmatprep.subr.bf16.mxu0 %v805
  %1133 = vmatpush2.bf16.msra.mxu0 %v804
  %1134 = vmatprep.subr.bf16.mxu0 %v803
  %1135 = vmatpush2.bf16.msra.mxu0 %v802
  %1136 = vmatprep.subr.bf16.mxu0 %v801
  %1137 = vmatpush2.bf16.msra.mxu0 %v800
  %1138 = vmatprep.subr.bf16.mxu0 %v799
  %1139 = vmatpush2.bf16.msra.mxu0 %v798
  %1140 = vmatprep.subr.bf16.mxu0 %v797
  %1141 = vmatpush2.bf16.msra.mxu0 %v796
  %1142 = vmatprep.subr.bf16.mxu0 %v795
  %1143 = vmatpush2.bf16.msra.mxu0 %v794
  %1144 = vmatprep.subr.bf16.mxu0 %v793
  %1145 = vmatpush2.bf16.msra.mxu0 %v792
  %1146 = vmatprep.mubr.bf16.mxu0 %v217
  %1147 = vmatmul.mubr.bf16.gmra.mxu0 %v216
  %v1148 = vpop.f32.mrf.mxu0
  %v1149 = vadd.f32 %v1108, %v1148
  %v1150 = vpop.f32.mrf.mxu0
  %v1151 = vadd.f32 %v1110, %v1150
  %v1152 = vpop.f32.mrf.mxu0
  %v1153 = vpop.f32.mrf.mxu0
  %1154 = vdwg.mxu0
  %1155 = vmatprep.subr.bf16.mxu0 %v823
  %1156 = vmatpush1.bf16.msra.mxu0 %v822
  %1157 = vmatprep.subr.bf16.mxu0 %v821
  %1158 = vmatpush1.bf16.msra.mxu0 %v820
  %1159 = vmatprep.subr.bf16.mxu0 %v819
  %1160 = vmatpush1.bf16.msra.mxu0 %v818
  %1161 = vmatprep.subr.bf16.mxu0 %v817
  %1162 = vmatpush1.bf16.msra.mxu0 %v816
  %1163 = vmatprep.subr.bf16.mxu0 %v815
  %1164 = vmatpush1.bf16.msra.mxu0 %v814
  %1165 = vmatprep.subr.bf16.mxu0 %v813
  %1166 = vmatpush1.bf16.msra.mxu0 %v812
  %1167 = vmatprep.subr.bf16.mxu0 %v811
  %1168 = vmatpush1.bf16.msra.mxu0 %v810
  %1169 = vmatprep.subr.bf16.mxu0 %v809
  %1170 = vmatpush1.bf16.msra.mxu0 %v808
  %1171 = vmatprep.subr.bf16.mxu0 %v839
  %1172 = vmatpush2.bf16.msra.mxu0 %v838
  %1173 = vmatprep.subr.bf16.mxu0 %v837
  %1174 = vmatpush2.bf16.msra.mxu0 %v836
  %1175 = vmatprep.subr.bf16.mxu0 %v835
  %1176 = vmatpush2.bf16.msra.mxu0 %v834
  %1177 = vmatprep.subr.bf16.mxu0 %v833
  %1178 = vmatpush2.bf16.msra.mxu0 %v832
  %1179 = vmatprep.subr.bf16.mxu0 %v831
  %1180 = vmatpush2.bf16.msra.mxu0 %v830
  %1181 = vmatprep.subr.bf16.mxu0 %v829
  %1182 = vmatpush2.bf16.msra.mxu0 %v828
  %1183 = vmatprep.subr.bf16.mxu0 %v827
  %1184 = vmatpush2.bf16.msra.mxu0 %v826
  %1185 = vmatprep.subr.bf16.mxu0 %v825
  %1186 = vmatpush2.bf16.msra.mxu0 %v824
  %1187 = vmatprep.mubr.bf16.mxu0 %v219
  %1188 = vmatmul.mubr.bf16.gmra.mxu0 %v218
  %v1189 = vpop.f32.mrf.mxu0
  %v1190 = vadd.f32 %v1149, %v1189
  %v1191 = vpop.f32.mrf.mxu0
  %v1192 = vadd.f32 %v1151, %v1191
  %v1193 = vpop.f32.mrf.mxu0
  %v1194 = vpop.f32.mrf.mxu0
  %1195 = vdwg.mxu0
  %1196 = vmatprep.subr.bf16.mxu0 %v855
  %1197 = vmatpush1.bf16.msra.mxu0 %v854
  %1198 = vmatprep.subr.bf16.mxu0 %v853
  %1199 = vmatpush1.bf16.msra.mxu0 %v852
  %1200 = vmatprep.subr.bf16.mxu0 %v851
  %1201 = vmatpush1.bf16.msra.mxu0 %v850
  %1202 = vmatprep.subr.bf16.mxu0 %v849
  %1203 = vmatpush1.bf16.msra.mxu0 %v848
  %1204 = vmatprep.subr.bf16.mxu0 %v847
  %1205 = vmatpush1.bf16.msra.mxu0 %v846
  %1206 = vmatprep.subr.bf16.mxu0 %v845
  %1207 = vmatpush1.bf16.msra.mxu0 %v844
  %1208 = vmatprep.subr.bf16.mxu0 %v843
  %1209 = vmatpush1.bf16.msra.mxu0 %v842
  %1210 = vmatprep.subr.bf16.mxu0 %v841
  %1211 = vmatpush1.bf16.msra.mxu0 %v840
  %1212 = vmatprep.subr.bf16.mxu0 %v871
  %1213 = vmatpush2.bf16.msra.mxu0 %v870
  %1214 = vmatprep.subr.bf16.mxu0 %v869
  %1215 = vmatpush2.bf16.msra.mxu0 %v868
  %1216 = vmatprep.subr.bf16.mxu0 %v867
  %1217 = vmatpush2.bf16.msra.mxu0 %v866
  %1218 = vmatprep.subr.bf16.mxu0 %v865
  %1219 = vmatpush2.bf16.msra.mxu0 %v864
  %1220 = vmatprep.subr.bf16.mxu0 %v863
  %1221 = vmatpush2.bf16.msra.mxu0 %v862
  %1222 = vmatprep.subr.bf16.mxu0 %v861
  %1223 = vmatpush2.bf16.msra.mxu0 %v860
  %1224 = vmatprep.subr.bf16.mxu0 %v859
  %1225 = vmatpush2.bf16.msra.mxu0 %v858
  %1226 = vmatprep.subr.bf16.mxu0 %v857
  %1227 = vmatpush2.bf16.msra.mxu0 %v856
  %1228 = vmatprep.mubr.bf16.mxu0 %v221
  %1229 = vmatmul.mubr.bf16.gmra.mxu0 %v220
  %v1230 = vpop.f32.mrf.mxu0
  %v1231 = vadd.f32 %v1190, %v1230
  %v1232 = vpop.f32.mrf.mxu0
  %v1233 = vadd.f32 %v1192, %v1232
  %v1234 = vpop.f32.mrf.mxu0
  %v1235 = vpop.f32.mrf.mxu0
  %1236 = vdwg.mxu0
  %v1237 = vmax.f32 %v1231, 0.0
  %v1238 = vmax.f32 %v1233, 0.0
  %v1239 = vpack.c.bf16 %v1237, %v1237
  %v1240 = vpack.c.bf16 %v1238, %v1238
  %v1241 = vld [vmem:[%s3] sm:$0xff]
  %v1242 = vld [vmem:[%s3 + $0x8] sm:$0xff]
  %v1243 = vld [vmem:[%s3 + $0x10] sm:$0xff]
  %v1244 = vld [vmem:[%s3 + $0x18] sm:$0xff]
  %v1245 = vld [vmem:[%s3 + $0x20] sm:$0xff]
  %v1246 = vld [vmem:[%s3 + $0x28] sm:$0xff]
  %v1247 = vld [vmem:[%s3 + $0x30] sm:$0xff]
  %v1248 = vld [vmem:[%s3 + $0x38] sm:$0xff]
  %v1249 = vld [vmem:[%s3 + $0x40] sm:$0xff]
  %v1250 = vld [vmem:[%s3 + $0x48] sm:$0xff]
  %v1251 = vld [vmem:[%s3 + $0x50] sm:$0xff]
  %v1252 = vld [vmem:[%s3 + $0x58] sm:$0xff]
  %v1253 = vld [vmem:[%s3 + $0x60] sm:$0xff]
  %v1254 = vld [vmem:[%s3 + $0x68] sm:$0xff]
  %v1255 = vld [vmem:[%s3 + $0x70] sm:$0xff]
  %v1256 = vld [vmem:[%s3 + $0x78] sm:$0xff]
  %v1257 = vld [vmem:[%s3 + $0x80] sm:$0xff]
  %v1258 = vld [vmem:[%s3 + $0x88] sm:$0xff]
  %v1259 = vld [vmem:[%s3 + $0x90] sm:$0xff]
  %v1260 = vld [vmem:[%s3 + $0x98] sm:$0xff]
  %v1261 = vld [vmem:[%s3 + $0xa0] sm:$0xff]
  %v1262 = vld [vmem:[%s3 + $0xa8] sm:$0xff]
  %v1263 = vld [vmem:[%s3 + $0xb0] sm:$0xff]
  %v1264 = vld [vmem:[%s3 + $0xb8] sm:$0xff]
  %v1265 = vld [vmem:[%s3 + $0xc0] sm:$0xff]
  %v1266 = vld [vmem:[%s3 + $0xc8] sm:$0xff]
  %v1267 = vld [vmem:[%s3 + $0xd0] sm:$0xff]
  %v1268 = vld [vmem:[%s3 + $0xd8] sm:$0xff]
  %v1269 = vld [vmem:[%s3 + $0xe0] sm:$0xff]
  %v1270 = vld [vmem:[%s3 + $0xe8] sm:$0xff]
  %v1271 = vld [vmem:[%s3 + $0xf0] sm:$0xff]
  %v1272 = vld [vmem:[%s3 + $0xf8] sm:$0xff]
  %v1273 = vld [vmem:[%s4] sm:$0x3]
  %v1275 = vlaneseq
  %v1276 = vshrl.u32 %v1275, 7
  %v1277 = vsub.s32 0, %v1276
  %v1278 = vrot.slane %v1273, %v1277
  %v1279 = vlaneseq
  %v1280 = vshrl.u32 %v1279, 7
  %v1281 = vsub.s32 1, %v1280
  %v1282 = vrot.slane %v1273, %v1281
  %v1317 = vunpack.c.l.b16 %v1241
  %v1318 = vunpack.c.h.b16 %v1241
  %v1319 = vunpack.c.l.b16 %v1242
  %v1320 = vunpack.c.h.b16 %v1242
  %v1321 = vunpack.c.l.b16 %v1243
  %v1322 = vunpack.c.h.b16 %v1243
  %v1323 = vunpack.c.l.b16 %v1244
  %v1324 = vunpack.c.h.b16 %v1244
  %v1325 = vunpack.c.l.b16 %v1245
  %v1326 = vunpack.c.h.b16 %v1245
  %v1327 = vunpack.c.l.b16 %v1246
  %v1328 = vunpack.c.h.b16 %v1246
  %v1329 = vunpack.c.l.b16 %v1247
  %v1330 = vunpack.c.h.b16 %v1247
  %v1331 = vunpack.c.l.b16 %v1248
  %v1332 = vunpack.c.h.b16 %v1248
  %v1333 = vunpack.c.l.b16 %v1249
  %v1334 = vunpack.c.h.b16 %v1249
  %v1335 = vunpack.c.l.b16 %v1250
  %v1336 = vunpack.c.h.b16 %v1250
  %v1337 = vunpack.c.l.b16 %v1251
  %v1338 = vunpack.c.h.b16 %v1251
  %v1339 = vunpack.c.l.b16 %v1252
  %v1340 = vunpack.c.h.b16 %v1252
  %v1341 = vunpack.c.l.b16 %v1253
  %v1342 = vunpack.c.h.b16 %v1253
  %v1343 = vunpack.c.l.b16 %v1254
  %v1344 = vunpack.c.h.b16 %v1254
  %v1345 = vunpack.c.l.b16 %v1255
  %v1346 = vunpack.c.h.b16 %v1255
  %v1347 = vunpack.c.l.b16 %v1256
  %v1348 = vunpack.c.h.b16 %v1256
  %v1349 = vunpack.c.l.b16 %v1257
  %v1350 = vunpack.c.h.b16 %v1257
  %v1351 = vunpack.c.l.b16 %v1258
  %v1352 = vunpack.c.h.b16 %v1258
  %v1353 = vunpack.c.l.b16 %v1259
  %v1354 = vunpack.c.h.b16 %v1259
  %v1355 = vunpack.c.l.b16 %v1260
  %v1356 = vunpack.c.h.b16 %v1260
  %v1357 = vunpack.c.l.b16 %v1261
  %v1358 = vunpack.c.h.b16 %v1261
  %v1359 = vunpack.c.l.b16 %v1262
  %v1360 = vunpack.c.h.b16 %v1262
  %v1361 = vunpack.c.l.b16 %v1263
  %v1362 = vunpack.c.h.b16 %v1263
  %v1363 = vunpack.c.l.b16 %v1264
  %v1364 = vunpack.c.h.b16 %v1264
  %v1365 = vunpack.c.l.b16 %v1265
  %v1366 = vunpack.c.h.b16 %v1265
  %v1367 = vunpack.c.l.b16 %v1266
  %v1368 = vunpack.c.h.b16 %v1266
  %v1369 = vunpack.c.l.b16 %v1267
  %v1370 = vunpack.c.h.b16 %v1267
  %v1371 = vunpack.c.l.b16 %v1268
  %v1372 = vunpack.c.h.b16 %v1268
  %v1373 = vunpack.c.l.b16 %v1269
  %v1374 = vunpack.c.h.b16 %v1269
  %v1375 = vunpack.c.l.b16 %v1270
  %v1376 = vunpack.c.h.b16 %v1270
  %v1377 = vunpack.c.l.b16 %v1271
  %v1378 = vunpack.c.h.b16 %v1271
  %v1379 = vunpack.c.l.b16 %v1272
  %v1380 = vunpack.c.h.b16 %v1272
  %v1381 = vpack.c.b16 %v1319, %v1317
  %v1382 = vpack.c.b16 %v1320, %v1318
  %v1383 = vpack.c.b16 %v1323, %v1321
  %v1384 = vpack.c.b16 %v1324, %v1322
  %v1385 = vpack.c.b16 %v1327, %v1325
  %v1386 = vpack.c.b16 %v1328, %v1326
  %v1387 = vpack.c.b16 %v1331, %v1329
  %v1388 = vpack.c.b16 %v1332, %v1330
  %v1389 = vpack.c.b16 %v1335, %v1333
  %v1390 = vpack.c.b16 %v1336, %v1334
  %v1391 = vpack.c.b16 %v1339, %v1337
  %v1392 = vpack.c.b16 %v1340, %v1338
  %v1393 = vpack.c.b16 %v1343, %v1341
  %v1394 = vpack.c.b16 %v1344, %v1342
  %v1395 = vpack.c.b16 %v1347, %v1345
  %v1396 = vpack.c.b16 %v1348, %v1346
  %v1397 = vpack.c.b16 %v1351, %v1349
  %v1398 = vpack.c.b16 %v1352, %v1350
  %v1399 = vpack.c.b16 %v1355, %v1353
  %v1400 = vpack.c.b16 %v1356, %v1354
  %v1401 = vpack.c.b16 %v1359, %v1357
  %v1402 = vpack.c.b16 %v1360, %v1358
  %v1403 = vpack.c.b16 %v1363, %v1361
  %v1404 = vpack.c.b16 %v1364, %v1362
  %v1405 = vpack.c.b16 %v1367, %v1365
  %v1406 = vpack.c.b16 %v1368, %v1366
  %v1407 = vpack.c.b16 %v1371, %v1369
  %v1408 = vpack.c.b16 %v1372, %v1370
  %v1409 = vpack.c.b16 %v1375, %v1373
  %v1410 = vpack.c.b16 %v1376, %v1374
  %v1411 = vpack.c.b16 %v1379, %v1377
  %v1412 = vpack.c.b16 %v1380, %v1378
  %1445 = vmatprep.subr.bf16.mxu0 %v1396
  %1446 = vmatpush1.bf16.msra.mxu0 %v1395
  %1447 = vmatprep.subr.bf16.mxu0 %v1394
  %1448 = vmatpush1.bf16.msra.mxu0 %v1393
  %1449 = vmatprep.subr.bf16.mxu0 %v1392
  %1450 = vmatpush1.bf16.msra.mxu0 %v1391
  %1451 = vmatprep.subr.bf16.mxu0 %v1390
  %1452 = vmatpush1.bf16.msra.mxu0 %v1389
  %1453 = vmatprep.subr.bf16.mxu0 %v1388
  %1454 = vmatpush1.bf16.msra.mxu0 %v1387
  %1455 = vmatprep.subr.bf16.mxu0 %v1386
  %1456 = vmatpush1.bf16.msra.mxu0 %v1385
  %1457 = vmatprep.subr.bf16.mxu0 %v1384
  %1458 = vmatpush1.bf16.msra.mxu0 %v1383
  %1459 = vmatprep.subr.bf16.mxu0 %v1382
  %1460 = vmatpush1.bf16.msra.mxu0 %v1381
  %1461 = vmatprep.subr.bf16.mxu0 %v1412
  %1462 = vmatpush2.bf16.msra.mxu0 %v1411
  %1463 = vmatprep.subr.bf16.mxu0 %v1410
  %1464 = vmatpush2.bf16.msra.mxu0 %v1409
  %1465 = vmatprep.subr.bf16.mxu0 %v1408
  %1466 = vmatpush2.bf16.msra.mxu0 %v1407
  %1467 = vmatprep.subr.bf16.mxu0 %v1406
  %1468 = vmatpush2.bf16.msra.mxu0 %v1405
  %1469 = vmatprep.subr.bf16.mxu0 %v1404
  %1470 = vmatpush2.bf16.msra.mxu0 %v1403
  %1471 = vmatprep.subr.bf16.mxu0 %v1402
  %1472 = vmatpush2.bf16.msra.mxu0 %v1401
  %1473 = vmatprep.subr.bf16.mxu0 %v1400
  %1474 = vmatpush2.bf16.msra.mxu0 %v1399
  %1475 = vmatprep.subr.bf16.mxu0 %v1398
  %1476 = vmatpush2.bf16.msra.mxu0 %v1397
  %1477 = vmatprep.mubr.bf16.mxu0 %v1240
  %1478 = vmatmul.mubr.bf16.gmra.mxu0 %v1239
  %v1479 = vpop.f32.mrf.mxu0
  %v1480 = vadd.f32 %v1278, %v1479
  %v1481 = vpop.f32.mrf.mxu0
  %v1482 = vadd.f32 %v1282, %v1481
  %v1483 = vpop.f32.mrf.mxu0
  %v1484 = vpop.f32.mrf.mxu0
  %1485 = vdwg.mxu0
  %1486 = vst [vmem:[%s5] sm:$0xff] %v1480
  %1487 = vst [vmem:[%s5 + $0x8] sm:$0xff] %v1482
  // Predicated region
  $region22: #{_lambda_.10} parent=0 // pred_check
    _
  $region23: #{_lambda_.10} parent=0 // pred_check_branch
    %1489 = sbr.rel (0) target = $region25
  $region24: #{_lambda_.10} parent=0 // pred_region
    _
  $region25: #{_lambda_.10} parent=0 // pred_fallthru
    _
  // Predicated region
  $region26: #{_lambda_.10} parent=0 // pred_check
    _
  $region27: #{_lambda_.10} parent=0 // pred_check_branch
    %1491 = sbr.rel (0) target = $region29
  $region28: #{_lambda_.10} parent=0 // pred_region
    _
  $region29: #{_lambda_.10} parent=0 // pred_fallthru
    _

// kernel: _lambda_.9
$region0: #{_lambda_.9}
  #allocation0 [shape = 'u32[]', space=smem, size = 0x4, offset = 0x4, fixed_abs, tag = 'smem constant byte address 0x4 - core index']
  #allocation1 [shape = 'u32[144,128]{1,0:T(1,128)}', space=vmem, size = 0x12000, scoped, tag = 'internal scratch']
  %s0 = inlined_call_operand.vmem [shape: bf16[2,8,256], index: 0, kind: input, shape index: {}]
  %s1 = inlined_call_operand.vmem [shape: f32[2,8,8], index: 1, kind: input, shape index: {}]
  %s2 = inlined_call_operand.vmem [shape: f32[2,1,8], index: 2, kind: input, shape index: {}]
  %s3 = inlined_call_operand.vmem [shape: f32[2,1,8,1], index: 3, kind: input, shape index: {}]
  %s4 = inlined_call_operand.vmem [shape: bf16[256,256], index: 4, kind: input, shape index: {}]
  %s5 = inlined_call_operand.vmem [shape: bf16[8,256], index: 5, kind: input, shape index: {}]
  %s6 = inlined_call_operand.vmem [shape: f32[1,256], index: 6, kind: input, shape index: {}]
  %s7 = inlined_call_operand.vmem [shape: bf16[256,512], index: 7, kind: input, shape index: {}]
  %s8 = inlined_call_operand.vmem [shape: f32[1,512], index: 8, kind: input, shape index: {}]
  %s9 = inlined_call_operand.vmem [shape: bf16[512,1024], index: 9, kind: input, shape index: {}]
  %s10 = inlined_call_operand.vmem [shape: f32[1,1024], index: 10, kind: input, shape index: {}]
  %s11 = inlined_call_operand.vmem [shape: f32[2,1,1024], index: 11, kind: output, shape index: {}]
  %s12 = sld [smem:[#allocation0]]
  $region77: #{_lambda_.9} parent=0
    _
  %s14 = ssub.s32 1, %s12
  %s15 = scalar_select 0, %s14, %s12
  loop: start=0, step=1, limit=4
  $region2: #{_lambda_.9} parent=0 // loop_pre_header
    _
  $region3: #{_lambda_.9} parent=0 // loop_header
    %s17 = sphi 0, %s21
    %p18 = scmp.ge.s32.totalorder %s17, 4
    %s24 = sphi 0, %s36
    %s25 = sphi 0, %s32
    %s26 = sphi 0, %s24
    %s27 = sphi 0, %s25
    %s28 = sphi 0, %s26
    %s29 = sphi 0, %s27
    %s39 = sphi 0, %s41
    %s42 = sphi 0, %s39
    %s43 = sphi 0, %s42
    %s59 = sphi 0, %s43
    %s65 = sphi 0, %s67
    %s68 = sphi 0, %s65
    %s69 = sphi 0, %s68
    %s85 = sphi 0, %s69
    %s93 = sphi 0, %s95
    %s96 = sphi 0, %s93
    %s97 = sphi 0, %s96
    %s113 = sphi 0, %s97
    %s121 = sphi 0, %s123
    %s124 = sphi 0, %s121
    %s125 = sphi 0, %s124
    %s141 = sphi 0, %s125
    %s145 = sphi 0, %s145
    %s147 = sphi 0, %s145
    %s148 = sphi 0, %s147
    %s162 = sphi 0, %s148
    %s166 = sphi 0, %s166
    %s168 = sphi 0, %s166
    %s169 = sphi 0, %s168
    %s183 = sphi 0, %s169
    %s187 = sphi 0, %s187
    %s189 = sphi 0, %s187
    %s190 = sphi 0, %s189
    %s204 = sphi 0, %s190
    %s208 = sphi 0, %s208
    %s210 = sphi 0, %s208
    %s211 = sphi 0, %s210
    %s225 = sphi 0, %s211
    %s229 = sphi 0, %s229
    %s231 = sphi 0, %s229
    %s232 = sphi 0, %s231
    %s246 = sphi 0, %s232
    %s250 = sphi 0, %s250
    %s252 = sphi 0, %s250
    %s253 = sphi 0, %s252
    %s267 = sphi 0, %s253
    %s271 = sphi 0, %s271
    %s273 = sphi 0, %s271
    %s274 = sphi 0, %s273
    %s288 = sphi 0, %s274
    %s296 = sphi 0, %s298
    %s299 = sphi 0, %s296
    %s300 = sphi 0, %s299
    %s316 = sphi 0, %s300
  $region4: #{_lambda_.9} parent=0 // loop_header_branch
    %20 = sbr.rel (%p18) target = $region8
  $region5: #{_lambda_.9} parent=0 // loop_body
    %s22 = ssub.s32 %s17, 1
    %s23 = ssub.s32 %s17, 2
    %s30 = sadd.s32 1, %s25
    %p31 = scmp.ge.s32.totalorder %s30, 1
    %s32 = scalar_select %p31, 0, %s30
    %s33 = sadd.s32 1, %s24
    %s34 = scalar_select %p31, %s33, %s24
    %p35 = scmp.ge.s32.totalorder %s34, 2
    %s36 = scalar_select %p35, 0, %s34
    %s37 = ssub.s32 %s24, %s36
    %p38 = scmp.eq.s32.totalorder %s37, 0
    %s40 = sadd.s32 %s39, 1
    %s41 = scalar_select %p38, %s39, %s40
    %p44 = pneg %p38
    %p45 = scmp.eq.s32.totalorder %s17, 1
    %p46 = por %p44, %p45
    %p47 = scmp.ne.s32.totalorder %s39, %s42
    %p48 = scmp.eq.s32.totalorder %s17, 0
    %p49 = por %p47, %p48
    %p50 = scmp.ne.s32.totalorder %s39, %s42
    %p51 = scmp.eq.s32.totalorder %s22, 1
    %p52 = por %p50, %p51
    %p53 = scmp.ne.s32.totalorder %s42, %s43
    %p54 = scmp.eq.s32.totalorder %s22, 0
    %p55 = por %p53, %p54
    %p56 = scmp.ne.s32.totalorder %s42, %s43
    %p57 = scmp.eq.s32.totalorder %s23, 1
    %p58 = por %p56, %p57
    %p60 = scmp.ne.s32.totalorder %s43, %s59
    %p61 = scmp.eq.s32.totalorder %s23, 0
    %p62 = por %p60, %p61
    %s63 = ssub.s32 %s24, %s36
    %p64 = scmp.eq.s32.totalorder %s63, 0
    %s66 = sadd.s32 %s65, 1
    %s67 = scalar_select %p64, %s65, %s66
    %p70 = pneg %p64
    %p71 = scmp.eq.s32.totalorder %s17, 1
    %p72 = por %p70, %p71
    %p73 = scmp.ne.s32.totalorder %s65, %s68
    %p74 = scmp.eq.s32.totalorder %s17, 0
    %p75 = por %p73, %p74
    %p76 = scmp.ne.s32.totalorder %s65, %s68
    %p77 = scmp.eq.s32.totalorder %s22, 1
    %p78 = por %p76, %p77
    %p79 = scmp.ne.s32.totalorder %s68, %s69
    %p80 = scmp.eq.s32.totalorder %s22, 0
    %p81 = por %p79, %p80
    %p82 = scmp.ne.s32.totalorder %s68, %s69
    %p83 = scmp.eq.s32.totalorder %s23, 1
    %p84 = por %p82, %p83
    %p86 = scmp.ne.s32.totalorder %s69, %s85
    %p87 = scmp.eq.s32.totalorder %s23, 0
    %p88 = por %p86, %p87
    %s89 = ssub.s32 %s24, %s36
    %s90 = ssub.s32 %s25, %s32
    %s91 = sor.u32 %s89, %s90
    %p92 = scmp.eq.s32.totalorder %s91, 0
    %s94 = sadd.s32 %s93, 1
    %s95 = scalar_select %p92, %s93, %s94
    %p98 = pneg %p92
    %p99 = scmp.eq.s32.totalorder %s17, 1
    %p100 = por %p98, %p99
    %p101 = scmp.ne.s32.totalorder %s93, %s96
    %p102 = scmp.eq.s32.totalorder %s17, 0
    %p103 = por %p101, %p102
    %p104 = scmp.ne.s32.totalorder %s93, %s96
    %p105 = scmp.eq.s32.totalorder %s22, 1
    %p106 = por %p104, %p105
    %p107 = scmp.ne.s32.totalorder %s96, %s97
    %p108 = scmp.eq.s32.totalorder %s22, 0
    %p109 = por %p107, %p108
    %p110 = scmp.ne.s32.totalorder %s96, %s97
    %p111 = scmp.eq.s32.totalorder %s23, 1
    %p112 = por %p110, %p111
    %p114 = scmp.ne.s32.totalorder %s97, %s113
    %p115 = scmp.eq.s32.totalorder %s23, 0
    %p116 = por %p114, %p115
    %s117 = ssub.s32 %s24, %s36
    %s118 = ssub.s32 %s25, %s32
    %s119 = sor.u32 %s117, %s118
    %p120 = scmp.eq.s32.totalorder %s119, 0
    %s122 = sadd.s32 %s121, 1
    %s123 = scalar_select %p120, %s121, %s122
    %p126 = pneg %p120
    %p127 = scmp.eq.s32.totalorder %s17, 1
    %p128 = por %p126, %p127
    %p129 = scmp.ne.s32.totalorder %s121, %s124
    %p130 = scmp.eq.s32.totalorder %s17, 0
    %p131 = por %p129, %p130
    %p132 = scmp.ne.s32.totalorder %s121, %s124
    %p133 = scmp.eq.s32.totalorder %s22, 1
    %p134 = por %p132, %p133
    %p135 = scmp.ne.s32.totalorder %s124, %s125
    %p136 = scmp.eq.s32.totalorder %s22, 0
    %p137 = por %p135, %p136
    %p138 = scmp.ne.s32.totalorder %s124, %s125
    %p139 = scmp.eq.s32.totalorder %s23, 1
    %p140 = por %p138, %p139
    %p142 = scmp.ne.s32.totalorder %s125, %s141
    %p143 = scmp.eq.s32.totalorder %s23, 0
    %p144 = por %p142, %p143
    %s146 = sadd.s32 %s145, 1
    %p149 = scmp.eq.s32.totalorder %s17, 1
    %p150 = scmp.ne.s32.totalorder %s145, %s147
    %p151 = scmp.eq.s32.totalorder %s17, 0
    %p152 = por %p150, %p151
    %p153 = scmp.ne.s32.totalorder %s145, %s147
    %p154 = scmp.eq.s32.totalorder %s22, 1
    %p155 = por %p153, %p154
    %p156 = scmp.ne.s32.totalorder %s147, %s148
    %p157 = scmp.eq.s32.totalorder %s22, 0
    %p158 = por %p156, %p157
    %p159 = scmp.ne.s32.totalorder %s147, %s148
    %p160 = scmp.eq.s32.totalorder %s23, 1
    %p161 = por %p159, %p160
    %p163 = scmp.ne.s32.totalorder %s148, %s162
    %p164 = scmp.eq.s32.totalorder %s23, 0
    %p165 = por %p163, %p164
    %s167 = sadd.s32 %s166, 1
    %p170 = scmp.eq.s32.totalorder %s17, 1
    %p171 = scmp.ne.s32.totalorder %s166, %s168
    %p172 = scmp.eq.s32.totalorder %s17, 0
    %p173 = por %p171, %p172
    %p174 = scmp.ne.s32.totalorder %s166, %s168
    %p175 = scmp.eq.s32.totalorder %s22, 1
    %p176 = por %p174, %p175
    %p177 = scmp.ne.s32.totalorder %s168, %s169
    %p178 = scmp.eq.s32.totalorder %s22, 0
    %p179 = por %p177, %p178
    %p180 = scmp.ne.s32.totalorder %s168, %s169
    %p181 = scmp.eq.s32.totalorder %s23, 1
    %p182 = por %p180, %p181
    %p184 = scmp.ne.s32.totalorder %s169, %s183
    %p185 = scmp.eq.s32.totalorder %s23, 0
    %p186 = por %p184, %p185
    %s188 = sadd.s32 %s187, 1
    %p191 = scmp.eq.s32.totalorder %s17, 1
    %p192 = scmp.ne.s32.totalorder %s187, %s189
    %p193 = scmp.eq.s32.totalorder %s17, 0
    %p194 = por %p192, %p193
    %p195 = scmp.ne.s32.totalorder %s187, %s189
    %p196 = scmp.eq.s32.totalorder %s22, 1
    %p197 = por %p195, %p196
    %p198 = scmp.ne.s32.totalorder %s189, %s190
    %p199 = scmp.eq.s32.totalorder %s22, 0
    %p200 = por %p198, %p199
    %p201 = scmp.ne.s32.totalorder %s189, %s190
    %p202 = scmp.eq.s32.totalorder %s23, 1
    %p203 = por %p201, %p202
    %p205 = scmp.ne.s32.totalorder %s190, %s204
    %p206 = scmp.eq.s32.totalorder %s23, 0
    %p207 = por %p205, %p206
    %s209 = sadd.s32 %s208, 1
    %p212 = scmp.eq.s32.totalorder %s17, 1
    %p213 = scmp.ne.s32.totalorder %s208, %s210
    %p214 = scmp.eq.s32.totalorder %s17, 0
    %p215 = por %p213, %p214
    %p216 = scmp.ne.s32.totalorder %s208, %s210
    %p217 = scmp.eq.s32.totalorder %s22, 1
    %p218 = por %p216, %p217
    %p219 = scmp.ne.s32.totalorder %s210, %s211
    %p220 = scmp.eq.s32.totalorder %s22, 0
    %p221 = por %p219, %p220
    %p222 = scmp.ne.s32.totalorder %s210, %s211
    %p223 = scmp.eq.s32.totalorder %s23, 1
    %p224 = por %p222, %p223
    %p226 = scmp.ne.s32.totalorder %s211, %s225
    %p227 = scmp.eq.s32.totalorder %s23, 0
    %p228 = por %p226, %p227
    %s230 = sadd.s32 %s229, 1
    %p233 = scmp.eq.s32.totalorder %s17, 1
    %p234 = scmp.ne.s32.totalorder %s229, %s231
    %p235 = scmp.eq.s32.totalorder %s17, 0
    %p236 = por %p234, %p235
    %p237 = scmp.ne.s32.totalorder %s229, %s231
    %p238 = scmp.eq.s32.totalorder %s22, 1
    %p239 = por %p237, %p238
    %p240 = scmp.ne.s32.totalorder %s231, %s232
    %p241 = scmp.eq.s32.totalorder %s22, 0
    %p242 = por %p240, %p241
    %p243 = scmp.ne.s32.totalorder %s231, %s232
    %p244 = scmp.eq.s32.totalorder %s23, 1
    %p245 = por %p243, %p244
    %p247 = scmp.ne.s32.totalorder %s232, %s246
    %p248 = scmp.eq.s32.totalorder %s23, 0
    %p249 = por %p247, %p248
    %s251 = sadd.s32 %s250, 1
    %p254 = scmp.eq.s32.totalorder %s17, 1
    %p255 = scmp.ne.s32.totalorder %s250, %s252
    %p256 = scmp.eq.s32.totalorder %s17, 0
    %p257 = por %p255, %p256
    %p258 = scmp.ne.s32.totalorder %s250, %s252
    %p259 = scmp.eq.s32.totalorder %s22, 1
    %p260 = por %p258, %p259
    %p261 = scmp.ne.s32.totalorder %s252, %s253
    %p262 = scmp.eq.s32.totalorder %s22, 0
    %p263 = por %p261, %p262
    %p264 = scmp.ne.s32.totalorder %s252, %s253
    %p265 = scmp.eq.s32.totalorder %s23, 1
    %p266 = por %p264, %p265
    %p268 = scmp.ne.s32.totalorder %s253, %s267
    %p269 = scmp.eq.s32.totalorder %s23, 0
    %p270 = por %p268, %p269
    %s272 = sadd.s32 %s271, 1
    %p275 = scmp.eq.s32.totalorder %s17, 1
    %p276 = scmp.ne.s32.totalorder %s271, %s273
    %p277 = scmp.eq.s32.totalorder %s17, 0
    %p278 = por %p276, %p277
    %p279 = scmp.ne.s32.totalorder %s271, %s273
    %p280 = scmp.eq.s32.totalorder %s22, 1
    %p281 = por %p279, %p280
    %p282 = scmp.ne.s32.totalorder %s273, %s274
    %p283 = scmp.eq.s32.totalorder %s22, 0
    %p284 = por %p282, %p283
    %p285 = scmp.ne.s32.totalorder %s273, %s274
    %p286 = scmp.eq.s32.totalorder %s23, 1
    %p287 = por %p285, %p286
    %p289 = scmp.ne.s32.totalorder %s274, %s288
    %p290 = scmp.eq.s32.totalorder %s23, 0
    %p291 = por %p289, %p290
    %s292 = ssub.s32 %s24, %s36
    %s293 = ssub.s32 %s25, %s32
    %s294 = sor.u32 %s292, %s293
    %p295 = scmp.eq.s32.totalorder %s294, 0
    %s297 = sadd.s32 %s296, 1
    %s298 = scalar_select %p295, %s296, %s297
    %p301 = pneg %p295
    %p302 = scmp.eq.s32.totalorder %s17, 1
    %p303 = por %p301, %p302
    %p304 = scmp.ne.s32.totalorder %s296, %s299
    %p305 = scmp.eq.s32.totalorder %s17, 0
    %p306 = por %p304, %p305
    %p307 = scmp.ne.s32.totalorder %s296, %s299
    %p308 = scmp.eq.s32.totalorder %s22, 1
    %p309 = por %p307, %p308
    %p310 = scmp.ne.s32.totalorder %s299, %s300
    %p311 = scmp.eq.s32.totalorder %s22, 0
    %p312 = por %p310, %p311
    %p313 = scmp.ne.s32.totalorder %s299, %s300
    %p314 = scmp.eq.s32.totalorder %s23, 1
    %p315 = por %p313, %p314
    %p317 = scmp.ne.s32.totalorder %s300, %s316
    %p318 = scmp.eq.s32.totalorder %s23, 0
    %p319 = por %p317, %p318
    %p320 = scmp.le.s32.totalorder 1, %s17
    %p321 = scmp.lt.s32.totalorder %s17, 3
    %p322 = pnand %p320, %p321
    %p323 = pneg %p322
    // Predicated region
    $region9: #{_lambda_.9} parent=5 // pred_check
      _
    $region10: #{_lambda_.9} parent=5 // pred_check_branch
      %325 = sbr.rel (%p322) target = $region12
    $region11: #{_lambda_.9} parent=5 // pred_region
      %s326 = ssub.s32 %s17, 1
      // Predicated region
      $region13: #{_lambda_.9} parent=11 // pred_check
        %p327 = pneg %p158
      $region14: #{_lambda_.9} parent=11 // pred_check_branch
        %329 = sbr.rel (%p327) target = $region16
      $region15: #{_lambda_.9} parent=11 // pred_region
        _
      $region16: #{_lambda_.9} parent=11 // pred_fallthru
        _
      // Predicated region
      $region17: #{_lambda_.9} parent=11 // pred_check
        %p330 = pneg %p179
      $region18: #{_lambda_.9} parent=11 // pred_check_branch
        %332 = sbr.rel (%p330) target = $region20
      $region19: #{_lambda_.9} parent=11 // pred_region
        _
      $region20: #{_lambda_.9} parent=11 // pred_fallthru
        _
      // Predicated region
      $region21: #{_lambda_.9} parent=11 // pred_check
        %p333 = pneg %p200
      $region22: #{_lambda_.9} parent=11 // pred_check_branch
        %335 = sbr.rel (%p333) target = $region24
      $region23: #{_lambda_.9} parent=11 // pred_region
        _
      $region24: #{_lambda_.9} parent=11 // pred_fallthru
        _
      // Predicated region
      $region25: #{_lambda_.9} parent=11 // pred_check
        %p336 = pneg %p221
      $region26: #{_lambda_.9} parent=11 // pred_check_branch
        %338 = sbr.rel (%p336) target = $region28
      $region27: #{_lambda_.9} parent=11 // pred_region
        _
      $region28: #{_lambda_.9} parent=11 // pred_fallthru
        _
      // Predicated region
      $region29: #{_lambda_.9} parent=11 // pred_check
        %p339 = pneg %p242
      $region30: #{_lambda_.9} parent=11 // pred_check_branch
        %341 = sbr.rel (%p339) target = $region32
      $region31: #{_lambda_.9} parent=11 // pred_region
        _
      $region32: #{_lambda_.9} parent=11 // pred_fallthru
        _
      // Predicated region
      $region33: #{_lambda_.9} parent=11 // pred_check
        %p342 = pneg %p263
      $region34: #{_lambda_.9} parent=11 // pred_check_branch
        %344 = sbr.rel (%p342) target = $region36
      $region35: #{_lambda_.9} parent=11 // pred_region
        _
      $region36: #{_lambda_.9} parent=11 // pred_fallthru
        _
      // Predicated region
      $region37: #{_lambda_.9} parent=11 // pred_check
        %p345 = pneg %p284
      $region38: #{_lambda_.9} parent=11 // pred_check_branch
        %347 = sbr.rel (%p345) target = $region40
      $region39: #{_lambda_.9} parent=11 // pred_region
        _
      $region40: #{_lambda_.9} parent=11 // pred_fallthru
        _
    $region12: #{_lambda_.9} parent=5 // pred_fallthru
      _
    %p348 = scmp.lt.s32.totalorder %s17, 2
    // Predicated region
    $region41: #{_lambda_.9} parent=5 // pred_check
      %p349 = pneg %p348
    $region42: #{_lambda_.9} parent=5 // pred_check_branch
      %351 = sbr.rel (%p349) target = $region44
    $region43: #{_lambda_.9} parent=5 // pred_region
      // Predicated region
      $region45: #{_lambda_.9} parent=43 // pred_check
        %p352 = pneg %p49
      $region46: #{_lambda_.9} parent=43 // pred_check_branch
        %354 = sbr.rel (%p352) target = $region48
      $region47: #{_lambda_.9} parent=43 // pred_region
        %p355 = scmp.lt.s32.totalorder %s24, 1
        %s356 = scalar_select %p355, %s24, 1
        %s357 = smul.addr %s356, 2
        %s358 = smul.addr %s357, 4
        %s359 = scalar_lea.vmem %s0, %s358
      $region48: #{_lambda_.9} parent=43 // pred_fallthru
        _
      // Predicated region
      $region49: #{_lambda_.9} parent=43 // pred_check
        %p360 = pneg %p75
      $region50: #{_lambda_.9} parent=43 // pred_check_branch
        %362 = sbr.rel (%p360) target = $region52
      $region51: #{_lambda_.9} parent=43 // pred_region
        %p363 = scmp.lt.s32.totalorder %s24, 1
        %s364 = scalar_select %p363, %s24, 1
        %s365 = smul.addr %s364, 8
        %s366 = scalar_lea.vmem %s1, %s365
      $region52: #{_lambda_.9} parent=43 // pred_fallthru
        _
      // Predicated region
      $region53: #{_lambda_.9} parent=43 // pred_check
        %p367 = pneg %p103
      $region54: #{_lambda_.9} parent=43 // pred_check_branch
        %369 = sbr.rel (%p367) target = $region56
      $region55: #{_lambda_.9} parent=43 // pred_region
        %p370 = scmp.lt.s32.totalorder %s24, 1
        %s371 = scalar_select %p370, %s24, 1
        %p372 = scmp.lt.s32.totalorder %s25, 0
        %s373 = scalar_select %p372, %s25, 0
        %s374 = sadd.s32 %s373, %s371
        %s375 = scalar_lea.vmem %s2, %s374
      $region56: #{_lambda_.9} parent=43 // pred_fallthru
        _
      // Predicated region
      $region57: #{_lambda_.9} parent=43 // pred_check
        %p376 = pneg %p131
      $region58: #{_lambda_.9} parent=43 // pred_check_branch
        %378 = sbr.rel (%p376) target = $region60
      $region59: #{_lambda_.9} parent=43 // pred_region
        %p379 = scmp.lt.s32.totalorder %s24, 1
        %s380 = scalar_select %p379, %s24, 1
        %p381 = scmp.lt.s32.totalorder %s25, 0
        %s382 = scalar_select %p381, %s25, 0
        %s383 = sadd.s32 %s382, %s380
        %s384 = smul.addr %s383, 8
        %s385 = scalar_lea.vmem %s3, %s384
      $region60: #{_lambda_.9} parent=43 // pred_fallthru
        _
    $region44: #{_lambda_.9} parent=5 // pred_fallthru
      _
    %p386 = scmp.le.s32.totalorder 1, %s17
    %p387 = scmp.lt.s32.totalorder %s17, 3
    %p388 = pnand %p386, %p387
    %p389 = pneg %p388
    // Predicated region
    $region61: #{_lambda_.9} parent=5 // pred_check
      _
    $region62: #{_lambda_.9} parent=5 // pred_check_branch
      %391 = sbr.rel (%p388) target = $region64
    $region63: #{_lambda_.9} parent=5 // pred_region
      %s392 = ssub.s32 %s17, 1
      %p393 = scmp.lt.s32.totalorder %s26, 1
      %s394 = scalar_select %p393, %s26, 1
      %s395 = smul.addr %s394, 2
      %s396 = smul.addr %s395, 4
      %s397 = scalar_lea.vmem %s0, %s396
      %p398 = pneg %p55
      %p399 = pneg %p52
      %p400 = scmp.lt.s32.totalorder %s26, 1
      %s401 = scalar_select %p400, %s26, 1
      %s402 = smul.addr %s401, 8
      %s403 = scalar_lea.vmem %s1, %s402
      %p404 = pneg %p81
      %p405 = pneg %p78
      %p406 = scmp.lt.s32.totalorder %s26, 1
      %s407 = scalar_select %p406, %s26, 1
      %p408 = scmp.lt.s32.totalorder %s27, 0
      %s409 = scalar_select %p408, %s27, 0
      %s410 = sadd.s32 %s409, %s407
      %s411 = scalar_lea.vmem %s2, %s410
      %p412 = pneg %p109
      %p413 = pneg %p106
      %p414 = scmp.lt.s32.totalorder %s26, 1
      %s415 = scalar_select %p414, %s26, 1
      %p416 = scmp.lt.s32.totalorder %s27, 0
      %s417 = scalar_select %p416, %s27, 0
      %s418 = sadd.s32 %s417, %s415
      %s419 = smul.addr %s418, 8
      %s420 = scalar_lea.vmem %s3, %s419
      %p421 = pneg %p137
      %p422 = pneg %p134
      %p423 = pneg %p158
      %p424 = pneg %p155
      %p425 = pneg %p179
      %p426 = pneg %p176
      %p427 = pneg %p200
      %p428 = pneg %p197
      %p429 = pneg %p221
      %p430 = pneg %p218
      %p431 = pneg %p242
      %p432 = pneg %p239
      %p433 = pneg %p263
      %p434 = pneg %p260
      %p435 = pneg %p284
      %p436 = pneg %p281
      %p437 = pneg %p312
      %p438 = pneg %p309
      %p439 = scmp.lt.s32.totalorder %s26, 1
      %s440 = scalar_select %p439, %s26, 1
      %p441 = scmp.lt.s32.totalorder %s27, 0
      %s442 = scalar_select %p441, %s27, 0
      %s443 = smul.addr %s442, 8
      %s444 = smul.addr %s440, 8
      %s445 = sadd.s32 %s443, %s444
      %s446 = scalar_lea.vmem %s11, %s445
      %p447 = scmp.lt.s32.totalorder %s26, 1
      %s448 = scalar_select %p447, %s26, 1
      %s449 = smul.addr %s448, 2
      %s450 = smul.addr %s449, 4
      %s451 = scalar_lea.vmem %s0, %s450
      %p452 = scmp.lt.s32.totalorder %s26, 1
      %s453 = scalar_select %p452, %s26, 1
      %s454 = smul.addr %s453, 8
      %s455 = scalar_lea.vmem %s1, %s454
      %p456 = scmp.lt.s32.totalorder %s26, 1
      %s457 = scalar_select %p456, %s26, 1
      %p458 = scmp.lt.s32.totalorder %s27, 0
      %s459 = scalar_select %p458, %s27, 0
      %s460 = sadd.s32 %s459, %s457
      %s461 = scalar_lea.vmem %s2, %s460
      %p462 = scmp.lt.s32.totalorder %s26, 1
      %s463 = scalar_select %p462, %s26, 1
      %p464 = scmp.lt.s32.totalorder %s27, 0
      %s465 = scalar_select %p464, %s27, 0
      %s466 = sadd.s32 %s465, %s463
      %s467 = smul.addr %s466, 8
      %s468 = scalar_lea.vmem %s3, %s467
      %p469 = scmp.lt.s32.totalorder %s26, 1
      %s470 = scalar_select %p469, %s26, 1
      %p471 = scmp.lt.s32.totalorder %s27, 0
      %s472 = scalar_select %p471, %s27, 0
      %s473 = smul.addr %s472, 8
      %s474 = smul.addr %s470, 8
      %s475 = sadd.s32 %s473, %s474
      %s476 = scalar_lea.vmem %s11, %s475
      %v478 = vld [vmem:[%s451] sm:$0xff]
      %v479 = vld [vmem:[%s4] sm:$0xff]
      %v480 = vld [vmem:[%s4 + $0x8] sm:$0xff]
      %v481 = vld [vmem:[%s4 + $0x10] sm:$0xff]
      %v482 = vld [vmem:[%s4 + $0x18] sm:$0xff]
      %v483 = vld [vmem:[%s4 + $0x20] sm:$0xff]
      %v484 = vld [vmem:[%s4 + $0x28] sm:$0xff]
      %v485 = vld [vmem:[%s4 + $0x30] sm:$0xff]
      %v486 = vld [vmem:[%s4 + $0x38] sm:$0xff]
      %v487 = vld [vmem:[%s4 + $0x40] sm:$0xff]
      %v488 = vld [vmem:[%s4 + $0x48] sm:$0xff]
      %v489 = vld [vmem:[%s4 + $0x50] sm:$0xff]
      %v490 = vld [vmem:[%s4 + $0x58] sm:$0xff]
      %v491 = vld [vmem:[%s4 + $0x60] sm:$0xff]
      %v492 = vld [vmem:[%s4 + $0x68] sm:$0xff]
      %v493 = vld [vmem:[%s4 + $0x70] sm:$0xff]
      %v494 = vld [vmem:[%s4 + $0x78] sm:$0xff]
      %v495 = vld [vmem:[%s4 + $0x80] sm:$0xff]
      %v496 = vld [vmem:[%s4 + $0x88] sm:$0xff]
      %v497 = vld [vmem:[%s4 + $0x90] sm:$0xff]
      %v498 = vld [vmem:[%s4 + $0x98] sm:$0xff]
      %v499 = vld [vmem:[%s4 + $0xa0] sm:$0xff]
      %v500 = vld [vmem:[%s4 + $0xa8] sm:$0xff]
      %v501 = vld [vmem:[%s4 + $0xb0] sm:$0xff]
      %v502 = vld [vmem:[%s4 + $0xb8] sm:$0xff]
      %v503 = vld [vmem:[%s4 + $0xc0] sm:$0xff]
      %v504 = vld [vmem:[%s4 + $0xc8] sm:$0xff]
      %v505 = vld [vmem:[%s4 + $0xd0] sm:$0xff]
      %v506 = vld [vmem:[%s4 + $0xd8] sm:$0xff]
      %v507 = vld [vmem:[%s4 + $0xe0] sm:$0xff]
      %v508 = vld [vmem:[%s4 + $0xe8] sm:$0xff]
      %v509 = vld [vmem:[%s4 + $0xf0] sm:$0xff]
      %v510 = vld [vmem:[%s4 + $0xf8] sm:$0xff]
      %v512 = vunpack.c.l.b16 %v478
      %v513 = vunpack.c.h.b16 %v478
      %v514 = vpack.c.b16 %v512, %v512
      %v515 = vpack.c.b16 %v513, %v513
      %v550 = vunpack.c.l.b16 %v479
      %v551 = vunpack.c.h.b16 %v479
      %v552 = vunpack.c.l.b16 %v480
      %v553 = vunpack.c.h.b16 %v480
      %v554 = vunpack.c.l.b16 %v481
      %v555 = vunpack.c.h.b16 %v481
      %v556 = vunpack.c.l.b16 %v482
      %v557 = vunpack.c.h.b16 %v482
      %v558 = vunpack.c.l.b16 %v483
      %v559 = vunpack.c.h.b16 %v483
      %v560 = vunpack.c.l.b16 %v484
      %v561 = vunpack.c.h.b16 %v484
      %v562 = vunpack.c.l.b16 %v485
      %v563 = vunpack.c.h.b16 %v485
      %v564 = vunpack.c.l.b16 %v486
      %v565 = vunpack.c.h.b16 %v486
      %v566 = vunpack.c.l.b16 %v487
      %v567 = vunpack.c.h.b16 %v487
      %v568 = vunpack.c.l.b16 %v488
      %v569 = vunpack.c.h.b16 %v488
      %v570 = vunpack.c.l.b16 %v489
      %v571 = vunpack.c.h.b16 %v489
      %v572 = vunpack.c.l.b16 %v490
      %v573 = vunpack.c.h.b16 %v490
      %v574 = vunpack.c.l.b16 %v491
      %v575 = vunpack.c.h.b16 %v491
      %v576 = vunpack.c.l.b16 %v492
      %v577 = vunpack.c.h.b16 %v492
      %v578 = vunpack.c.l.b16 %v493
      %v579 = vunpack.c.h.b16 %v493
      %v580 = vunpack.c.l.b16 %v494
      %v581 = vunpack.c.h.b16 %v494
      %v582 = vunpack.c.l.b16 %v495
      %v583 = vunpack.c.h.b16 %v495
      %v584 = vunpack.c.l.b16 %v496
      %v585 = vunpack.c.h.b16 %v496
      %v586 = vunpack.c.l.b16 %v497
      %v587 = vunpack.c.h.b16 %v497
      %v588 = vunpack.c.l.b16 %v498
      %v589 = vunpack.c.h.b16 %v498
      %v590 = vunpack.c.l.b16 %v499
      %v591 = vunpack.c.h.b16 %v499
      %v592 = vunpack.c.l.b16 %v500
      %v593 = vunpack.c.h.b16 %v500
      %v594 = vunpack.c.l.b16 %v501
      %v595 = vunpack.c.h.b16 %v501
      %v596 = vunpack.c.l.b16 %v502
      %v597 = vunpack.c.h.b16 %v502
      %v598 = vunpack.c.l.b16 %v503
      %v599 = vunpack.c.h.b16 %v503
      %v600 = vunpack.c.l.b16 %v504
      %v601 = vunpack.c.h.b16 %v504
      %v602 = vunpack.c.l.b16 %v505
      %v603 = vunpack.c.h.b16 %v505
      %v604 = vunpack.c.l.b16 %v506
      %v605 = vunpack.c.h.b16 %v506
      %v606 = vunpack.c.l.b16 %v507
      %v607 = vunpack.c.h.b16 %v507
      %v608 = vunpack.c.l.b16 %v508
      %v609 = vunpack.c.h.b16 %v508
      %v610 = vunpack.c.l.b16 %v509
      %v611 = vunpack.c.h.b16 %v509
      %v612 = vunpack.c.l.b16 %v510
      %v613 = vunpack.c.h.b16 %v510
      %v614 = vpack.c.b16 %v552, %v550
      %v615 = vpack.c.b16 %v553, %v551
      %v616 = vpack.c.b16 %v556, %v554
      %v617 = vpack.c.b16 %v557, %v555
      %v618 = vpack.c.b16 %v560, %v558
      %v619 = vpack.c.b16 %v561, %v559
      %v620 = vpack.c.b16 %v564, %v562
      %v621 = vpack.c.b16 %v565, %v563
      %v622 = vpack.c.b16 %v568, %v566
      %v623 = vpack.c.b16 %v569, %v567
      %v624 = vpack.c.b16 %v572, %v570
      %v625 = vpack.c.b16 %v573, %v571
      %v626 = vpack.c.b16 %v576, %v574
      %v627 = vpack.c.b16 %v577, %v575
      %v628 = vpack.c.b16 %v580, %v578
      %v629 = vpack.c.b16 %v581, %v579
      %v630 = vpack.c.b16 %v584, %v582
      %v631 = vpack.c.b16 %v585, %v583
      %v632 = vpack.c.b16 %v588, %v586
      %v633 = vpack.c.b16 %v589, %v587
      %v634 = vpack.c.b16 %v592, %v590
      %v635 = vpack.c.b16 %v593, %v591
      %v636 = vpack.c.b16 %v596, %v594
      %v637 = vpack.c.b16 %v597, %v595
      %v638 = vpack.c.b16 %v600, %v598
      %v639 = vpack.c.b16 %v601, %v599
      %v640 = vpack.c.b16 %v604, %v602
      %v641 = vpack.c.b16 %v605, %v603
      %v642 = vpack.c.b16 %v608, %v606
      %v643 = vpack.c.b16 %v609, %v607
      %v644 = vpack.c.b16 %v612, %v610
      %v645 = vpack.c.b16 %v613, %v611
      %678 = vmatprep.subr.bf16.mxu0 %v629
      %679 = vmatpush1.bf16.msra.mxu0 %v628
      %680 = vmatprep.subr.bf16.mxu0 %v627
      %681 = vmatpush1.bf16.msra.mxu0 %v626
      %682 = vmatprep.subr.bf16.mxu0 %v625
      %683 = vmatpush1.bf16.msra.mxu0 %v624
      %684 = vmatprep.subr.bf16.mxu0 %v623
      %685 = vmatpush1.bf16.msra.mxu0 %v622
      %686 = vmatprep.subr.bf16.mxu0 %v621
      %687 = vmatpush1.bf16.msra.mxu0 %v620
      %688 = vmatprep.subr.bf16.mxu0 %v619
      %689 = vmatpush1.bf16.msra.mxu0 %v618
      %690 = vmatprep.subr.bf16.mxu0 %v617
      %691 = vmatpush1.bf16.msra.mxu0 %v616
      %692 = vmatprep.subr.bf16.mxu0 %v615
      %693 = vmatpush1.bf16.msra.mxu0 %v614
      %694 = vmatprep.subr.bf16.mxu0 %v645
      %695 = vmatpush2.bf16.msra.mxu0 %v644
      %696 = vmatprep.subr.bf16.mxu0 %v643
      %697 = vmatpush2.bf16.msra.mxu0 %v642
      %698 = vmatprep.subr.bf16.mxu0 %v641
      %699 = vmatpush2.bf16.msra.mxu0 %v640
      %700 = vmatprep.subr.bf16.mxu0 %v639
      %701 = vmatpush2.bf16.msra.mxu0 %v638
      %702 = vmatprep.subr.bf16.mxu0 %v637
      %703 = vmatpush2.bf16.msra.mxu0 %v636
      %704 = vmatprep.subr.bf16.mxu0 %v635
      %705 = vmatpush2.bf16.msra.mxu0 %v634
      %706 = vmatprep.subr.bf16.mxu0 %v633
      %707 = vmatpush2.bf16.msra.mxu0 %v632
      %708 = vmatprep.subr.bf16.mxu0 %v631
      %709 = vmatpush2.bf16.msra.mxu0 %v630
      %710 = vmatprep.mubr.bf16.mxu0 %v515
      %711 = vmatmul.mubr.bf16.gmra.mxu0 %v514
      %v712 = vpop.f32.mrf.mxu0
      %v713 = vadd.f32 0.0, %v712
      %v714 = vpop.f32.mrf.mxu0
      %v715 = vadd.f32 0.0, %v714
      %v716 = vpop.f32.mrf.mxu0
      %v717 = vpop.f32.mrf.mxu0
      %718 = vdwg.mxu0
      %v719 = vld [vmem:[%s455] sm:$0xff]
      %v720 = vld [vmem:[%s461] sm:$0x1]
      %v722 = vlaneseq
      %v723 = vshrl.u32 %v722, 7
      %v724 = vsub.s32 0, %v723
      %v725 = vrot.slane %v720, %v724
      %v727 = vsub.f32 %v719, %v725
      %v728 = vpack.c.bf16 %v727, %v727
      %v729 = vld [vmem:[%s5] sm:$0xff]
      %v731 = vunpack.c.l.b16 %v729
      %v732 = vunpack.c.h.b16 %v729
      %v733 = vpack.c.b16 %v731, %v731
      %v734 = vpack.c.b16 %v732, %v732
      %vm735 = vcmask 64512
      %v737 = vsel %vm735, %v728, 0
      %vm739 = vcmask 1043456
      %v741 = vsel %vm739, %v733, 0
      %v744 = vsel %vm739, %v734, 0
      %746 = vmatprep.subr.bf16.mxu0 0
      %747 = vmatpush1.bf16.msra.mxu0 0
      %748 = vmatprep.subr.bf16.mxu0 0
      %749 = vmatpush1.bf16.msra.mxu0 0
      %750 = vmatprep.subr.bf16.mxu0 0
      %751 = vmatpush1.bf16.msra.mxu0 0
      %752 = vmatprep.subr.bf16.mxu0 0
      %753 = vmatpush1.bf16.msra.mxu0 0
      %754 = vmatprep.subr.bf16.mxu0 0
      %755 = vmatpush1.bf16.msra.mxu0 0
      %756 = vmatprep.subr.bf16.mxu0 0
      %757 = vmatpush1.bf16.msra.mxu0 0
      %758 = vmatprep.subr.bf16.mxu0 0
      %759 = vmatpush1.bf16.msra.mxu0 0
      %760 = vmatprep.subr.bf16.mxu0 %v744
      %761 = vmatpush1.bf16.msra.mxu0 %v741
      %762 = vmatprep.subr.bf16.mxu0 0
      %763 = vmatpush2.bf16.msra.mxu0 0
      %764 = vmatprep.subr.bf16.mxu0 0
      %765 = vmatpush2.bf16.msra.mxu0 0
      %766 = vmatprep.subr.bf16.mxu0 0
      %767 = vmatpush2.bf16.msra.mxu0 0
      %768 = vmatprep.subr.bf16.mxu0 0
      %769 = vmatpush2.bf16.msra.mxu0 0
      %770 = vmatprep.subr.bf16.mxu0 0
      %771 = vmatpush2.bf16.msra.mxu0 0
      %772 = vmatprep.subr.bf16.mxu0 0
      %773 = vmatpush2.bf16.msra.mxu0 0
      %774 = vmatprep.subr.bf16.mxu0 0
      %775 = vmatpush2.bf16.msra.mxu0 0
      %776 = vmatprep.subr.bf16.mxu0 0
      %777 = vmatpush2.bf16.msra.mxu0 0
      %778 = vmatprep.mubr.bf16.mxu0 0
      %779 = vmatmul.mubr.bf16.gmra.mxu0 %v737
      %v780 = vpop.f32.mrf.mxu0
      %v781 = vadd.f32 0.0, %v780
      %v782 = vpop.f32.mrf.mxu0
      %v783 = vadd.f32 0.0, %v782
      %v784 = vpop.f32.mrf.mxu0
      %v785 = vpop.f32.mrf.mxu0
      %786 = vdwg.mxu0
      %v787 = vadd.f32 %v781, %v713
      %v788 = vadd.f32 %v783, %v715
      %v789 = vld [vmem:[%s6] sm:$0x3]
      %v791 = vlaneseq
      %v792 = vshrl.u32 %v791, 7
      %v793 = vsub.s32 0, %v792
      %v794 = vrot.slane %v789, %v793
      %v795 = vlaneseq
      %v796 = vshrl.u32 %v795, 7
      %v797 = vsub.s32 1, %v796
      %v798 = vrot.slane %v789, %v797
      %v801 = vadd.f32 %v787, %v794
      %v802 = vadd.f32 %v788, %v798
      %v803 = vmax.f32 %v801, 0.0
      %v804 = vmax.f32 %v802, 0.0
      %v805 = vpack.c.bf16 %v803, %v803
      %v806 = vpack.c.bf16 %v804, %v804
      %v807 = vld [vmem:[%s7] sm:$0xff]
      %v808 = vld [vmem:[%s7 + $0x8] sm:$0xff]
      %v809 = vld [vmem:[%s7 + $0x10] sm:$0xff]
      %v810 = vld [vmem:[%s7 + $0x18] sm:$0xff]
      %v811 = vld [vmem:[%s7 + $0x20] sm:$0xff]
      %v812 = vld [vmem:[%s7 + $0x28] sm:$0xff]
      %v813 = vld [vmem:[%s7 + $0x30] sm:$0xff]
      %v814 = vld [vmem:[%s7 + $0x38] sm:$0xff]
      %v815 = vld [vmem:[%s7 + $0x40] sm:$0xff]
      %v816 = vld [vmem:[%s7 + $0x48] sm:$0xff]
      %v817 = vld [vmem:[%s7 + $0x50] sm:$0xff]
      %v818 = vld [vmem:[%s7 + $0x58] sm:$0xff]
      %v819 = vld [vmem:[%s7 + $0x60] sm:$0xff]
      %v820 = vld [vmem:[%s7 + $0x68] sm:$0xff]
      %v821 = vld [vmem:[%s7 + $0x70] sm:$0xff]
      %v822 = vld [vmem:[%s7 + $0x78] sm:$0xff]
      %v823 = vld [vmem:[%s7 + $0x80] sm:$0xff]
      %v824 = vld [vmem:[%s7 + $0x88] sm:$0xff]
      %v825 = vld [vmem:[%s7 + $0x90] sm:$0xff]
      %v826 = vld [vmem:[%s7 + $0x98] sm:$0xff]
      %v827 = vld [vmem:[%s7 + $0xa0] sm:$0xff]
      %v828 = vld [vmem:[%s7 + $0xa8] sm:$0xff]
      %v829 = vld [vmem:[%s7 + $0xb0] sm:$0xff]
      %v830 = vld [vmem:[%s7 + $0xb8] sm:$0xff]
      %v831 = vld [vmem:[%s7 + $0xc0] sm:$0xff]
      %v832 = vld [vmem:[%s7 + $0xc8] sm:$0xff]
      %v833 = vld [vmem:[%s7 + $0xd0] sm:$0xff]
      %v834 = vld [vmem:[%s7 + $0xd8] sm:$0xff]
      %v835 = vld [vmem:[%s7 + $0xe0] sm:$0xff]
      %v836 = vld [vmem:[%s7 + $0xe8] sm:$0xff]
      %v837 = vld [vmem:[%s7 + $0xf0] sm:$0xff]
      %v838 = vld [vmem:[%s7 + $0xf8] sm:$0xff]
      %v839 = vld [vmem:[%s7 + $0x100] sm:$0xff]
      %v840 = vld [vmem:[%s7 + $0x108] sm:$0xff]
      %v841 = vld [vmem:[%s7 + $0x110] sm:$0xff]
      %v842 = vld [vmem:[%s7 + $0x118] sm:$0xff]
      %v843 = vld [vmem:[%s7 + $0x120] sm:$0xff]
      %v844 = vld [vmem:[%s7 + $0x128] sm:$0xff]
      %v845 = vld [vmem:[%s7 + $0x130] sm:$0xff]
      %v846 = vld [vmem:[%s7 + $0x138] sm:$0xff]
      %v847 = vld [vmem:[%s7 + $0x140] sm:$0xff]
      %v848 = vld [vmem:[%s7 + $0x148] sm:$0xff]
      %v849 = vld [vmem:[%s7 + $0x150] sm:$0xff]
      %v850 = vld [vmem:[%s7 + $0x158] sm:$0xff]
      %v851 = vld [vmem:[%s7 + $0x160] sm:$0xff]
      %v852 = vld [vmem:[%s7 + $0x168] sm:$0xff]
      %v853 = vld [vmem:[%s7 + $0x170] sm:$0xff]
      %v854 = vld [vmem:[%s7 + $0x178] sm:$0xff]
      %v855 = vld [vmem:[%s7 + $0x180] sm:$0xff]
      %v856 = vld [vmem:[%s7 + $0x188] sm:$0xff]
      %v857 = vld [vmem:[%s7 + $0x190] sm:$0xff]
      %v858 = vld [vmem:[%s7 + $0x198] sm:$0xff]
      %v859 = vld [vmem:[%s7 + $0x1a0] sm:$0xff]
      %v860 = vld [vmem:[%s7 + $0x1a8] sm:$0xff]
      %v861 = vld [vmem:[%s7 + $0x1b0] sm:$0xff]
      %v862 = vld [vmem:[%s7 + $0x1b8] sm:$0xff]
      %v863 = vld [vmem:[%s7 + $0x1c0] sm:$0xff]
      %v864 = vld [vmem:[%s7 + $0x1c8] sm:$0xff]
      %v865 = vld [vmem:[%s7 + $0x1d0] sm:$0xff]
      %v866 = vld [vmem:[%s7 + $0x1d8] sm:$0xff]
      %v867 = vld [vmem:[%s7 + $0x1e0] sm:$0xff]
      %v868 = vld [vmem:[%s7 + $0x1e8] sm:$0xff]
      %v869 = vld [vmem:[%s7 + $0x1f0] sm:$0xff]
      %v870 = vld [vmem:[%s7 + $0x1f8] sm:$0xff]
      %v871 = vld [vmem:[%s8] sm:$0xf]
      %v873 = vlaneseq
      %v874 = vshrl.u32 %v873, 7
      %v875 = vsub.s32 0, %v874
      %v876 = vrot.slane %v871, %v875
      %v877 = vlaneseq
      %v878 = vshrl.u32 %v877, 7
      %v879 = vsub.s32 1, %v878
      %v880 = vrot.slane %v871, %v879
      %v881 = vlaneseq
      %v882 = vshrl.u32 %v881, 7
      %v883 = vsub.s32 2, %v882
      %v884 = vrot.slane %v871, %v883
      %v885 = vlaneseq
      %v886 = vshrl.u32 %v885, 7
      %v887 = vsub.s32 3, %v886
      %v888 = vrot.slane %v871, %v887
      %v957 = vunpack.c.l.b16 %v807
      %v958 = vunpack.c.h.b16 %v807
      %v959 = vunpack.c.l.b16 %v808
      %v960 = vunpack.c.h.b16 %v808
      %v961 = vunpack.c.l.b16 %v809
      %v962 = vunpack.c.h.b16 %v809
      %v963 = vunpack.c.l.b16 %v810
      %v964 = vunpack.c.h.b16 %v810
      %v965 = vunpack.c.l.b16 %v811
      %v966 = vunpack.c.h.b16 %v811
      %v967 = vunpack.c.l.b16 %v812
      %v968 = vunpack.c.h.b16 %v812
      %v969 = vunpack.c.l.b16 %v813
      %v970 = vunpack.c.h.b16 %v813
      %v971 = vunpack.c.l.b16 %v814
      %v972 = vunpack.c.h.b16 %v814
      %v973 = vunpack.c.l.b16 %v815
      %v974 = vunpack.c.h.b16 %v815
      %v975 = vunpack.c.l.b16 %v816
      %v976 = vunpack.c.h.b16 %v816
      %v977 = vunpack.c.l.b16 %v817
      %v978 = vunpack.c.h.b16 %v817
      %v979 = vunpack.c.l.b16 %v818
      %v980 = vunpack.c.h.b16 %v818
      %v981 = vunpack.c.l.b16 %v819
      %v982 = vunpack.c.h.b16 %v819
      %v983 = vunpack.c.l.b16 %v820
      %v984 = vunpack.c.h.b16 %v820
      %v985 = vunpack.c.l.b16 %v821
      %v986 = vunpack.c.h.b16 %v821
      %v987 = vunpack.c.l.b16 %v822
      %v988 = vunpack.c.h.b16 %v822
      %v989 = vunpack.c.l.b16 %v823
      %v990 = vunpack.c.h.b16 %v823
      %v991 = vunpack.c.l.b16 %v824
      %v992 = vunpack.c.h.b16 %v824
      %v993 = vunpack.c.l.b16 %v825
      %v994 = vunpack.c.h.b16 %v825
      %v995 = vunpack.c.l.b16 %v826
      %v996 = vunpack.c.h.b16 %v826
      %v997 = vunpack.c.l.b16 %v827
      %v998 = vunpack.c.h.b16 %v827
      %v999 = vunpack.c.l.b16 %v828
      %v1000 = vunpack.c.h.b16 %v828
      %v1001 = vunpack.c.l.b16 %v829
      %v1002 = vunpack.c.h.b16 %v829
      %v1003 = vunpack.c.l.b16 %v830
      %v1004 = vunpack.c.h.b16 %v830
      %v1005 = vunpack.c.l.b16 %v831
      %v1006 = vunpack.c.h.b16 %v831
      %v1007 = vunpack.c.l.b16 %v832
      %v1008 = vunpack.c.h.b16 %v832
      %v1009 = vunpack.c.l.b16 %v833
      %v1010 = vunpack.c.h.b16 %v833
      %v1011 = vunpack.c.l.b16 %v834
      %v1012 = vunpack.c.h.b16 %v834
      %v1013 = vunpack.c.l.b16 %v835
      %v1014 = vunpack.c.h.b16 %v835
      %v1015 = vunpack.c.l.b16 %v836
      %v1016 = vunpack.c.h.b16 %v836
      %v1017 = vunpack.c.l.b16 %v837
      %v1018 = vunpack.c.h.b16 %v837
      %v1019 = vunpack.c.l.b16 %v838
      %v1020 = vunpack.c.h.b16 %v838
      %v1021 = vunpack.c.l.b16 %v839
      %v1022 = vunpack.c.h.b16 %v839
      %v1023 = vunpack.c.l.b16 %v840
      %v1024 = vunpack.c.h.b16 %v840
      %v1025 = vunpack.c.l.b16 %v841
      %v1026 = vunpack.c.h.b16 %v841
      %v1027 = vunpack.c.l.b16 %v842
      %v1028 = vunpack.c.h.b16 %v842
      %v1029 = vunpack.c.l.b16 %v843
      %v1030 = vunpack.c.h.b16 %v843
      %v1031 = vunpack.c.l.b16 %v844
      %v1032 = vunpack.c.h.b16 %v844
      %v1033 = vunpack.c.l.b16 %v845
      %v1034 = vunpack.c.h.b16 %v845
      %v1035 = vunpack.c.l.b16 %v846
      %v1036 = vunpack.c.h.b16 %v846
      %v1037 = vunpack.c.l.b16 %v847
      %v1038 = vunpack.c.h.b16 %v847
      %v1039 = vunpack.c.l.b16 %v848
      %v1040 = vunpack.c.h.b16 %v848
      %v1041 = vunpack.c.l.b16 %v849
      %v1042 = vunpack.c.h.b16 %v849
      %v1043 = vunpack.c.l.b16 %v850
      %v1044 = vunpack.c.h.b16 %v850
      %v1045 = vunpack.c.l.b16 %v851
      %v1046 = vunpack.c.h.b16 %v851
      %v1047 = vunpack.c.l.b16 %v852
      %v1048 = vunpack.c.h.b16 %v852
      %v1049 = vunpack.c.l.b16 %v853
      %v1050 = vunpack.c.h.b16 %v853
      %v1051 = vunpack.c.l.b16 %v854
      %v1052 = vunpack.c.h.b16 %v854
      %v1053 = vunpack.c.l.b16 %v855
      %v1054 = vunpack.c.h.b16 %v855
      %v1055 = vunpack.c.l.b16 %v856
      %v1056 = vunpack.c.h.b16 %v856
      %v1057 = vunpack.c.l.b16 %v857
      %v1058 = vunpack.c.h.b16 %v857
      %v1059 = vunpack.c.l.b16 %v858
      %v1060 = vunpack.c.h.b16 %v858
      %v1061 = vunpack.c.l.b16 %v859
      %v1062 = vunpack.c.h.b16 %v859
      %v1063 = vunpack.c.l.b16 %v860
      %v1064 = vunpack.c.h.b16 %v860
      %v1065 = vunpack.c.l.b16 %v861
      %v1066 = vunpack.c.h.b16 %v861
      %v1067 = vunpack.c.l.b16 %v862
      %v1068 = vunpack.c.h.b16 %v862
      %v1069 = vunpack.c.l.b16 %v863
      %v1070 = vunpack.c.h.b16 %v863
      %v1071 = vunpack.c.l.b16 %v864
      %v1072 = vunpack.c.h.b16 %v864
      %v1073 = vunpack.c.l.b16 %v865
      %v1074 = vunpack.c.h.b16 %v865
      %v1075 = vunpack.c.l.b16 %v866
      %v1076 = vunpack.c.h.b16 %v866
      %v1077 = vunpack.c.l.b16 %v867
      %v1078 = vunpack.c.h.b16 %v867
      %v1079 = vunpack.c.l.b16 %v868
      %v1080 = vunpack.c.h.b16 %v868
      %v1081 = vunpack.c.l.b16 %v869
      %v1082 = vunpack.c.h.b16 %v869
      %v1083 = vunpack.c.l.b16 %v870
      %v1084 = vunpack.c.h.b16 %v870
      %v1085 = vpack.c.b16 %v961, %v957
      %v1086 = vpack.c.b16 %v962, %v958
      %v1087 = vpack.c.b16 %v963, %v959
      %v1088 = vpack.c.b16 %v964, %v960
      %v1089 = vpack.c.b16 %v969, %v965
      %v1090 = vpack.c.b16 %v970, %v966
      %v1091 = vpack.c.b16 %v971, %v967
      %v1092 = vpack.c.b16 %v972, %v968
      %v1093 = vpack.c.b16 %v977, %v973
      %v1094 = vpack.c.b16 %v978, %v974
      %v1095 = vpack.c.b16 %v979, %v975
      %v1096 = vpack.c.b16 %v980, %v976
      %v1097 = vpack.c.b16 %v985, %v981
      %v1098 = vpack.c.b16 %v986, %v982
      %v1099 = vpack.c.b16 %v987, %v983
      %v1100 = vpack.c.b16 %v988, %v984
      %v1101 = vpack.c.b16 %v993, %v989
      %v1102 = vpack.c.b16 %v994, %v990
      %v1103 = vpack.c.b16 %v995, %v991
      %v1104 = vpack.c.b16 %v996, %v992
      %v1105 = vpack.c.b16 %v1001, %v997
      %v1106 = vpack.c.b16 %v1002, %v998
      %v1107 = vpack.c.b16 %v1003, %v999
      %v1108 = vpack.c.b16 %v1004, %v1000
      %v1109 = vpack.c.b16 %v1009, %v1005
      %v1110 = vpack.c.b16 %v1010, %v1006
      %v1111 = vpack.c.b16 %v1011, %v1007
      %v1112 = vpack.c.b16 %v1012, %v1008
      %v1113 = vpack.c.b16 %v1017, %v1013
      %v1114 = vpack.c.b16 %v1018, %v1014
      %v1115 = vpack.c.b16 %v1019, %v1015
      %v1116 = vpack.c.b16 %v1020, %v1016
      %v1117 = vpack.c.b16 %v1025, %v1021
      %v1118 = vpack.c.b16 %v1026, %v1022
      %v1119 = vpack.c.b16 %v1027, %v1023
      %v1120 = vpack.c.b16 %v1028, %v1024
      %v1121 = vpack.c.b16 %v1033, %v1029
      %v1122 = vpack.c.b16 %v1034, %v1030
      %v1123 = vpack.c.b16 %v1035, %v1031
      %v1124 = vpack.c.b16 %v1036, %v1032
      %v1125 = vpack.c.b16 %v1041, %v1037
      %v1126 = vpack.c.b16 %v1042, %v1038
      %v1127 = vpack.c.b16 %v1043, %v1039
      %v1128 = vpack.c.b16 %v1044, %v1040
      %v1129 = vpack.c.b16 %v1049, %v1045
      %v1130 = vpack.c.b16 %v1050, %v1046
      %v1131 = vpack.c.b16 %v1051, %v1047
      %v1132 = vpack.c.b16 %v1052, %v1048
      %v1133 = vpack.c.b16 %v1057, %v1053
      %v1134 = vpack.c.b16 %v1058, %v1054
      %v1135 = vpack.c.b16 %v1059, %v1055
      %v1136 = vpack.c.b16 %v1060, %v1056
      %v1137 = vpack.c.b16 %v1065, %v1061
      %v1138 = vpack.c.b16 %v1066, %v1062
      %v1139 = vpack.c.b16 %v1067, %v1063
      %v1140 = vpack.c.b16 %v1068, %v1064
      %v1141 = vpack.c.b16 %v1073, %v1069
      %v1142 = vpack.c.b16 %v1074, %v1070
      %v1143 = vpack.c.b16 %v1075, %v1071
      %v1144 = vpack.c.b16 %v1076, %v1072
      %v1145 = vpack.c.b16 %v1081, %v1077
      %v1146 = vpack.c.b16 %v1082, %v1078
      %v1147 = vpack.c.b16 %v1083, %v1079
      %v1148 = vpack.c.b16 %v1084, %v1080
      %1213 = vmatprep.subr.bf16.mxu0 %v1114
      %1214 = vmatpush1.bf16.msra.mxu0 %v1113
      %1215 = vmatprep.subr.bf16.mxu0 %v1110
      %1216 = vmatpush1.bf16.msra.mxu0 %v1109
      %1217 = vmatprep.subr.bf16.mxu0 %v1106
      %1218 = vmatpush1.bf16.msra.mxu0 %v1105
      %1219 = vmatprep.subr.bf16.mxu0 %v1102
      %1220 = vmatpush1.bf16.msra.mxu0 %v1101
      %1221 = vmatprep.subr.bf16.mxu0 %v1098
      %1222 = vmatpush1.bf16.msra.mxu0 %v1097
      %1223 = vmatprep.subr.bf16.mxu0 %v1094
      %1224 = vmatpush1.bf16.msra.mxu0 %v1093
      %1225 = vmatprep.subr.bf16.mxu0 %v1090
      %1226 = vmatpush1.bf16.msra.mxu0 %v1089
      %1227 = vmatprep.subr.bf16.mxu0 %v1086
      %1228 = vmatpush1.bf16.msra.mxu0 %v1085
      %1229 = vmatprep.subr.bf16.mxu0 %v1146
      %1230 = vmatpush2.bf16.msra.mxu0 %v1145
      %1231 = vmatprep.subr.bf16.mxu0 %v1142
      %1232 = vmatpush2.bf16.msra.mxu0 %v1141
      %1233 = vmatprep.subr.bf16.mxu0 %v1138
      %1234 = vmatpush2.bf16.msra.mxu0 %v1137
      %1235 = vmatprep.subr.bf16.mxu0 %v1134
      %1236 = vmatpush2.bf16.msra.mxu0 %v1133
      %1237 = vmatprep.subr.bf16.mxu0 %v1130
      %1238 = vmatpush2.bf16.msra.mxu0 %v1129
      %1239 = vmatprep.subr.bf16.mxu0 %v1126
      %1240 = vmatpush2.bf16.msra.mxu0 %v1125
      %1241 = vmatprep.subr.bf16.mxu0 %v1122
      %1242 = vmatpush2.bf16.msra.mxu0 %v1121
      %1243 = vmatprep.subr.bf16.mxu0 %v1118
      %1244 = vmatpush2.bf16.msra.mxu0 %v1117
      %1245 = vmatprep.mubr.bf16.mxu0 %v806
      %1246 = vmatmul.mubr.bf16.gmra.mxu0 %v805
      %v1247 = vpop.f32.mrf.mxu0
      %v1248 = vadd.f32 %v876, %v1247
      %v1249 = vpop.f32.mrf.mxu0
      %v1250 = vadd.f32 %v880, %v1249
      %v1251 = vpop.f32.mrf.mxu0
      %v1252 = vpop.f32.mrf.mxu0
      %1253 = vdwg.mxu0
      %1254 = vmatprep.subr.bf16.mxu0 %v1116
      %1255 = vmatpush1.bf16.msra.mxu0 %v1115
      %1256 = vmatprep.subr.bf16.mxu0 %v1112
      %1257 = vmatpush1.bf16.msra.mxu0 %v1111
      %1258 = vmatprep.subr.bf16.mxu0 %v1108
      %1259 = vmatpush1.bf16.msra.mxu0 %v1107
      %1260 = vmatprep.subr.bf16.mxu0 %v1104
      %1261 = vmatpush1.bf16.msra.mxu0 %v1103
      %1262 = vmatprep.subr.bf16.mxu0 %v1100
      %1263 = vmatpush1.bf16.msra.mxu0 %v1099
      %1264 = vmatprep.subr.bf16.mxu0 %v1096
      %1265 = vmatpush1.bf16.msra.mxu0 %v1095
      %1266 = vmatprep.subr.bf16.mxu0 %v1092
      %1267 = vmatpush1.bf16.msra.mxu0 %v1091
      %1268 = vmatprep.subr.bf16.mxu0 %v1088
      %1269 = vmatpush1.bf16.msra.mxu0 %v1087
      %1270 = vmatprep.subr.bf16.mxu0 %v1148
      %1271 = vmatpush2.bf16.msra.mxu0 %v1147
      %1272 = vmatprep.subr.bf16.mxu0 %v1144
      %1273 = vmatpush2.bf16.msra.mxu0 %v1143
      %1274 = vmatprep.subr.bf16.mxu0 %v1140
      %1275 = vmatpush2.bf16.msra.mxu0 %v1139
      %1276 = vmatprep.subr.bf16.mxu0 %v1136
      %1277 = vmatpush2.bf16.msra.mxu0 %v1135
      %1278 = vmatprep.subr.bf16.mxu0 %v1132
      %1279 = vmatpush2.bf16.msra.mxu0 %v1131
      %1280 = vmatprep.subr.bf16.mxu0 %v1128
      %1281 = vmatpush2.bf16.msra.mxu0 %v1127
      %1282 = vmatprep.subr.bf16.mxu0 %v1124
      %1283 = vmatpush2.bf16.msra.mxu0 %v1123
      %1284 = vmatprep.subr.bf16.mxu0 %v1120
      %1285 = vmatpush2.bf16.msra.mxu0 %v1119
      %1286 = vmatprep.mubr.bf16.mxu0 %v806
      %1287 = vmatmul.mubr.bf16.gmra.mxu0 %v805
      %v1288 = vpop.f32.mrf.mxu0
      %v1289 = vadd.f32 %v884, %v1288
      %v1290 = vpop.f32.mrf.mxu0
      %v1291 = vadd.f32 %v888, %v1290
      %v1292 = vpop.f32.mrf.mxu0
      %v1293 = vpop.f32.mrf.mxu0
      %1294 = vdwg.mxu0
      %v1295 = vmax.f32 %v1248, 0.0
      %v1296 = vmax.f32 %v1250, 0.0
      %v1297 = vmax.f32 %v1289, 0.0
      %v1298 = vmax.f32 %v1291, 0.0
      %v1299 = vpack.c.bf16 %v1295, %v1295
      %v1300 = vpack.c.bf16 %v1296, %v1296
      %v1301 = vpack.c.bf16 %v1297, %v1297
      %v1302 = vpack.c.bf16 %v1298, %v1298
      %v1303 = vld [vmem:[%s9] sm:$0xff]
      %v1304 = vld [vmem:[%s9 + $0x8] sm:$0xff]
      %v1305 = vld [vmem:[%s9 + $0x10] sm:$0xff]
      %v1306 = vld [vmem:[%s9 + $0x18] sm:$0xff]
      %v1307 = vld [vmem:[%s9 + $0x20] sm:$0xff]
      %v1308 = vld [vmem:[%s9 + $0x28] sm:$0xff]
      %v1309 = vld [vmem:[%s9 + $0x30] sm:$0xff]
      %v1310 = vld [vmem:[%s9 + $0x38] sm:$0xff]
      %v1311 = vld [vmem:[%s9 + $0x40] sm:$0xff]
      %v1312 = vld [vmem:[%s9 + $0x48] sm:$0xff]
      %v1313 = vld [vmem:[%s9 + $0x50] sm:$0xff]
      %v1314 = vld [vmem:[%s9 + $0x58] sm:$0xff]
      %v1315 = vld [vmem:[%s9 + $0x60] sm:$0xff]
      %v1316 = vld [vmem:[%s9 + $0x68] sm:$0xff]
      %v1317 = vld [vmem:[%s9 + $0x70] sm:$0xff]
      %v1318 = vld [vmem:[%s9 + $0x78] sm:$0xff]
      %v1319 = vld [vmem:[%s9 + $0x80] sm:$0xff]
      %v1320 = vld [vmem:[%s9 + $0x88] sm:$0xff]
      %v1321 = vld [vmem:[%s9 + $0x90] sm:$0xff]
      %v1322 = vld [vmem:[%s9 + $0x98] sm:$0xff]
      %v1323 = vld [vmem:[%s9 + $0xa0] sm:$0xff]
      %v1324 = vld [vmem:[%s9 + $0xa8] sm:$0xff]
      %v1325 = vld [vmem:[%s9 + $0xb0] sm:$0xff]
      %v1326 = vld [vmem:[%s9 + $0xb8] sm:$0xff]
      %v1327 = vld [vmem:[%s9 + $0xc0] sm:$0xff]
      %v1328 = vld [vmem:[%s9 + $0xc8] sm:$0xff]
      %v1329 = vld [vmem:[%s9 + $0xd0] sm:$0xff]
      %v1330 = vld [vmem:[%s9 + $0xd8] sm:$0xff]
      %v1331 = vld [vmem:[%s9 + $0xe0] sm:$0xff]
      %v1332 = vld [vmem:[%s9 + $0xe8] sm:$0xff]
      %v1333 = vld [vmem:[%s9 + $0xf0] sm:$0xff]
      %v1334 = vld [vmem:[%s9 + $0xf8] sm:$0xff]
      %v1335 = vld [vmem:[%s9 + $0x100] sm:$0xff]
      %v1336 = vld [vmem:[%s9 + $0x108] sm:$0xff]
      %v1337 = vld [vmem:[%s9 + $0x110] sm:$0xff]
      %v1338 = vld [vmem:[%s9 + $0x118] sm:$0xff]
      %v1339 = vld [vmem:[%s9 + $0x120] sm:$0xff]
      %v1340 = vld [vmem:[%s9 + $0x128] sm:$0xff]
      %v1341 = vld [vmem:[%s9 + $0x130] sm:$0xff]
      %v1342 = vld [vmem:[%s9 + $0x138] sm:$0xff]
      %v1343 = vld [vmem:[%s9 + $0x140] sm:$0xff]
      %v1344 = vld [vmem:[%s9 + $0x148] sm:$0xff]
      %v1345 = vld [vmem:[%s9 + $0x150] sm:$0xff]
      %v1346 = vld [vmem:[%s9 + $0x158] sm:$0xff]
      %v1347 = vld [vmem:[%s9 + $0x160] sm:$0xff]
      %v1348 = vld [vmem:[%s9 + $0x168] sm:$0xff]
      %v1349 = vld [vmem:[%s9 + $0x170] sm:$0xff]
      %v1350 = vld [vmem:[%s9 + $0x178] sm:$0xff]
      %v1351 = vld [vmem:[%s9 + $0x180] sm:$0xff]
      %v1352 = vld [vmem:[%s9 + $0x188] sm:$0xff]
      %v1353 = vld [vmem:[%s9 + $0x190] sm:$0xff]
      %v1354 = vld [vmem:[%s9 + $0x198] sm:$0xff]
      %v1355 = vld [vmem:[%s9 + $0x1a0] sm:$0xff]
      %v1356 = vld [vmem:[%s9 + $0x1a8] sm:$0xff]
      %v1357 = vld [vmem:[%s9 + $0x1b0] sm:$0xff]
      %v1358 = vld [vmem:[%s9 + $0x1b8] sm:$0xff]
      %v1359 = vld [vmem:[%s9 + $0x1c0] sm:$0xff]
      %v1360 = vld [vmem:[%s9 + $0x1c8] sm:$0xff]
      %v1361 = vld [vmem:[%s9 + $0x1d0] sm:$0xff]
      %v1362 = vld [vmem:[%s9 + $0x1d8] sm:$0xff]
      %v1363 = vld [vmem:[%s9 + $0x1e0] sm:$0xff]
      %v1364 = vld [vmem:[%s9 + $0x1e8] sm:$0xff]
      %v1365 = vld [vmem:[%s9 + $0x1f0] sm:$0xff]
      %v1366 = vld [vmem:[%s9 + $0x1f8] sm:$0xff]
      %v1367 = vld [vmem:[%s9 + $0x200] sm:$0xff]
      %v1368 = vld [vmem:[%s9 + $0x208] sm:$0xff]
      %v1369 = vld [vmem:[%s9 + $0x210] sm:$0xff]
      %v1370 = vld [vmem:[%s9 + $0x218] sm:$0xff]
      %v1371 = vld [vmem:[%s9 + $0x220] sm:$0xff]
      %v1372 = vld [vmem:[%s9 + $0x228] sm:$0xff]
      %v1373 = vld [vmem:[%s9 + $0x230] sm:$0xff]
      %v1374 = vld [vmem:[%s9 + $0x238] sm:$0xff]
      %v1375 = vld [vmem:[%s9 + $0x240] sm:$0xff]
      %v1376 = vld [vmem:[%s9 + $0x248] sm:$0xff]
      %v1377 = vld [vmem:[%s9 + $0x250] sm:$0xff]
      %v1378 = vld [vmem:[%s9 + $0x258] sm:$0xff]
      %v1379 = vld [vmem:[%s9 + $0x260] sm:$0xff]
      %v1380 = vld [vmem:[%s9 + $0x268] sm:$0xff]
      %v1381 = vld [vmem:[%s9 + $0x270] sm:$0xff]
      %v1382 = vld [vmem:[%s9 + $0x278] sm:$0xff]
      %v1383 = vld [vmem:[%s9 + $0x280] sm:$0xff]
      %v1384 = vld [vmem:[%s9 + $0x288] sm:$0xff]
      %v1385 = vld [vmem:[%s9 + $0x290] sm:$0xff]
      %v1386 = vld [vmem:[%s9 + $0x298] sm:$0xff]
      %v1387 = vld [vmem:[%s9 + $0x2a0] sm:$0xff]
      %v1388 = vld [vmem:[%s9 + $0x2a8] sm:$0xff]
      %v1389 = vld [vmem:[%s9 + $0x2b0] sm:$0xff]
      %v1390 = vld [vmem:[%s9 + $0x2b8] sm:$0xff]
      %v1391 = vld [vmem:[%s9 + $0x2c0] sm:$0xff]
      %v1392 = vld [vmem:[%s9 + $0x2c8] sm:$0xff]
      %v1393 = vld [vmem:[%s9 + $0x2d0] sm:$0xff]
      %v1394 = vld [vmem:[%s9 + $0x2d8] sm:$0xff]
      %v1395 = vld [vmem:[%s9 + $0x2e0] sm:$0xff]
      %v1396 = vld [vmem:[%s9 + $0x2e8] sm:$0xff]
      %v1397 = vld [vmem:[%s9 + $0x2f0] sm:$0xff]
      %v1398 = vld [vmem:[%s9 + $0x2f8] sm:$0xff]
      %v1399 = vld [vmem:[%s9 + $0x300] sm:$0xff]
      %v1400 = vld [vmem:[%s9 + $0x308] sm:$0xff]
      %v1401 = vld [vmem:[%s9 + $0x310] sm:$0xff]
      %v1402 = vld [vmem:[%s9 + $0x318] sm:$0xff]
      %v1403 = vld [vmem:[%s9 + $0x320] sm:$0xff]
      %v1404 = vld [vmem:[%s9 + $0x328] sm:$0xff]
      %v1405 = vld [vmem:[%s9 + $0x330] sm:$0xff]
      %v1406 = vld [vmem:[%s9 + $0x338] sm:$0xff]
      %v1407 = vld [vmem:[%s9 + $0x340] sm:$0xff]
      %v1408 = vld [vmem:[%s9 + $0x348] sm:$0xff]
      %v1409 = vld [vmem:[%s9 + $0x350] sm:$0xff]
      %v1410 = vld [vmem:[%s9 + $0x358] sm:$0xff]
      %v1411 = vld [vmem:[%s9 + $0x360] sm:$0xff]
      %v1412 = vld [vmem:[%s9 + $0x368] sm:$0xff]
      %v1413 = vld [vmem:[%s9 + $0x370] sm:$0xff]
      %v1414 = vld [vmem:[%s9 + $0x378] sm:$0xff]
      %v1415 = vld [vmem:[%s9 + $0x380] sm:$0xff]
      %v1416 = vld [vmem:[%s9 + $0x388] sm:$0xff]
      %v1417 = vld [vmem:[%s9 + $0x390] sm:$0xff]
      %v1418 = vld [vmem:[%s9 + $0x398] sm:$0xff]
      %v1419 = vld [vmem:[%s9 + $0x3a0] sm:$0xff]
      %v1420 = vld [vmem:[%s9 + $0x3a8] sm:$0xff]
      %v1421 = vld [vmem:[%s9 + $0x3b0] sm:$0xff]
      %v1422 = vld [vmem:[%s9 + $0x3b8] sm:$0xff]
      %v1423 = vld [vmem:[%s9 + $0x3c0] sm:$0xff]
      %v1424 = vld [vmem:[%s9 + $0x3c8] sm:$0xff]
      %v1425 = vld [vmem:[%s9 + $0x3d0] sm:$0xff]
      %v1426 = vld [vmem:[%s9 + $0x3d8] sm:$0xff]
      %v1427 = vld [vmem:[%s9 + $0x3e0] sm:$0xff]
      %v1428 = vld [vmem:[%s9 + $0x3e8] sm:$0xff]
      %v1429 = vld [vmem:[%s9 + $0x3f0] sm:$0xff]
      %v1430 = vld [vmem:[%s9 + $0x3f8] sm:$0xff]
      %v1431 = vld [vmem:[%s9 + $0x400] sm:$0xff]
      %v1432 = vld [vmem:[%s9 + $0x408] sm:$0xff]
      %v1433 = vld [vmem:[%s9 + $0x410] sm:$0xff]
      %v1434 = vld [vmem:[%s9 + $0x418] sm:$0xff]
      %v1435 = vld [vmem:[%s9 + $0x420] sm:$0xff]
      %v1436 = vld [vmem:[%s9 + $0x428] sm:$0xff]
      %v1437 = vld [vmem:[%s9 + $0x430] sm:$0xff]
      %v1438 = vld [vmem:[%s9 + $0x438] sm:$0xff]
      %v1439 = vld [vmem:[%s9 + $0x440] sm:$0xff]
      %v1440 = vld [vmem:[%s9 + $0x448] sm:$0xff]
      %v1441 = vld [vmem:[%s9 + $0x450] sm:$0xff]
      %v1442 = vld [vmem:[%s9 + $0x458] sm:$0xff]
      %v1443 = vld [vmem:[%s9 + $0x460] sm:$0xff]
      %v1444 = vld [vmem:[%s9 + $0x468] sm:$0xff]
      %v1445 = vld [vmem:[%s9 + $0x470] sm:$0xff]
      %v1446 = vld [vmem:[%s9 + $0x478] sm:$0xff]
      %v1447 = vld [vmem:[%s9 + $0x480] sm:$0xff]
      %v1448 = vld [vmem:[%s9 + $0x488] sm:$0xff]
      %v1449 = vld [vmem:[%s9 + $0x490] sm:$0xff]
      %v1450 = vld [vmem:[%s9 + $0x498] sm:$0xff]
      %v1451 = vld [vmem:[%s9 + $0x4a0] sm:$0xff]
      %v1452 = vld [vmem:[%s9 + $0x4a8] sm:$0xff]
      %v1453 = vld [vmem:[%s9 + $0x4b0] sm:$0xff]
      %v1454 = vld [vmem:[%s9 + $0x4b8] sm:$0xff]
      %v1455 = vld [vmem:[%s9 + $0x4c0] sm:$0xff]
      %v1456 = vld [vmem:[%s9 + $0x4c8] sm:$0xff]
      %v1457 = vld [vmem:[%s9 + $0x4d0] sm:$0xff]
      %v1458 = vld [vmem:[%s9 + $0x4d8] sm:$0xff]
      %v1459 = vld [vmem:[%s9 + $0x4e0] sm:$0xff]
      %v1460 = vld [vmem:[%s9 + $0x4e8] sm:$0xff]
      %v1461 = vld [vmem:[%s9 + $0x4f0] sm:$0xff]
      %v1462 = vld [vmem:[%s9 + $0x4f8] sm:$0xff]
      %v1463 = vld [vmem:[%s9 + $0x500] sm:$0xff]
      %v1464 = vld [vmem:[%s9 + $0x508] sm:$0xff]
      %v1465 = vld [vmem:[%s9 + $0x510] sm:$0xff]
      %v1466 = vld [vmem:[%s9 + $0x518] sm:$0xff]
      %v1467 = vld [vmem:[%s9 + $0x520] sm:$0xff]
      %v1468 = vld [vmem:[%s9 + $0x528] sm:$0xff]
      %v1469 = vld [vmem:[%s9 + $0x530] sm:$0xff]
      %v1470 = vld [vmem:[%s9 + $0x538] sm:$0xff]
      %v1471 = vld [vmem:[%s9 + $0x540] sm:$0xff]
      %v1472 = vld [vmem:[%s9 + $0x548] sm:$0xff]
      %v1473 = vld [vmem:[%s9 + $0x550] sm:$0xff]
      %v1474 = vld [vmem:[%s9 + $0x558] sm:$0xff]
      %v1475 = vld [vmem:[%s9 + $0x560] sm:$0xff]
      %v1476 = vld [vmem:[%s9 + $0x568] sm:$0xff]
      %v1477 = vld [vmem:[%s9 + $0x570] sm:$0xff]
      %v1478 = vld [vmem:[%s9 + $0x578] sm:$0xff]
      %v1479 = vld [vmem:[%s9 + $0x580] sm:$0xff]
      %v1480 = vld [vmem:[%s9 + $0x588] sm:$0xff]
      %v1481 = vld [vmem:[%s9 + $0x590] sm:$0xff]
      %v1482 = vld [vmem:[%s9 + $0x598] sm:$0xff]
      %v1483 = vld [vmem:[%s9 + $0x5a0] sm:$0xff]
      %v1484 = vld [vmem:[%s9 + $0x5a8] sm:$0xff]
      %v1485 = vld [vmem:[%s9 + $0x5b0] sm:$0xff]
      %v1486 = vld [vmem:[%s9 + $0x5b8] sm:$0xff]
      %v1487 = vld [vmem:[%s9 + $0x5c0] sm:$0xff]
      %v1488 = vld [vmem:[%s9 + $0x5c8] sm:$0xff]
      %v1489 = vld [vmem:[%s9 + $0x5d0] sm:$0xff]
      %v1490 = vld [vmem:[%s9 + $0x5d8] sm:$0xff]
      %v1491 = vld [vmem:[%s9 + $0x5e0] sm:$0xff]
      %v1492 = vld [vmem:[%s9 + $0x5e8] sm:$0xff]
      %v1493 = vld [vmem:[%s9 + $0x5f0] sm:$0xff]
      %v1494 = vld [vmem:[%s9 + $0x5f8] sm:$0xff]
      %v1495 = vld [vmem:[%s9 + $0x600] sm:$0xff]
      %v1496 = vld [vmem:[%s9 + $0x608] sm:$0xff]
      %v1497 = vld [vmem:[%s9 + $0x610] sm:$0xff]
      %v1498 = vld [vmem:[%s9 + $0x618] sm:$0xff]
      %v1499 = vld [vmem:[%s9 + $0x620] sm:$0xff]
      %v1500 = vld [vmem:[%s9 + $0x628] sm:$0xff]
      %v1501 = vld [vmem:[%s9 + $0x630] sm:$0xff]
      %v1502 = vld [vmem:[%s9 + $0x638] sm:$0xff]
      %v1503 = vld [vmem:[%s9 + $0x640] sm:$0xff]
      %v1504 = vld [vmem:[%s9 + $0x648] sm:$0xff]
      %v1505 = vld [vmem:[%s9 + $0x650] sm:$0xff]
      %v1506 = vld [vmem:[%s9 + $0x658] sm:$0xff]
      %v1507 = vld [vmem:[%s9 + $0x660] sm:$0xff]
      %v1508 = vld [vmem:[%s9 + $0x668] sm:$0xff]
      %v1509 = vld [vmem:[%s9 + $0x670] sm:$0xff]
      %v1510 = vld [vmem:[%s9 + $0x678] sm:$0xff]
      %v1511 = vld [vmem:[%s9 + $0x680] sm:$0xff]
      %v1512 = vld [vmem:[%s9 + $0x688] sm:$0xff]
      %v1513 = vld [vmem:[%s9 + $0x690] sm:$0xff]
      %v1514 = vld [vmem:[%s9 + $0x698] sm:$0xff]
      %v1515 = vld [vmem:[%s9 + $0x6a0] sm:$0xff]
      %v1516 = vld [vmem:[%s9 + $0x6a8] sm:$0xff]
      %v1517 = vld [vmem:[%s9 + $0x6b0] sm:$0xff]
      %v1518 = vld [vmem:[%s9 + $0x6b8] sm:$0xff]
      %v1519 = vld [vmem:[%s9 + $0x6c0] sm:$0xff]
      %v1520 = vld [vmem:[%s9 + $0x6c8] sm:$0xff]
      %v1521 = vld [vmem:[%s9 + $0x6d0] sm:$0xff]
      %v1522 = vld [vmem:[%s9 + $0x6d8] sm:$0xff]
      %v1523 = vld [vmem:[%s9 + $0x6e0] sm:$0xff]
      %v1524 = vld [vmem:[%s9 + $0x6e8] sm:$0xff]
      %v1525 = vld [vmem:[%s9 + $0x6f0] sm:$0xff]
      %v1526 = vld [vmem:[%s9 + $0x6f8] sm:$0xff]
      %v1527 = vld [vmem:[%s9 + $0x700] sm:$0xff]
      %v1528 = vld [vmem:[%s9 + $0x708] sm:$0xff]
      %v1529 = vld [vmem:[%s9 + $0x710] sm:$0xff]
      %v1530 = vld [vmem:[%s9 + $0x718] sm:$0xff]
      %v1531 = vld [vmem:[%s9 + $0x720] sm:$0xff]
      %v1532 = vld [vmem:[%s9 + $0x728] sm:$0xff]
      %v1533 = vld [vmem:[%s9 + $0x730] sm:$0xff]
      %v1534 = vld [vmem:[%s9 + $0x738] sm:$0xff]
      %v1535 = vld [vmem:[%s9 + $0x740] sm:$0xff]
      %v1536 = vld [vmem:[%s9 + $0x748] sm:$0xff]
      %v1537 = vld [vmem:[%s9 + $0x750] sm:$0xff]
      %v1538 = vld [vmem:[%s9 + $0x758] sm:$0xff]
      %v1539 = vld [vmem:[%s9 + $0x760] sm:$0xff]
      %v1540 = vld [vmem:[%s9 + $0x768] sm:$0xff]
      %v1541 = vld [vmem:[%s9 + $0x770] sm:$0xff]
      %v1542 = vld [vmem:[%s9 + $0x778] sm:$0xff]
      %v1543 = vld [vmem:[%s9 + $0x780] sm:$0xff]
      %v1544 = vld [vmem:[%s9 + $0x788] sm:$0xff]
      %v1545 = vld [vmem:[%s9 + $0x790] sm:$0xff]
      %v1546 = vld [vmem:[%s9 + $0x798] sm:$0xff]
      %v1547 = vld [vmem:[%s9 + $0x7a0] sm:$0xff]
      %v1548 = vld [vmem:[%s9 + $0x7a8] sm:$0xff]
      %v1549 = vld [vmem:[%s9 + $0x7b0] sm:$0xff]
      %v1550 = vld [vmem:[%s9 + $0x7b8] sm:$0xff]
      %v1551 = vld [vmem:[%s9 + $0x7c0] sm:$0xff]
      %v1552 = vld [vmem:[%s9 + $0x7c8] sm:$0xff]
      %v1553 = vld [vmem:[%s9 + $0x7d0] sm:$0xff]
      %v1554 = vld [vmem:[%s9 + $0x7d8] sm:$0xff]
      %v1555 = vld [vmem:[%s9 + $0x7e0] sm:$0xff]
      %v1556 = vld [vmem:[%s9 + $0x7e8] sm:$0xff]
      %v1557 = vld [vmem:[%s9 + $0x7f0] sm:$0xff]
      %v1558 = vld [vmem:[%s9 + $0x7f8] sm:$0xff]
      %v1559 = vld [vmem:[%s10] sm:$0xff]
      %v1561 = vlaneseq
      %v1562 = vshrl.u32 %v1561, 7
      %v1563 = vsub.s32 0, %v1562
      %v1564 = vrot.slane %v1559, %v1563
      %v1565 = vlaneseq
      %v1566 = vshrl.u32 %v1565, 7
      %v1567 = vsub.s32 1, %v1566
      %v1568 = vrot.slane %v1559, %v1567
      %v1569 = vlaneseq
      %v1570 = vshrl.u32 %v1569, 7
      %v1571 = vsub.s32 2, %v1570
      %v1572 = vrot.slane %v1559, %v1571
      %v1573 = vlaneseq
      %v1574 = vshrl.u32 %v1573, 7
      %v1575 = vsub.s32 3, %v1574
      %v1576 = vrot.slane %v1559, %v1575
      %v1577 = vlaneseq
      %v1578 = vshrl.u32 %v1577, 7
      %v1579 = vsub.s32 4, %v1578
      %v1580 = vrot.slane %v1559, %v1579
      %v1581 = vlaneseq
      %v1582 = vshrl.u32 %v1581, 7
      %v1583 = vsub.s32 5, %v1582
      %v1584 = vrot.slane %v1559, %v1583
      %v1585 = vlaneseq
      %v1586 = vshrl.u32 %v1585, 7
      %v1587 = vsub.s32 6, %v1586
      %v1588 = vrot.slane %v1559, %v1587
      %v1589 = vlaneseq
      %v1590 = vshrl.u32 %v1589, 7
      %v1591 = vsub.s32 7, %v1590
      %v1592 = vrot.slane %v1559, %v1591
      %v1857 = vunpack.c.l.b16 %v1303
      %v1858 = vunpack.c.h.b16 %v1303
      %v1859 = vunpack.c.l.b16 %v1304
      %v1860 = vunpack.c.h.b16 %v1304
      %v1861 = vunpack.c.l.b16 %v1305
      %v1862 = vunpack.c.h.b16 %v1305
      %v1863 = vunpack.c.l.b16 %v1306
      %v1864 = vunpack.c.h.b16 %v1306
      %v1865 = vunpack.c.l.b16 %v1307
      %v1866 = vunpack.c.h.b16 %v1307
      %v1867 = vunpack.c.l.b16 %v1308
      %v1868 = vunpack.c.h.b16 %v1308
      %v1869 = vunpack.c.l.b16 %v1309
      %v1870 = vunpack.c.h.b16 %v1309
      %v1871 = vunpack.c.l.b16 %v1310
      %v1872 = vunpack.c.h.b16 %v1310
      %v1873 = vunpack.c.l.b16 %v1311
      %v1874 = vunpack.c.h.b16 %v1311
      %v1875 = vunpack.c.l.b16 %v1312
      %v1876 = vunpack.c.h.b16 %v1312
      %v1877 = vunpack.c.l.b16 %v1313
      %v1878 = vunpack.c.h.b16 %v1313
      %v1879 = vunpack.c.l.b16 %v1314
      %v1880 = vunpack.c.h.b16 %v1314
      %v1881 = vunpack.c.l.b16 %v1315
      %v1882 = vunpack.c.h.b16 %v1315
      %v1883 = vunpack.c.l.b16 %v1316
      %v1884 = vunpack.c.h.b16 %v1316
      %v1885 = vunpack.c.l.b16 %v1317
      %v1886 = vunpack.c.h.b16 %v1317
      %v1887 = vunpack.c.l.b16 %v1318
      %v1888 = vunpack.c.h.b16 %v1318
      %v1889 = vunpack.c.l.b16 %v1319
      %v1890 = vunpack.c.h.b16 %v1319
      %v1891 = vunpack.c.l.b16 %v1320
      %v1892 = vunpack.c.h.b16 %v1320
      %v1893 = vunpack.c.l.b16 %v1321
      %v1894 = vunpack.c.h.b16 %v1321
      %v1895 = vunpack.c.l.b16 %v1322
      %v1896 = vunpack.c.h.b16 %v1322
      %v1897 = vunpack.c.l.b16 %v1323
      %v1898 = vunpack.c.h.b16 %v1323
      %v1899 = vunpack.c.l.b16 %v1324
      %v1900 = vunpack.c.h.b16 %v1324
      %v1901 = vunpack.c.l.b16 %v1325
      %v1902 = vunpack.c.h.b16 %v1325
      %v1903 = vunpack.c.l.b16 %v1326
      %v1904 = vunpack.c.h.b16 %v1326
      %v1905 = vunpack.c.l.b16 %v1327
      %v1906 = vunpack.c.h.b16 %v1327
      %v1907 = vunpack.c.l.b16 %v1328
      %v1908 = vunpack.c.h.b16 %v1328
      %v1909 = vunpack.c.l.b16 %v1329
      %v1910 = vunpack.c.h.b16 %v1329
      %v1911 = vunpack.c.l.b16 %v1330
      %v1912 = vunpack.c.h.b16 %v1330
      %v1913 = vunpack.c.l.b16 %v1331
      %v1914 = vunpack.c.h.b16 %v1331
      %v1915 = vunpack.c.l.b16 %v1332
      %v1916 = vunpack.c.h.b16 %v1332
      %v1917 = vunpack.c.l.b16 %v1333
      %v1918 = vunpack.c.h.b16 %v1333
      %v1919 = vunpack.c.l.b16 %v1334
      %v1920 = vunpack.c.h.b16 %v1334
      %v1921 = vunpack.c.l.b16 %v1335
      %v1922 = vunpack.c.h.b16 %v1335
      %v1923 = vunpack.c.l.b16 %v1336
      %v1924 = vunpack.c.h.b16 %v1336
      %v1925 = vunpack.c.l.b16 %v1337
      %v1926 = vunpack.c.h.b16 %v1337
      %v1927 = vunpack.c.l.b16 %v1338
      %v1928 = vunpack.c.h.b16 %v1338
      %v1929 = vunpack.c.l.b16 %v1339
      %v1930 = vunpack.c.h.b16 %v1339
      %v1931 = vunpack.c.l.b16 %v1340
      %v1932 = vunpack.c.h.b16 %v1340
      %v1933 = vunpack.c.l.b16 %v1341
      %v1934 = vunpack.c.h.b16 %v1341
      %v1935 = vunpack.c.l.b16 %v1342
      %v1936 = vunpack.c.h.b16 %v1342
      %v1937 = vunpack.c.l.b16 %v1343
      %v1938 = vunpack.c.h.b16 %v1343
      %v1939 = vunpack.c.l.b16 %v1344
      %v1940 = vunpack.c.h.b16 %v1344
      %v1941 = vunpack.c.l.b16 %v1345
      %v1942 = vunpack.c.h.b16 %v1345
      %v1943 = vunpack.c.l.b16 %v1346
      %v1944 = vunpack.c.h.b16 %v1346
      %v1945 = vunpack.c.l.b16 %v1347
      %v1946 = vunpack.c.h.b16 %v1347
      %v1947 = vunpack.c.l.b16 %v1348
      %v1948 = vunpack.c.h.b16 %v1348
      %v1949 = vunpack.c.l.b16 %v1349
      %v1950 = vunpack.c.h.b16 %v1349
      %v1951 = vunpack.c.l.b16 %v1350
      %v1952 = vunpack.c.h.b16 %v1350
      %v1953 = vunpack.c.l.b16 %v1351
      %v1954 = vunpack.c.h.b16 %v1351
      %v1955 = vunpack.c.l.b16 %v1352
      %v1956 = vunpack.c.h.b16 %v1352
      %v1957 = vunpack.c.l.b16 %v1353
      %v1958 = vunpack.c.h.b16 %v1353
      %v1959 = vunpack.c.l.b16 %v1354
      %v1960 = vunpack.c.h.b16 %v1354
      %v1961 = vunpack.c.l.b16 %v1355
      %v1962 = vunpack.c.h.b16 %v1355
      %v1963 = vunpack.c.l.b16 %v1356
      %v1964 = vunpack.c.h.b16 %v1356
      %v1965 = vunpack.c.l.b16 %v1357
      %v1966 = vunpack.c.h.b16 %v1357
      %v1967 = vunpack.c.l.b16 %v1358
      %v1968 = vunpack.c.h.b16 %v1358
      %v1969 = vunpack.c.l.b16 %v1359
      %v1970 = vunpack.c.h.b16 %v1359
      %v1971 = vunpack.c.l.b16 %v1360
      %v1972 = vunpack.c.h.b16 %v1360
      %v1973 = vunpack.c.l.b16 %v1361
      %v1974 = vunpack.c.h.b16 %v1361
      %v1975 = vunpack.c.l.b16 %v1362
      %v1976 = vunpack.c.h.b16 %v1362
      %v1977 = vunpack.c.l.b16 %v1363
      %v1978 = vunpack.c.h.b16 %v1363
      %v1979 = vunpack.c.l.b16 %v1364
      %v1980 = vunpack.c.h.b16 %v1364
      %v1981 = vunpack.c.l.b16 %v1365
      %v1982 = vunpack.c.h.b16 %v1365
      %v1983 = vunpack.c.l.b16 %v1366
      %v1984 = vunpack.c.h.b16 %v1366
      %v1985 = vunpack.c.l.b16 %v1367
      %v1986 = vunpack.c.h.b16 %v1367
      %v1987 = vunpack.c.l.b16 %v1368
      %v1988 = vunpack.c.h.b16 %v1368
      %v1989 = vunpack.c.l.b16 %v1369
      %v1990 = vunpack.c.h.b16 %v1369
      %v1991 = vunpack.c.l.b16 %v1370
      %v1992 = vunpack.c.h.b16 %v1370
      %v1993 = vunpack.c.l.b16 %v1371
      %v1994 = vunpack.c.h.b16 %v1371
      %v1995 = vunpack.c.l.b16 %v1372
      %v1996 = vunpack.c.h.b16 %v1372
      %v1997 = vunpack.c.l.b16 %v1373
      %v1998 = vunpack.c.h.b16 %v1373
      %v1999 = vunpack.c.l.b16 %v1374
      %v2000 = vunpack.c.h.b16 %v1374
      %v2001 = vunpack.c.l.b16 %v1375
      %v2002 = vunpack.c.h.b16 %v1375
      %v2003 = vunpack.c.l.b16 %v1376
      %v2004 = vunpack.c.h.b16 %v1376
      %v2005 = vunpack.c.l.b16 %v1377
      %v2006 = vunpack.c.h.b16 %v1377
      %v2007 = vunpack.c.l.b16 %v1378
      %v2008 = vunpack.c.h.b16 %v1378
      %v2009 = vunpack.c.l.b16 %v1379
      %v2010 = vunpack.c.h.b16 %v1379
      %v2011 = vunpack.c.l.b16 %v1380
      %v2012 = vunpack.c.h.b16 %v1380
      %v2013 = vunpack.c.l.b16 %v1381
      %v2014 = vunpack.c.h.b16 %v1381
      %v2015 = vunpack.c.l.b16 %v1382
      %v2016 = vunpack.c.h.b16 %v1382
      %v2017 = vunpack.c.l.b16 %v1383
      %v2018 = vunpack.c.h.b16 %v1383
      %v2019 = vunpack.c.l.b16 %v1384
      %v2020 = vunpack.c.h.b16 %v1384
      %v2021 = vunpack.c.l.b16 %v1385
      %v2022 = vunpack.c.h.b16 %v1385
      %v2023 = vunpack.c.l.b16 %v1386
      %v2024 = vunpack.c.h.b16 %v1386
      %v2025 = vunpack.c.l.b16 %v1387
      %v2026 = vunpack.c.h.b16 %v1387
      %v2027 = vunpack.c.l.b16 %v1388
      %v2028 = vunpack.c.h.b16 %v1388
      %v2029 = vunpack.c.l.b16 %v1389
      %v2030 = vunpack.c.h.b16 %v1389
      %v2031 = vunpack.c.l.b16 %v1390
      %v2032 = vunpack.c.h.b16 %v1390
      %v2033 = vunpack.c.l.b16 %v1391
      %v2034 = vunpack.c.h.b16 %v1391
      %v2035 = vunpack.c.l.b16 %v1392
      %v2036 = vunpack.c.h.b16 %v1392
      %v2037 = vunpack.c.l.b16 %v1393
      %v2038 = vunpack.c.h.b16 %v1393
      %v2039 = vunpack.c.l.b16 %v1394
      %v2040 = vunpack.c.h.b16 %v1394
      %v2041 = vunpack.c.l.b16 %v1395
      %v2042 = vunpack.c.h.b16 %v1395
      %v2043 = vunpack.c.l.b16 %v1396
      %v2044 = vunpack.c.h.b16 %v1396
      %v2045 = vunpack.c.l.b16 %v1397
      %v2046 = vunpack.c.h.b16 %v1397
      %v2047 = vunpack.c.l.b16 %v1398
      %v2048 = vunpack.c.h.b16 %v1398
      %v2049 = vunpack.c.l.b16 %v1399
      %v2050 = vunpack.c.h.b16 %v1399
      %v2051 = vunpack.c.l.b16 %v1400
      %v2052 = vunpack.c.h.b16 %v1400
      %v2053 = vunpack.c.l.b16 %v1401
      %v2054 = vunpack.c.h.b16 %v1401
      %v2055 = vunpack.c.l.b16 %v1402
      %v2056 = vunpack.c.h.b16 %v1402
      %v2057 = vunpack.c.l.b16 %v1403
      %v2058 = vunpack.c.h.b16 %v1403
      %v2059 = vunpack.c.l.b16 %v1404
      %v2060 = vunpack.c.h.b16 %v1404
      %v2061 = vunpack.c.l.b16 %v1405
      %v2062 = vunpack.c.h.b16 %v1405
      %v2063 = vunpack.c.l.b16 %v1406
      %v2064 = vunpack.c.h.b16 %v1406
      %v2065 = vunpack.c.l.b16 %v1407
      %v2066 = vunpack.c.h.b16 %v1407
      %v2067 = vunpack.c.l.b16 %v1408
      %v2068 = vunpack.c.h.b16 %v1408
      %v2069 = vunpack.c.l.b16 %v1409
      %v2070 = vunpack.c.h.b16 %v1409
      %v2071 = vunpack.c.l.b16 %v1410
      %v2072 = vunpack.c.h.b16 %v1410
      %v2073 = vunpack.c.l.b16 %v1411
      %v2074 = vunpack.c.h.b16 %v1411
      %v2075 = vunpack.c.l.b16 %v1412
      %v2076 = vunpack.c.h.b16 %v1412
      %v2077 = vunpack.c.l.b16 %v1413
      %v2078 = vunpack.c.h.b16 %v1413
      %v2079 = vunpack.c.l.b16 %v1414
      %v2080 = vunpack.c.h.b16 %v1414
      %v2081 = vunpack.c.l.b16 %v1415
      %v2082 = vunpack.c.h.b16 %v1415
      %v2083 = vunpack.c.l.b16 %v1416
      %v2084 = vunpack.c.h.b16 %v1416
      %v2085 = vunpack.c.l.b16 %v1417
      %v2086 = vunpack.c.h.b16 %v1417
      %v2087 = vunpack.c.l.b16 %v1418
      %v2088 = vunpack.c.h.b16 %v1418
      %v2089 = vunpack.c.l.b16 %v1419
      %v2090 = vunpack.c.h.b16 %v1419
      %v2091 = vunpack.c.l.b16 %v1420
      %v2092 = vunpack.c.h.b16 %v1420
      %v2093 = vunpack.c.l.b16 %v1421
      %v2094 = vunpack.c.h.b16 %v1421
      %v2095 = vunpack.c.l.b16 %v1422
      %v2096 = vunpack.c.h.b16 %v1422
      %v2097 = vunpack.c.l.b16 %v1423
      %v2098 = vunpack.c.h.b16 %v1423
      %v2099 = vunpack.c.l.b16 %v1424
      %v2100 = vunpack.c.h.b16 %v1424
      %v2101 = vunpack.c.l.b16 %v1425
      %v2102 = vunpack.c.h.b16 %v1425
      %v2103 = vunpack.c.l.b16 %v1426
      %v2104 = vunpack.c.h.b16 %v1426
      %v2105 = vunpack.c.l.b16 %v1427
      %v2106 = vunpack.c.h.b16 %v1427
      %v2107 = vunpack.c.l.b16 %v1428
      %v2108 = vunpack.c.h.b16 %v1428
      %v2109 = vunpack.c.l.b16 %v1429
      %v2110 = vunpack.c.h.b16 %v1429
      %v2111 = vunpack.c.l.b16 %v1430
      %v2112 = vunpack.c.h.b16 %v1430
      %v2113 = vunpack.c.l.b16 %v1431
      %v2114 = vunpack.c.h.b16 %v1431
      %v2115 = vunpack.c.l.b16 %v1432
      %v2116 = vunpack.c.h.b16 %v1432
      %v2117 = vunpack.c.l.b16 %v1433
      %v2118 = vunpack.c.h.b16 %v1433
      %v2119 = vunpack.c.l.b16 %v1434
      %v2120 = vunpack.c.h.b16 %v1434
      %v2121 = vunpack.c.l.b16 %v1435
      %v2122 = vunpack.c.h.b16 %v1435
      %v2123 = vunpack.c.l.b16 %v1436
      %v2124 = vunpack.c.h.b16 %v1436
      %v2125 = vunpack.c.l.b16 %v1437
      %v2126 = vunpack.c.h.b16 %v1437
      %v2127 = vunpack.c.l.b16 %v1438
      %v2128 = vunpack.c.h.b16 %v1438
      %v2129 = vunpack.c.l.b16 %v1439
      %v2130 = vunpack.c.h.b16 %v1439
      %v2131 = vunpack.c.l.b16 %v1440
      %v2132 = vunpack.c.h.b16 %v1440
      %v2133 = vunpack.c.l.b16 %v1441
      %v2134 = vunpack.c.h.b16 %v1441
      %v2135 = vunpack.c.l.b16 %v1442
      %v2136 = vunpack.c.h.b16 %v1442
      %v2137 = vunpack.c.l.b16 %v1443
      %v2138 = vunpack.c.h.b16 %v1443
      %v2139 = vunpack.c.l.b16 %v1444
      %v2140 = vunpack.c.h.b16 %v1444
      %v2141 = vunpack.c.l.b16 %v1445
      %v2142 = vunpack.c.h.b16 %v1445
      %v2143 = vunpack.c.l.b16 %v1446
      %v2144 = vunpack.c.h.b16 %v1446
      %v2145 = vunpack.c.l.b16 %v1447
      %v2146 = vunpack.c.h.b16 %v1447
      %v2147 = vunpack.c.l.b16 %v1448
      %v2148 = vunpack.c.h.b16 %v1448
      %v2149 = vunpack.c.l.b16 %v1449
      %v2150 = vunpack.c.h.b16 %v1449
      %v2151 = vunpack.c.l.b16 %v1450
      %v2152 = vunpack.c.h.b16 %v1450
      %v2153 = vunpack.c.l.b16 %v1451
      %v2154 = vunpack.c.h.b16 %v1451
      %v2155 = vunpack.c.l.b16 %v1452
      %v2156 = vunpack.c.h.b16 %v1452
      %v2157 = vunpack.c.l.b16 %v1453
      %v2158 = vunpack.c.h.b16 %v1453
      %v2159 = vunpack.c.l.b16 %v1454
      %v2160 = vunpack.c.h.b16 %v1454
      %v2161 = vunpack.c.l.b16 %v1455
      %v2162 = vunpack.c.h.b16 %v1455
      %v2163 = vunpack.c.l.b16 %v1456
      %v2164 = vunpack.c.h.b16 %v1456
      %v2165 = vunpack.c.l.b16 %v1457
      %v2166 = vunpack.c.h.b16 %v1457
      %v2167 = vunpack.c.l.b16 %v1458
      %v2168 = vunpack.c.h.b16 %v1458
      %v2169 = vunpack.c.l.b16 %v1459
      %v2170 = vunpack.c.h.b16 %v1459
      %v2171 = vunpack.c.l.b16 %v1460
      %v2172 = vunpack.c.h.b16 %v1460
      %v2173 = vunpack.c.l.b16 %v1461
      %v2174 = vunpack.c.h.b16 %v1461
      %v2175 = vunpack.c.l.b16 %v1462
      %v2176 = vunpack.c.h.b16 %v1462
      %v2177 = vunpack.c.l.b16 %v1463
      %v2178 = vunpack.c.h.b16 %v1463
      %v2179 = vunpack.c.l.b16 %v1464
      %v2180 = vunpack.c.h.b16 %v1464
      %v2181 = vunpack.c.l.b16 %v1465
      %v2182 = vunpack.c.h.b16 %v1465
      %v2183 = vunpack.c.l.b16 %v1466
      %v2184 = vunpack.c.h.b16 %v1466
      %v2185 = vunpack.c.l.b16 %v1467
      %v2186 = vunpack.c.h.b16 %v1467
      %v2187 = vunpack.c.l.b16 %v1468
      %v2188 = vunpack.c.h.b16 %v1468
      %v2189 = vunpack.c.l.b16 %v1469
      %v2190 = vunpack.c.h.b16 %v1469
      %v2191 = vunpack.c.l.b16 %v1470
      %v2192 = vunpack.c.h.b16 %v1470
      %v2193 = vunpack.c.l.b16 %v1471
      %v2194 = vunpack.c.h.b16 %v1471
      %v2195 = vunpack.c.l.b16 %v1472
      %v2196 = vunpack.c.h.b16 %v1472
      %v2197 = vunpack.c.l.b16 %v1473
      %v2198 = vunpack.c.h.b16 %v1473
      %v2199 = vunpack.c.l.b16 %v1474
      %v2200 = vunpack.c.h.b16 %v1474
      %v2201 = vunpack.c.l.b16 %v1475
      %v2202 = vunpack.c.h.b16 %v1475
      %v2203 = vunpack.c.l.b16 %v1476
      %v2204 = vunpack.c.h.b16 %v1476
      %v2205 = vunpack.c.l.b16 %v1477
      %v2206 = vunpack.c.h.b16 %v1477
      %v2207 = vunpack.c.l.b16 %v1478
      %v2208 = vunpack.c.h.b16 %v1478
      %v2209 = vunpack.c.l.b16 %v1479
      %v2210 = vunpack.c.h.b16 %v1479
      %v2211 = vunpack.c.l.b16 %v1480
      %v2212 = vunpack.c.h.b16 %v1480
      %v2213 = vunpack.c.l.b16 %v1481
      %v2214 = vunpack.c.h.b16 %v1481
      %v2215 = vunpack.c.l.b16 %v1482
      %v2216 = vunpack.c.h.b16 %v1482
      %v2217 = vunpack.c.l.b16 %v1483
      %v2218 = vunpack.c.h.b16 %v1483
      %v2219 = vunpack.c.l.b16 %v1484
      %v2220 = vunpack.c.h.b16 %v1484
      %v2221 = vunpack.c.l.b16 %v1485
      %v2222 = vunpack.c.h.b16 %v1485
      %v2223 = vunpack.c.l.b16 %v1486
      %v2224 = vunpack.c.h.b16 %v1486
      %v2225 = vunpack.c.l.b16 %v1487
      %v2226 = vunpack.c.h.b16 %v1487
      %v2227 = vunpack.c.l.b16 %v1488
      %v2228 = vunpack.c.h.b16 %v1488
      %v2229 = vunpack.c.l.b16 %v1489
      %v2230 = vunpack.c.h.b16 %v1489
      %v2231 = vunpack.c.l.b16 %v1490
      %v2232 = vunpack.c.h.b16 %v1490
      %v2233 = vunpack.c.l.b16 %v1491
      %v2234 = vunpack.c.h.b16 %v1491
      %v2235 = vunpack.c.l.b16 %v1492
      %v2236 = vunpack.c.h.b16 %v1492
      %v2237 = vunpack.c.l.b16 %v1493
      %v2238 = vunpack.c.h.b16 %v1493
      %v2239 = vunpack.c.l.b16 %v1494
      %v2240 = vunpack.c.h.b16 %v1494
      %v2241 = vunpack.c.l.b16 %v1495
      %v2242 = vunpack.c.h.b16 %v1495
      %v2243 = vunpack.c.l.b16 %v1496
      %v2244 = vunpack.c.h.b16 %v1496
      %v2245 = vunpack.c.l.b16 %v1497
      %v2246 = vunpack.c.h.b16 %v1497
      %v2247 = vunpack.c.l.b16 %v1498
      %v2248 = vunpack.c.h.b16 %v1498
      %v2249 = vunpack.c.l.b16 %v1499
      %v2250 = vunpack.c.h.b16 %v1499
      %v2251 = vunpack.c.l.b16 %v1500
      %v2252 = vunpack.c.h.b16 %v1500
      %v2253 = vunpack.c.l.b16 %v1501
      %v2254 = vunpack.c.h.b16 %v1501
      %v2255 = vunpack.c.l.b16 %v1502
      %v2256 = vunpack.c.h.b16 %v1502
      %v2257 = vunpack.c.l.b16 %v1503
      %v2258 = vunpack.c.h.b16 %v1503
      %v2259 = vunpack.c.l.b16 %v1504
      %v2260 = vunpack.c.h.b16 %v1504
      %v2261 = vunpack.c.l.b16 %v1505
      %v2262 = vunpack.c.h.b16 %v1505
      %v2263 = vunpack.c.l.b16 %v1506
      %v2264 = vunpack.c.h.b16 %v1506
      %v2265 = vunpack.c.l.b16 %v1507
      %v2266 = vunpack.c.h.b16 %v1507
      %v2267 = vunpack.c.l.b16 %v1508
      %v2268 = vunpack.c.h.b16 %v1508
      %v2269 = vunpack.c.l.b16 %v1509
      %v2270 = vunpack.c.h.b16 %v1509
      %v2271 = vunpack.c.l.b16 %v1510
      %v2272 = vunpack.c.h.b16 %v1510
      %v2273 = vunpack.c.l.b16 %v1511
      %v2274 = vunpack.c.h.b16 %v1511
      %v2275 = vunpack.c.l.b16 %v1512
      %v2276 = vunpack.c.h.b16 %v1512
      %v2277 = vunpack.c.l.b16 %v1513
      %v2278 = vunpack.c.h.b16 %v1513
      %v2279 = vunpack.c.l.b16 %v1514
      %v2280 = vunpack.c.h.b16 %v1514
      %v2281 = vunpack.c.l.b16 %v1515
      %v2282 = vunpack.c.h.b16 %v1515
      %v2283 = vunpack.c.l.b16 %v1516
      %v2284 = vunpack.c.h.b16 %v1516
      %v2285 = vunpack.c.l.b16 %v1517
      %v2286 = vunpack.c.h.b16 %v1517
      %v2287 = vunpack.c.l.b16 %v1518
      %v2288 = vunpack.c.h.b16 %v1518
      %v2289 = vunpack.c.l.b16 %v1519
      %v2290 = vunpack.c.h.b16 %v1519
      %v2291 = vunpack.c.l.b16 %v1520
      %v2292 = vunpack.c.h.b16 %v1520
      %v2293 = vunpack.c.l.b16 %v1521
      %v2294 = vunpack.c.h.b16 %v1521
      %v2295 = vunpack.c.l.b16 %v1522
      %v2296 = vunpack.c.h.b16 %v1522
      %v2297 = vunpack.c.l.b16 %v1523
      %v2298 = vunpack.c.h.b16 %v1523
      %v2299 = vunpack.c.l.b16 %v1524
      %v2300 = vunpack.c.h.b16 %v1524
      %v2301 = vunpack.c.l.b16 %v1525
      %v2302 = vunpack.c.h.b16 %v1525
      %v2303 = vunpack.c.l.b16 %v1526
      %v2304 = vunpack.c.h.b16 %v1526
      %v2305 = vunpack.c.l.b16 %v1527
      %v2306 = vunpack.c.h.b16 %v1527
      %v2307 = vunpack.c.l.b16 %v1528
      %v2308 = vunpack.c.h.b16 %v1528
      %v2309 = vunpack.c.l.b16 %v1529
      %v2310 = vunpack.c.h.b16 %v1529
      %v2311 = vunpack.c.l.b16 %v1530
      %v2312 = vunpack.c.h.b16 %v1530
      %v2313 = vunpack.c.l.b16 %v1531
      %v2314 = vunpack.c.h.b16 %v1531
      %v2315 = vunpack.c.l.b16 %v1532
      %v2316 = vunpack.c.h.b16 %v1532
      %v2317 = vunpack.c.l.b16 %v1533
      %v2318 = vunpack.c.h.b16 %v1533
      %v2319 = vunpack.c.l.b16 %v1534
      %v2320 = vunpack.c.h.b16 %v1534
      %v2321 = vunpack.c.l.b16 %v1535
      %v2322 = vunpack.c.h.b16 %v1535
      %v2323 = vunpack.c.l.b16 %v1536
      %v2324 = vunpack.c.h.b16 %v1536
      %v2325 = vunpack.c.l.b16 %v1537
      %v2326 = vunpack.c.h.b16 %v1537
      %v2327 = vunpack.c.l.b16 %v1538
      %v2328 = vunpack.c.h.b16 %v1538
      %v2329 = vunpack.c.l.b16 %v1539
      %v2330 = vunpack.c.h.b16 %v1539
      %v2331 = vunpack.c.l.b16 %v1540
      %v2332 = vunpack.c.h.b16 %v1540
      %v2333 = vunpack.c.l.b16 %v1541
      %v2334 = vunpack.c.h.b16 %v1541
      %v2335 = vunpack.c.l.b16 %v1542
      %v2336 = vunpack.c.h.b16 %v1542
      %v2337 = vunpack.c.l.b16 %v1543
      %v2338 = vunpack.c.h.b16 %v1543
      %v2339 = vunpack.c.l.b16 %v1544
      %v2340 = vunpack.c.h.b16 %v1544
      %v2341 = vunpack.c.l.b16 %v1545
      %v2342 = vunpack.c.h.b16 %v1545
      %v2343 = vunpack.c.l.b16 %v1546
      %v2344 = vunpack.c.h.b16 %v1546
      %v2345 = vunpack.c.l.b16 %v1547
      %v2346 = vunpack.c.h.b16 %v1547
      %v2347 = vunpack.c.l.b16 %v1548
      %v2348 = vunpack.c.h.b16 %v1548
      %v2349 = vunpack.c.l.b16 %v1549
      %v2350 = vunpack.c.h.b16 %v1549
      %v2351 = vunpack.c.l.b16 %v1550
      %v2352 = vunpack.c.h.b16 %v1550
      %v2353 = vunpack.c.l.b16 %v1551
      %v2354 = vunpack.c.h.b16 %v1551
      %v2355 = vunpack.c.l.b16 %v1552
      %v2356 = vunpack.c.h.b16 %v1552
      %v2357 = vunpack.c.l.b16 %v1553
      %v2358 = vunpack.c.h.b16 %v1553
      %v2359 = vunpack.c.l.b16 %v1554
      %v2360 = vunpack.c.h.b16 %v1554
      %v2361 = vunpack.c.l.b16 %v1555
      %v2362 = vunpack.c.h.b16 %v1555
      %v2363 = vunpack.c.l.b16 %v1556
      %v2364 = vunpack.c.h.b16 %v1556
      %v2365 = vunpack.c.l.b16 %v1557
      %v2366 = vunpack.c.h.b16 %v1557
      %v2367 = vunpack.c.l.b16 %v1558
      %v2368 = vunpack.c.h.b16 %v1558
      %v2369 = vpack.c.b16 %v1865, %v1857
      %v2370 = vpack.c.b16 %v1866, %v1858
      %v2371 = vpack.c.b16 %v1867, %v1859
      %v2372 = vpack.c.b16 %v1868, %v1860
      %v2373 = vpack.c.b16 %v1869, %v1861
      %v2374 = vpack.c.b16 %v1870, %v1862
      %v2375 = vpack.c.b16 %v1871, %v1863
      %v2376 = vpack.c.b16 %v1872, %v1864
      %v2377 = vpack.c.b16 %v1881, %v1873
      %v2378 = vpack.c.b16 %v1882, %v1874
      %v2379 = vpack.c.b16 %v1883, %v1875
      %v2380 = vpack.c.b16 %v1884, %v1876
      %v2381 = vpack.c.b16 %v1885, %v1877
      %v2382 = vpack.c.b16 %v1886, %v1878
      %v2383 = vpack.c.b16 %v1887, %v1879
      %v2384 = vpack.c.b16 %v1888, %v1880
      %v2385 = vpack.c.b16 %v1897, %v1889
      %v2386 = vpack.c.b16 %v1898, %v1890
      %v2387 = vpack.c.b16 %v1899, %v1891
      %v2388 = vpack.c.b16 %v1900, %v1892
      %v2389 = vpack.c.b16 %v1901, %v1893
      %v2390 = vpack.c.b16 %v1902, %v1894
      %v2391 = vpack.c.b16 %v1903, %v1895
      %v2392 = vpack.c.b16 %v1904, %v1896
      %v2393 = vpack.c.b16 %v1913, %v1905
      %v2394 = vpack.c.b16 %v1914, %v1906
      %v2395 = vpack.c.b16 %v1915, %v1907
      %v2396 = vpack.c.b16 %v1916, %v1908
      %v2397 = vpack.c.b16 %v1917, %v1909
      %v2398 = vpack.c.b16 %v1918, %v1910
      %v2399 = vpack.c.b16 %v1919, %v1911
      %v2400 = vpack.c.b16 %v1920, %v1912
      %v2401 = vpack.c.b16 %v1929, %v1921
      %v2402 = vpack.c.b16 %v1930, %v1922
      %v2403 = vpack.c.b16 %v1931, %v1923
      %v2404 = vpack.c.b16 %v1932, %v1924
      %v2405 = vpack.c.b16 %v1933, %v1925
      %v2406 = vpack.c.b16 %v1934, %v1926
      %v2407 = vpack.c.b16 %v1935, %v1927
      %v2408 = vpack.c.b16 %v1936, %v1928
      %v2409 = vpack.c.b16 %v1945, %v1937
      %v2410 = vpack.c.b16 %v1946, %v1938
      %v2411 = vpack.c.b16 %v1947, %v1939
      %v2412 = vpack.c.b16 %v1948, %v1940
      %v2413 = vpack.c.b16 %v1949, %v1941
      %v2414 = vpack.c.b16 %v1950, %v1942
      %v2415 = vpack.c.b16 %v1951, %v1943
      %v2416 = vpack.c.b16 %v1952, %v1944
      %v2417 = vpack.c.b16 %v1961, %v1953
      %v2418 = vpack.c.b16 %v1962, %v1954
      %v2419 = vpack.c.b16 %v1963, %v1955
      %v2420 = vpack.c.b16 %v1964, %v1956
      %v2421 = vpack.c.b16 %v1965, %v1957
      %v2422 = vpack.c.b16 %v1966, %v1958
      %v2423 = vpack.c.b16 %v1967, %v1959
      %v2424 = vpack.c.b16 %v1968, %v1960
      %v2425 = vpack.c.b16 %v1977, %v1969
      %v2426 = vpack.c.b16 %v1978, %v1970
      %v2427 = vpack.c.b16 %v1979, %v1971
      %v2428 = vpack.c.b16 %v1980, %v1972
      %v2429 = vpack.c.b16 %v1981, %v1973
      %v2430 = vpack.c.b16 %v1982, %v1974
      %v2431 = vpack.c.b16 %v1983, %v1975
      %v2432 = vpack.c.b16 %v1984, %v1976
      %v2433 = vpack.c.b16 %v1993, %v1985
      %v2434 = vpack.c.b16 %v1994, %v1986
      %v2435 = vpack.c.b16 %v1995, %v1987
      %v2436 = vpack.c.b16 %v1996, %v1988
      %v2437 = vpack.c.b16 %v1997, %v1989
      %v2438 = vpack.c.b16 %v1998, %v1990
      %v2439 = vpack.c.b16 %v1999, %v1991
      %v2440 = vpack.c.b16 %v2000, %v1992
      %v2441 = vpack.c.b16 %v2009, %v2001
      %v2442 = vpack.c.b16 %v2010, %v2002
      %v2443 = vpack.c.b16 %v2011, %v2003
      %v2444 = vpack.c.b16 %v2012, %v2004
      %v2445 = vpack.c.b16 %v2013, %v2005
      %v2446 = vpack.c.b16 %v2014, %v2006
      %v2447 = vpack.c.b16 %v2015, %v2007
      %v2448 = vpack.c.b16 %v2016, %v2008
      %v2449 = vpack.c.b16 %v2025, %v2017
      %v2450 = vpack.c.b16 %v2026, %v2018
      %v2451 = vpack.c.b16 %v2027, %v2019
      %v2452 = vpack.c.b16 %v2028, %v2020
      %v2453 = vpack.c.b16 %v2029, %v2021
      %v2454 = vpack.c.b16 %v2030, %v2022
      %v2455 = vpack.c.b16 %v2031, %v2023
      %v2456 = vpack.c.b16 %v2032, %v2024
      %v2457 = vpack.c.b16 %v2041, %v2033
      %v2458 = vpack.c.b16 %v2042, %v2034
      %v2459 = vpack.c.b16 %v2043, %v2035
      %v2460 = vpack.c.b16 %v2044, %v2036
      %v2461 = vpack.c.b16 %v2045, %v2037
      %v2462 = vpack.c.b16 %v2046, %v2038
      %v2463 = vpack.c.b16 %v2047, %v2039
      %v2464 = vpack.c.b16 %v2048, %v2040
      %v2465 = vpack.c.b16 %v2057, %v2049
      %v2466 = vpack.c.b16 %v2058, %v2050
      %v2467 = vpack.c.b16 %v2059, %v2051
      %v2468 = vpack.c.b16 %v2060, %v2052
      %v2469 = vpack.c.b16 %v2061, %v2053
      %v2470 = vpack.c.b16 %v2062, %v2054
      %v2471 = vpack.c.b16 %v2063, %v2055
      %v2472 = vpack.c.b16 %v2064, %v2056
      %v2473 = vpack.c.b16 %v2073, %v2065
      %v2474 = vpack.c.b16 %v2074, %v2066
      %v2475 = vpack.c.b16 %v2075, %v2067
      %v2476 = vpack.c.b16 %v2076, %v2068
      %v2477 = vpack.c.b16 %v2077, %v2069
      %v2478 = vpack.c.b16 %v2078, %v2070
      %v2479 = vpack.c.b16 %v2079, %v2071
      %v2480 = vpack.c.b16 %v2080, %v2072
      %v2481 = vpack.c.b16 %v2089, %v2081
      %v2482 = vpack.c.b16 %v2090, %v2082
      %v2483 = vpack.c.b16 %v2091, %v2083
      %v2484 = vpack.c.b16 %v2092, %v2084
      %v2485 = vpack.c.b16 %v2093, %v2085
      %v2486 = vpack.c.b16 %v2094, %v2086
      %v2487 = vpack.c.b16 %v2095, %v2087
      %v2488 = vpack.c.b16 %v2096, %v2088
      %v2489 = vpack.c.b16 %v2105, %v2097
      %v2490 = vpack.c.b16 %v2106, %v2098
      %v2491 = vpack.c.b16 %v2107, %v2099
      %v2492 = vpack.c.b16 %v2108, %v2100
      %v2493 = vpack.c.b16 %v2109, %v2101
      %v2494 = vpack.c.b16 %v2110, %v2102
      %v2495 = vpack.c.b16 %v2111, %v2103
      %v2496 = vpack.c.b16 %v2112, %v2104
      %v2497 = vpack.c.b16 %v2121, %v2113
      %v2498 = vpack.c.b16 %v2122, %v2114
      %v2499 = vpack.c.b16 %v2123, %v2115
      %v2500 = vpack.c.b16 %v2124, %v2116
      %v2501 = vpack.c.b16 %v2125, %v2117
      %v2502 = vpack.c.b16 %v2126, %v2118
      %v2503 = vpack.c.b16 %v2127, %v2119
      %v2504 = vpack.c.b16 %v2128, %v2120
      %v2505 = vpack.c.b16 %v2137, %v2129
      %v2506 = vpack.c.b16 %v2138, %v2130
      %v2507 = vpack.c.b16 %v2139, %v2131
      %v2508 = vpack.c.b16 %v2140, %v2132
      %v2509 = vpack.c.b16 %v2141, %v2133
      %v2510 = vpack.c.b16 %v2142, %v2134
      %v2511 = vpack.c.b16 %v2143, %v2135
      %v2512 = vpack.c.b16 %v2144, %v2136
      %v2513 = vpack.c.b16 %v2153, %v2145
      %v2514 = vpack.c.b16 %v2154, %v2146
      %v2515 = vpack.c.b16 %v2155, %v2147
      %v2516 = vpack.c.b16 %v2156, %v2148
      %v2517 = vpack.c.b16 %v2157, %v2149
      %v2518 = vpack.c.b16 %v2158, %v2150
      %v2519 = vpack.c.b16 %v2159, %v2151
      %v2520 = vpack.c.b16 %v2160, %v2152
      %v2521 = vpack.c.b16 %v2169, %v2161
      %v2522 = vpack.c.b16 %v2170, %v2162
      %v2523 = vpack.c.b16 %v2171, %v2163
      %v2524 = vpack.c.b16 %v2172, %v2164
      %v2525 = vpack.c.b16 %v2173, %v2165
      %v2526 = vpack.c.b16 %v2174, %v2166
      %v2527 = vpack.c.b16 %v2175, %v2167
      %v2528 = vpack.c.b16 %v2176, %v2168
      %v2529 = vpack.c.b16 %v2185, %v2177
      %v2530 = vpack.c.b16 %v2186, %v2178
      %v2531 = vpack.c.b16 %v2187, %v2179
      %v2532 = vpack.c.b16 %v2188, %v2180
      %v2533 = vpack.c.b16 %v2189, %v2181
      %v2534 = vpack.c.b16 %v2190, %v2182
      %v2535 = vpack.c.b16 %v2191, %v2183
      %v2536 = vpack.c.b16 %v2192, %v2184
      %v2537 = vpack.c.b16 %v2201, %v2193
      %v2538 = vpack.c.b16 %v2202, %v2194
      %v2539 = vpack.c.b16 %v2203, %v2195
      %v2540 = vpack.c.b16 %v2204, %v2196
      %v2541 = vpack.c.b16 %v2205, %v2197
      %v2542 = vpack.c.b16 %v2206, %v2198
      %v2543 = vpack.c.b16 %v2207, %v2199
      %v2544 = vpack.c.b16 %v2208, %v2200
      %v2545 = vpack.c.b16 %v2217, %v2209
      %v2546 = vpack.c.b16 %v2218, %v2210
      %v2547 = vpack.c.b16 %v2219, %v2211
      %v2548 = vpack.c.b16 %v2220, %v2212
      %v2549 = vpack.c.b16 %v2221, %v2213
      %v2550 = vpack.c.b16 %v2222, %v2214
      %v2551 = vpack.c.b16 %v2223, %v2215
      %v2552 = vpack.c.b16 %v2224, %v2216
      %v2553 = vpack.c.b16 %v2233, %v2225
      %v2554 = vpack.c.b16 %v2234, %v2226
      %v2555 = vpack.c.b16 %v2235, %v2227
      %v2556 = vpack.c.b16 %v2236, %v2228
      %v2557 = vpack.c.b16 %v2237, %v2229
      %v2558 = vpack.c.b16 %v2238, %v2230
      %v2559 = vpack.c.b16 %v2239, %v2231
      %v2560 = vpack.c.b16 %v2240, %v2232
      %v2561 = vpack.c.b16 %v2249, %v2241
      %v2562 = vpack.c.b16 %v2250, %v2242
      %v2563 = vpack.c.b16 %v2251, %v2243
      %v2564 = vpack.c.b16 %v2252, %v2244
      %v2565 = vpack.c.b16 %v2253, %v2245
      %v2566 = vpack.c.b16 %v2254, %v2246
      %v2567 = vpack.c.b16 %v2255, %v2247
      %v2568 = vpack.c.b16 %v2256, %v2248
      %v2569 = vpack.c.b16 %v2265, %v2257
      %v2570 = vpack.c.b16 %v2266, %v2258
      %v2571 = vpack.c.b16 %v2267, %v2259
      %v2572 = vpack.c.b16 %v2268, %v2260
      %v2573 = vpack.c.b16 %v2269, %v2261
      %v2574 = vpack.c.b16 %v2270, %v2262
      %v2575 = vpack.c.b16 %v2271, %v2263
      %v2576 = vpack.c.b16 %v2272, %v2264
      %v2577 = vpack.c.b16 %v2281, %v2273
      %v2578 = vpack.c.b16 %v2282, %v2274
      %v2579 = vpack.c.b16 %v2283, %v2275
      %v2580 = vpack.c.b16 %v2284, %v2276
      %v2581 = vpack.c.b16 %v2285, %v2277
      %v2582 = vpack.c.b16 %v2286, %v2278
      %v2583 = vpack.c.b16 %v2287, %v2279
      %v2584 = vpack.c.b16 %v2288, %v2280
      %v2585 = vpack.c.b16 %v2297, %v2289
      %v2586 = vpack.c.b16 %v2298, %v2290
      %v2587 = vpack.c.b16 %v2299, %v2291
      %v2588 = vpack.c.b16 %v2300, %v2292
      %v2589 = vpack.c.b16 %v2301, %v2293
      %v2590 = vpack.c.b16 %v2302, %v2294
      %v2591 = vpack.c.b16 %v2303, %v2295
      %v2592 = vpack.c.b16 %v2304, %v2296
      %v2593 = vpack.c.b16 %v2313, %v2305
      %v2594 = vpack.c.b16 %v2314, %v2306
      %v2595 = vpack.c.b16 %v2315, %v2307
      %v2596 = vpack.c.b16 %v2316, %v2308
      %v2597 = vpack.c.b16 %v2317, %v2309
      %v2598 = vpack.c.b16 %v2318, %v2310
      %v2599 = vpack.c.b16 %v2319, %v2311
      %v2600 = vpack.c.b16 %v2320, %v2312
      %v2601 = vpack.c.b16 %v2329, %v2321
      %v2602 = vpack.c.b16 %v2330, %v2322
      %v2603 = vpack.c.b16 %v2331, %v2323
      %v2604 = vpack.c.b16 %v2332, %v2324
      %v2605 = vpack.c.b16 %v2333, %v2325
      %v2606 = vpack.c.b16 %v2334, %v2326
      %v2607 = vpack.c.b16 %v2335, %v2327
      %v2608 = vpack.c.b16 %v2336, %v2328
      %v2609 = vpack.c.b16 %v2345, %v2337
      %v2610 = vpack.c.b16 %v2346, %v2338
      %v2611 = vpack.c.b16 %v2347, %v2339
      %v2612 = vpack.c.b16 %v2348, %v2340
      %v2613 = vpack.c.b16 %v2349, %v2341
      %v2614 = vpack.c.b16 %v2350, %v2342
      %v2615 = vpack.c.b16 %v2351, %v2343
      %v2616 = vpack.c.b16 %v2352, %v2344
      %v2617 = vpack.c.b16 %v2361, %v2353
      %v2618 = vpack.c.b16 %v2362, %v2354
      %v2619 = vpack.c.b16 %v2363, %v2355
      %v2620 = vpack.c.b16 %v2364, %v2356
      %v2621 = vpack.c.b16 %v2365, %v2357
      %v2622 = vpack.c.b16 %v2366, %v2358
      %v2623 = vpack.c.b16 %v2367, %v2359
      %v2624 = vpack.c.b16 %v2368, %v2360
      %2881 = vmatprep.subr.bf16.mxu0 %v2426
      %2882 = vmatpush1.bf16.msra.mxu0 %v2425
      %2883 = vmatprep.subr.bf16.mxu0 %v2418
      %2884 = vmatpush1.bf16.msra.mxu0 %v2417
      %2885 = vmatprep.subr.bf16.mxu0 %v2410
      %2886 = vmatpush1.bf16.msra.mxu0 %v2409
      %2887 = vmatprep.subr.bf16.mxu0 %v2402
      %2888 = vmatpush1.bf16.msra.mxu0 %v2401
      %2889 = vmatprep.subr.bf16.mxu0 %v2394
      %2890 = vmatpush1.bf16.msra.mxu0 %v2393
      %2891 = vmatprep.subr.bf16.mxu0 %v2386
      %2892 = vmatpush1.bf16.msra.mxu0 %v2385
      %2893 = vmatprep.subr.bf16.mxu0 %v2378
      %2894 = vmatpush1.bf16.msra.mxu0 %v2377
      %2895 = vmatprep.subr.bf16.mxu0 %v2370
      %2896 = vmatpush1.bf16.msra.mxu0 %v2369
      %2897 = vmatprep.subr.bf16.mxu0 %v2490
      %2898 = vmatpush2.bf16.msra.mxu0 %v2489
      %2899 = vmatprep.subr.bf16.mxu0 %v2482
      %2900 = vmatpush2.bf16.msra.mxu0 %v2481
      %2901 = vmatprep.subr.bf16.mxu0 %v2474
      %2902 = vmatpush2.bf16.msra.mxu0 %v2473
      %2903 = vmatprep.subr.bf16.mxu0 %v2466
      %2904 = vmatpush2.bf16.msra.mxu0 %v2465
      %2905 = vmatprep.subr.bf16.mxu0 %v2458
      %2906 = vmatpush2.bf16.msra.mxu0 %v2457
      %2907 = vmatprep.subr.bf16.mxu0 %v2450
      %2908 = vmatpush2.bf16.msra.mxu0 %v2449
      %2909 = vmatprep.subr.bf16.mxu0 %v2442
      %2910 = vmatpush2.bf16.msra.mxu0 %v2441
      %2911 = vmatprep.subr.bf16.mxu0 %v2434
      %2912 = vmatpush2.bf16.msra.mxu0 %v2433
      %2913 = vmatprep.mubr.bf16.mxu0 %v1300
      %2914 = vmatmul.mubr.bf16.gmra.mxu0 %v1299
      %v2915 = vpop.f32.mrf.mxu0
      %v2916 = vadd.f32 %v1564, %v2915
      %v2917 = vpop.f32.mrf.mxu0
      %v2918 = vadd.f32 %v1568, %v2917
      %v2919 = vpop.f32.mrf.mxu0
      %v2920 = vpop.f32.mrf.mxu0
      %2921 = vdwg.mxu0
      %2922 = vmatprep.subr.bf16.mxu0 %v2554
      %2923 = vmatpush1.bf16.msra.mxu0 %v2553
      %2924 = vmatprep.subr.bf16.mxu0 %v2546
      %2925 = vmatpush1.bf16.msra.mxu0 %v2545
      %2926 = vmatprep.subr.bf16.mxu0 %v2538
      %2927 = vmatpush1.bf16.msra.mxu0 %v2537
      %2928 = vmatprep.subr.bf16.mxu0 %v2530
      %2929 = vmatpush1.bf16.msra.mxu0 %v2529
      %2930 = vmatprep.subr.bf16.mxu0 %v2522
      %2931 = vmatpush1.bf16.msra.mxu0 %v2521
      %2932 = vmatprep.subr.bf16.mxu0 %v2514
      %2933 = vmatpush1.bf16.msra.mxu0 %v2513
      %2934 = vmatprep.subr.bf16.mxu0 %v2506
      %2935 = vmatpush1.bf16.msra.mxu0 %v2505
      %2936 = vmatprep.subr.bf16.mxu0 %v2498
      %2937 = vmatpush1.bf16.msra.mxu0 %v2497
      %2938 = vmatprep.subr.bf16.mxu0 %v2618
      %2939 = vmatpush2.bf16.msra.mxu0 %v2617
      %2940 = vmatprep.subr.bf16.mxu0 %v2610
      %2941 = vmatpush2.bf16.msra.mxu0 %v2609
      %2942 = vmatprep.subr.bf16.mxu0 %v2602
      %2943 = vmatpush2.bf16.msra.mxu0 %v2601
      %2944 = vmatprep.subr.bf16.mxu0 %v2594
      %2945 = vmatpush2.bf16.msra.mxu0 %v2593
      %2946 = vmatprep.subr.bf16.mxu0 %v2586
      %2947 = vmatpush2.bf16.msra.mxu0 %v2585
      %2948 = vmatprep.subr.bf16.mxu0 %v2578
      %2949 = vmatpush2.bf16.msra.mxu0 %v2577
      %2950 = vmatprep.subr.bf16.mxu0 %v2570
      %2951 = vmatpush2.bf16.msra.mxu0 %v2569
      %2952 = vmatprep.subr.bf16.mxu0 %v2562
      %2953 = vmatpush2.bf16.msra.mxu0 %v2561
      %2954 = vmatprep.mubr.bf16.mxu0 %v1302
      %2955 = vmatmul.mubr.bf16.gmra.mxu0 %v1301
      %v2956 = vpop.f32.mrf.mxu0
      %v2957 = vadd.f32 %v2916, %v2956
      %v2958 = vpop.f32.mrf.mxu0
      %v2959 = vadd.f32 %v2918, %v2958
      %v2960 = vpop.f32.mrf.mxu0
      %v2961 = vpop.f32.mrf.mxu0
      %2962 = vdwg.mxu0
      %2963 = vmatprep.subr.bf16.mxu0 %v2428
      %2964 = vmatpush1.bf16.msra.mxu0 %v2427
      %2965 = vmatprep.subr.bf16.mxu0 %v2420
      %2966 = vmatpush1.bf16.msra.mxu0 %v2419
      %2967 = vmatprep.subr.bf16.mxu0 %v2412
      %2968 = vmatpush1.bf16.msra.mxu0 %v2411
      %2969 = vmatprep.subr.bf16.mxu0 %v2404
      %2970 = vmatpush1.bf16.msra.mxu0 %v2403
      %2971 = vmatprep.subr.bf16.mxu0 %v2396
      %2972 = vmatpush1.bf16.msra.mxu0 %v2395
      %2973 = vmatprep.subr.bf16.mxu0 %v2388
      %2974 = vmatpush1.bf16.msra.mxu0 %v2387
      %2975 = vmatprep.subr.bf16.mxu0 %v2380
      %2976 = vmatpush1.bf16.msra.mxu0 %v2379
      %2977 = vmatprep.subr.bf16.mxu0 %v2372
      %2978 = vmatpush1.bf16.msra.mxu0 %v2371
      %2979 = vmatprep.subr.bf16.mxu0 %v2492
      %2980 = vmatpush2.bf16.msra.mxu0 %v2491
      %2981 = vmatprep.subr.bf16.mxu0 %v2484
      %2982 = vmatpush2.bf16.msra.mxu0 %v2483
      %2983 = vmatprep.subr.bf16.mxu0 %v2476
      %2984 = vmatpush2.bf16.msra.mxu0 %v2475
      %2985 = vmatprep.subr.bf16.mxu0 %v2468
      %2986 = vmatpush2.bf16.msra.mxu0 %v2467
      %2987 = vmatprep.subr.bf16.mxu0 %v2460
      %2988 = vmatpush2.bf16.msra.mxu0 %v2459
      %2989 = vmatprep.subr.bf16.mxu0 %v2452
      %2990 = vmatpush2.bf16.msra.mxu0 %v2451
      %2991 = vmatprep.subr.bf16.mxu0 %v2444
      %2992 = vmatpush2.bf16.msra.mxu0 %v2443
      %2993 = vmatprep.subr.bf16.mxu0 %v2436
      %2994 = vmatpush2.bf16.msra.mxu0 %v2435
      %2995 = vmatprep.mubr.bf16.mxu0 %v1300
      %2996 = vmatmul.mubr.bf16.gmra.mxu0 %v1299
      %v2997 = vpop.f32.mrf.mxu0
      %v2998 = vadd.f32 %v1572, %v2997
      %v2999 = vpop.f32.mrf.mxu0
      %v3000 = vadd.f32 %v1576, %v2999
      %v3001 = vpop.f32.mrf.mxu0
      %v3002 = vpop.f32.mrf.mxu0
      %3003 = vdwg.mxu0
      %3004 = vmatprep.subr.bf16.mxu0 %v2556
      %3005 = vmatpush1.bf16.msra.mxu0 %v2555
      %3006 = vmatprep.subr.bf16.mxu0 %v2548
      %3007 = vmatpush1.bf16.msra.mxu0 %v2547
      %3008 = vmatprep.subr.bf16.mxu0 %v2540
      %3009 = vmatpush1.bf16.msra.mxu0 %v2539
      %3010 = vmatprep.subr.bf16.mxu0 %v2532
      %3011 = vmatpush1.bf16.msra.mxu0 %v2531
      %3012 = vmatprep.subr.bf16.mxu0 %v2524
      %3013 = vmatpush1.bf16.msra.mxu0 %v2523
      %3014 = vmatprep.subr.bf16.mxu0 %v2516
      %3015 = vmatpush1.bf16.msra.mxu0 %v2515
      %3016 = vmatprep.subr.bf16.mxu0 %v2508
      %3017 = vmatpush1.bf16.msra.mxu0 %v2507
      %3018 = vmatprep.subr.bf16.mxu0 %v2500
      %3019 = vmatpush1.bf16.msra.mxu0 %v2499
      %3020 = vmatprep.subr.bf16.mxu0 %v2620
      %3021 = vmatpush2.bf16.msra.mxu0 %v2619
      %3022 = vmatprep.subr.bf16.mxu0 %v2612
      %3023 = vmatpush2.bf16.msra.mxu0 %v2611
      %3024 = vmatprep.subr.bf16.mxu0 %v2604
      %3025 = vmatpush2.bf16.msra.mxu0 %v2603
      %3026 = vmatprep.subr.bf16.mxu0 %v2596
      %3027 = vmatpush2.bf16.msra.mxu0 %v2595
      %3028 = vmatprep.subr.bf16.mxu0 %v2588
      %3029 = vmatpush2.bf16.msra.mxu0 %v2587
      %3030 = vmatprep.subr.bf16.mxu0 %v2580
      %3031 = vmatpush2.bf16.msra.mxu0 %v2579
      %3032 = vmatprep.subr.bf16.mxu0 %v2572
      %3033 = vmatpush2.bf16.msra.mxu0 %v2571
      %3034 = vmatprep.subr.bf16.mxu0 %v2564
      %3035 = vmatpush2.bf16.msra.mxu0 %v2563
      %3036 = vmatprep.mubr.bf16.mxu0 %v1302
      %3037 = vmatmul.mubr.bf16.gmra.mxu0 %v1301
      %v3038 = vpop.f32.mrf.mxu0
      %v3039 = vadd.f32 %v2998, %v3038
      %v3040 = vpop.f32.mrf.mxu0
      %v3041 = vadd.f32 %v3000, %v3040
      %v3042 = vpop.f32.mrf.mxu0
      %v3043 = vpop.f32.mrf.mxu0
      %3044 = vdwg.mxu0
      %3045 = vmatprep.subr.bf16.mxu0 %v2430
      %3046 = vmatpush1.bf16.msra.mxu0 %v2429
      %3047 = vmatprep.subr.bf16.mxu0 %v2422
      %3048 = vmatpush1.bf16.msra.mxu0 %v2421
      %3049 = vmatprep.subr.bf16.mxu0 %v2414
      %3050 = vmatpush1.bf16.msra.mxu0 %v2413
      %3051 = vmatprep.subr.bf16.mxu0 %v2406
      %3052 = vmatpush1.bf16.msra.mxu0 %v2405
      %3053 = vmatprep.subr.bf16.mxu0 %v2398
      %3054 = vmatpush1.bf16.msra.mxu0 %v2397
      %3055 = vmatprep.subr.bf16.mxu0 %v2390
      %3056 = vmatpush1.bf16.msra.mxu0 %v2389
      %3057 = vmatprep.subr.bf16.mxu0 %v2382
      %3058 = vmatpush1.bf16.msra.mxu0 %v2381
      %3059 = vmatprep.subr.bf16.mxu0 %v2374
      %3060 = vmatpush1.bf16.msra.mxu0 %v2373
      %3061 = vmatprep.subr.bf16.mxu0 %v2494
      %3062 = vmatpush2.bf16.msra.mxu0 %v2493
      %3063 = vmatprep.subr.bf16.mxu0 %v2486
      %3064 = vmatpush2.bf16.msra.mxu0 %v2485
      %3065 = vmatprep.subr.bf16.mxu0 %v2478
      %3066 = vmatpush2.bf16.msra.mxu0 %v2477
      %3067 = vmatprep.subr.bf16.mxu0 %v2470
      %3068 = vmatpush2.bf16.msra.mxu0 %v2469
      %3069 = vmatprep.subr.bf16.mxu0 %v2462
      %3070 = vmatpush2.bf16.msra.mxu0 %v2461
      %3071 = vmatprep.subr.bf16.mxu0 %v2454
      %3072 = vmatpush2.bf16.msra.mxu0 %v2453
      %3073 = vmatprep.subr.bf16.mxu0 %v2446
      %3074 = vmatpush2.bf16.msra.mxu0 %v2445
      %3075 = vmatprep.subr.bf16.mxu0 %v2438
      %3076 = vmatpush2.bf16.msra.mxu0 %v2437
      %3077 = vmatprep.mubr.bf16.mxu0 %v1300
      %3078 = vmatmul.mubr.bf16.gmra.mxu0 %v1299
      %v3079 = vpop.f32.mrf.mxu0
      %v3080 = vadd.f32 %v1580, %v3079
      %v3081 = vpop.f32.mrf.mxu0
      %v3082 = vadd.f32 %v1584, %v3081
      %v3083 = vpop.f32.mrf.mxu0
      %v3084 = vpop.f32.mrf.mxu0
      %3085 = vdwg.mxu0
      %3086 = vmatprep.subr.bf16.mxu0 %v2558
      %3087 = vmatpush1.bf16.msra.mxu0 %v2557
      %3088 = vmatprep.subr.bf16.mxu0 %v2550
      %3089 = vmatpush1.bf16.msra.mxu0 %v2549
      %3090 = vmatprep.subr.bf16.mxu0 %v2542
      %3091 = vmatpush1.bf16.msra.mxu0 %v2541
      %3092 = vmatprep.subr.bf16.mxu0 %v2534
      %3093 = vmatpush1.bf16.msra.mxu0 %v2533
      %3094 = vmatprep.subr.bf16.mxu0 %v2526
      %3095 = vmatpush1.bf16.msra.mxu0 %v2525
      %3096 = vmatprep.subr.bf16.mxu0 %v2518
      %3097 = vmatpush1.bf16.msra.mxu0 %v2517
      %3098 = vmatprep.subr.bf16.mxu0 %v2510
      %3099 = vmatpush1.bf16.msra.mxu0 %v2509
      %3100 = vmatprep.subr.bf16.mxu0 %v2502
      %3101 = vmatpush1.bf16.msra.mxu0 %v2501
      %3102 = vmatprep.subr.bf16.mxu0 %v2622
      %3103 = vmatpush2.bf16.msra.mxu0 %v2621
      %3104 = vmatprep.subr.bf16.mxu0 %v2614
      %3105 = vmatpush2.bf16.msra.mxu0 %v2613
      %3106 = vmatprep.subr.bf16.mxu0 %v2606
      %3107 = vmatpush2.bf16.msra.mxu0 %v2605
      %3108 = vmatprep.subr.bf16.mxu0 %v2598
      %3109 = vmatpush2.bf16.msra.mxu0 %v2597
      %3110 = vmatprep.subr.bf16.mxu0 %v2590
      %3111 = vmatpush2.bf16.msra.mxu0 %v2589
      %3112 = vmatprep.subr.bf16.mxu0 %v2582
      %3113 = vmatpush2.bf16.msra.mxu0 %v2581
      %3114 = vmatprep.subr.bf16.mxu0 %v2574
      %3115 = vmatpush2.bf16.msra.mxu0 %v2573
      %3116 = vmatprep.subr.bf16.mxu0 %v2566
      %3117 = vmatpush2.bf16.msra.mxu0 %v2565
      %3118 = vmatprep.mubr.bf16.mxu0 %v1302
      %3119 = vmatmul.mubr.bf16.gmra.mxu0 %v1301
      %v3120 = vpop.f32.mrf.mxu0
      %v3121 = vadd.f32 %v3080, %v3120
      %v3122 = vpop.f32.mrf.mxu0
      %v3123 = vadd.f32 %v3082, %v3122
      %v3124 = vpop.f32.mrf.mxu0
      %v3125 = vpop.f32.mrf.mxu0
      %3126 = vdwg.mxu0
      %3127 = vmatprep.subr.bf16.mxu0 %v2432
      %3128 = vmatpush1.bf16.msra.mxu0 %v2431
      %3129 = vmatprep.subr.bf16.mxu0 %v2424
      %3130 = vmatpush1.bf16.msra.mxu0 %v2423
      %3131 = vmatprep.subr.bf16.mxu0 %v2416
      %3132 = vmatpush1.bf16.msra.mxu0 %v2415
      %3133 = vmatprep.subr.bf16.mxu0 %v2408
      %3134 = vmatpush1.bf16.msra.mxu0 %v2407
      %3135 = vmatprep.subr.bf16.mxu0 %v2400
      %3136 = vmatpush1.bf16.msra.mxu0 %v2399
      %3137 = vmatprep.subr.bf16.mxu0 %v2392
      %3138 = vmatpush1.bf16.msra.mxu0 %v2391
      %3139 = vmatprep.subr.bf16.mxu0 %v2384
      %3140 = vmatpush1.bf16.msra.mxu0 %v2383
      %3141 = vmatprep.subr.bf16.mxu0 %v2376
      %3142 = vmatpush1.bf16.msra.mxu0 %v2375
      %3143 = vmatprep.subr.bf16.mxu0 %v2496
      %3144 = vmatpush2.bf16.msra.mxu0 %v2495
      %3145 = vmatprep.subr.bf16.mxu0 %v2488
      %3146 = vmatpush2.bf16.msra.mxu0 %v2487
      %3147 = vmatprep.subr.bf16.mxu0 %v2480
      %3148 = vmatpush2.bf16.msra.mxu0 %v2479
      %3149 = vmatprep.subr.bf16.mxu0 %v2472
      %3150 = vmatpush2.bf16.msra.mxu0 %v2471
      %3151 = vmatprep.subr.bf16.mxu0 %v2464
      %3152 = vmatpush2.bf16.msra.mxu0 %v2463
      %3153 = vmatprep.subr.bf16.mxu0 %v2456
      %3154 = vmatpush2.bf16.msra.mxu0 %v2455
      %3155 = vmatprep.subr.bf16.mxu0 %v2448
      %3156 = vmatpush2.bf16.msra.mxu0 %v2447
      %3157 = vmatprep.subr.bf16.mxu0 %v2440
      %3158 = vmatpush2.bf16.msra.mxu0 %v2439
      %3159 = vmatprep.mubr.bf16.mxu0 %v1300
      %3160 = vmatmul.mubr.bf16.gmra.mxu0 %v1299
      %v3161 = vpop.f32.mrf.mxu0
      %v3162 = vadd.f32 %v1588, %v3161
      %v3163 = vpop.f32.mrf.mxu0
      %v3164 = vadd.f32 %v1592, %v3163
      %v3165 = vpop.f32.mrf.mxu0
      %v3166 = vpop.f32.mrf.mxu0
      %3167 = vdwg.mxu0
      %3168 = vmatprep.subr.bf16.mxu0 %v2560
      %3169 = vmatpush1.bf16.msra.mxu0 %v2559
      %3170 = vmatprep.subr.bf16.mxu0 %v2552
      %3171 = vmatpush1.bf16.msra.mxu0 %v2551
      %3172 = vmatprep.subr.bf16.mxu0 %v2544
      %3173 = vmatpush1.bf16.msra.mxu0 %v2543
      %3174 = vmatprep.subr.bf16.mxu0 %v2536
      %3175 = vmatpush1.bf16.msra.mxu0 %v2535
      %3176 = vmatprep.subr.bf16.mxu0 %v2528
      %3177 = vmatpush1.bf16.msra.mxu0 %v2527
      %3178 = vmatprep.subr.bf16.mxu0 %v2520
      %3179 = vmatpush1.bf16.msra.mxu0 %v2519
      %3180 = vmatprep.subr.bf16.mxu0 %v2512
      %3181 = vmatpush1.bf16.msra.mxu0 %v2511
      %3182 = vmatprep.subr.bf16.mxu0 %v2504
      %3183 = vmatpush1.bf16.msra.mxu0 %v2503
      %3184 = vmatprep.subr.bf16.mxu0 %v2624
      %3185 = vmatpush2.bf16.msra.mxu0 %v2623
      %3186 = vmatprep.subr.bf16.mxu0 %v2616
      %3187 = vmatpush2.bf16.msra.mxu0 %v2615
      %3188 = vmatprep.subr.bf16.mxu0 %v2608
      %3189 = vmatpush2.bf16.msra.mxu0 %v2607
      %3190 = vmatprep.subr.bf16.mxu0 %v2600
      %3191 = vmatpush2.bf16.msra.mxu0 %v2599
      %3192 = vmatprep.subr.bf16.mxu0 %v2592
      %3193 = vmatpush2.bf16.msra.mxu0 %v2591
      %3194 = vmatprep.subr.bf16.mxu0 %v2584
      %3195 = vmatpush2.bf16.msra.mxu0 %v2583
      %3196 = vmatprep.subr.bf16.mxu0 %v2576
      %3197 = vmatpush2.bf16.msra.mxu0 %v2575
      %3198 = vmatprep.subr.bf16.mxu0 %v2568
      %3199 = vmatpush2.bf16.msra.mxu0 %v2567
      %3200 = vmatprep.mubr.bf16.mxu0 %v1302
      %3201 = vmatmul.mubr.bf16.gmra.mxu0 %v1301
      %v3202 = vpop.f32.mrf.mxu0
      %v3203 = vadd.f32 %v3162, %v3202
      %v3204 = vpop.f32.mrf.mxu0
      %v3205 = vadd.f32 %v3164, %v3204
      %v3206 = vpop.f32.mrf.mxu0
      %v3207 = vpop.f32.mrf.mxu0
      %3208 = vdwg.mxu0
      %v3209 = vld [vmem:[%s468] sm:$0xff]
      %3211 = vset.pattern.permute.xlu0 0
      %3212 = vperm.xlu0 %3211, %v3209
      %v3213 = vpop.permute.xlu0 %3212
      %v3215 = vadd.f32 %v2957, %v3213
      %v3216 = vadd.f32 %v2959, %v3213
      %v3217 = vadd.f32 %v3039, %v3213
      %v3218 = vadd.f32 %v3041, %v3213
      %v3219 = vadd.f32 %v3121, %v3213
      %v3220 = vadd.f32 %v3123, %v3213
      %v3221 = vadd.f32 %v3203, %v3213
      %v3222 = vadd.f32 %v3205, %v3213
      %v3223 = vrot.slane %v3215, 4
      %v3224 = vmax.f32 %v3215, %v3223
      %v3225 = vrot.slane %v3224, 2
      %v3226 = vmax.f32 %v3224, %v3225
      %v3227 = vrot.slane %v3226, 1
      %v3228 = vmax.f32 %v3226, %v3227
      %v3229 = vrot.slane %v3216, 4
      %v3230 = vmax.f32 %v3216, %v3229
      %v3231 = vrot.slane %v3230, 2
      %v3232 = vmax.f32 %v3230, %v3231
      %v3233 = vrot.slane %v3232, 1
      %v3234 = vmax.f32 %v3232, %v3233
      %v3235 = vrot.slane %v3217, 4
      %v3236 = vmax.f32 %v3217, %v3235
      %v3237 = vrot.slane %v3236, 2
      %v3238 = vmax.f32 %v3236, %v3237
      %v3239 = vrot.slane %v3238, 1
      %v3240 = vmax.f32 %v3238, %v3239
      %v3241 = vrot.slane %v3218, 4
      %v3242 = vmax.f32 %v3218, %v3241
      %v3243 = vrot.slane %v3242, 2
      %v3244 = vmax.f32 %v3242, %v3243
      %v3245 = vrot.slane %v3244, 1
      %v3246 = vmax.f32 %v3244, %v3245
      %v3247 = vrot.slane %v3219, 4
      %v3248 = vmax.f32 %v3219, %v3247
      %v3249 = vrot.slane %v3248, 2
      %v3250 = vmax.f32 %v3248, %v3249
      %v3251 = vrot.slane %v3250, 1
      %v3252 = vmax.f32 %v3250, %v3251
      %v3253 = vrot.slane %v3220, 4
      %v3254 = vmax.f32 %v3220, %v3253
      %v3255 = vrot.slane %v3254, 2
      %v3256 = vmax.f32 %v3254, %v3255
      %v3257 = vrot.slane %v3256, 1
      %v3258 = vmax.f32 %v3256, %v3257
      %v3259 = vrot.slane %v3221, 4
      %v3260 = vmax.f32 %v3221, %v3259
      %v3261 = vrot.slane %v3260, 2
      %v3262 = vmax.f32 %v3260, %v3261
      %v3263 = vrot.slane %v3262, 1
      %v3264 = vmax.f32 %v3262, %v3263
      %v3265 = vrot.slane %v3222, 4
      %v3266 = vmax.f32 %v3222, %v3265
      %v3267 = vrot.slane %v3266, 2
      %v3268 = vmax.f32 %v3266, %v3267
      %v3269 = vrot.slane %v3268, 1
      %v3270 = vmax.f32 %v3268, %v3269
      %v3279 = vcombine.low %v3228, %v3234
      %v3280 = vcombine.low %v3240, %v3246
      %v3281 = vcombine.low %v3252, %v3258
      %v3282 = vcombine.low %v3264, %v3270
      %v3284 = vunpack.c.l.s4 1966171168
      %v3285 = vunpack.c.0.s8 %v3284
      %v3286 = vlaneseq
      %v3287 = vshrl.u32 %v3286, 7
      %v3288 = vsub.s32 %v3285, %v3287
      %v3289 = vrot.slane %v3279, %v3288
      %v3291 = vunpack.c.l.s4 1966171168
      %v3292 = vunpack.c.0.s8 %v3291
      %v3293 = vlaneseq
      %v3294 = vshrl.u32 %v3293, 7
      %v3295 = vsub.s32 %v3292, %v3294
      %v3296 = vrot.slane %v3280, %v3295
      %v3298 = vunpack.c.l.s4 1966171168
      %v3299 = vunpack.c.0.s8 %v3298
      %v3300 = vlaneseq
      %v3301 = vshrl.u32 %v3300, 7
      %v3302 = vsub.s32 %v3299, %v3301
      %v3303 = vrot.slane %v3281, %v3302
      %v3305 = vunpack.c.l.s4 1966171168
      %v3306 = vunpack.c.0.s8 %v3305
      %v3307 = vlaneseq
      %v3308 = vshrl.u32 %v3307, 7
      %v3309 = vsub.s32 %v3306, %v3308
      %v3310 = vrot.slane %v3282, %v3309
      %v3311 = vcombine.low %v3289, %v3296
      %v3312 = vcombine.low %v3303, %v3310
      %v3314 = vunpack.c.l.s4 1966171168
      %v3315 = vunpack.c.0.s8 %v3314
      %v3316 = vlaneseq
      %v3317 = vshrl.u32 %v3316, 7
      %v3318 = vsub.s32 %v3315, %v3317
      %v3319 = vrot.slane %v3311, %v3318
      %v3321 = vunpack.c.l.s4 1966171168
      %v3322 = vunpack.c.0.s8 %v3321
      %v3323 = vlaneseq
      %v3324 = vshrl.u32 %v3323, 7
      %v3325 = vsub.s32 %v3322, %v3324
      %v3326 = vrot.slane %v3312, %v3325
      %v3327 = vcombine.low %v3319, %v3326
      %3329 = vst [vmem:[%s476] sm:$0xff] %v3327
      %p3330 = scmp.lt.s32.totalorder %s26, 1
      %s3331 = scalar_select %p3330, %s26, 1
      %p3332 = scmp.lt.s32.totalorder %s27, 0
      %s3333 = scalar_select %p3332, %s27, 0
      %s3334 = smul.addr %s3333, 8
      %s3335 = smul.addr %s3331, 8
      %s3336 = sadd.s32 %s3334, %s3335
      %s3337 = scalar_lea.vmem %s11, %s3336
      // Predicated region
      $region65: #{_lambda_.9} parent=63 // pred_check
        %p3338 = pneg %p309
      $region66: #{_lambda_.9} parent=63 // pred_check_branch
        %3340 = sbr.rel (%p3338) target = $region68
      $region67: #{_lambda_.9} parent=63 // pred_region
        _
      $region68: #{_lambda_.9} parent=63 // pred_fallthru
        _
    $region64: #{_lambda_.9} parent=5 // pred_fallthru
      _
    %p3341 = scmp.le.s32.totalorder 2, %s17
    // Predicated region
    $region69: #{_lambda_.9} parent=5 // pred_check
      %p3342 = pneg %p3341
    $region70: #{_lambda_.9} parent=5 // pred_check_branch
      %3344 = sbr.rel (%p3342) target = $region72
    $region71: #{_lambda_.9} parent=5 // pred_region
      %s3345 = ssub.s32 %s17, 2
      // Predicated region
      $region73: #{_lambda_.9} parent=71 // pred_check
        %p3346 = pneg %p315
      $region74: #{_lambda_.9} parent=71 // pred_check_branch
        %3348 = sbr.rel (%p3346) target = $region76
      $region75: #{_lambda_.9} parent=71 // pred_region
        %p3349 = scmp.lt.s32.totalorder %s28, 1
        %s3350 = scalar_select %p3349, %s28, 1
        %p3351 = scmp.lt.s32.totalorder %s29, 0
        %s3352 = scalar_select %p3351, %s29, 0
        %s3353 = smul.addr %s3352, 8
        %s3354 = smul.addr %s3350, 8
        %s3355 = sadd.s32 %s3353, %s3354
        %s3356 = scalar_lea.vmem %s11, %s3355
      $region76: #{_lambda_.9} parent=71 // pred_fallthru
        _
    $region72: #{_lambda_.9} parent=5 // pred_fallthru
      _
  $region6: #{_lambda_.9} parent=0 // loop_footer
    %s21 = sadd.s32 1, %s17
  $region7: #{_lambda_.9} parent=0 // loop_footer_branch
    %16 = sbr.rel target = $region3
  $region8: #{_lambda_.9} parent=0 // loop_exit
    _

// kernel: neg.10
$region0: #{neg.10}
  #allocation0 [shape = 's32[1]{0}', space=sflag, size = 0x4, scoped, tag = 'scoped memory for neg.10']
  %s0 = inlined_call_operand.vmem [shape: f32[2,64,13], index: 0, kind: input, shape index: {}]
  %s1 = inlined_call_operand.vmem [shape: f32[2,64,13], index: 1, kind: output, shape index: {}]
  %v2 = vld [vmem:[%s0] sm:$0x3]
  %3 = xla_tuple %v2
  %4 = xla_tuple %3
  %v5 = vxor.u32 %v2, 2147483648
  %6 = xla_tuple %v5
  %7 = vst [vmem:[%s1] sm:$0x3] %v5
  %s8 = scalar_lea.vmem %s0, 2
  %v9 = vld [vmem:[%s8] sm:$0x3]
  %10 = xla_tuple %v9
  %11 = xla_tuple %10
  %v12 = vxor.u32 %v9, 2147483648
  %13 = xla_tuple %v12
  %s14 = scalar_lea.vmem %s1, 2
  %15 = vst [vmem:[%s14] sm:$0x3] %v12
  %s16 = scalar_lea.vmem %s0, 4
  %v17 = vld [vmem:[%s16] sm:$0x3]
  %18 = xla_tuple %v17
  %19 = xla_tuple %18
  %v20 = vxor.u32 %v17, 2147483648
  %21 = xla_tuple %v20
  %s22 = scalar_lea.vmem %s1, 4
  %23 = vst [vmem:[%s22] sm:$0x3] %v20
  %s24 = scalar_lea.vmem %s0, 6
  %v25 = vld [vmem:[%s24] sm:$0x3]
  %26 = xla_tuple %v25
  %27 = xla_tuple %26
  %v28 = vxor.u32 %v25, 2147483648
  %29 = xla_tuple %v28
  %s30 = scalar_lea.vmem %s1, 6
  %31 = vst [vmem:[%s30] sm:$0x3] %v28
  %s32 = scalar_lea.vmem %s0, 8
  %v33 = vld [vmem:[%s32] sm:$0x3]
  %34 = xla_tuple %v33
  %35 = xla_tuple %34
  %v36 = vxor.u32 %v33, 2147483648
  %37 = xla_tuple %v36
  %s38 = scalar_lea.vmem %s1, 8
  %39 = vst [vmem:[%s38] sm:$0x3] %v36
  %s40 = scalar_lea.vmem %s0, 10
  %v41 = vld [vmem:[%s40] sm:$0x3]
  %42 = xla_tuple %v41
  %43 = xla_tuple %42
  %v44 = vxor.u32 %v41, 2147483648
  %45 = xla_tuple %v44
  %s46 = scalar_lea.vmem %s1, 10
  %47 = vst [vmem:[%s46] sm:$0x3] %v44
  %s48 = scalar_lea.vmem %s0, 12
  %v49 = vld [vmem:[%s48] sm:$0x3]
  %50 = xla_tuple %v49
  %51 = xla_tuple %50
  %v52 = vxor.u32 %v49, 2147483648
  %53 = xla_tuple %v52
  %s54 = scalar_lea.vmem %s1, 12
  %55 = vst [vmem:[%s54] sm:$0x3] %v52
  %s56 = scalar_lea.vmem %s0, 14
  %v57 = vld [vmem:[%s56] sm:$0x3]
  %58 = xla_tuple %v57
  %59 = xla_tuple %58
  %v60 = vxor.u32 %v57, 2147483648
  %61 = xla_tuple %v60
  %s62 = scalar_lea.vmem %s1, 14
  %63 = vst [vmem:[%s62] sm:$0x3] %v60
  %s64 = scalar_lea.vmem %s0, 16
  %v65 = vld [vmem:[%s64] sm:$0x3]
  %66 = xla_tuple %v65
  %67 = xla_tuple %66
  %v68 = vxor.u32 %v65, 2147483648
  %69 = xla_tuple %v68
  %s70 = scalar_lea.vmem %s1, 16
  %71 = vst [vmem:[%s70] sm:$0x3] %v68
  %s72 = scalar_lea.vmem %s0, 18
  %v73 = vld [vmem:[%s72] sm:$0x3]
  %74 = xla_tuple %v73
  %75 = xla_tuple %74
  %v76 = vxor.u32 %v73, 2147483648
  %77 = xla_tuple %v76
  %s78 = scalar_lea.vmem %s1, 18
  %79 = vst [vmem:[%s78] sm:$0x3] %v76
  %s80 = scalar_lea.vmem %s0, 20
  %v81 = vld [vmem:[%s80] sm:$0x3]
  %82 = xla_tuple %v81
  %83 = xla_tuple %82
  %v84 = vxor.u32 %v81, 2147483648
  %85 = xla_tuple %v84
  %s86 = scalar_lea.vmem %s1, 20
  %87 = vst [vmem:[%s86] sm:$0x3] %v84
  %s88 = scalar_lea.vmem %s0, 22
  %v89 = vld [vmem:[%s88] sm:$0x3]
  %90 = xla_tuple %v89
  %91 = xla_tuple %90
  %v92 = vxor.u32 %v89, 2147483648
  %93 = xla_tuple %v92
  %s94 = scalar_lea.vmem %s1, 22
  %95 = vst [vmem:[%s94] sm:$0x3] %v92
  %s96 = scalar_lea.vmem %s0, 24
  %v97 = vld [vmem:[%s96] sm:$0x3]
  %98 = xla_tuple %v97
  %99 = xla_tuple %98
  %v100 = vxor.u32 %v97, 2147483648
  %101 = xla_tuple %v100
  %s102 = scalar_lea.vmem %s1, 24
  %103 = vst [vmem:[%s102] sm:$0x3] %v100

// kernel: _lambda_.11
$region0: #{_lambda_.11}
  #allocation0 [shape = 'u32[]', space=smem, size = 0x4, offset = 0x4, fixed_abs, tag = 'smem constant byte address 0x4 - core index']
  #allocation1 [shape = 'u32[144,128]{1,0:T(1,128)}', space=vmem, size = 0x12000, scoped, tag = 'internal scratch']
  %s0 = inlined_call_operand.vmem [shape: bf16[32,384], index: 0, kind: input, shape index: {}]
  %s1 = inlined_call_operand.vmem [shape: bf16[384,256], index: 1, kind: input, shape index: {}]
  %s2 = inlined_call_operand.vmem [shape: f32[1,256], index: 2, kind: input, shape index: {}]
  %s3 = inlined_call_operand.vmem [shape: bf16[256,128], index: 3, kind: input, shape index: {}]
  %s4 = inlined_call_operand.vmem [shape: f32[1,128], index: 4, kind: input, shape index: {}]
  %s5 = inlined_call_operand.vmem [shape: f32[32,128], index: 5, kind: output, shape index: {}]
  %s6 = sld [smem:[#allocation0]]
  $region53: #{_lambda_.11} parent=0
    _
  %s8 = ssub.s32 1, %s6
  %s9 = scalar_select 0, %s8, %s6
  loop: start=0, step=1, limit=4
  $region2: #{_lambda_.11} parent=0 // loop_pre_header
    _
  $region3: #{_lambda_.11} parent=0 // loop_header
    %s11 = sphi 0, %s15
    %p12 = scmp.ge.s32.totalorder %s11, 4
    %s21 = sphi 0, %s23
    %s24 = sphi 0, %s21
    %s25 = sphi 0, %s24
    %s41 = sphi 0, %s25
    %s45 = sphi 0, %s45
    %s47 = sphi 0, %s45
    %s48 = sphi 0, %s47
    %s62 = sphi 0, %s48
    %s66 = sphi 0, %s66
    %s68 = sphi 0, %s66
    %s69 = sphi 0, %s68
    %s83 = sphi 0, %s69
    %s87 = sphi 0, %s87
    %s89 = sphi 0, %s87
    %s90 = sphi 0, %s89
    %s104 = sphi 0, %s90
    %s108 = sphi 0, %s108
    %s110 = sphi 0, %s108
    %s111 = sphi 0, %s110
    %s125 = sphi 0, %s111
    %s131 = sphi 0, %s133
    %s134 = sphi 0, %s131
    %s135 = sphi 0, %s134
    %s151 = sphi 0, %s135
  $region4: #{_lambda_.11} parent=0 // loop_header_branch
    %14 = sbr.rel (%p12) target = $region8
  $region5: #{_lambda_.11} parent=0 // loop_body
    %s16 = ssub.s32 %s11, 1
    %s17 = ssub.s32 %s11, 2
    %s18 = sadd.s32 %s11, 1
    %s19 = ssub.s32 %s11, %s18
    %p20 = scmp.eq.s32.totalorder %s19, 0
    %s22 = sadd.s32 %s21, 1
    %s23 = scalar_select %p20, %s21, %s22
    %p26 = pneg %p20
    %p27 = scmp.eq.s32.totalorder %s11, 1
    %p28 = por %p26, %p27
    %p29 = scmp.ne.s32.totalorder %s21, %s24
    %p30 = scmp.eq.s32.totalorder %s11, 0
    %p31 = por %p29, %p30
    %p32 = scmp.ne.s32.totalorder %s21, %s24
    %p33 = scmp.eq.s32.totalorder %s16, 1
    %p34 = por %p32, %p33
    %p35 = scmp.ne.s32.totalorder %s24, %s25
    %p36 = scmp.eq.s32.totalorder %s16, 0
    %p37 = por %p35, %p36
    %p38 = scmp.ne.s32.totalorder %s24, %s25
    %p39 = scmp.eq.s32.totalorder %s17, 1
    %p40 = por %p38, %p39
    %p42 = scmp.ne.s32.totalorder %s25, %s41
    %p43 = scmp.eq.s32.totalorder %s17, 0
    %p44 = por %p42, %p43
    %s46 = sadd.s32 %s45, 1
    %p49 = scmp.eq.s32.totalorder %s11, 1
    %p50 = scmp.ne.s32.totalorder %s45, %s47
    %p51 = scmp.eq.s32.totalorder %s11, 0
    %p52 = por %p50, %p51
    %p53 = scmp.ne.s32.totalorder %s45, %s47
    %p54 = scmp.eq.s32.totalorder %s16, 1
    %p55 = por %p53, %p54
    %p56 = scmp.ne.s32.totalorder %s47, %s48
    %p57 = scmp.eq.s32.totalorder %s16, 0
    %p58 = por %p56, %p57
    %p59 = scmp.ne.s32.totalorder %s47, %s48
    %p60 = scmp.eq.s32.totalorder %s17, 1
    %p61 = por %p59, %p60
    %p63 = scmp.ne.s32.totalorder %s48, %s62
    %p64 = scmp.eq.s32.totalorder %s17, 0
    %p65 = por %p63, %p64
    %s67 = sadd.s32 %s66, 1
    %p70 = scmp.eq.s32.totalorder %s11, 1
    %p71 = scmp.ne.s32.totalorder %s66, %s68
    %p72 = scmp.eq.s32.totalorder %s11, 0
    %p73 = por %p71, %p72
    %p74 = scmp.ne.s32.totalorder %s66, %s68
    %p75 = scmp.eq.s32.totalorder %s16, 1
    %p76 = por %p74, %p75
    %p77 = scmp.ne.s32.totalorder %s68, %s69
    %p78 = scmp.eq.s32.totalorder %s16, 0
    %p79 = por %p77, %p78
    %p80 = scmp.ne.s32.totalorder %s68, %s69
    %p81 = scmp.eq.s32.totalorder %s17, 1
    %p82 = por %p80, %p81
    %p84 = scmp.ne.s32.totalorder %s69, %s83
    %p85 = scmp.eq.s32.totalorder %s17, 0
    %p86 = por %p84, %p85
    %s88 = sadd.s32 %s87, 1
    %p91 = scmp.eq.s32.totalorder %s11, 1
    %p92 = scmp.ne.s32.totalorder %s87, %s89
    %p93 = scmp.eq.s32.totalorder %s11, 0
    %p94 = por %p92, %p93
    %p95 = scmp.ne.s32.totalorder %s87, %s89
    %p96 = scmp.eq.s32.totalorder %s16, 1
    %p97 = por %p95, %p96
    %p98 = scmp.ne.s32.totalorder %s89, %s90
    %p99 = scmp.eq.s32.totalorder %s16, 0
    %p100 = por %p98, %p99
    %p101 = scmp.ne.s32.totalorder %s89, %s90
    %p102 = scmp.eq.s32.totalorder %s17, 1
    %p103 = por %p101, %p102
    %p105 = scmp.ne.s32.totalorder %s90, %s104
    %p106 = scmp.eq.s32.totalorder %s17, 0
    %p107 = por %p105, %p106
    %s109 = sadd.s32 %s108, 1
    %p112 = scmp.eq.s32.totalorder %s11, 1
    %p113 = scmp.ne.s32.totalorder %s108, %s110
    %p114 = scmp.eq.s32.totalorder %s11, 0
    %p115 = por %p113, %p114
    %p116 = scmp.ne.s32.totalorder %s108, %s110
    %p117 = scmp.eq.s32.totalorder %s16, 1
    %p118 = por %p116, %p117
    %p119 = scmp.ne.s32.totalorder %s110, %s111
    %p120 = scmp.eq.s32.totalorder %s16, 0
    %p121 = por %p119, %p120
    %p122 = scmp.ne.s32.totalorder %s110, %s111
    %p123 = scmp.eq.s32.totalorder %s17, 1
    %p124 = por %p122, %p123
    %p126 = scmp.ne.s32.totalorder %s111, %s125
    %p127 = scmp.eq.s32.totalorder %s17, 0
    %p128 = por %p126, %p127
    %s129 = ssub.s32 %s11, %s18
    %p130 = scmp.eq.s32.totalorder %s129, 0
    %s132 = sadd.s32 %s131, 1
    %s133 = scalar_select %p130, %s131, %s132
    %p136 = pneg %p130
    %p137 = scmp.eq.s32.totalorder %s11, 1
    %p138 = por %p136, %p137
    %p139 = scmp.ne.s32.totalorder %s131, %s134
    %p140 = scmp.eq.s32.totalorder %s11, 0
    %p141 = por %p139, %p140
    %p142 = scmp.ne.s32.totalorder %s131, %s134
    %p143 = scmp.eq.s32.totalorder %s16, 1
    %p144 = por %p142, %p143
    %p145 = scmp.ne.s32.totalorder %s134, %s135
    %p146 = scmp.eq.s32.totalorder %s16, 0
    %p147 = por %p145, %p146
    %p148 = scmp.ne.s32.totalorder %s134, %s135
    %p149 = scmp.eq.s32.totalorder %s17, 1
    %p150 = por %p148, %p149
    %p152 = scmp.ne.s32.totalorder %s135, %s151
    %p153 = scmp.eq.s32.totalorder %s17, 0
    %p154 = por %p152, %p153
    %p155 = scmp.le.s32.totalorder 1, %s11
    %p156 = scmp.lt.s32.totalorder %s11, 3
    %p157 = pnand %p155, %p156
    %p158 = pneg %p157
    // Predicated region
    $region9: #{_lambda_.11} parent=5 // pred_check
      _
    $region10: #{_lambda_.11} parent=5 // pred_check_branch
      %160 = sbr.rel (%p157) target = $region12
    $region11: #{_lambda_.11} parent=5 // pred_region
      %s161 = ssub.s32 %s11, 1
      // Predicated region
      $region13: #{_lambda_.11} parent=11 // pred_check
        %p162 = pneg %p58
      $region14: #{_lambda_.11} parent=11 // pred_check_branch
        %164 = sbr.rel (%p162) target = $region16
      $region15: #{_lambda_.11} parent=11 // pred_region
        _
      $region16: #{_lambda_.11} parent=11 // pred_fallthru
        _
      // Predicated region
      $region17: #{_lambda_.11} parent=11 // pred_check
        %p165 = pneg %p79
      $region18: #{_lambda_.11} parent=11 // pred_check_branch
        %167 = sbr.rel (%p165) target = $region20
      $region19: #{_lambda_.11} parent=11 // pred_region
        _
      $region20: #{_lambda_.11} parent=11 // pred_fallthru
        _
      // Predicated region
      $region21: #{_lambda_.11} parent=11 // pred_check
        %p168 = pneg %p100
      $region22: #{_lambda_.11} parent=11 // pred_check_branch
        %170 = sbr.rel (%p168) target = $region24
      $region23: #{_lambda_.11} parent=11 // pred_region
        _
      $region24: #{_lambda_.11} parent=11 // pred_fallthru
        _
      // Predicated region
      $region25: #{_lambda_.11} parent=11 // pred_check
        %p171 = pneg %p121
      $region26: #{_lambda_.11} parent=11 // pred_check_branch
        %173 = sbr.rel (%p171) target = $region28
      $region27: #{_lambda_.11} parent=11 // pred_region
        _
      $region28: #{_lambda_.11} parent=11 // pred_fallthru
        _
    $region12: #{_lambda_.11} parent=5 // pred_fallthru
      _
    %p174 = scmp.lt.s32.totalorder %s11, 2
    // Predicated region
    $region29: #{_lambda_.11} parent=5 // pred_check
      %p175 = pneg %p174
    $region30: #{_lambda_.11} parent=5 // pred_check_branch
      %177 = sbr.rel (%p175) target = $region32
    $region31: #{_lambda_.11} parent=5 // pred_region
      // Predicated region
      $region33: #{_lambda_.11} parent=31 // pred_check
        %p178 = pneg %p31
      $region34: #{_lambda_.11} parent=31 // pred_check_branch
        %180 = sbr.rel (%p178) target = $region36
      $region35: #{_lambda_.11} parent=31 // pred_region
        %s181 = smul.u32 2, %s11
        %p182 = scmp.lt.s32.totalorder %s181, 3
        %s183 = scalar_select %p182, %s181, 3
        %s184 = smul.addr %s183, 3
        %s185 = smul.addr %s184, 4
        %s186 = scalar_lea.vmem %s0, %s185
        %s187 = smul.u32 2, %s11
      $region36: #{_lambda_.11} parent=31 // pred_fallthru
        _
    $region32: #{_lambda_.11} parent=5 // pred_fallthru
      _
    %p188 = scmp.le.s32.totalorder 1, %s11
    %p189 = scmp.lt.s32.totalorder %s11, 3
    %p190 = pnand %p188, %p189
    %p191 = pneg %p190
    // Predicated region
    $region37: #{_lambda_.11} parent=5 // pred_check
      _
    $region38: #{_lambda_.11} parent=5 // pred_check_branch
      %193 = sbr.rel (%p190) target = $region40
    $region39: #{_lambda_.11} parent=5 // pred_region
      %s194 = ssub.s32 %s11, 1
      %s195 = smul.u32 2, %s16
      %p196 = scmp.lt.s32.totalorder %s195, 3
      %s197 = scalar_select %p196, %s195, 3
      %s198 = smul.addr %s197, 3
      %s199 = smul.addr %s198, 4
      %s200 = scalar_lea.vmem %s0, %s199
      %p201 = pneg %p37
      %p202 = pneg %p34
      %p203 = pneg %p58
      %p204 = pneg %p55
      %p205 = pneg %p79
      %p206 = pneg %p76
      %p207 = pneg %p100
      %p208 = pneg %p97
      %p209 = pneg %p121
      %p210 = pneg %p118
      %p211 = pneg %p147
      %p212 = pneg %p144
      %s213 = smul.u32 2, %s16
      %p214 = scmp.lt.s32.totalorder %s213, 3
      %s215 = scalar_select %p214, %s213, 3
      %s216 = smul.addr %s215, 8
      %s217 = scalar_lea.vmem %s5, %s216
      %s218 = smul.u32 2, %s16
      %p219 = scmp.lt.s32.totalorder %s218, 3
      %s220 = scalar_select %p219, %s218, 3
      %s221 = smul.addr %s220, 3
      %s222 = smul.addr %s221, 4
      %s223 = scalar_lea.vmem %s0, %s222
      %s224 = smul.u32 2, %s16
      %s225 = smul.u32 2, %s16
      %p226 = scmp.lt.s32.totalorder %s225, 3
      %s227 = scalar_select %p226, %s225, 3
      %s228 = smul.addr %s227, 8
      %s229 = scalar_lea.vmem %s5, %s228
      %s230 = smul.u32 2, %s16
      %v232 = vld [vmem:[%s223] sm:$0xff]
      %v233 = vld [vmem:[%s223 + $0x8] sm:$0xf]
      %v234 = vld [vmem:[%s223 + $0xc] sm:$0xff]
      %v235 = vld [vmem:[%s223 + $0x14] sm:$0xf]
      %v236 = vld [vmem:[%s1] sm:$0xff]
      %v237 = vld [vmem:[%s1 + $0x8] sm:$0xff]
      %v238 = vld [vmem:[%s1 + $0x10] sm:$0xff]
      %v239 = vld [vmem:[%s1 + $0x18] sm:$0xff]
      %v240 = vld [vmem:[%s1 + $0x20] sm:$0xff]
      %v241 = vld [vmem:[%s1 + $0x28] sm:$0xff]
      %v242 = vld [vmem:[%s1 + $0x30] sm:$0xff]
      %v243 = vld [vmem:[%s1 + $0x38] sm:$0xff]
      %v244 = vld [vmem:[%s1 + $0x40] sm:$0xff]
      %v245 = vld [vmem:[%s1 + $0x48] sm:$0xff]
      %v246 = vld [vmem:[%s1 + $0x50] sm:$0xff]
      %v247 = vld [vmem:[%s1 + $0x58] sm:$0xff]
      %v248 = vld [vmem:[%s1 + $0x60] sm:$0xff]
      %v249 = vld [vmem:[%s1 + $0x68] sm:$0xff]
      %v250 = vld [vmem:[%s1 + $0x70] sm:$0xff]
      %v251 = vld [vmem:[%s1 + $0x78] sm:$0xff]
      %v252 = vld [vmem:[%s1 + $0x80] sm:$0xff]
      %v253 = vld [vmem:[%s1 + $0x88] sm:$0xff]
      %v254 = vld [vmem:[%s1 + $0x90] sm:$0xff]
      %v255 = vld [vmem:[%s1 + $0x98] sm:$0xff]
      %v256 = vld [vmem:[%s1 + $0xa0] sm:$0xff]
      %v257 = vld [vmem:[%s1 + $0xa8] sm:$0xff]
      %v258 = vld [vmem:[%s1 + $0xb0] sm:$0xff]
      %v259 = vld [vmem:[%s1 + $0xb8] sm:$0xff]
      %v260 = vld [vmem:[%s1 + $0xc0] sm:$0xff]
      %v261 = vld [vmem:[%s1 + $0xc8] sm:$0xff]
      %v262 = vld [vmem:[%s1 + $0xd0] sm:$0xff]
      %v263 = vld [vmem:[%s1 + $0xd8] sm:$0xff]
      %v264 = vld [vmem:[%s1 + $0xe0] sm:$0xff]
      %v265 = vld [vmem:[%s1 + $0xe8] sm:$0xff]
      %v266 = vld [vmem:[%s1 + $0xf0] sm:$0xff]
      %v267 = vld [vmem:[%s1 + $0xf8] sm:$0xff]
      %v268 = vld [vmem:[%s1 + $0x100] sm:$0xff]
      %v269 = vld [vmem:[%s1 + $0x108] sm:$0xff]
      %v270 = vld [vmem:[%s1 + $0x110] sm:$0xff]
      %v271 = vld [vmem:[%s1 + $0x118] sm:$0xff]
      %v272 = vld [vmem:[%s1 + $0x120] sm:$0xff]
      %v273 = vld [vmem:[%s1 + $0x128] sm:$0xff]
      %v274 = vld [vmem:[%s1 + $0x130] sm:$0xff]
      %v275 = vld [vmem:[%s1 + $0x138] sm:$0xff]
      %v276 = vld [vmem:[%s1 + $0x140] sm:$0xff]
      %v277 = vld [vmem:[%s1 + $0x148] sm:$0xff]
      %v278 = vld [vmem:[%s1 + $0x150] sm:$0xff]
      %v279 = vld [vmem:[%s1 + $0x158] sm:$0xff]
      %v280 = vld [vmem:[%s1 + $0x160] sm:$0xff]
      %v281 = vld [vmem:[%s1 + $0x168] sm:$0xff]
      %v282 = vld [vmem:[%s1 + $0x170] sm:$0xff]
      %v283 = vld [vmem:[%s1 + $0x178] sm:$0xff]
      %v284 = vld [vmem:[%s2] sm:$0x3]
      %v286 = vlaneseq
      %v287 = vshrl.u32 %v286, 7
      %v288 = vsub.s32 0, %v287
      %v289 = vrot.slane %v284, %v288
      %v290 = vlaneseq
      %v291 = vshrl.u32 %v290, 7
      %v292 = vsub.s32 1, %v291
      %v293 = vrot.slane %v284, %v292
      %v300 = vunpack.c.l.b16 %v232
      %v301 = vunpack.c.h.b16 %v232
      %v302 = vunpack.c.l.b16 %v233
      %v303 = vunpack.c.l.b16 %v234
      %v304 = vunpack.c.h.b16 %v234
      %v305 = vunpack.c.l.b16 %v235
      %v306 = vpack.c.b16 %v303, %v300
      %v307 = vpack.c.b16 %v304, %v301
      %v308 = vpack.c.b16 %v305, %v302
      %v360 = vunpack.c.l.b16 %v236
      %v361 = vunpack.c.h.b16 %v236
      %v362 = vunpack.c.l.b16 %v237
      %v363 = vunpack.c.h.b16 %v237
      %v364 = vunpack.c.l.b16 %v238
      %v365 = vunpack.c.h.b16 %v238
      %v366 = vunpack.c.l.b16 %v239
      %v367 = vunpack.c.h.b16 %v239
      %v368 = vunpack.c.l.b16 %v240
      %v369 = vunpack.c.h.b16 %v240
      %v370 = vunpack.c.l.b16 %v241
      %v371 = vunpack.c.h.b16 %v241
      %v372 = vunpack.c.l.b16 %v242
      %v373 = vunpack.c.h.b16 %v242
      %v374 = vunpack.c.l.b16 %v243
      %v375 = vunpack.c.h.b16 %v243
      %v376 = vunpack.c.l.b16 %v244
      %v377 = vunpack.c.h.b16 %v244
      %v378 = vunpack.c.l.b16 %v245
      %v379 = vunpack.c.h.b16 %v245
      %v380 = vunpack.c.l.b16 %v246
      %v381 = vunpack.c.h.b16 %v246
      %v382 = vunpack.c.l.b16 %v247
      %v383 = vunpack.c.h.b16 %v247
      %v384 = vunpack.c.l.b16 %v248
      %v385 = vunpack.c.h.b16 %v248
      %v386 = vunpack.c.l.b16 %v249
      %v387 = vunpack.c.h.b16 %v249
      %v388 = vunpack.c.l.b16 %v250
      %v389 = vunpack.c.h.b16 %v250
      %v390 = vunpack.c.l.b16 %v251
      %v391 = vunpack.c.h.b16 %v251
      %v392 = vunpack.c.l.b16 %v252
      %v393 = vunpack.c.h.b16 %v252
      %v394 = vunpack.c.l.b16 %v253
      %v395 = vunpack.c.h.b16 %v253
      %v396 = vunpack.c.l.b16 %v254
      %v397 = vunpack.c.h.b16 %v254
      %v398 = vunpack.c.l.b16 %v255
      %v399 = vunpack.c.h.b16 %v255
      %v400 = vunpack.c.l.b16 %v256
      %v401 = vunpack.c.h.b16 %v256
      %v402 = vunpack.c.l.b16 %v257
      %v403 = vunpack.c.h.b16 %v257
      %v404 = vunpack.c.l.b16 %v258
      %v405 = vunpack.c.h.b16 %v258
      %v406 = vunpack.c.l.b16 %v259
      %v407 = vunpack.c.h.b16 %v259
      %v408 = vunpack.c.l.b16 %v260
      %v409 = vunpack.c.h.b16 %v260
      %v410 = vunpack.c.l.b16 %v261
      %v411 = vunpack.c.h.b16 %v261
      %v412 = vunpack.c.l.b16 %v262
      %v413 = vunpack.c.h.b16 %v262
      %v414 = vunpack.c.l.b16 %v263
      %v415 = vunpack.c.h.b16 %v263
      %v416 = vunpack.c.l.b16 %v264
      %v417 = vunpack.c.h.b16 %v264
      %v418 = vunpack.c.l.b16 %v265
      %v419 = vunpack.c.h.b16 %v265
      %v420 = vunpack.c.l.b16 %v266
      %v421 = vunpack.c.h.b16 %v266
      %v422 = vunpack.c.l.b16 %v267
      %v423 = vunpack.c.h.b16 %v267
      %v424 = vunpack.c.l.b16 %v268
      %v425 = vunpack.c.h.b16 %v268
      %v426 = vunpack.c.l.b16 %v269
      %v427 = vunpack.c.h.b16 %v269
      %v428 = vunpack.c.l.b16 %v270
      %v429 = vunpack.c.h.b16 %v270
      %v430 = vunpack.c.l.b16 %v271
      %v431 = vunpack.c.h.b16 %v271
      %v432 = vunpack.c.l.b16 %v272
      %v433 = vunpack.c.h.b16 %v272
      %v434 = vunpack.c.l.b16 %v273
      %v435 = vunpack.c.h.b16 %v273
      %v436 = vunpack.c.l.b16 %v274
      %v437 = vunpack.c.h.b16 %v274
      %v438 = vunpack.c.l.b16 %v275
      %v439 = vunpack.c.h.b16 %v275
      %v440 = vunpack.c.l.b16 %v276
      %v441 = vunpack.c.h.b16 %v276
      %v442 = vunpack.c.l.b16 %v277
      %v443 = vunpack.c.h.b16 %v277
      %v444 = vunpack.c.l.b16 %v278
      %v445 = vunpack.c.h.b16 %v278
      %v446 = vunpack.c.l.b16 %v279
      %v447 = vunpack.c.h.b16 %v279
      %v448 = vunpack.c.l.b16 %v280
      %v449 = vunpack.c.h.b16 %v280
      %v450 = vunpack.c.l.b16 %v281
      %v451 = vunpack.c.h.b16 %v281
      %v452 = vunpack.c.l.b16 %v282
      %v453 = vunpack.c.h.b16 %v282
      %v454 = vunpack.c.l.b16 %v283
      %v455 = vunpack.c.h.b16 %v283
      %v456 = vpack.c.b16 %v362, %v360
      %v457 = vpack.c.b16 %v363, %v361
      %v458 = vpack.c.b16 %v366, %v364
      %v459 = vpack.c.b16 %v367, %v365
      %v460 = vpack.c.b16 %v370, %v368
      %v461 = vpack.c.b16 %v371, %v369
      %v462 = vpack.c.b16 %v374, %v372
      %v463 = vpack.c.b16 %v375, %v373
      %v464 = vpack.c.b16 %v378, %v376
      %v465 = vpack.c.b16 %v379, %v377
      %v466 = vpack.c.b16 %v382, %v380
      %v467 = vpack.c.b16 %v383, %v381
      %v468 = vpack.c.b16 %v386, %v384
      %v469 = vpack.c.b16 %v387, %v385
      %v470 = vpack.c.b16 %v390, %v388
      %v471 = vpack.c.b16 %v391, %v389
      %v472 = vpack.c.b16 %v394, %v392
      %v473 = vpack.c.b16 %v395, %v393
      %v474 = vpack.c.b16 %v398, %v396
      %v475 = vpack.c.b16 %v399, %v397
      %v476 = vpack.c.b16 %v402, %v400
      %v477 = vpack.c.b16 %v403, %v401
      %v478 = vpack.c.b16 %v406, %v404
      %v479 = vpack.c.b16 %v407, %v405
      %v480 = vpack.c.b16 %v410, %v408
      %v481 = vpack.c.b16 %v411, %v409
      %v482 = vpack.c.b16 %v414, %v412
      %v483 = vpack.c.b16 %v415, %v413
      %v484 = vpack.c.b16 %v418, %v416
      %v485 = vpack.c.b16 %v419, %v417
      %v486 = vpack.c.b16 %v422, %v420
      %v487 = vpack.c.b16 %v423, %v421
      %v488 = vpack.c.b16 %v426, %v424
      %v489 = vpack.c.b16 %v427, %v425
      %v490 = vpack.c.b16 %v430, %v428
      %v491 = vpack.c.b16 %v431, %v429
      %v492 = vpack.c.b16 %v434, %v432
      %v493 = vpack.c.b16 %v435, %v433
      %v494 = vpack.c.b16 %v438, %v436
      %v495 = vpack.c.b16 %v439, %v437
      %v496 = vpack.c.b16 %v442, %v440
      %v497 = vpack.c.b16 %v443, %v441
      %v498 = vpack.c.b16 %v446, %v444
      %v499 = vpack.c.b16 %v447, %v445
      %v500 = vpack.c.b16 %v450, %v448
      %v501 = vpack.c.b16 %v451, %v449
      %v502 = vpack.c.b16 %v454, %v452
      %v503 = vpack.c.b16 %v455, %v453
      %552 = vmatprep.subr.bf16.mxu0 %v471
      %553 = vmatpush1.bf16.msra.mxu0 %v470
      %554 = vmatprep.subr.bf16.mxu0 %v469
      %555 = vmatpush1.bf16.msra.mxu0 %v468
      %556 = vmatprep.subr.bf16.mxu0 %v467
      %557 = vmatpush1.bf16.msra.mxu0 %v466
      %558 = vmatprep.subr.bf16.mxu0 %v465
      %559 = vmatpush1.bf16.msra.mxu0 %v464
      %560 = vmatprep.subr.bf16.mxu0 %v463
      %561 = vmatpush1.bf16.msra.mxu0 %v462
      %562 = vmatprep.subr.bf16.mxu0 %v461
      %563 = vmatpush1.bf16.msra.mxu0 %v460
      %564 = vmatprep.subr.bf16.mxu0 %v459
      %565 = vmatpush1.bf16.msra.mxu0 %v458
      %566 = vmatprep.subr.bf16.mxu0 %v457
      %567 = vmatpush1.bf16.msra.mxu0 %v456
      %568 = vmatprep.subr.bf16.mxu0 %v487
      %569 = vmatpush2.bf16.msra.mxu0 %v486
      %570 = vmatprep.subr.bf16.mxu0 %v485
      %571 = vmatpush2.bf16.msra.mxu0 %v484
      %572 = vmatprep.subr.bf16.mxu0 %v483
      %573 = vmatpush2.bf16.msra.mxu0 %v482
      %574 = vmatprep.subr.bf16.mxu0 %v481
      %575 = vmatpush2.bf16.msra.mxu0 %v480
      %576 = vmatprep.subr.bf16.mxu0 %v479
      %577 = vmatpush2.bf16.msra.mxu0 %v478
      %578 = vmatprep.subr.bf16.mxu0 %v477
      %579 = vmatpush2.bf16.msra.mxu0 %v476
      %580 = vmatprep.subr.bf16.mxu0 %v475
      %581 = vmatpush2.bf16.msra.mxu0 %v474
      %582 = vmatprep.subr.bf16.mxu0 %v473
      %583 = vmatpush2.bf16.msra.mxu0 %v472
      %584 = vmatprep.mubr.bf16.mxu0 %v307
      %585 = vmatmul.mubr.bf16.gmra.mxu0 %v306
      %v586 = vpop.f32.mrf.mxu0
      %v587 = vadd.f32 %v289, %v586
      %v588 = vpop.f32.mrf.mxu0
      %v589 = vadd.f32 %v293, %v588
      %v590 = vpop.f32.mrf.mxu0
      %v591 = vadd.f32 %v289, %v590
      %v592 = vpop.f32.mrf.mxu0
      %v593 = vadd.f32 %v293, %v592
      %594 = vdwg.mxu0
      %595 = vmatprep.subr.bf16.mxu0 %v503
      %596 = vmatpush1.bf16.msra.mxu0 %v502
      %597 = vmatprep.subr.bf16.mxu0 %v501
      %598 = vmatpush1.bf16.msra.mxu0 %v500
      %599 = vmatprep.subr.bf16.mxu0 %v499
      %600 = vmatpush1.bf16.msra.mxu0 %v498
      %601 = vmatprep.subr.bf16.mxu0 %v497
      %602 = vmatpush1.bf16.msra.mxu0 %v496
      %603 = vmatprep.subr.bf16.mxu0 %v495
      %604 = vmatpush1.bf16.msra.mxu0 %v494
      %605 = vmatprep.subr.bf16.mxu0 %v493
      %606 = vmatpush1.bf16.msra.mxu0 %v492
      %607 = vmatprep.subr.bf16.mxu0 %v491
      %608 = vmatpush1.bf16.msra.mxu0 %v490
      %609 = vmatprep.subr.bf16.mxu0 %v489
      %610 = vmatpush1.bf16.msra.mxu0 %v488
      %611 = vmatprep.subr.bf16.mxu0 0
      %612 = vmatpush2.bf16.msra.mxu0 0
      %613 = vmatprep.subr.bf16.mxu0 0
      %614 = vmatpush2.bf16.msra.mxu0 0
      %615 = vmatprep.subr.bf16.mxu0 0
      %616 = vmatpush2.bf16.msra.mxu0 0
      %617 = vmatprep.subr.bf16.mxu0 0
      %618 = vmatpush2.bf16.msra.mxu0 0
      %619 = vmatprep.subr.bf16.mxu0 0
      %620 = vmatpush2.bf16.msra.mxu0 0
      %621 = vmatprep.subr.bf16.mxu0 0
      %622 = vmatpush2.bf16.msra.mxu0 0
      %623 = vmatprep.subr.bf16.mxu0 0
      %624 = vmatpush2.bf16.msra.mxu0 0
      %625 = vmatprep.subr.bf16.mxu0 0
      %626 = vmatpush2.bf16.msra.mxu0 0
      %627 = vmatprep.mubr.bf16.mxu0 0
      %628 = vmatmul.mubr.bf16.gmra.mxu0 %v308
      %v629 = vpop.f32.mrf.mxu0
      %v630 = vadd.f32 %v587, %v629
      %v631 = vpop.f32.mrf.mxu0
      %v632 = vadd.f32 %v589, %v631
      %v633 = vpop.f32.mrf.mxu0
      %v634 = vadd.f32 %v591, %v633
      %v635 = vpop.f32.mrf.mxu0
      %v636 = vadd.f32 %v593, %v635
      %637 = vdwg.mxu0
      %v638 = vmax.f32 %v630, 0.0
      %v639 = vmax.f32 %v632, 0.0
      %v640 = vmax.f32 %v634, 0.0
      %v641 = vmax.f32 %v636, 0.0
      %v642 = vpack.c.bf16 %v640, %v638
      %v643 = vpack.c.bf16 %v641, %v639
      %v644 = vld [vmem:[%s3] sm:$0xf]
      %v645 = vld [vmem:[%s3 + $0x4] sm:$0xf]
      %v646 = vld [vmem:[%s3 + $0x8] sm:$0xf]
      %v647 = vld [vmem:[%s3 + $0xc] sm:$0xf]
      %v648 = vld [vmem:[%s3 + $0x10] sm:$0xf]
      %v649 = vld [vmem:[%s3 + $0x14] sm:$0xf]
      %v650 = vld [vmem:[%s3 + $0x18] sm:$0xf]
      %v651 = vld [vmem:[%s3 + $0x1c] sm:$0xf]
      %v652 = vld [vmem:[%s3 + $0x20] sm:$0xf]
      %v653 = vld [vmem:[%s3 + $0x24] sm:$0xf]
      %v654 = vld [vmem:[%s3 + $0x28] sm:$0xf]
      %v655 = vld [vmem:[%s3 + $0x2c] sm:$0xf]
      %v656 = vld [vmem:[%s3 + $0x30] sm:$0xf]
      %v657 = vld [vmem:[%s3 + $0x34] sm:$0xf]
      %v658 = vld [vmem:[%s3 + $0x38] sm:$0xf]
      %v659 = vld [vmem:[%s3 + $0x3c] sm:$0xf]
      %v660 = vld [vmem:[%s3 + $0x40] sm:$0xf]
      %v661 = vld [vmem:[%s3 + $0x44] sm:$0xf]
      %v662 = vld [vmem:[%s3 + $0x48] sm:$0xf]
      %v663 = vld [vmem:[%s3 + $0x4c] sm:$0xf]
      %v664 = vld [vmem:[%s3 + $0x50] sm:$0xf]
      %v665 = vld [vmem:[%s3 + $0x54] sm:$0xf]
      %v666 = vld [vmem:[%s3 + $0x58] sm:$0xf]
      %v667 = vld [vmem:[%s3 + $0x5c] sm:$0xf]
      %v668 = vld [vmem:[%s3 + $0x60] sm:$0xf]
      %v669 = vld [vmem:[%s3 + $0x64] sm:$0xf]
      %v670 = vld [vmem:[%s3 + $0x68] sm:$0xf]
      %v671 = vld [vmem:[%s3 + $0x6c] sm:$0xf]
      %v672 = vld [vmem:[%s3 + $0x70] sm:$0xf]
      %v673 = vld [vmem:[%s3 + $0x74] sm:$0xf]
      %v674 = vld [vmem:[%s3 + $0x78] sm:$0xf]
      %v675 = vld [vmem:[%s3 + $0x7c] sm:$0xf]
      %v676 = vld [vmem:[%s4] sm:$0x1]
      %v678 = vlaneseq
      %v679 = vshrl.u32 %v678, 7
      %v680 = vsub.s32 0, %v679
      %v681 = vrot.slane %v676, %v680
      %v715 = vunpack.c.l.b16 %v644
      %v716 = vunpack.c.l.b16 %v645
      %v717 = vunpack.c.l.b16 %v646
      %v718 = vunpack.c.l.b16 %v647
      %v719 = vunpack.c.l.b16 %v648
      %v720 = vunpack.c.l.b16 %v649
      %v721 = vunpack.c.l.b16 %v650
      %v722 = vunpack.c.l.b16 %v651
      %v723 = vunpack.c.l.b16 %v652
      %v724 = vunpack.c.l.b16 %v653
      %v725 = vunpack.c.l.b16 %v654
      %v726 = vunpack.c.l.b16 %v655
      %v727 = vunpack.c.l.b16 %v656
      %v728 = vunpack.c.l.b16 %v657
      %v729 = vunpack.c.l.b16 %v658
      %v730 = vunpack.c.l.b16 %v659
      %v731 = vunpack.c.l.b16 %v660
      %v732 = vunpack.c.l.b16 %v661
      %v733 = vunpack.c.l.b16 %v662
      %v734 = vunpack.c.l.b16 %v663
      %v735 = vunpack.c.l.b16 %v664
      %v736 = vunpack.c.l.b16 %v665
      %v737 = vunpack.c.l.b16 %v666
      %v738 = vunpack.c.l.b16 %v667
      %v739 = vunpack.c.l.b16 %v668
      %v740 = vunpack.c.l.b16 %v669
      %v741 = vunpack.c.l.b16 %v670
      %v742 = vunpack.c.l.b16 %v671
      %v743 = vunpack.c.l.b16 %v672
      %v744 = vunpack.c.l.b16 %v673
      %v745 = vunpack.c.l.b16 %v674
      %v746 = vunpack.c.l.b16 %v675
      %v747 = vpack.c.b16 %v716, %v715
      %v748 = vpack.c.b16 %v718, %v717
      %v749 = vpack.c.b16 %v720, %v719
      %v750 = vpack.c.b16 %v722, %v721
      %v751 = vpack.c.b16 %v724, %v723
      %v752 = vpack.c.b16 %v726, %v725
      %v753 = vpack.c.b16 %v728, %v727
      %v754 = vpack.c.b16 %v730, %v729
      %v755 = vpack.c.b16 %v732, %v731
      %v756 = vpack.c.b16 %v734, %v733
      %v757 = vpack.c.b16 %v736, %v735
      %v758 = vpack.c.b16 %v738, %v737
      %v759 = vpack.c.b16 %v740, %v739
      %v760 = vpack.c.b16 %v742, %v741
      %v761 = vpack.c.b16 %v744, %v743
      %v762 = vpack.c.b16 %v746, %v745
      %779 = vmatprep.subr.bf16.mxu0 0
      %780 = vmatpush1.bf16.msra.mxu0 %v754
      %781 = vmatprep.subr.bf16.mxu0 0
      %782 = vmatpush1.bf16.msra.mxu0 %v753
      %783 = vmatprep.subr.bf16.mxu0 0
      %784 = vmatpush1.bf16.msra.mxu0 %v752
      %785 = vmatprep.subr.bf16.mxu0 0
      %786 = vmatpush1.bf16.msra.mxu0 %v751
      %787 = vmatprep.subr.bf16.mxu0 0
      %788 = vmatpush1.bf16.msra.mxu0 %v750
      %789 = vmatprep.subr.bf16.mxu0 0
      %790 = vmatpush1.bf16.msra.mxu0 %v749
      %791 = vmatprep.subr.bf16.mxu0 0
      %792 = vmatpush1.bf16.msra.mxu0 %v748
      %793 = vmatprep.subr.bf16.mxu0 0
      %794 = vmatpush1.bf16.msra.mxu0 %v747
      %795 = vmatprep.subr.bf16.mxu0 0
      %796 = vmatpush2.bf16.msra.mxu0 %v762
      %797 = vmatprep.subr.bf16.mxu0 0
      %798 = vmatpush2.bf16.msra.mxu0 %v761
      %799 = vmatprep.subr.bf16.mxu0 0
      %800 = vmatpush2.bf16.msra.mxu0 %v760
      %801 = vmatprep.subr.bf16.mxu0 0
      %802 = vmatpush2.bf16.msra.mxu0 %v759
      %803 = vmatprep.subr.bf16.mxu0 0
      %804 = vmatpush2.bf16.msra.mxu0 %v758
      %805 = vmatprep.subr.bf16.mxu0 0
      %806 = vmatpush2.bf16.msra.mxu0 %v757
      %807 = vmatprep.subr.bf16.mxu0 0
      %808 = vmatpush2.bf16.msra.mxu0 %v756
      %809 = vmatprep.subr.bf16.mxu0 0
      %810 = vmatpush2.bf16.msra.mxu0 %v755
      %811 = vmatprep.mubr.bf16.mxu0 %v643
      %812 = vmatmul.mubr.bf16.gmra.mxu0 %v642
      %v813 = vpop.f32.mrf.mxu0
      %v814 = vadd.f32 %v681, %v813
      %v815 = vpop.f32.mrf.mxu0
      %v816 = vpop.f32.mrf.mxu0
      %v817 = vadd.f32 %v681, %v816
      %v818 = vpop.f32.mrf.mxu0
      %819 = vdwg.mxu0
      %820 = vst [vmem:[%s229] sm:$0xff] %v814
      %821 = vst [vmem:[%s229 + $0x8] sm:$0xff] %v817
      %s822 = smul.u32 2, %s16
      %p823 = scmp.lt.s32.totalorder %s822, 3
      %s824 = scalar_select %p823, %s822, 3
      %s825 = smul.addr %s824, 8
      %s826 = scalar_lea.vmem %s5, %s825
      // Predicated region
      $region41: #{_lambda_.11} parent=39 // pred_check
        %p827 = pneg %p144
      $region42: #{_lambda_.11} parent=39 // pred_check_branch
        %829 = sbr.rel (%p827) target = $region44
      $region43: #{_lambda_.11} parent=39 // pred_region
        %s830 = smul.u32 2, %s16
      $region44: #{_lambda_.11} parent=39 // pred_fallthru
        _
    $region40: #{_lambda_.11} parent=5 // pred_fallthru
      _
    %p831 = scmp.le.s32.totalorder 2, %s11
    // Predicated region
    $region45: #{_lambda_.11} parent=5 // pred_check
      %p832 = pneg %p831
    $region46: #{_lambda_.11} parent=5 // pred_check_branch
      %834 = sbr.rel (%p832) target = $region48
    $region47: #{_lambda_.11} parent=5 // pred_region
      %s835 = ssub.s32 %s11, 2
      // Predicated region
      $region49: #{_lambda_.11} parent=47 // pred_check
        %p836 = pneg %p150
      $region50: #{_lambda_.11} parent=47 // pred_check_branch
        %838 = sbr.rel (%p836) target = $region52
      $region51: #{_lambda_.11} parent=47 // pred_region
        %s839 = smul.u32 2, %s17
        %p840 = scmp.lt.s32.totalorder %s839, 3
        %s841 = scalar_select %p840, %s839, 3
        %s842 = smul.addr %s841, 8
        %s843 = scalar_lea.vmem %s5, %s842
      $region52: #{_lambda_.11} parent=47 // pred_fallthru
        _
    $region48: #{_lambda_.11} parent=5 // pred_fallthru
      _
  $region6: #{_lambda_.11} parent=0 // loop_footer
    %s15 = sadd.s32 1, %s11
  $region7: #{_lambda_.11} parent=0 // loop_footer_branch
    %10 = sbr.rel target = $region3
  $region8: #{_lambda_.11} parent=0 // loop_exit
    _

// kernel: _lambda_.12
$region0: #{_lambda_.12}
  #allocation0 [shape = 'u32[]', space=smem, size = 0x4, offset = 0x4, fixed_abs, tag = 'smem constant byte address 0x4 - core index']
  #allocation1 [shape = 'u32[144,128]{1,0:T(1,128)}', space=vmem, size = 0x12000, scoped, tag = 'internal scratch']
  %s0 = inlined_call_operand.vmem [shape: bf16[128,256], index: 0, kind: input, shape index: {}]
  %s1 = inlined_call_operand.vmem [shape: bf16[256,128], index: 1, kind: input, shape index: {}]
  %s2 = inlined_call_operand.vmem [shape: f32[1,128], index: 2, kind: input, shape index: {}]
  %s3 = inlined_call_operand.vmem [shape: bf16[128,128], index: 3, kind: input, shape index: {}]
  %s4 = inlined_call_operand.vmem [shape: f32[1,128], index: 4, kind: input, shape index: {}]
  %s5 = inlined_call_operand.vmem [shape: bf16[128,128], index: 5, kind: input, shape index: {}]
  %s6 = inlined_call_operand.vmem [shape: f32[1,128], index: 6, kind: input, shape index: {}]
  %s7 = inlined_call_operand.vmem [shape: f32[128,128], index: 7, kind: output, shape index: {}]
  %s8 = sld [smem:[#allocation0]]
  $region61: #{_lambda_.12} parent=0
    _
  %s10 = ssub.s32 1, %s8
  %s11 = scalar_select 0, %s10, %s8
  loop: start=0, step=1, limit=4
  $region2: #{_lambda_.12} parent=0 // loop_pre_header
    _
  $region3: #{_lambda_.12} parent=0 // loop_header
    %s13 = sphi 0, %s17
    %p14 = scmp.ge.s32.totalorder %s13, 4
    %s23 = sphi 0, %s25
    %s26 = sphi 0, %s23
    %s27 = sphi 0, %s26
    %s43 = sphi 0, %s27
    %s47 = sphi 0, %s47
    %s49 = sphi 0, %s47
    %s50 = sphi 0, %s49
    %s64 = sphi 0, %s50
    %s68 = sphi 0, %s68
    %s70 = sphi 0, %s68
    %s71 = sphi 0, %s70
    %s85 = sphi 0, %s71
    %s89 = sphi 0, %s89
    %s91 = sphi 0, %s89
    %s92 = sphi 0, %s91
    %s106 = sphi 0, %s92
    %s110 = sphi 0, %s110
    %s112 = sphi 0, %s110
    %s113 = sphi 0, %s112
    %s127 = sphi 0, %s113
    %s131 = sphi 0, %s131
    %s133 = sphi 0, %s131
    %s134 = sphi 0, %s133
    %s148 = sphi 0, %s134
    %s152 = sphi 0, %s152
    %s154 = sphi 0, %s152
    %s155 = sphi 0, %s154
    %s169 = sphi 0, %s155
    %s175 = sphi 0, %s177
    %s178 = sphi 0, %s175
    %s179 = sphi 0, %s178
    %s195 = sphi 0, %s179
  $region4: #{_lambda_.12} parent=0 // loop_header_branch
    %16 = sbr.rel (%p14) target = $region8
  $region5: #{_lambda_.12} parent=0 // loop_body
    %s18 = ssub.s32 %s13, 1
    %s19 = ssub.s32 %s13, 2
    %s20 = sadd.s32 %s13, 1
    %s21 = ssub.s32 %s13, %s20
    %p22 = scmp.eq.s32.totalorder %s21, 0
    %s24 = sadd.s32 %s23, 1
    %s25 = scalar_select %p22, %s23, %s24
    %p28 = pneg %p22
    %p29 = scmp.eq.s32.totalorder %s13, 1
    %p30 = por %p28, %p29
    %p31 = scmp.ne.s32.totalorder %s23, %s26
    %p32 = scmp.eq.s32.totalorder %s13, 0
    %p33 = por %p31, %p32
    %p34 = scmp.ne.s32.totalorder %s23, %s26
    %p35 = scmp.eq.s32.totalorder %s18, 1
    %p36 = por %p34, %p35
    %p37 = scmp.ne.s32.totalorder %s26, %s27
    %p38 = scmp.eq.s32.totalorder %s18, 0
    %p39 = por %p37, %p38
    %p40 = scmp.ne.s32.totalorder %s26, %s27
    %p41 = scmp.eq.s32.totalorder %s19, 1
    %p42 = por %p40, %p41
    %p44 = scmp.ne.s32.totalorder %s27, %s43
    %p45 = scmp.eq.s32.totalorder %s19, 0
    %p46 = por %p44, %p45
    %s48 = sadd.s32 %s47, 1
    %p51 = scmp.eq.s32.totalorder %s13, 1
    %p52 = scmp.ne.s32.totalorder %s47, %s49
    %p53 = scmp.eq.s32.totalorder %s13, 0
    %p54 = por %p52, %p53
    %p55 = scmp.ne.s32.totalorder %s47, %s49
    %p56 = scmp.eq.s32.totalorder %s18, 1
    %p57 = por %p55, %p56
    %p58 = scmp.ne.s32.totalorder %s49, %s50
    %p59 = scmp.eq.s32.totalorder %s18, 0
    %p60 = por %p58, %p59
    %p61 = scmp.ne.s32.totalorder %s49, %s50
    %p62 = scmp.eq.s32.totalorder %s19, 1
    %p63 = por %p61, %p62
    %p65 = scmp.ne.s32.totalorder %s50, %s64
    %p66 = scmp.eq.s32.totalorder %s19, 0
    %p67 = por %p65, %p66
    %s69 = sadd.s32 %s68, 1
    %p72 = scmp.eq.s32.totalorder %s13, 1
    %p73 = scmp.ne.s32.totalorder %s68, %s70
    %p74 = scmp.eq.s32.totalorder %s13, 0
    %p75 = por %p73, %p74
    %p76 = scmp.ne.s32.totalorder %s68, %s70
    %p77 = scmp.eq.s32.totalorder %s18, 1
    %p78 = por %p76, %p77
    %p79 = scmp.ne.s32.totalorder %s70, %s71
    %p80 = scmp.eq.s32.totalorder %s18, 0
    %p81 = por %p79, %p80
    %p82 = scmp.ne.s32.totalorder %s70, %s71
    %p83 = scmp.eq.s32.totalorder %s19, 1
    %p84 = por %p82, %p83
    %p86 = scmp.ne.s32.totalorder %s71, %s85
    %p87 = scmp.eq.s32.totalorder %s19, 0
    %p88 = por %p86, %p87
    %s90 = sadd.s32 %s89, 1
    %p93 = scmp.eq.s32.totalorder %s13, 1
    %p94 = scmp.ne.s32.totalorder %s89, %s91
    %p95 = scmp.eq.s32.totalorder %s13, 0
    %p96 = por %p94, %p95
    %p97 = scmp.ne.s32.totalorder %s89, %s91
    %p98 = scmp.eq.s32.totalorder %s18, 1
    %p99 = por %p97, %p98
    %p100 = scmp.ne.s32.totalorder %s91, %s92
    %p101 = scmp.eq.s32.totalorder %s18, 0
    %p102 = por %p100, %p101
    %p103 = scmp.ne.s32.totalorder %s91, %s92
    %p104 = scmp.eq.s32.totalorder %s19, 1
    %p105 = por %p103, %p104
    %p107 = scmp.ne.s32.totalorder %s92, %s106
    %p108 = scmp.eq.s32.totalorder %s19, 0
    %p109 = por %p107, %p108
    %s111 = sadd.s32 %s110, 1
    %p114 = scmp.eq.s32.totalorder %s13, 1
    %p115 = scmp.ne.s32.totalorder %s110, %s112
    %p116 = scmp.eq.s32.totalorder %s13, 0
    %p117 = por %p115, %p116
    %p118 = scmp.ne.s32.totalorder %s110, %s112
    %p119 = scmp.eq.s32.totalorder %s18, 1
    %p120 = por %p118, %p119
    %p121 = scmp.ne.s32.totalorder %s112, %s113
    %p122 = scmp.eq.s32.totalorder %s18, 0
    %p123 = por %p121, %p122
    %p124 = scmp.ne.s32.totalorder %s112, %s113
    %p125 = scmp.eq.s32.totalorder %s19, 1
    %p126 = por %p124, %p125
    %p128 = scmp.ne.s32.totalorder %s113, %s127
    %p129 = scmp.eq.s32.totalorder %s19, 0
    %p130 = por %p128, %p129
    %s132 = sadd.s32 %s131, 1
    %p135 = scmp.eq.s32.totalorder %s13, 1
    %p136 = scmp.ne.s32.totalorder %s131, %s133
    %p137 = scmp.eq.s32.totalorder %s13, 0
    %p138 = por %p136, %p137
    %p139 = scmp.ne.s32.totalorder %s131, %s133
    %p140 = scmp.eq.s32.totalorder %s18, 1
    %p141 = por %p139, %p140
    %p142 = scmp.ne.s32.totalorder %s133, %s134
    %p143 = scmp.eq.s32.totalorder %s18, 0
    %p144 = por %p142, %p143
    %p145 = scmp.ne.s32.totalorder %s133, %s134
    %p146 = scmp.eq.s32.totalorder %s19, 1
    %p147 = por %p145, %p146
    %p149 = scmp.ne.s32.totalorder %s134, %s148
    %p150 = scmp.eq.s32.totalorder %s19, 0
    %p151 = por %p149, %p150
    %s153 = sadd.s32 %s152, 1
    %p156 = scmp.eq.s32.totalorder %s13, 1
    %p157 = scmp.ne.s32.totalorder %s152, %s154
    %p158 = scmp.eq.s32.totalorder %s13, 0
    %p159 = por %p157, %p158
    %p160 = scmp.ne.s32.totalorder %s152, %s154
    %p161 = scmp.eq.s32.totalorder %s18, 1
    %p162 = por %p160, %p161
    %p163 = scmp.ne.s32.totalorder %s154, %s155
    %p164 = scmp.eq.s32.totalorder %s18, 0
    %p165 = por %p163, %p164
    %p166 = scmp.ne.s32.totalorder %s154, %s155
    %p167 = scmp.eq.s32.totalorder %s19, 1
    %p168 = por %p166, %p167
    %p170 = scmp.ne.s32.totalorder %s155, %s169
    %p171 = scmp.eq.s32.totalorder %s19, 0
    %p172 = por %p170, %p171
    %s173 = ssub.s32 %s13, %s20
    %p174 = scmp.eq.s32.totalorder %s173, 0
    %s176 = sadd.s32 %s175, 1
    %s177 = scalar_select %p174, %s175, %s176
    %p180 = pneg %p174
    %p181 = scmp.eq.s32.totalorder %s13, 1
    %p182 = por %p180, %p181
    %p183 = scmp.ne.s32.totalorder %s175, %s178
    %p184 = scmp.eq.s32.totalorder %s13, 0
    %p185 = por %p183, %p184
    %p186 = scmp.ne.s32.totalorder %s175, %s178
    %p187 = scmp.eq.s32.totalorder %s18, 1
    %p188 = por %p186, %p187
    %p189 = scmp.ne.s32.totalorder %s178, %s179
    %p190 = scmp.eq.s32.totalorder %s18, 0
    %p191 = por %p189, %p190
    %p192 = scmp.ne.s32.totalorder %s178, %s179
    %p193 = scmp.eq.s32.totalorder %s19, 1
    %p194 = por %p192, %p193
    %p196 = scmp.ne.s32.totalorder %s179, %s195
    %p197 = scmp.eq.s32.totalorder %s19, 0
    %p198 = por %p196, %p197
    %p199 = scmp.le.s32.totalorder 1, %s13
    %p200 = scmp.lt.s32.totalorder %s13, 3
    %p201 = pnand %p199, %p200
    %p202 = pneg %p201
    // Predicated region
    $region9: #{_lambda_.12} parent=5 // pred_check
      _
    $region10: #{_lambda_.12} parent=5 // pred_check_branch
      %204 = sbr.rel (%p201) target = $region12
    $region11: #{_lambda_.12} parent=5 // pred_region
      %s205 = ssub.s32 %s13, 1
      // Predicated region
      $region13: #{_lambda_.12} parent=11 // pred_check
        %p206 = pneg %p60
      $region14: #{_lambda_.12} parent=11 // pred_check_branch
        %208 = sbr.rel (%p206) target = $region16
      $region15: #{_lambda_.12} parent=11 // pred_region
        _
      $region16: #{_lambda_.12} parent=11 // pred_fallthru
        _
      // Predicated region
      $region17: #{_lambda_.12} parent=11 // pred_check
        %p209 = pneg %p81
      $region18: #{_lambda_.12} parent=11 // pred_check_branch
        %211 = sbr.rel (%p209) target = $region20
      $region19: #{_lambda_.12} parent=11 // pred_region
        _
      $region20: #{_lambda_.12} parent=11 // pred_fallthru
        _
      // Predicated region
      $region21: #{_lambda_.12} parent=11 // pred_check
        %p212 = pneg %p102
      $region22: #{_lambda_.12} parent=11 // pred_check_branch
        %214 = sbr.rel (%p212) target = $region24
      $region23: #{_lambda_.12} parent=11 // pred_region
        _
      $region24: #{_lambda_.12} parent=11 // pred_fallthru
        _
      // Predicated region
      $region25: #{_lambda_.12} parent=11 // pred_check
        %p215 = pneg %p123
      $region26: #{_lambda_.12} parent=11 // pred_check_branch
        %217 = sbr.rel (%p215) target = $region28
      $region27: #{_lambda_.12} parent=11 // pred_region
        _
      $region28: #{_lambda_.12} parent=11 // pred_fallthru
        _
      // Predicated region
      $region29: #{_lambda_.12} parent=11 // pred_check
        %p218 = pneg %p144
      $region30: #{_lambda_.12} parent=11 // pred_check_branch
        %220 = sbr.rel (%p218) target = $region32
      $region31: #{_lambda_.12} parent=11 // pred_region
        _
      $region32: #{_lambda_.12} parent=11 // pred_fallthru
        _
      // Predicated region
      $region33: #{_lambda_.12} parent=11 // pred_check
        %p221 = pneg %p165
      $region34: #{_lambda_.12} parent=11 // pred_check_branch
        %223 = sbr.rel (%p221) target = $region36
      $region35: #{_lambda_.12} parent=11 // pred_region
        _
      $region36: #{_lambda_.12} parent=11 // pred_fallthru
        _
    $region12: #{_lambda_.12} parent=5 // pred_fallthru
      _
    %p224 = scmp.lt.s32.totalorder %s13, 2
    // Predicated region
    $region37: #{_lambda_.12} parent=5 // pred_check
      %p225 = pneg %p224
    $region38: #{_lambda_.12} parent=5 // pred_check_branch
      %227 = sbr.rel (%p225) target = $region40
    $region39: #{_lambda_.12} parent=5 // pred_region
      // Predicated region
      $region41: #{_lambda_.12} parent=39 // pred_check
        %p228 = pneg %p33
      $region42: #{_lambda_.12} parent=39 // pred_check_branch
        %230 = sbr.rel (%p228) target = $region44
      $region43: #{_lambda_.12} parent=39 // pred_region
        %s231 = smul.u32 8, %s13
        %p232 = scmp.lt.s32.totalorder %s231, 15
        %s233 = scalar_select %p232, %s231, 15
        %s234 = smul.addr %s233, 2
        %s235 = smul.addr %s234, 4
        %s236 = scalar_lea.vmem %s0, %s235
        %s237 = smul.u32 8, %s13
      $region44: #{_lambda_.12} parent=39 // pred_fallthru
        _
    $region40: #{_lambda_.12} parent=5 // pred_fallthru
      _
    %p238 = scmp.le.s32.totalorder 1, %s13
    %p239 = scmp.lt.s32.totalorder %s13, 3
    %p240 = pnand %p238, %p239
    %p241 = pneg %p240
    // Predicated region
    $region45: #{_lambda_.12} parent=5 // pred_check
      _
    $region46: #{_lambda_.12} parent=5 // pred_check_branch
      %243 = sbr.rel (%p240) target = $region48
    $region47: #{_lambda_.12} parent=5 // pred_region
      %s244 = ssub.s32 %s13, 1
      %s245 = smul.u32 8, %s18
      %p246 = scmp.lt.s32.totalorder %s245, 15
      %s247 = scalar_select %p246, %s245, 15
      %s248 = smul.addr %s247, 2
      %s249 = smul.addr %s248, 4
      %s250 = scalar_lea.vmem %s0, %s249
      %p251 = pneg %p39
      %p252 = pneg %p36
      %p253 = pneg %p60
      %p254 = pneg %p57
      %p255 = pneg %p81
      %p256 = pneg %p78
      %p257 = pneg %p102
      %p258 = pneg %p99
      %p259 = pneg %p123
      %p260 = pneg %p120
      %p261 = pneg %p144
      %p262 = pneg %p141
      %p263 = pneg %p165
      %p264 = pneg %p162
      %p265 = pneg %p191
      %p266 = pneg %p188
      %s267 = smul.u32 8, %s18
      %p268 = scmp.lt.s32.totalorder %s267, 15
      %s269 = scalar_select %p268, %s267, 15
      %s270 = smul.addr %s269, 8
      %s271 = scalar_lea.vmem %s7, %s270
      %s272 = smul.u32 8, %s18
      %p273 = scmp.lt.s32.totalorder %s272, 15
      %s274 = scalar_select %p273, %s272, 15
      %s275 = smul.addr %s274, 2
      %s276 = smul.addr %s275, 4
      %s277 = scalar_lea.vmem %s0, %s276
      %s278 = smul.u32 8, %s18
      %s279 = smul.u32 8, %s18
      %p280 = scmp.lt.s32.totalorder %s279, 15
      %s281 = scalar_select %p280, %s279, 15
      %s282 = smul.addr %s281, 8
      %s283 = scalar_lea.vmem %s7, %s282
      %s284 = smul.u32 8, %s18
      %v286 = vld [vmem:[%s277] sm:$0xff]
      %v287 = vld [vmem:[%s277 + $0x8] sm:$0xff]
      %v288 = vld [vmem:[%s277 + $0x10] sm:$0xff]
      %v289 = vld [vmem:[%s277 + $0x18] sm:$0xff]
      %v290 = vld [vmem:[%s277 + $0x20] sm:$0xff]
      %v291 = vld [vmem:[%s277 + $0x28] sm:$0xff]
      %v292 = vld [vmem:[%s277 + $0x30] sm:$0xff]
      %v293 = vld [vmem:[%s277 + $0x38] sm:$0xff]
      %v294 = vld [vmem:[%s1] sm:$0xf]
      %v295 = vld [vmem:[%s1 + $0x4] sm:$0xf]
      %v296 = vld [vmem:[%s1 + $0x8] sm:$0xf]
      %v297 = vld [vmem:[%s1 + $0xc] sm:$0xf]
      %v298 = vld [vmem:[%s1 + $0x10] sm:$0xf]
      %v299 = vld [vmem:[%s1 + $0x14] sm:$0xf]
      %v300 = vld [vmem:[%s1 + $0x18] sm:$0xf]
      %v301 = vld [vmem:[%s1 + $0x1c] sm:$0xf]
      %v302 = vld [vmem:[%s1 + $0x20] sm:$0xf]
      %v303 = vld [vmem:[%s1 + $0x24] sm:$0xf]
      %v304 = vld [vmem:[%s1 + $0x28] sm:$0xf]
      %v305 = vld [vmem:[%s1 + $0x2c] sm:$0xf]
      %v306 = vld [vmem:[%s1 + $0x30] sm:$0xf]
      %v307 = vld [vmem:[%s1 + $0x34] sm:$0xf]
      %v308 = vld [vmem:[%s1 + $0x38] sm:$0xf]
      %v309 = vld [vmem:[%s1 + $0x3c] sm:$0xf]
      %v310 = vld [vmem:[%s1 + $0x40] sm:$0xf]
      %v311 = vld [vmem:[%s1 + $0x44] sm:$0xf]
      %v312 = vld [vmem:[%s1 + $0x48] sm:$0xf]
      %v313 = vld [vmem:[%s1 + $0x4c] sm:$0xf]
      %v314 = vld [vmem:[%s1 + $0x50] sm:$0xf]
      %v315 = vld [vmem:[%s1 + $0x54] sm:$0xf]
      %v316 = vld [vmem:[%s1 + $0x58] sm:$0xf]
      %v317 = vld [vmem:[%s1 + $0x5c] sm:$0xf]
      %v318 = vld [vmem:[%s1 + $0x60] sm:$0xf]
      %v319 = vld [vmem:[%s1 + $0x64] sm:$0xf]
      %v320 = vld [vmem:[%s1 + $0x68] sm:$0xf]
      %v321 = vld [vmem:[%s1 + $0x6c] sm:$0xf]
      %v322 = vld [vmem:[%s1 + $0x70] sm:$0xf]
      %v323 = vld [vmem:[%s1 + $0x74] sm:$0xf]
      %v324 = vld [vmem:[%s1 + $0x78] sm:$0xf]
      %v325 = vld [vmem:[%s1 + $0x7c] sm:$0xf]
      %v326 = vld [vmem:[%s2] sm:$0x1]
      %v328 = vlaneseq
      %v329 = vshrl.u32 %v328, 7
      %v330 = vsub.s32 0, %v329
      %v331 = vrot.slane %v326, %v330
      %v341 = vunpack.c.l.b16 %v286
      %v342 = vunpack.c.h.b16 %v286
      %v343 = vunpack.c.l.b16 %v287
      %v344 = vunpack.c.h.b16 %v287
      %v345 = vunpack.c.l.b16 %v288
      %v346 = vunpack.c.h.b16 %v288
      %v347 = vunpack.c.l.b16 %v289
      %v348 = vunpack.c.h.b16 %v289
      %v349 = vunpack.c.l.b16 %v290
      %v350 = vunpack.c.h.b16 %v290
      %v351 = vunpack.c.l.b16 %v291
      %v352 = vunpack.c.h.b16 %v291
      %v353 = vunpack.c.l.b16 %v292
      %v354 = vunpack.c.h.b16 %v292
      %v355 = vunpack.c.l.b16 %v293
      %v356 = vunpack.c.h.b16 %v293
      %v357 = vpack.c.b16 %v343, %v341
      %v358 = vpack.c.b16 %v344, %v342
      %v359 = vpack.c.b16 %v347, %v345
      %v360 = vpack.c.b16 %v348, %v346
      %v361 = vpack.c.b16 %v351, %v349
      %v362 = vpack.c.b16 %v352, %v350
      %v363 = vpack.c.b16 %v355, %v353
      %v364 = vpack.c.b16 %v356, %v354
      %v405 = vunpack.c.l.b16 %v294
      %v406 = vunpack.c.l.b16 %v295
      %v407 = vunpack.c.l.b16 %v296
      %v408 = vunpack.c.l.b16 %v297
      %v409 = vunpack.c.l.b16 %v298
      %v410 = vunpack.c.l.b16 %v299
      %v411 = vunpack.c.l.b16 %v300
      %v412 = vunpack.c.l.b16 %v301
      %v413 = vunpack.c.l.b16 %v302
      %v414 = vunpack.c.l.b16 %v303
      %v415 = vunpack.c.l.b16 %v304
      %v416 = vunpack.c.l.b16 %v305
      %v417 = vunpack.c.l.b16 %v306
      %v418 = vunpack.c.l.b16 %v307
      %v419 = vunpack.c.l.b16 %v308
      %v420 = vunpack.c.l.b16 %v309
      %v421 = vunpack.c.l.b16 %v310
      %v422 = vunpack.c.l.b16 %v311
      %v423 = vunpack.c.l.b16 %v312
      %v424 = vunpack.c.l.b16 %v313
      %v425 = vunpack.c.l.b16 %v314
      %v426 = vunpack.c.l.b16 %v315
      %v427 = vunpack.c.l.b16 %v316
      %v428 = vunpack.c.l.b16 %v317
      %v429 = vunpack.c.l.b16 %v318
      %v430 = vunpack.c.l.b16 %v319
      %v431 = vunpack.c.l.b16 %v320
      %v432 = vunpack.c.l.b16 %v321
      %v433 = vunpack.c.l.b16 %v322
      %v434 = vunpack.c.l.b16 %v323
      %v435 = vunpack.c.l.b16 %v324
      %v436 = vunpack.c.l.b16 %v325
      %v437 = vpack.c.b16 %v406, %v405
      %v438 = vpack.c.b16 %v408, %v407
      %v439 = vpack.c.b16 %v410, %v409
      %v440 = vpack.c.b16 %v412, %v411
      %v441 = vpack.c.b16 %v414, %v413
      %v442 = vpack.c.b16 %v416, %v415
      %v443 = vpack.c.b16 %v418, %v417
      %v444 = vpack.c.b16 %v420, %v419
      %v445 = vpack.c.b16 %v422, %v421
      %v446 = vpack.c.b16 %v424, %v423
      %v447 = vpack.c.b16 %v426, %v425
      %v448 = vpack.c.b16 %v428, %v427
      %v449 = vpack.c.b16 %v430, %v429
      %v450 = vpack.c.b16 %v432, %v431
      %v451 = vpack.c.b16 %v434, %v433
      %v452 = vpack.c.b16 %v436, %v435
      %469 = vmatprep.subr.bf16.mxu0 0
      %470 = vmatpush1.bf16.msra.mxu0 %v444
      %471 = vmatprep.subr.bf16.mxu0 0
      %472 = vmatpush1.bf16.msra.mxu0 %v443
      %473 = vmatprep.subr.bf16.mxu0 0
      %474 = vmatpush1.bf16.msra.mxu0 %v442
      %475 = vmatprep.subr.bf16.mxu0 0
      %476 = vmatpush1.bf16.msra.mxu0 %v441
      %477 = vmatprep.subr.bf16.mxu0 0
      %478 = vmatpush1.bf16.msra.mxu0 %v440
      %479 = vmatprep.subr.bf16.mxu0 0
      %480 = vmatpush1.bf16.msra.mxu0 %v439
      %481 = vmatprep.subr.bf16.mxu0 0
      %482 = vmatpush1.bf16.msra.mxu0 %v438
      %483 = vmatprep.subr.bf16.mxu0 0
      %484 = vmatpush1.bf16.msra.mxu0 %v437
      %485 = vmatprep.subr.bf16.mxu0 0
      %486 = vmatpush2.bf16.msra.mxu0 %v452
      %487 = vmatprep.subr.bf16.mxu0 0
      %488 = vmatpush2.bf16.msra.mxu0 %v451
      %489 = vmatprep.subr.bf16.mxu0 0
      %490 = vmatpush2.bf16.msra.mxu0 %v450
      %491 = vmatprep.subr.bf16.mxu0 0
      %492 = vmatpush2.bf16.msra.mxu0 %v449
      %493 = vmatprep.subr.bf16.mxu0 0
      %494 = vmatpush2.bf16.msra.mxu0 %v448
      %495 = vmatprep.subr.bf16.mxu0 0
      %496 = vmatpush2.bf16.msra.mxu0 %v447
      %497 = vmatprep.subr.bf16.mxu0 0
      %498 = vmatpush2.bf16.msra.mxu0 %v446
      %499 = vmatprep.subr.bf16.mxu0 0
      %500 = vmatpush2.bf16.msra.mxu0 %v445
      %501 = vmatprep.mubr.bf16.mxu0 %v358
      %502 = vmatmul.mubr.bf16.gmra.mxu0 %v357
      %v503 = vpop.f32.mrf.mxu0
      %v504 = vadd.f32 %v331, %v503
      %v505 = vpop.f32.mrf.mxu0
      %v506 = vpop.f32.mrf.mxu0
      %v507 = vadd.f32 %v331, %v506
      %v508 = vpop.f32.mrf.mxu0
      %509 = vmatprep.mubr.bf16.mxu0 %v360
      %510 = vmatmul.mubr.bf16.gmra.mxu0 %v359
      %v511 = vpop.f32.mrf.mxu0
      %v512 = vadd.f32 %v331, %v511
      %v513 = vpop.f32.mrf.mxu0
      %v514 = vpop.f32.mrf.mxu0
      %v515 = vadd.f32 %v331, %v514
      %v516 = vpop.f32.mrf.mxu0
      %517 = vmatprep.mubr.bf16.mxu0 %v362
      %518 = vmatmul.mubr.bf16.gmra.mxu0 %v361
      %v519 = vpop.f32.mrf.mxu0
      %v520 = vadd.f32 %v331, %v519
      %v521 = vpop.f32.mrf.mxu0
      %v522 = vpop.f32.mrf.mxu0
      %v523 = vadd.f32 %v331, %v522
      %v524 = vpop.f32.mrf.mxu0
      %525 = vmatprep.mubr.bf16.mxu0 %v364
      %526 = vmatmul.mubr.bf16.gmra.mxu0 %v363
      %v527 = vpop.f32.mrf.mxu0
      %v528 = vadd.f32 %v331, %v527
      %v529 = vpop.f32.mrf.mxu0
      %v530 = vpop.f32.mrf.mxu0
      %v531 = vadd.f32 %v331, %v530
      %v532 = vpop.f32.mrf.mxu0
      %533 = vdwg.mxu0
      %v534 = vmax.f32 %v504, 0.0
      %v535 = vmax.f32 %v507, 0.0
      %v536 = vmax.f32 %v512, 0.0
      %v537 = vmax.f32 %v515, 0.0
      %v538 = vmax.f32 %v520, 0.0
      %v539 = vmax.f32 %v523, 0.0
      %v540 = vmax.f32 %v528, 0.0
      %v541 = vmax.f32 %v531, 0.0
      %v542 = vpack.c.bf16 %v535, %v534
      %v543 = vpack.c.bf16 %v537, %v536
      %v544 = vpack.c.bf16 %v539, %v538
      %v545 = vpack.c.bf16 %v541, %v540
      %v546 = vld [vmem:[%s3] sm:$0xf]
      %v547 = vld [vmem:[%s3 + $0x4] sm:$0xf]
      %v548 = vld [vmem:[%s3 + $0x8] sm:$0xf]
      %v549 = vld [vmem:[%s3 + $0xc] sm:$0xf]
      %v550 = vld [vmem:[%s3 + $0x10] sm:$0xf]
      %v551 = vld [vmem:[%s3 + $0x14] sm:$0xf]
      %v552 = vld [vmem:[%s3 + $0x18] sm:$0xf]
      %v553 = vld [vmem:[%s3 + $0x1c] sm:$0xf]
      %v554 = vld [vmem:[%s3 + $0x20] sm:$0xf]
      %v555 = vld [vmem:[%s3 + $0x24] sm:$0xf]
      %v556 = vld [vmem:[%s3 + $0x28] sm:$0xf]
      %v557 = vld [vmem:[%s3 + $0x2c] sm:$0xf]
      %v558 = vld [vmem:[%s3 + $0x30] sm:$0xf]
      %v559 = vld [vmem:[%s3 + $0x34] sm:$0xf]
      %v560 = vld [vmem:[%s3 + $0x38] sm:$0xf]
      %v561 = vld [vmem:[%s3 + $0x3c] sm:$0xf]
      %v562 = vld [vmem:[%s4] sm:$0x1]
      %v564 = vlaneseq
      %v565 = vshrl.u32 %v564, 7
      %v566 = vsub.s32 0, %v565
      %v567 = vrot.slane %v562, %v566
      %v585 = vunpack.c.l.b16 %v546
      %v586 = vunpack.c.l.b16 %v547
      %v587 = vunpack.c.l.b16 %v548
      %v588 = vunpack.c.l.b16 %v549
      %v589 = vunpack.c.l.b16 %v550
      %v590 = vunpack.c.l.b16 %v551
      %v591 = vunpack.c.l.b16 %v552
      %v592 = vunpack.c.l.b16 %v553
      %v593 = vunpack.c.l.b16 %v554
      %v594 = vunpack.c.l.b16 %v555
      %v595 = vunpack.c.l.b16 %v556
      %v596 = vunpack.c.l.b16 %v557
      %v597 = vunpack.c.l.b16 %v558
      %v598 = vunpack.c.l.b16 %v559
      %v599 = vunpack.c.l.b16 %v560
      %v600 = vunpack.c.l.b16 %v561
      %v601 = vpack.c.b16 %v586, %v585
      %v602 = vpack.c.b16 %v588, %v587
      %v603 = vpack.c.b16 %v590, %v589
      %v604 = vpack.c.b16 %v592, %v591
      %v605 = vpack.c.b16 %v594, %v593
      %v606 = vpack.c.b16 %v596, %v595
      %v607 = vpack.c.b16 %v598, %v597
      %v608 = vpack.c.b16 %v600, %v599
      %617 = vmatprep.subr.bf16.mxu0 0
      %618 = vmatpush1.bf16.msra.mxu0 %v608
      %619 = vmatprep.subr.bf16.mxu0 0
      %620 = vmatpush1.bf16.msra.mxu0 %v607
      %621 = vmatprep.subr.bf16.mxu0 0
      %622 = vmatpush1.bf16.msra.mxu0 %v606
      %623 = vmatprep.subr.bf16.mxu0 0
      %624 = vmatpush1.bf16.msra.mxu0 %v605
      %625 = vmatprep.subr.bf16.mxu0 0
      %626 = vmatpush1.bf16.msra.mxu0 %v604
      %627 = vmatprep.subr.bf16.mxu0 0
      %628 = vmatpush1.bf16.msra.mxu0 %v603
      %629 = vmatprep.subr.bf16.mxu0 0
      %630 = vmatpush1.bf16.msra.mxu0 %v602
      %631 = vmatprep.subr.bf16.mxu0 0
      %632 = vmatpush1.bf16.msra.mxu0 %v601
      %633 = vmatprep.subr.bf16.mxu0 0
      %634 = vmatpush2.bf16.msra.mxu0 0
      %635 = vmatprep.subr.bf16.mxu0 0
      %636 = vmatpush2.bf16.msra.mxu0 0
      %637 = vmatprep.subr.bf16.mxu0 0
      %638 = vmatpush2.bf16.msra.mxu0 0
      %639 = vmatprep.subr.bf16.mxu0 0
      %640 = vmatpush2.bf16.msra.mxu0 0
      %641 = vmatprep.subr.bf16.mxu0 0
      %642 = vmatpush2.bf16.msra.mxu0 0
      %643 = vmatprep.subr.bf16.mxu0 0
      %644 = vmatpush2.bf16.msra.mxu0 0
      %645 = vmatprep.subr.bf16.mxu0 0
      %646 = vmatpush2.bf16.msra.mxu0 0
      %647 = vmatprep.subr.bf16.mxu0 0
      %648 = vmatpush2.bf16.msra.mxu0 0
      %649 = vmatprep.mubr.bf16.mxu0 0
      %650 = vmatmul.mubr.bf16.gmra.mxu0 %v542
      %v651 = vpop.f32.mrf.mxu0
      %v652 = vadd.f32 %v567, %v651
      %v653 = vpop.f32.mrf.mxu0
      %v654 = vpop.f32.mrf.mxu0
      %v655 = vadd.f32 %v567, %v654
      %v656 = vpop.f32.mrf.mxu0
      %657 = vmatprep.mubr.bf16.mxu0 0
      %658 = vmatmul.mubr.bf16.gmra.mxu0 %v543
      %v659 = vpop.f32.mrf.mxu0
      %v660 = vadd.f32 %v567, %v659
      %v661 = vpop.f32.mrf.mxu0
      %v662 = vpop.f32.mrf.mxu0
      %v663 = vadd.f32 %v567, %v662
      %v664 = vpop.f32.mrf.mxu0
      %665 = vmatprep.mubr.bf16.mxu0 0
      %666 = vmatmul.mubr.bf16.gmra.mxu0 %v544
      %v667 = vpop.f32.mrf.mxu0
      %v668 = vadd.f32 %v567, %v667
      %v669 = vpop.f32.mrf.mxu0
      %v670 = vpop.f32.mrf.mxu0
      %v671 = vadd.f32 %v567, %v670
      %v672 = vpop.f32.mrf.mxu0
      %673 = vmatprep.mubr.bf16.mxu0 0
      %674 = vmatmul.mubr.bf16.gmra.mxu0 %v545
      %v675 = vpop.f32.mrf.mxu0
      %v676 = vadd.f32 %v567, %v675
      %v677 = vpop.f32.mrf.mxu0
      %v678 = vpop.f32.mrf.mxu0
      %v679 = vadd.f32 %v567, %v678
      %v680 = vpop.f32.mrf.mxu0
      %681 = vdwg.mxu0
      %v682 = vmax.f32 %v652, 0.0
      %v683 = vmax.f32 %v655, 0.0
      %v684 = vmax.f32 %v660, 0.0
      %v685 = vmax.f32 %v663, 0.0
      %v686 = vmax.f32 %v668, 0.0
      %v687 = vmax.f32 %v671, 0.0
      %v688 = vmax.f32 %v676, 0.0
      %v689 = vmax.f32 %v679, 0.0
      %v690 = vpack.c.bf16 %v683, %v682
      %v691 = vpack.c.bf16 %v685, %v684
      %v692 = vpack.c.bf16 %v687, %v686
      %v693 = vpack.c.bf16 %v689, %v688
      %v694 = vld [vmem:[%s5] sm:$0xf]
      %v695 = vld [vmem:[%s5 + $0x4] sm:$0xf]
      %v696 = vld [vmem:[%s5 + $0x8] sm:$0xf]
      %v697 = vld [vmem:[%s5 + $0xc] sm:$0xf]
      %v698 = vld [vmem:[%s5 + $0x10] sm:$0xf]
      %v699 = vld [vmem:[%s5 + $0x14] sm:$0xf]
      %v700 = vld [vmem:[%s5 + $0x18] sm:$0xf]
      %v701 = vld [vmem:[%s5 + $0x1c] sm:$0xf]
      %v702 = vld [vmem:[%s5 + $0x20] sm:$0xf]
      %v703 = vld [vmem:[%s5 + $0x24] sm:$0xf]
      %v704 = vld [vmem:[%s5 + $0x28] sm:$0xf]
      %v705 = vld [vmem:[%s5 + $0x2c] sm:$0xf]
      %v706 = vld [vmem:[%s5 + $0x30] sm:$0xf]
      %v707 = vld [vmem:[%s5 + $0x34] sm:$0xf]
      %v708 = vld [vmem:[%s5 + $0x38] sm:$0xf]
      %v709 = vld [vmem:[%s5 + $0x3c] sm:$0xf]
      %v710 = vld [vmem:[%s6] sm:$0x1]
      %v712 = vlaneseq
      %v713 = vshrl.u32 %v712, 7
      %v714 = vsub.s32 0, %v713
      %v715 = vrot.slane %v710, %v714
      %v733 = vunpack.c.l.b16 %v694
      %v734 = vunpack.c.l.b16 %v695
      %v735 = vunpack.c.l.b16 %v696
      %v736 = vunpack.c.l.b16 %v697
      %v737 = vunpack.c.l.b16 %v698
      %v738 = vunpack.c.l.b16 %v699
      %v739 = vunpack.c.l.b16 %v700
      %v740 = vunpack.c.l.b16 %v701
      %v741 = vunpack.c.l.b16 %v702
      %v742 = vunpack.c.l.b16 %v703
      %v743 = vunpack.c.l.b16 %v704
      %v744 = vunpack.c.l.b16 %v705
      %v745 = vunpack.c.l.b16 %v706
      %v746 = vunpack.c.l.b16 %v707
      %v747 = vunpack.c.l.b16 %v708
      %v748 = vunpack.c.l.b16 %v709
      %v749 = vpack.c.b16 %v734, %v733
      %v750 = vpack.c.b16 %v736, %v735
      %v751 = vpack.c.b16 %v738, %v737
      %v752 = vpack.c.b16 %v740, %v739
      %v753 = vpack.c.b16 %v742, %v741
      %v754 = vpack.c.b16 %v744, %v743
      %v755 = vpack.c.b16 %v746, %v745
      %v756 = vpack.c.b16 %v748, %v747
      %765 = vmatprep.subr.bf16.mxu0 0
      %766 = vmatpush1.bf16.msra.mxu0 %v756
      %767 = vmatprep.subr.bf16.mxu0 0
      %768 = vmatpush1.bf16.msra.mxu0 %v755
      %769 = vmatprep.subr.bf16.mxu0 0
      %770 = vmatpush1.bf16.msra.mxu0 %v754
      %771 = vmatprep.subr.bf16.mxu0 0
      %772 = vmatpush1.bf16.msra.mxu0 %v753
      %773 = vmatprep.subr.bf16.mxu0 0
      %774 = vmatpush1.bf16.msra.mxu0 %v752
      %775 = vmatprep.subr.bf16.mxu0 0
      %776 = vmatpush1.bf16.msra.mxu0 %v751
      %777 = vmatprep.subr.bf16.mxu0 0
      %778 = vmatpush1.bf16.msra.mxu0 %v750
      %779 = vmatprep.subr.bf16.mxu0 0
      %780 = vmatpush1.bf16.msra.mxu0 %v749
      %781 = vmatprep.subr.bf16.mxu0 0
      %782 = vmatpush2.bf16.msra.mxu0 0
      %783 = vmatprep.subr.bf16.mxu0 0
      %784 = vmatpush2.bf16.msra.mxu0 0
      %785 = vmatprep.subr.bf16.mxu0 0
      %786 = vmatpush2.bf16.msra.mxu0 0
      %787 = vmatprep.subr.bf16.mxu0 0
      %788 = vmatpush2.bf16.msra.mxu0 0
      %789 = vmatprep.subr.bf16.mxu0 0
      %790 = vmatpush2.bf16.msra.mxu0 0
      %791 = vmatprep.subr.bf16.mxu0 0
      %792 = vmatpush2.bf16.msra.mxu0 0
      %793 = vmatprep.subr.bf16.mxu0 0
      %794 = vmatpush2.bf16.msra.mxu0 0
      %795 = vmatprep.subr.bf16.mxu0 0
      %796 = vmatpush2.bf16.msra.mxu0 0
      %797 = vmatprep.mubr.bf16.mxu0 0
      %798 = vmatmul.mubr.bf16.gmra.mxu0 %v690
      %v799 = vpop.f32.mrf.mxu0
      %v800 = vadd.f32 %v715, %v799
      %v801 = vpop.f32.mrf.mxu0
      %v802 = vpop.f32.mrf.mxu0
      %v803 = vadd.f32 %v715, %v802
      %v804 = vpop.f32.mrf.mxu0
      %805 = vmatprep.mubr.bf16.mxu0 0
      %806 = vmatmul.mubr.bf16.gmra.mxu0 %v691
      %v807 = vpop.f32.mrf.mxu0
      %v808 = vadd.f32 %v715, %v807
      %v809 = vpop.f32.mrf.mxu0
      %v810 = vpop.f32.mrf.mxu0
      %v811 = vadd.f32 %v715, %v810
      %v812 = vpop.f32.mrf.mxu0
      %813 = vmatprep.mubr.bf16.mxu0 0
      %814 = vmatmul.mubr.bf16.gmra.mxu0 %v692
      %v815 = vpop.f32.mrf.mxu0
      %v816 = vadd.f32 %v715, %v815
      %v817 = vpop.f32.mrf.mxu0
      %v818 = vpop.f32.mrf.mxu0
      %v819 = vadd.f32 %v715, %v818
      %v820 = vpop.f32.mrf.mxu0
      %821 = vmatprep.mubr.bf16.mxu0 0
      %822 = vmatmul.mubr.bf16.gmra.mxu0 %v693
      %v823 = vpop.f32.mrf.mxu0
      %v824 = vadd.f32 %v715, %v823
      %v825 = vpop.f32.mrf.mxu0
      %v826 = vpop.f32.mrf.mxu0
      %v827 = vadd.f32 %v715, %v826
      %v828 = vpop.f32.mrf.mxu0
      %829 = vdwg.mxu0
      %830 = vst [vmem:[%s283] sm:$0xff] %v800
      %831 = vst [vmem:[%s283 + $0x8] sm:$0xff] %v803
      %832 = vst [vmem:[%s283 + $0x10] sm:$0xff] %v808
      %833 = vst [vmem:[%s283 + $0x18] sm:$0xff] %v811
      %834 = vst [vmem:[%s283 + $0x20] sm:$0xff] %v816
      %835 = vst [vmem:[%s283 + $0x28] sm:$0xff] %v819
      %836 = vst [vmem:[%s283 + $0x30] sm:$0xff] %v824
      %837 = vst [vmem:[%s283 + $0x38] sm:$0xff] %v827
      %s838 = smul.u32 8, %s18
      %p839 = scmp.lt.s32.totalorder %s838, 15
      %s840 = scalar_select %p839, %s838, 15
      %s841 = smul.addr %s840, 8
      %s842 = scalar_lea.vmem %s7, %s841
      // Predicated region
      $region49: #{_lambda_.12} parent=47 // pred_check
        %p843 = pneg %p188
      $region50: #{_lambda_.12} parent=47 // pred_check_branch
        %845 = sbr.rel (%p843) target = $region52
      $region51: #{_lambda_.12} parent=47 // pred_region
        %s846 = smul.u32 8, %s18
      $region52: #{_lambda_.12} parent=47 // pred_fallthru
        _
    $region48: #{_lambda_.12} parent=5 // pred_fallthru
      _
    %p847 = scmp.le.s32.totalorder 2, %s13
    // Predicated region
    $region53: #{_lambda_.12} parent=5 // pred_check
      %p848 = pneg %p847
    $region54: #{_lambda_.12} parent=5 // pred_check_branch
      %850 = sbr.rel (%p848) target = $region56
    $region55: #{_lambda_.12} parent=5 // pred_region
      %s851 = ssub.s32 %s13, 2
      // Predicated region
      $region57: #{_lambda_.12} parent=55 // pred_check
        %p852 = pneg %p194
      $region58: #{_lambda_.12} parent=55 // pred_check_branch
        %854 = sbr.rel (%p852) target = $region60
      $region59: #{_lambda_.12} parent=55 // pred_region
        %s855 = smul.u32 8, %s19
        %p856 = scmp.lt.s32.totalorder %s855, 15
        %s857 = scalar_select %p856, %s855, 15
        %s858 = smul.addr %s857, 8
        %s859 = scalar_lea.vmem %s7, %s858
      $region60: #{_lambda_.12} parent=55 // pred_fallthru
        _
    $region56: #{_lambda_.12} parent=5 // pred_fallthru
      _
  $region6: #{_lambda_.12} parent=0 // loop_footer
    %s17 = sadd.s32 1, %s13
  $region7: #{_lambda_.12} parent=0 // loop_footer_branch
    %12 = sbr.rel target = $region3
  $region8: #{_lambda_.12} parent=0 // loop_exit
    _

// kernel: _lambda_.13
$region0: #{_lambda_.13}
  #allocation0 [shape = 'u32[]', space=smem, size = 0x4, offset = 0x4, fixed_abs, tag = 'smem constant byte address 0x4 - core index']
  #allocation1 [shape = 'u32[144,128]{1,0:T(1,128)}', space=vmem, size = 0x12000, scoped, tag = 'internal scratch']
  %s0 = inlined_call_operand.vmem [shape: bf16[128,128], index: 0, kind: input, shape index: {}]
  %s1 = inlined_call_operand.vmem [shape: bf16[128,128], index: 1, kind: input, shape index: {}]
  %s2 = inlined_call_operand.vmem [shape: f32[1,128], index: 2, kind: input, shape index: {}]
  %s3 = inlined_call_operand.vmem [shape: bf16[128,128], index: 3, kind: input, shape index: {}]
  %s4 = inlined_call_operand.vmem [shape: f32[1,128], index: 4, kind: input, shape index: {}]
  %s5 = inlined_call_operand.vmem [shape: bf16[128,128], index: 5, kind: input, shape index: {}]
  %s6 = inlined_call_operand.vmem [shape: f32[1,128], index: 6, kind: input, shape index: {}]
  %s7 = inlined_call_operand.vmem [shape: f32[128,128], index: 7, kind: output, shape index: {}]
  %s8 = sld [smem:[#allocation0]]
  $region61: #{_lambda_.13} parent=0
    _
  %s10 = ssub.s32 1, %s8
  %s11 = scalar_select 0, %s10, %s8
  loop: start=0, step=1, limit=4
  $region2: #{_lambda_.13} parent=0 // loop_pre_header
    _
  $region3: #{_lambda_.13} parent=0 // loop_header
    %s13 = sphi 0, %s17
    %p14 = scmp.ge.s32.totalorder %s13, 4
    %s23 = sphi 0, %s25
    %s26 = sphi 0, %s23
    %s27 = sphi 0, %s26
    %s43 = sphi 0, %s27
    %s47 = sphi 0, %s47
    %s49 = sphi 0, %s47
    %s50 = sphi 0, %s49
    %s64 = sphi 0, %s50
    %s68 = sphi 0, %s68
    %s70 = sphi 0, %s68
    %s71 = sphi 0, %s70
    %s85 = sphi 0, %s71
    %s89 = sphi 0, %s89
    %s91 = sphi 0, %s89
    %s92 = sphi 0, %s91
    %s106 = sphi 0, %s92
    %s110 = sphi 0, %s110
    %s112 = sphi 0, %s110
    %s113 = sphi 0, %s112
    %s127 = sphi 0, %s113
    %s131 = sphi 0, %s131
    %s133 = sphi 0, %s131
    %s134 = sphi 0, %s133
    %s148 = sphi 0, %s134
    %s152 = sphi 0, %s152
    %s154 = sphi 0, %s152
    %s155 = sphi 0, %s154
    %s169 = sphi 0, %s155
    %s175 = sphi 0, %s177
    %s178 = sphi 0, %s175
    %s179 = sphi 0, %s178
    %s195 = sphi 0, %s179
  $region4: #{_lambda_.13} parent=0 // loop_header_branch
    %16 = sbr.rel (%p14) target = $region8
  $region5: #{_lambda_.13} parent=0 // loop_body
    %s18 = ssub.s32 %s13, 1
    %s19 = ssub.s32 %s13, 2
    %s20 = sadd.s32 %s13, 1
    %s21 = ssub.s32 %s13, %s20
    %p22 = scmp.eq.s32.totalorder %s21, 0
    %s24 = sadd.s32 %s23, 1
    %s25 = scalar_select %p22, %s23, %s24
    %p28 = pneg %p22
    %p29 = scmp.eq.s32.totalorder %s13, 1
    %p30 = por %p28, %p29
    %p31 = scmp.ne.s32.totalorder %s23, %s26
    %p32 = scmp.eq.s32.totalorder %s13, 0
    %p33 = por %p31, %p32
    %p34 = scmp.ne.s32.totalorder %s23, %s26
    %p35 = scmp.eq.s32.totalorder %s18, 1
    %p36 = por %p34, %p35
    %p37 = scmp.ne.s32.totalorder %s26, %s27
    %p38 = scmp.eq.s32.totalorder %s18, 0
    %p39 = por %p37, %p38
    %p40 = scmp.ne.s32.totalorder %s26, %s27
    %p41 = scmp.eq.s32.totalorder %s19, 1
    %p42 = por %p40, %p41
    %p44 = scmp.ne.s32.totalorder %s27, %s43
    %p45 = scmp.eq.s32.totalorder %s19, 0
    %p46 = por %p44, %p45
    %s48 = sadd.s32 %s47, 1
    %p51 = scmp.eq.s32.totalorder %s13, 1
    %p52 = scmp.ne.s32.totalorder %s47, %s49
    %p53 = scmp.eq.s32.totalorder %s13, 0
    %p54 = por %p52, %p53
    %p55 = scmp.ne.s32.totalorder %s47, %s49
    %p56 = scmp.eq.s32.totalorder %s18, 1
    %p57 = por %p55, %p56
    %p58 = scmp.ne.s32.totalorder %s49, %s50
    %p59 = scmp.eq.s32.totalorder %s18, 0
    %p60 = por %p58, %p59
    %p61 = scmp.ne.s32.totalorder %s49, %s50
    %p62 = scmp.eq.s32.totalorder %s19, 1
    %p63 = por %p61, %p62
    %p65 = scmp.ne.s32.totalorder %s50, %s64
    %p66 = scmp.eq.s32.totalorder %s19, 0
    %p67 = por %p65, %p66
    %s69 = sadd.s32 %s68, 1
    %p72 = scmp.eq.s32.totalorder %s13, 1
    %p73 = scmp.ne.s32.totalorder %s68, %s70
    %p74 = scmp.eq.s32.totalorder %s13, 0
    %p75 = por %p73, %p74
    %p76 = scmp.ne.s32.totalorder %s68, %s70
    %p77 = scmp.eq.s32.totalorder %s18, 1
    %p78 = por %p76, %p77
    %p79 = scmp.ne.s32.totalorder %s70, %s71
    %p80 = scmp.eq.s32.totalorder %s18, 0
    %p81 = por %p79, %p80
    %p82 = scmp.ne.s32.totalorder %s70, %s71
    %p83 = scmp.eq.s32.totalorder %s19, 1
    %p84 = por %p82, %p83
    %p86 = scmp.ne.s32.totalorder %s71, %s85
    %p87 = scmp.eq.s32.totalorder %s19, 0
    %p88 = por %p86, %p87
    %s90 = sadd.s32 %s89, 1
    %p93 = scmp.eq.s32.totalorder %s13, 1
    %p94 = scmp.ne.s32.totalorder %s89, %s91
    %p95 = scmp.eq.s32.totalorder %s13, 0
    %p96 = por %p94, %p95
    %p97 = scmp.ne.s32.totalorder %s89, %s91
    %p98 = scmp.eq.s32.totalorder %s18, 1
    %p99 = por %p97, %p98
    %p100 = scmp.ne.s32.totalorder %s91, %s92
    %p101 = scmp.eq.s32.totalorder %s18, 0
    %p102 = por %p100, %p101
    %p103 = scmp.ne.s32.totalorder %s91, %s92
    %p104 = scmp.eq.s32.totalorder %s19, 1
    %p105 = por %p103, %p104
    %p107 = scmp.ne.s32.totalorder %s92, %s106
    %p108 = scmp.eq.s32.totalorder %s19, 0
    %p109 = por %p107, %p108
    %s111 = sadd.s32 %s110, 1
    %p114 = scmp.eq.s32.totalorder %s13, 1
    %p115 = scmp.ne.s32.totalorder %s110, %s112
    %p116 = scmp.eq.s32.totalorder %s13, 0
    %p117 = por %p115, %p116
    %p118 = scmp.ne.s32.totalorder %s110, %s112
    %p119 = scmp.eq.s32.totalorder %s18, 1
    %p120 = por %p118, %p119
    %p121 = scmp.ne.s32.totalorder %s112, %s113
    %p122 = scmp.eq.s32.totalorder %s18, 0
    %p123 = por %p121, %p122
    %p124 = scmp.ne.s32.totalorder %s112, %s113
    %p125 = scmp.eq.s32.totalorder %s19, 1
    %p126 = por %p124, %p125
    %p128 = scmp.ne.s32.totalorder %s113, %s127
    %p129 = scmp.eq.s32.totalorder %s19, 0
    %p130 = por %p128, %p129
    %s132 = sadd.s32 %s131, 1
    %p135 = scmp.eq.s32.totalorder %s13, 1
    %p136 = scmp.ne.s32.totalorder %s131, %s133
    %p137 = scmp.eq.s32.totalorder %s13, 0
    %p138 = por %p136, %p137
    %p139 = scmp.ne.s32.totalorder %s131, %s133
    %p140 = scmp.eq.s32.totalorder %s18, 1
    %p141 = por %p139, %p140
    %p142 = scmp.ne.s32.totalorder %s133, %s134
    %p143 = scmp.eq.s32.totalorder %s18, 0
    %p144 = por %p142, %p143
    %p145 = scmp.ne.s32.totalorder %s133, %s134
    %p146 = scmp.eq.s32.totalorder %s19, 1
    %p147 = por %p145, %p146
    %p149 = scmp.ne.s32.totalorder %s134, %s148
    %p150 = scmp.eq.s32.totalorder %s19, 0
    %p151 = por %p149, %p150
    %s153 = sadd.s32 %s152, 1
    %p156 = scmp.eq.s32.totalorder %s13, 1
    %p157 = scmp.ne.s32.totalorder %s152, %s154
    %p158 = scmp.eq.s32.totalorder %s13, 0
    %p159 = por %p157, %p158
    %p160 = scmp.ne.s32.totalorder %s152, %s154
    %p161 = scmp.eq.s32.totalorder %s18, 1
    %p162 = por %p160, %p161
    %p163 = scmp.ne.s32.totalorder %s154, %s155
    %p164 = scmp.eq.s32.totalorder %s18, 0
    %p165 = por %p163, %p164
    %p166 = scmp.ne.s32.totalorder %s154, %s155
    %p167 = scmp.eq.s32.totalorder %s19, 1
    %p168 = por %p166, %p167
    %p170 = scmp.ne.s32.totalorder %s155, %s169
    %p171 = scmp.eq.s32.totalorder %s19, 0
    %p172 = por %p170, %p171
    %s173 = ssub.s32 %s13, %s20
    %p174 = scmp.eq.s32.totalorder %s173, 0
    %s176 = sadd.s32 %s175, 1
    %s177 = scalar_select %p174, %s175, %s176
    %p180 = pneg %p174
    %p181 = scmp.eq.s32.totalorder %s13, 1
    %p182 = por %p180, %p181
    %p183 = scmp.ne.s32.totalorder %s175, %s178
    %p184 = scmp.eq.s32.totalorder %s13, 0
    %p185 = por %p183, %p184
    %p186 = scmp.ne.s32.totalorder %s175, %s178
    %p187 = scmp.eq.s32.totalorder %s18, 1
    %p188 = por %p186, %p187
    %p189 = scmp.ne.s32.totalorder %s178, %s179
    %p190 = scmp.eq.s32.totalorder %s18, 0
    %p191 = por %p189, %p190
    %p192 = scmp.ne.s32.totalorder %s178, %s179
    %p193 = scmp.eq.s32.totalorder %s19, 1
    %p194 = por %p192, %p193
    %p196 = scmp.ne.s32.totalorder %s179, %s195
    %p197 = scmp.eq.s32.totalorder %s19, 0
    %p198 = por %p196, %p197
    %p199 = scmp.le.s32.totalorder 1, %s13
    %p200 = scmp.lt.s32.totalorder %s13, 3
    %p201 = pnand %p199, %p200
    %p202 = pneg %p201
    // Predicated region
    $region9: #{_lambda_.13} parent=5 // pred_check
      _
    $region10: #{_lambda_.13} parent=5 // pred_check_branch
      %204 = sbr.rel (%p201) target = $region12
    $region11: #{_lambda_.13} parent=5 // pred_region
      %s205 = ssub.s32 %s13, 1
      // Predicated region
      $region13: #{_lambda_.13} parent=11 // pred_check
        %p206 = pneg %p60
      $region14: #{_lambda_.13} parent=11 // pred_check_branch
        %208 = sbr.rel (%p206) target = $region16
      $region15: #{_lambda_.13} parent=11 // pred_region
        _
      $region16: #{_lambda_.13} parent=11 // pred_fallthru
        _
      // Predicated region
      $region17: #{_lambda_.13} parent=11 // pred_check
        %p209 = pneg %p81
      $region18: #{_lambda_.13} parent=11 // pred_check_branch
        %211 = sbr.rel (%p209) target = $region20
      $region19: #{_lambda_.13} parent=11 // pred_region
        _
      $region20: #{_lambda_.13} parent=11 // pred_fallthru
        _
      // Predicated region
      $region21: #{_lambda_.13} parent=11 // pred_check
        %p212 = pneg %p102
      $region22: #{_lambda_.13} parent=11 // pred_check_branch
        %214 = sbr.rel (%p212) target = $region24
      $region23: #{_lambda_.13} parent=11 // pred_region
        _
      $region24: #{_lambda_.13} parent=11 // pred_fallthru
        _
      // Predicated region
      $region25: #{_lambda_.13} parent=11 // pred_check
        %p215 = pneg %p123
      $region26: #{_lambda_.13} parent=11 // pred_check_branch
        %217 = sbr.rel (%p215) target = $region28
      $region27: #{_lambda_.13} parent=11 // pred_region
        _
      $region28: #{_lambda_.13} parent=11 // pred_fallthru
        _
      // Predicated region
      $region29: #{_lambda_.13} parent=11 // pred_check
        %p218 = pneg %p144
      $region30: #{_lambda_.13} parent=11 // pred_check_branch
        %220 = sbr.rel (%p218) target = $region32
      $region31: #{_lambda_.13} parent=11 // pred_region
        _
      $region32: #{_lambda_.13} parent=11 // pred_fallthru
        _
      // Predicated region
      $region33: #{_lambda_.13} parent=11 // pred_check
        %p221 = pneg %p165
      $region34: #{_lambda_.13} parent=11 // pred_check_branch
        %223 = sbr.rel (%p221) target = $region36
      $region35: #{_lambda_.13} parent=11 // pred_region
        _
      $region36: #{_lambda_.13} parent=11 // pred_fallthru
        _
    $region12: #{_lambda_.13} parent=5 // pred_fallthru
      _
    %p224 = scmp.lt.s32.totalorder %s13, 2
    // Predicated region
    $region37: #{_lambda_.13} parent=5 // pred_check
      %p225 = pneg %p224
    $region38: #{_lambda_.13} parent=5 // pred_check_branch
      %227 = sbr.rel (%p225) target = $region40
    $region39: #{_lambda_.13} parent=5 // pred_region
      // Predicated region
      $region41: #{_lambda_.13} parent=39 // pred_check
        %p228 = pneg %p33
      $region42: #{_lambda_.13} parent=39 // pred_check_branch
        %230 = sbr.rel (%p228) target = $region44
      $region43: #{_lambda_.13} parent=39 // pred_region
        %s231 = smul.u32 8, %s13
        %p232 = scmp.lt.s32.totalorder %s231, 15
        %s233 = scalar_select %p232, %s231, 15
        %s234 = smul.addr %s233, 4
        %s235 = scalar_lea.vmem %s0, %s234
        %s236 = smul.u32 8, %s13
      $region44: #{_lambda_.13} parent=39 // pred_fallthru
        _
    $region40: #{_lambda_.13} parent=5 // pred_fallthru
      _
    %p237 = scmp.le.s32.totalorder 1, %s13
    %p238 = scmp.lt.s32.totalorder %s13, 3
    %p239 = pnand %p237, %p238
    %p240 = pneg %p239
    // Predicated region
    $region45: #{_lambda_.13} parent=5 // pred_check
      _
    $region46: #{_lambda_.13} parent=5 // pred_check_branch
      %242 = sbr.rel (%p239) target = $region48
    $region47: #{_lambda_.13} parent=5 // pred_region
      %s243 = ssub.s32 %s13, 1
      %s244 = smul.u32 8, %s18
      %p245 = scmp.lt.s32.totalorder %s244, 15
      %s246 = scalar_select %p245, %s244, 15
      %s247 = smul.addr %s246, 4
      %s248 = scalar_lea.vmem %s0, %s247
      %p249 = pneg %p39
      %p250 = pneg %p36
      %p251 = pneg %p60
      %p252 = pneg %p57
      %p253 = pneg %p81
      %p254 = pneg %p78
      %p255 = pneg %p102
      %p256 = pneg %p99
      %p257 = pneg %p123
      %p258 = pneg %p120
      %p259 = pneg %p144
      %p260 = pneg %p141
      %p261 = pneg %p165
      %p262 = pneg %p162
      %p263 = pneg %p191
      %p264 = pneg %p188
      %s265 = smul.u32 8, %s18
      %p266 = scmp.lt.s32.totalorder %s265, 15
      %s267 = scalar_select %p266, %s265, 15
      %s268 = smul.addr %s267, 8
      %s269 = scalar_lea.vmem %s7, %s268
      %s270 = smul.u32 8, %s18
      %p271 = scmp.lt.s32.totalorder %s270, 15
      %s272 = scalar_select %p271, %s270, 15
      %s273 = smul.addr %s272, 4
      %s274 = scalar_lea.vmem %s0, %s273
      %s275 = smul.u32 8, %s18
      %s276 = smul.u32 8, %s18
      %p277 = scmp.lt.s32.totalorder %s276, 15
      %s278 = scalar_select %p277, %s276, 15
      %s279 = smul.addr %s278, 8
      %s280 = scalar_lea.vmem %s7, %s279
      %s281 = smul.u32 8, %s18
      %v283 = vld [vmem:[%s274] sm:$0xf]
      %v284 = vld [vmem:[%s274 + $0x4] sm:$0xf]
      %v285 = vld [vmem:[%s274 + $0x8] sm:$0xf]
      %v286 = vld [vmem:[%s274 + $0xc] sm:$0xf]
      %v287 = vld [vmem:[%s274 + $0x10] sm:$0xf]
      %v288 = vld [vmem:[%s274 + $0x14] sm:$0xf]
      %v289 = vld [vmem:[%s274 + $0x18] sm:$0xf]
      %v290 = vld [vmem:[%s274 + $0x1c] sm:$0xf]
      %v291 = vld [vmem:[%s1] sm:$0xf]
      %v292 = vld [vmem:[%s1 + $0x4] sm:$0xf]
      %v293 = vld [vmem:[%s1 + $0x8] sm:$0xf]
      %v294 = vld [vmem:[%s1 + $0xc] sm:$0xf]
      %v295 = vld [vmem:[%s1 + $0x10] sm:$0xf]
      %v296 = vld [vmem:[%s1 + $0x14] sm:$0xf]
      %v297 = vld [vmem:[%s1 + $0x18] sm:$0xf]
      %v298 = vld [vmem:[%s1 + $0x1c] sm:$0xf]
      %v299 = vld [vmem:[%s1 + $0x20] sm:$0xf]
      %v300 = vld [vmem:[%s1 + $0x24] sm:$0xf]
      %v301 = vld [vmem:[%s1 + $0x28] sm:$0xf]
      %v302 = vld [vmem:[%s1 + $0x2c] sm:$0xf]
      %v303 = vld [vmem:[%s1 + $0x30] sm:$0xf]
      %v304 = vld [vmem:[%s1 + $0x34] sm:$0xf]
      %v305 = vld [vmem:[%s1 + $0x38] sm:$0xf]
      %v306 = vld [vmem:[%s1 + $0x3c] sm:$0xf]
      %v307 = vld [vmem:[%s2] sm:$0x1]
      %v309 = vlaneseq
      %v310 = vshrl.u32 %v309, 7
      %v311 = vsub.s32 0, %v310
      %v312 = vrot.slane %v307, %v311
      %v322 = vunpack.c.l.b16 %v283
      %v323 = vunpack.c.l.b16 %v284
      %v324 = vunpack.c.l.b16 %v285
      %v325 = vunpack.c.l.b16 %v286
      %v326 = vunpack.c.l.b16 %v287
      %v327 = vunpack.c.l.b16 %v288
      %v328 = vunpack.c.l.b16 %v289
      %v329 = vunpack.c.l.b16 %v290
      %v330 = vpack.c.b16 %v323, %v322
      %v331 = vpack.c.b16 %v325, %v324
      %v332 = vpack.c.b16 %v327, %v326
      %v333 = vpack.c.b16 %v329, %v328
      %v354 = vunpack.c.l.b16 %v291
      %v355 = vunpack.c.l.b16 %v292
      %v356 = vunpack.c.l.b16 %v293
      %v357 = vunpack.c.l.b16 %v294
      %v358 = vunpack.c.l.b16 %v295
      %v359 = vunpack.c.l.b16 %v296
      %v360 = vunpack.c.l.b16 %v297
      %v361 = vunpack.c.l.b16 %v298
      %v362 = vunpack.c.l.b16 %v299
      %v363 = vunpack.c.l.b16 %v300
      %v364 = vunpack.c.l.b16 %v301
      %v365 = vunpack.c.l.b16 %v302
      %v366 = vunpack.c.l.b16 %v303
      %v367 = vunpack.c.l.b16 %v304
      %v368 = vunpack.c.l.b16 %v305
      %v369 = vunpack.c.l.b16 %v306
      %v370 = vpack.c.b16 %v355, %v354
      %v371 = vpack.c.b16 %v357, %v356
      %v372 = vpack.c.b16 %v359, %v358
      %v373 = vpack.c.b16 %v361, %v360
      %v374 = vpack.c.b16 %v363, %v362
      %v375 = vpack.c.b16 %v365, %v364
      %v376 = vpack.c.b16 %v367, %v366
      %v377 = vpack.c.b16 %v369, %v368
      %386 = vmatprep.subr.bf16.mxu0 0
      %387 = vmatpush1.bf16.msra.mxu0 %v377
      %388 = vmatprep.subr.bf16.mxu0 0
      %389 = vmatpush1.bf16.msra.mxu0 %v376
      %390 = vmatprep.subr.bf16.mxu0 0
      %391 = vmatpush1.bf16.msra.mxu0 %v375
      %392 = vmatprep.subr.bf16.mxu0 0
      %393 = vmatpush1.bf16.msra.mxu0 %v374
      %394 = vmatprep.subr.bf16.mxu0 0
      %395 = vmatpush1.bf16.msra.mxu0 %v373
      %396 = vmatprep.subr.bf16.mxu0 0
      %397 = vmatpush1.bf16.msra.mxu0 %v372
      %398 = vmatprep.subr.bf16.mxu0 0
      %399 = vmatpush1.bf16.msra.mxu0 %v371
      %400 = vmatprep.subr.bf16.mxu0 0
      %401 = vmatpush1.bf16.msra.mxu0 %v370
      %402 = vmatprep.subr.bf16.mxu0 0
      %403 = vmatpush2.bf16.msra.mxu0 0
      %404 = vmatprep.subr.bf16.mxu0 0
      %405 = vmatpush2.bf16.msra.mxu0 0
      %406 = vmatprep.subr.bf16.mxu0 0
      %407 = vmatpush2.bf16.msra.mxu0 0
      %408 = vmatprep.subr.bf16.mxu0 0
      %409 = vmatpush2.bf16.msra.mxu0 0
      %410 = vmatprep.subr.bf16.mxu0 0
      %411 = vmatpush2.bf16.msra.mxu0 0
      %412 = vmatprep.subr.bf16.mxu0 0
      %413 = vmatpush2.bf16.msra.mxu0 0
      %414 = vmatprep.subr.bf16.mxu0 0
      %415 = vmatpush2.bf16.msra.mxu0 0
      %416 = vmatprep.subr.bf16.mxu0 0
      %417 = vmatpush2.bf16.msra.mxu0 0
      %418 = vmatprep.mubr.bf16.mxu0 0
      %419 = vmatmul.mubr.bf16.gmra.mxu0 %v330
      %v420 = vpop.f32.mrf.mxu0
      %v421 = vadd.f32 %v312, %v420
      %v422 = vpop.f32.mrf.mxu0
      %v423 = vpop.f32.mrf.mxu0
      %v424 = vadd.f32 %v312, %v423
      %v425 = vpop.f32.mrf.mxu0
      %426 = vmatprep.mubr.bf16.mxu0 0
      %427 = vmatmul.mubr.bf16.gmra.mxu0 %v331
      %v428 = vpop.f32.mrf.mxu0
      %v429 = vadd.f32 %v312, %v428
      %v430 = vpop.f32.mrf.mxu0
      %v431 = vpop.f32.mrf.mxu0
      %v432 = vadd.f32 %v312, %v431
      %v433 = vpop.f32.mrf.mxu0
      %434 = vmatprep.mubr.bf16.mxu0 0
      %435 = vmatmul.mubr.bf16.gmra.mxu0 %v332
      %v436 = vpop.f32.mrf.mxu0
      %v437 = vadd.f32 %v312, %v436
      %v438 = vpop.f32.mrf.mxu0
      %v439 = vpop.f32.mrf.mxu0
      %v440 = vadd.f32 %v312, %v439
      %v441 = vpop.f32.mrf.mxu0
      %442 = vmatprep.mubr.bf16.mxu0 0
      %443 = vmatmul.mubr.bf16.gmra.mxu0 %v333
      %v444 = vpop.f32.mrf.mxu0
      %v445 = vadd.f32 %v312, %v444
      %v446 = vpop.f32.mrf.mxu0
      %v447 = vpop.f32.mrf.mxu0
      %v448 = vadd.f32 %v312, %v447
      %v449 = vpop.f32.mrf.mxu0
      %450 = vdwg.mxu0
      %v451 = vmax.f32 %v421, 0.0
      %v452 = vmax.f32 %v424, 0.0
      %v453 = vmax.f32 %v429, 0.0
      %v454 = vmax.f32 %v432, 0.0
      %v455 = vmax.f32 %v437, 0.0
      %v456 = vmax.f32 %v440, 0.0
      %v457 = vmax.f32 %v445, 0.0
      %v458 = vmax.f32 %v448, 0.0
      %v459 = vpack.c.bf16 %v452, %v451
      %v460 = vpack.c.bf16 %v454, %v453
      %v461 = vpack.c.bf16 %v456, %v455
      %v462 = vpack.c.bf16 %v458, %v457
      %v463 = vld [vmem:[%s3] sm:$0xf]
      %v464 = vld [vmem:[%s3 + $0x4] sm:$0xf]
      %v465 = vld [vmem:[%s3 + $0x8] sm:$0xf]
      %v466 = vld [vmem:[%s3 + $0xc] sm:$0xf]
      %v467 = vld [vmem:[%s3 + $0x10] sm:$0xf]
      %v468 = vld [vmem:[%s3 + $0x14] sm:$0xf]
      %v469 = vld [vmem:[%s3 + $0x18] sm:$0xf]
      %v470 = vld [vmem:[%s3 + $0x1c] sm:$0xf]
      %v471 = vld [vmem:[%s3 + $0x20] sm:$0xf]
      %v472 = vld [vmem:[%s3 + $0x24] sm:$0xf]
      %v473 = vld [vmem:[%s3 + $0x28] sm:$0xf]
      %v474 = vld [vmem:[%s3 + $0x2c] sm:$0xf]
      %v475 = vld [vmem:[%s3 + $0x30] sm:$0xf]
      %v476 = vld [vmem:[%s3 + $0x34] sm:$0xf]
      %v477 = vld [vmem:[%s3 + $0x38] sm:$0xf]
      %v478 = vld [vmem:[%s3 + $0x3c] sm:$0xf]
      %v479 = vld [vmem:[%s4] sm:$0x1]
      %v481 = vlaneseq
      %v482 = vshrl.u32 %v481, 7
      %v483 = vsub.s32 0, %v482
      %v484 = vrot.slane %v479, %v483
      %v502 = vunpack.c.l.b16 %v463
      %v503 = vunpack.c.l.b16 %v464
      %v504 = vunpack.c.l.b16 %v465
      %v505 = vunpack.c.l.b16 %v466
      %v506 = vunpack.c.l.b16 %v467
      %v507 = vunpack.c.l.b16 %v468
      %v508 = vunpack.c.l.b16 %v469
      %v509 = vunpack.c.l.b16 %v470
      %v510 = vunpack.c.l.b16 %v471
      %v511 = vunpack.c.l.b16 %v472
      %v512 = vunpack.c.l.b16 %v473
      %v513 = vunpack.c.l.b16 %v474
      %v514 = vunpack.c.l.b16 %v475
      %v515 = vunpack.c.l.b16 %v476
      %v516 = vunpack.c.l.b16 %v477
      %v517 = vunpack.c.l.b16 %v478
      %v518 = vpack.c.b16 %v503, %v502
      %v519 = vpack.c.b16 %v505, %v504
      %v520 = vpack.c.b16 %v507, %v506
      %v521 = vpack.c.b16 %v509, %v508
      %v522 = vpack.c.b16 %v511, %v510
      %v523 = vpack.c.b16 %v513, %v512
      %v524 = vpack.c.b16 %v515, %v514
      %v525 = vpack.c.b16 %v517, %v516
      %534 = vmatprep.subr.bf16.mxu0 0
      %535 = vmatpush1.bf16.msra.mxu0 %v525
      %536 = vmatprep.subr.bf16.mxu0 0
      %537 = vmatpush1.bf16.msra.mxu0 %v524
      %538 = vmatprep.subr.bf16.mxu0 0
      %539 = vmatpush1.bf16.msra.mxu0 %v523
      %540 = vmatprep.subr.bf16.mxu0 0
      %541 = vmatpush1.bf16.msra.mxu0 %v522
      %542 = vmatprep.subr.bf16.mxu0 0
      %543 = vmatpush1.bf16.msra.mxu0 %v521
      %544 = vmatprep.subr.bf16.mxu0 0
      %545 = vmatpush1.bf16.msra.mxu0 %v520
      %546 = vmatprep.subr.bf16.mxu0 0
      %547 = vmatpush1.bf16.msra.mxu0 %v519
      %548 = vmatprep.subr.bf16.mxu0 0
      %549 = vmatpush1.bf16.msra.mxu0 %v518
      %550 = vmatprep.subr.bf16.mxu0 0
      %551 = vmatpush2.bf16.msra.mxu0 0
      %552 = vmatprep.subr.bf16.mxu0 0
      %553 = vmatpush2.bf16.msra.mxu0 0
      %554 = vmatprep.subr.bf16.mxu0 0
      %555 = vmatpush2.bf16.msra.mxu0 0
      %556 = vmatprep.subr.bf16.mxu0 0
      %557 = vmatpush2.bf16.msra.mxu0 0
      %558 = vmatprep.subr.bf16.mxu0 0
      %559 = vmatpush2.bf16.msra.mxu0 0
      %560 = vmatprep.subr.bf16.mxu0 0
      %561 = vmatpush2.bf16.msra.mxu0 0
      %562 = vmatprep.subr.bf16.mxu0 0
      %563 = vmatpush2.bf16.msra.mxu0 0
      %564 = vmatprep.subr.bf16.mxu0 0
      %565 = vmatpush2.bf16.msra.mxu0 0
      %566 = vmatprep.mubr.bf16.mxu0 0
      %567 = vmatmul.mubr.bf16.gmra.mxu0 %v459
      %v568 = vpop.f32.mrf.mxu0
      %v569 = vadd.f32 %v484, %v568
      %v570 = vpop.f32.mrf.mxu0
      %v571 = vpop.f32.mrf.mxu0
      %v572 = vadd.f32 %v484, %v571
      %v573 = vpop.f32.mrf.mxu0
      %574 = vmatprep.mubr.bf16.mxu0 0
      %575 = vmatmul.mubr.bf16.gmra.mxu0 %v460
      %v576 = vpop.f32.mrf.mxu0
      %v577 = vadd.f32 %v484, %v576
      %v578 = vpop.f32.mrf.mxu0
      %v579 = vpop.f32.mrf.mxu0
      %v580 = vadd.f32 %v484, %v579
      %v581 = vpop.f32.mrf.mxu0
      %582 = vmatprep.mubr.bf16.mxu0 0
      %583 = vmatmul.mubr.bf16.gmra.mxu0 %v461
      %v584 = vpop.f32.mrf.mxu0
      %v585 = vadd.f32 %v484, %v584
      %v586 = vpop.f32.mrf.mxu0
      %v587 = vpop.f32.mrf.mxu0
      %v588 = vadd.f32 %v484, %v587
      %v589 = vpop.f32.mrf.mxu0
      %590 = vmatprep.mubr.bf16.mxu0 0
      %591 = vmatmul.mubr.bf16.gmra.mxu0 %v462
      %v592 = vpop.f32.mrf.mxu0
      %v593 = vadd.f32 %v484, %v592
      %v594 = vpop.f32.mrf.mxu0
      %v595 = vpop.f32.mrf.mxu0
      %v596 = vadd.f32 %v484, %v595
      %v597 = vpop.f32.mrf.mxu0
      %598 = vdwg.mxu0
      %v599 = vmax.f32 %v569, 0.0
      %v600 = vmax.f32 %v572, 0.0
      %v601 = vmax.f32 %v577, 0.0
      %v602 = vmax.f32 %v580, 0.0
      %v603 = vmax.f32 %v585, 0.0
      %v604 = vmax.f32 %v588, 0.0
      %v605 = vmax.f32 %v593, 0.0
      %v606 = vmax.f32 %v596, 0.0
      %v607 = vpack.c.bf16 %v600, %v599
      %v608 = vpack.c.bf16 %v602, %v601
      %v609 = vpack.c.bf16 %v604, %v603
      %v610 = vpack.c.bf16 %v606, %v605
      %v611 = vld [vmem:[%s5] sm:$0xf]
      %v612 = vld [vmem:[%s5 + $0x4] sm:$0xf]
      %v613 = vld [vmem:[%s5 + $0x8] sm:$0xf]
      %v614 = vld [vmem:[%s5 + $0xc] sm:$0xf]
      %v615 = vld [vmem:[%s5 + $0x10] sm:$0xf]
      %v616 = vld [vmem:[%s5 + $0x14] sm:$0xf]
      %v617 = vld [vmem:[%s5 + $0x18] sm:$0xf]
      %v618 = vld [vmem:[%s5 + $0x1c] sm:$0xf]
      %v619 = vld [vmem:[%s5 + $0x20] sm:$0xf]
      %v620 = vld [vmem:[%s5 + $0x24] sm:$0xf]
      %v621 = vld [vmem:[%s5 + $0x28] sm:$0xf]
      %v622 = vld [vmem:[%s5 + $0x2c] sm:$0xf]
      %v623 = vld [vmem:[%s5 + $0x30] sm:$0xf]
      %v624 = vld [vmem:[%s5 + $0x34] sm:$0xf]
      %v625 = vld [vmem:[%s5 + $0x38] sm:$0xf]
      %v626 = vld [vmem:[%s5 + $0x3c] sm:$0xf]
      %v627 = vld [vmem:[%s6] sm:$0x1]
      %v629 = vlaneseq
      %v630 = vshrl.u32 %v629, 7
      %v631 = vsub.s32 0, %v630
      %v632 = vrot.slane %v627, %v631
      %v650 = vunpack.c.l.b16 %v611
      %v651 = vunpack.c.l.b16 %v612
      %v652 = vunpack.c.l.b16 %v613
      %v653 = vunpack.c.l.b16 %v614
      %v654 = vunpack.c.l.b16 %v615
      %v655 = vunpack.c.l.b16 %v616
      %v656 = vunpack.c.l.b16 %v617
      %v657 = vunpack.c.l.b16 %v618
      %v658 = vunpack.c.l.b16 %v619
      %v659 = vunpack.c.l.b16 %v620
      %v660 = vunpack.c.l.b16 %v621
      %v661 = vunpack.c.l.b16 %v622
      %v662 = vunpack.c.l.b16 %v623
      %v663 = vunpack.c.l.b16 %v624
      %v664 = vunpack.c.l.b16 %v625
      %v665 = vunpack.c.l.b16 %v626
      %v666 = vpack.c.b16 %v651, %v650
      %v667 = vpack.c.b16 %v653, %v652
      %v668 = vpack.c.b16 %v655, %v654
      %v669 = vpack.c.b16 %v657, %v656
      %v670 = vpack.c.b16 %v659, %v658
      %v671 = vpack.c.b16 %v661, %v660
      %v672 = vpack.c.b16 %v663, %v662
      %v673 = vpack.c.b16 %v665, %v664
      %682 = vmatprep.subr.bf16.mxu0 0
      %683 = vmatpush1.bf16.msra.mxu0 %v673
      %684 = vmatprep.subr.bf16.mxu0 0
      %685 = vmatpush1.bf16.msra.mxu0 %v672
      %686 = vmatprep.subr.bf16.mxu0 0
      %687 = vmatpush1.bf16.msra.mxu0 %v671
      %688 = vmatprep.subr.bf16.mxu0 0
      %689 = vmatpush1.bf16.msra.mxu0 %v670
      %690 = vmatprep.subr.bf16.mxu0 0
      %691 = vmatpush1.bf16.msra.mxu0 %v669
      %692 = vmatprep.subr.bf16.mxu0 0
      %693 = vmatpush1.bf16.msra.mxu0 %v668
      %694 = vmatprep.subr.bf16.mxu0 0
      %695 = vmatpush1.bf16.msra.mxu0 %v667
      %696 = vmatprep.subr.bf16.mxu0 0
      %697 = vmatpush1.bf16.msra.mxu0 %v666
      %698 = vmatprep.subr.bf16.mxu0 0
      %699 = vmatpush2.bf16.msra.mxu0 0
      %700 = vmatprep.subr.bf16.mxu0 0
      %701 = vmatpush2.bf16.msra.mxu0 0
      %702 = vmatprep.subr.bf16.mxu0 0
      %703 = vmatpush2.bf16.msra.mxu0 0
      %704 = vmatprep.subr.bf16.mxu0 0
      %705 = vmatpush2.bf16.msra.mxu0 0
      %706 = vmatprep.subr.bf16.mxu0 0
      %707 = vmatpush2.bf16.msra.mxu0 0
      %708 = vmatprep.subr.bf16.mxu0 0
      %709 = vmatpush2.bf16.msra.mxu0 0
      %710 = vmatprep.subr.bf16.mxu0 0
      %711 = vmatpush2.bf16.msra.mxu0 0
      %712 = vmatprep.subr.bf16.mxu0 0
      %713 = vmatpush2.bf16.msra.mxu0 0
      %714 = vmatprep.mubr.bf16.mxu0 0
      %715 = vmatmul.mubr.bf16.gmra.mxu0 %v607
      %v716 = vpop.f32.mrf.mxu0
      %v717 = vadd.f32 %v632, %v716
      %v718 = vpop.f32.mrf.mxu0
      %v719 = vpop.f32.mrf.mxu0
      %v720 = vadd.f32 %v632, %v719
      %v721 = vpop.f32.mrf.mxu0
      %722 = vmatprep.mubr.bf16.mxu0 0
      %723 = vmatmul.mubr.bf16.gmra.mxu0 %v608
      %v724 = vpop.f32.mrf.mxu0
      %v725 = vadd.f32 %v632, %v724
      %v726 = vpop.f32.mrf.mxu0
      %v727 = vpop.f32.mrf.mxu0
      %v728 = vadd.f32 %v632, %v727
      %v729 = vpop.f32.mrf.mxu0
      %730 = vmatprep.mubr.bf16.mxu0 0
      %731 = vmatmul.mubr.bf16.gmra.mxu0 %v609
      %v732 = vpop.f32.mrf.mxu0
      %v733 = vadd.f32 %v632, %v732
      %v734 = vpop.f32.mrf.mxu0
      %v735 = vpop.f32.mrf.mxu0
      %v736 = vadd.f32 %v632, %v735
      %v737 = vpop.f32.mrf.mxu0
      %738 = vmatprep.mubr.bf16.mxu0 0
      %739 = vmatmul.mubr.bf16.gmra.mxu0 %v610
      %v740 = vpop.f32.mrf.mxu0
      %v741 = vadd.f32 %v632, %v740
      %v742 = vpop.f32.mrf.mxu0
      %v743 = vpop.f32.mrf.mxu0
      %v744 = vadd.f32 %v632, %v743
      %v745 = vpop.f32.mrf.mxu0
      %746 = vdwg.mxu0
      %v747 = vlaneseq
      %v748 = vand.u32 %v747, 127
      %vm749 = vcmp.lt.s32.totalorder %v748, 6
      %v750 = vsel %vm749, %v717, -1e+30
      %v751 = vsel %vm749, %v720, -1e+30
      %v752 = vsel %vm749, %v725, -1e+30
      %v753 = vsel %vm749, %v728, -1e+30
      %v754 = vsel %vm749, %v733, -1e+30
      %v755 = vsel %vm749, %v736, -1e+30
      %v756 = vsel %vm749, %v741, -1e+30
      %v757 = vsel %vm749, %v744, -1e+30
      %758 = vmax.xlane.f32.xlu0 %v750
      %v759 = vpop.xlane.xlu0 %758
      %760 = vmax.xlane.f32.xlu0 %v751
      %v761 = vpop.xlane.xlu0 %760
      %762 = vmax.xlane.f32.xlu0 %v752
      %v763 = vpop.xlane.xlu0 %762
      %764 = vmax.xlane.f32.xlu0 %v753
      %v765 = vpop.xlane.xlu0 %764
      %766 = vmax.xlane.f32.xlu0 %v754
      %v767 = vpop.xlane.xlu0 %766
      %768 = vmax.xlane.f32.xlu0 %v755
      %v769 = vpop.xlane.xlu0 %768
      %770 = vmax.xlane.f32.xlu0 %v756
      %v771 = vpop.xlane.xlu0 %770
      %772 = vmax.xlane.f32.xlu0 %v757
      %v773 = vpop.xlane.xlu0 %772
      %v774 = vsub.f32 %v750, %v759
      %v775 = vsub.f32 %v751, %v761
      %v776 = vsub.f32 %v752, %v763
      %v777 = vsub.f32 %v753, %v765
      %v778 = vsub.f32 %v754, %v767
      %v779 = vsub.f32 %v755, %v769
      %v780 = vsub.f32 %v756, %v771
      %v781 = vsub.f32 %v757, %v773
      %v782 = vmul.f32 %v774, 1.442695
      %v783 = vpow.pop %v782
      %v784 = vmul.f32 %v775, 1.442695
      %v785 = vpow.pop %v784
      %v786 = vmul.f32 %v776, 1.442695
      %v787 = vpow.pop %v786
      %v788 = vmul.f32 %v777, 1.442695
      %v789 = vpow.pop %v788
      %v790 = vmul.f32 %v778, 1.442695
      %v791 = vpow.pop %v790
      %v792 = vmul.f32 %v779, 1.442695
      %v793 = vpow.pop %v792
      %v794 = vmul.f32 %v780, 1.442695
      %v795 = vpow.pop %v794
      %v796 = vmul.f32 %v781, 1.442695
      %v797 = vpow.pop %v796
      %798 = vadd.xlane.f32.xlu0 %v783
      %v799 = vpop.xlane.xlu0 %798
      %800 = vadd.xlane.f32.xlu0 %v785
      %v801 = vpop.xlane.xlu0 %800
      %802 = vadd.xlane.f32.xlu0 %v787
      %v803 = vpop.xlane.xlu0 %802
      %804 = vadd.xlane.f32.xlu0 %v789
      %v805 = vpop.xlane.xlu0 %804
      %806 = vadd.xlane.f32.xlu0 %v791
      %v807 = vpop.xlane.xlu0 %806
      %808 = vadd.xlane.f32.xlu0 %v793
      %v809 = vpop.xlane.xlu0 %808
      %810 = vadd.xlane.f32.xlu0 %v795
      %v811 = vpop.xlane.xlu0 %810
      %812 = vadd.xlane.f32.xlu0 %v797
      %v813 = vpop.xlane.xlu0 %812
      %v814 = vlog2.pop %v799
      %v815 = vmul.f32 %v814, 0.6931472
      %v816 = vlog2.pop %v801
      %v817 = vmul.f32 %v816, 0.6931472
      %v818 = vlog2.pop %v803
      %v819 = vmul.f32 %v818, 0.6931472
      %v820 = vlog2.pop %v805
      %v821 = vmul.f32 %v820, 0.6931472
      %v822 = vlog2.pop %v807
      %v823 = vmul.f32 %v822, 0.6931472
      %v824 = vlog2.pop %v809
      %v825 = vmul.f32 %v824, 0.6931472
      %v826 = vlog2.pop %v811
      %v827 = vmul.f32 %v826, 0.6931472
      %v828 = vlog2.pop %v813
      %v829 = vmul.f32 %v828, 0.6931472
      %v830 = vsub.f32 %v774, %v815
      %v831 = vsub.f32 %v775, %v817
      %v832 = vsub.f32 %v776, %v819
      %v833 = vsub.f32 %v777, %v821
      %v834 = vsub.f32 %v778, %v823
      %v835 = vsub.f32 %v779, %v825
      %v836 = vsub.f32 %v780, %v827
      %v837 = vsub.f32 %v781, %v829
      %838 = vst [vmem:[%s280] sm:$0xff] %v830
      %839 = vst [vmem:[%s280 + $0x8] sm:$0xff] %v831
      %840 = vst [vmem:[%s280 + $0x10] sm:$0xff] %v832
      %841 = vst [vmem:[%s280 + $0x18] sm:$0xff] %v833
      %842 = vst [vmem:[%s280 + $0x20] sm:$0xff] %v834
      %843 = vst [vmem:[%s280 + $0x28] sm:$0xff] %v835
      %844 = vst [vmem:[%s280 + $0x30] sm:$0xff] %v836
      %845 = vst [vmem:[%s280 + $0x38] sm:$0xff] %v837
      %s846 = smul.u32 8, %s18
      %p847 = scmp.lt.s32.totalorder %s846, 15
      %s848 = scalar_select %p847, %s846, 15
      %s849 = smul.addr %s848, 8
      %s850 = scalar_lea.vmem %s7, %s849
      // Predicated region
      $region49: #{_lambda_.13} parent=47 // pred_check
        %p851 = pneg %p188
      $region50: #{_lambda_.13} parent=47 // pred_check_branch
        %853 = sbr.rel (%p851) target = $region52
      $region51: #{_lambda_.13} parent=47 // pred_region
        %s854 = smul.u32 8, %s18
      $region52: #{_lambda_.13} parent=47 // pred_fallthru
        _
    $region48: #{_lambda_.13} parent=5 // pred_fallthru
      _
    %p855 = scmp.le.s32.totalorder 2, %s13
    // Predicated region
    $region53: #{_lambda_.13} parent=5 // pred_check
      %p856 = pneg %p855
    $region54: #{_lambda_.13} parent=5 // pred_check_branch
      %858 = sbr.rel (%p856) target = $region56
    $region55: #{_lambda_.13} parent=5 // pred_region
      %s859 = ssub.s32 %s13, 2
      // Predicated region
      $region57: #{_lambda_.13} parent=55 // pred_check
        %p860 = pneg %p194
      $region58: #{_lambda_.13} parent=55 // pred_check_branch
        %862 = sbr.rel (%p860) target = $region60
      $region59: #{_lambda_.13} parent=55 // pred_region
        %s863 = smul.u32 8, %s19
        %p864 = scmp.lt.s32.totalorder %s863, 15
        %s865 = scalar_select %p864, %s863, 15
        %s866 = smul.addr %s865, 8
        %s867 = scalar_lea.vmem %s7, %s866
      $region60: #{_lambda_.13} parent=55 // pred_fallthru
        _
    $region56: #{_lambda_.13} parent=5 // pred_fallthru
      _
  $region6: #{_lambda_.13} parent=0 // loop_footer
    %s17 = sadd.s32 1, %s13
  $region7: #{_lambda_.13} parent=0 // loop_footer_branch
    %12 = sbr.rel target = $region3
  $region8: #{_lambda_.13} parent=0 // loop_exit
    _

</llo_original>
